<compile_context>
chip_gen: v6e
topology: v6e:2x2x1
jax: 0.10.0
libtpu: 0.0.40
codegen_flags: <defaults>
</compile_context>

<pallas_src>
import functools

import jax
import jax.numpy as jnp
from jax import lax
from jax.experimental import pallas as pl
from jax.experimental.pallas import tpu as pltpu


def _round_up(x, m):
    return (x + m - 1) // m * m


def _vmem_estimate(T, BT, E, Hp, Op):
    """Rough per-tile VMEM bytes: double-buffered I/O blocks + persistent scratch + weights."""
    io = 2 * T * BT * (E * 2 + 4 + Op * 2)              # emb bf16, mask f32, out bf16
    scratch = T * BT * (2 * 4 * Hp * 2 + 2 * Hp * 2)    # gin_f+gin_b bf16, hf+hb bf16
    weights = 2 * 2 * (2 * E * 4 * Hp + 2 * Hp * 4 * Hp + 2 * Hp * Op + 8 * Hp + Op)
    return io + scratch + weights


def _choose_bt(B, T, E, Hp, Op, budget=48 * 1024 * 1024):
    """Batch tile: as large as possible (MXU rows), >=2 programs when batch allows
    (v7x 2nd TC), shrunk to fit a conservative (v7x-safe) VMEM budget."""
    Bp = _round_up(max(B, 1), 8)
    if Bp >= 256:
        bt = 128
    elif Bp >= 16:
        bt = _round_up(Bp // 2, 8)      # two tiles -> two grid programs
    else:
        bt = Bp
    while bt > 8 and _vmem_estimate(T, bt, E, Hp, Op) > budget:
        bt = _round_up(bt // 2, 8)
    return bt


def _bilstm_fc_kernel(emb_ref, mask_ref,
                      w_in_f_ref, w_in_b_ref, b_in_f_ref, b_in_b_ref,
                      whh_f_ref, whh_b_ref,
                      wfc_f_ref, wfc_b_ref, bfc_ref,
                      out_ref,
                      gin_f_buf, gin_b_buf, hf_buf, hb_buf,
                      *, T, BT, E, Hp, Op, unroll):
    """One batch tile: (T, BT, E) -> (T, BT, Op) emissions (bf16).

    emb_ref   : (T, BT, E)    bf16   time-major embedded input (tile-major host layout)
    mask_ref  : (T, BT, 1)    f32    1.0 where t < length[b] else 0.0
    w_in_*    : (E, 4*Hp)     bf16   input weights per direction, gate blocks lane-aligned
    b_in_*    : (1, 4*Hp)     f32    b_ih + b_hh per direction
    whh_*     : (Hp, 4*Hp)    bf16   recurrent weights per direction
    wfc_*     : (Hp, Op) bf16, bfc (1, Op) f32
    gin_*_buf : (T, BT, 4*Hp) bf16   precomputed input-side gates (per direction)
    hf/hb_buf : (T, BT, Hp)   bf16   per-direction hidden outputs
    """
    G4 = 4 * Hp

    # ---- 1) input projection hoisted out of the recurrence (big MXU matmuls,
    #         biases folded in); stored per-direction in bf16. ----
    emb_flat = emb_ref[...].reshape(T * BT, E)
    gin_f = jnp.dot(emb_flat, w_in_f_ref[...],
                    preferred_element_type=jnp.float32) + b_in_f_ref[...]
    gin_b = jnp.dot(emb_flat, w_in_b_ref[...],
                    preferred_element_type=jnp.float32) + b_in_b_ref[...]
    gin_f_buf[...] = gin_f.reshape(T, BT, G4).astype(gin_f_buf.dtype)
    gin_b_buf[...] = gin_b.reshape(T, BT, G4).astype(gin_b_buf.dtype)

    # ---- 2) fused fwd/bwd recurrence: per step two (BT,Hp)x(Hp,4Hp) matmuls. ----
    def cell(gates_in_b, m, h_b, c, whh_ref):
        # MXU accumulation in f32; h is carried in bf16 (it is the matmul operand).
        gates = gates_in_b.astype(jnp.float32) + jnp.dot(
            h_b, whh_ref[...], preferred_element_type=jnp.float32)
        gb = gates.astype(jnp.bfloat16)          # EUP bf16 path on v6e/v7x
        i_g = jax.nn.sigmoid(gb[:, 0:Hp])        # lane-aligned slices (Hp % 128 == 0)
        f_g = jax.nn.sigmoid(gb[:, Hp:2 * Hp])
        g_g = jnp.tanh(gb[:, 2 * Hp:3 * Hp])
        o_g = jax.nn.sigmoid(gb[:, 3 * Hp:4 * Hp])
        c_new = f_g.astype(jnp.float32) * c + (i_g * g_g).astype(jnp.float32)
        h_new = o_g * jnp.tanh(c_new.astype(jnp.bfloat16))           # bf16
        # packed-sequence masking: freeze state at padded steps
        m_b = m.astype(jnp.bfloat16)
        h_next = h_b + m_b * (h_new - h_b)       # bf16
        c_next = c + m * (c_new - c)             # f32
        return h_next, c_next, m_b * h_new       # zero output at padded steps

    zeros_h = jnp.zeros((BT, Hp), jnp.bfloat16)
    zeros_c = jnp.zeros((BT, Hp), jnp.float32)

    def body(s, carry):
        hf, cf, hb, cb = carry
        tb = T - 1 - s
        # forward chain at t = s
        hf, cf, of = cell(gin_f_buf[s], mask_ref[s], hf, cf, whh_f_ref)
        hf_buf[s] = of
        # backward chain at t = T-1-s (independent; starts fresh at last valid token)
        hb, cb, ob = cell(gin_b_buf[tb], mask_ref[tb], hb, cb, whh_b_ref)
        hb_buf[tb] = ob
        return hf, cf, hb, cb

    lax.fori_loop(0, T, body, (zeros_h, zeros_c, zeros_h, zeros_c), unroll=unroll)

    # ---- 3) fc without concat/reshape-copy: two (T*BT,Hp)x(Hp,Op) matmuls. ----
    hf2 = hf_buf[...].reshape(T * BT, Hp)
    hb2 = hb_buf[...].reshape(T * BT, Hp)
    emis = (jnp.dot(hf2, wfc_f_ref[...], preferred_element_type=jnp.float32)
            + jnp.dot(hb2, wfc_b_ref[...], preferred_element_type=jnp.float32)
            + bfc_ref[...])
    out_ref[...] = emis.reshape(T, BT, Op).astype(out_ref.dtype)


def lstm_crf_forward(kp, x_ids, lengths):
    """Equivalent of LSTM_CRF_Model.forward(x, lengths) in eval mode.
    Assumes max(lengths) == T (pad_packed pads to max(lengths))."""
    B, T = x_ids.shape
    E = kp["embedding"].shape[1]
    H, O, Hp, Op = kp["H"], kp["O"], kp["Hp"], kp["Op"]
    pad_idx = kp["pad_idx"]

    BT = _choose_bt(B, T, E, Hp, Op)
    Bp = _round_up(max(B, 1), BT)
    NB = Bp // BT

    # glue: pad batch, embedding lookup (pad row is zero), dropout(eval)=identity
    ids_p = jnp.full((Bp, T), pad_idx, dtype=x_ids.dtype).at[:B].set(x_ids)
    len_p = jnp.zeros((Bp,), jnp.int32).at[:B].set(lengths.astype(jnp.int32))

    emb = kp["embedding"][ids_p]                                     # (Bp, T, E) f32
    # tile-major layout (NB, T, BT, E): each grid block is one contiguous DMA
    emb_t = jnp.transpose(emb.reshape(NB, BT, T, E), (0, 2, 1, 3)).astype(jnp.bfloat16)

    len_tile = len_p.reshape(NB, BT)
    t_idx = jnp.arange(T, dtype=jnp.int32)
    mask = (t_idx[None, :, None] < len_tile[:, None, :]).astype(jnp.float32)[..., None]
    # mask: (NB, T, BT, 1)

    if BT >= 64:
        unroll = 1            # large tile: carried state already fills vregs
    elif T <= 16:
        unroll = True
    else:
        unroll = 2

    vmem_limit = int(min(100 * 1024 * 1024,
                         max(32 * 1024 * 1024,
                             1.3 * _vmem_estimate(T, BT, E, Hp, Op))))

    kernel = functools.partial(_bilstm_fc_kernel,
                               T=T, BT=BT, E=E, Hp=Hp, Op=Op, unroll=unroll)

    emis_tile = pl.pallas_call(
        kernel,
        out_shape=jax.ShapeDtypeStruct((NB, T, BT, Op), jnp.bfloat16),
        grid=(NB,),
        in_specs=[
            pl.BlockSpec((pl.Squeezed(), T, BT, E), lambda b: (b, 0, 0, 0)),
            pl.BlockSpec((pl.Squeezed(), T, BT, 1), lambda b: (b, 0, 0, 0)),
            pl.BlockSpec((E, 4 * Hp), lambda b: (0, 0)),
            pl.BlockSpec((E, 4 * Hp), lambda b: (0, 0)),
            pl.BlockSpec((1, 4 * Hp), lambda b: (0, 0)),
            pl.BlockSpec((1, 4 * Hp), lambda b: (0, 0)),
            pl.BlockSpec((Hp, 4 * Hp), lambda b: (0, 0)),
            pl.BlockSpec((Hp, 4 * Hp), lambda b: (0, 0)),
            pl.BlockSpec((Hp, Op), lambda b: (0, 0)),
            pl.BlockSpec((Hp, Op), lambda b: (0, 0)),
            pl.BlockSpec((1, Op), lambda b: (0, 0)),
        ],
        out_specs=pl.BlockSpec((pl.Squeezed(), T, BT, Op), lambda b: (b, 0, 0, 0)),
        scratch_shapes=[
            pltpu.VMEM((T, BT, 4 * Hp), jnp.bfloat16),   # fwd input-side gates
            pltpu.VMEM((T, BT, 4 * Hp), jnp.bfloat16),   # bwd input-side gates
            pltpu.VMEM((T, BT, Hp), jnp.bfloat16),       # fwd hidden outputs
            pltpu.VMEM((T, BT, Hp), jnp.bfloat16),       # bwd hidden outputs
        ],
        compiler_params=pltpu.CompilerParams(
            dimension_semantics=("parallel",),           # megacore / v7x 2nd TC
            vmem_limit_bytes=vmem_limit,
        ),
    )(emb_t, mask,
      kp["w_in_f"], kp["w_in_b"], kp["b_in_f"], kp["b_in_b"],
      kp["whh_f"], kp["whh_b"],
      kp["wfc_f"], kp["wfc_b"], kp["bfc"])

    # back to batch_first, drop batch / lane padding, restore f32
    out = jnp.transpose(emis_tile, (0, 2, 1, 3)).reshape(Bp, T, Op)
    return out[:B, :, :O].astype(jnp.float32)


def init_params(key, vocab_size, embedding_dim, hidden_dim, output_dim, pad_idx):
    """PyTorch-shaped parameters (weight_ih: (4H,E), weight_hh: (4H,H), fc: (O,2H))."""
    H, E, O = hidden_dim, embedding_dim, output_dim
    ks = jax.random.split(key, 11)
    k = 1.0 / jnp.sqrt(H)

    def u(kk, shape, scale):
        return jax.random.uniform(kk, shape, jnp.float32, -scale, scale)

    emb = jax.random.normal(ks[0], (vocab_size, E), jnp.float32)
    emb = emb.at[pad_idx].set(0.0)                    # padding_idx row is zero

    kf = 1.0 / jnp.sqrt(2 * H)
    return {
        "embedding": emb,
        "w_ih_f": u(ks[1], (4 * H, E), k), "w_hh_f": u(ks[2], (4 * H, H), k),
        "b_ih_f": u(ks[3], (4 * H,), k),   "b_hh_f": u(ks[4], (4 * H,), k),
        "w_ih_b": u(ks[5], (4 * H, E), k), "w_hh_b": u(ks[6], (4 * H, H), k),
        "b_ih_b": u(ks[7], (4 * H,), k),   "b_hh_b": u(ks[8], (4 * H,), k),
        "w_fc": u(ks[9], (O, 2 * H), kf),  "b_fc": u(ks[10], (O,), kf),
    }


def prepare_kernel_params(p, *, embedding_dim, hidden_dim, output_dim, pad_idx):
    """Pad gates to 128 lanes (per gate block), transpose for (x @ W), cast to bf16.
    Zero padding keeps padded hidden/output lanes exactly zero through the whole net."""
    E, H, O = embedding_dim, hidden_dim, output_dim
    Hp = _round_up(H, 128)
    Op = _round_up(O, 128)

    def pad_ih(w):                      # (4H, E) -> (E, 4Hp), PyTorch gate order i,f,g,o
        w = jnp.pad(w.reshape(4, H, E), ((0, 0), (0, Hp - H), (0, 0)))
        return jnp.transpose(w.reshape(4 * Hp, E))

    def pad_hh(w):                      # (4H, H) -> (Hp, 4Hp)
        w = jnp.pad(w.reshape(4, H, H), ((0, 0), (0, Hp - H), (0, Hp - H)))
        return jnp.transpose(w.reshape(4 * Hp, Hp))

    def pad_b(b):                       # (4H,) -> (1, 4Hp)
        return jnp.pad(b.reshape(4, H), ((0, 0), (0, Hp - H))).reshape(1, 4 * Hp)

    w_fc_t = p["w_fc"].T                               # (2H, O)
    wfc_f = jnp.pad(w_fc_t[:H], ((0, Hp - H), (0, Op - O)))
    wfc_b = jnp.pad(w_fc_t[H:], ((0, Hp - H), (0, Op - O)))
    bfc = jnp.pad(p["b_fc"], (0, Op - O))[None, :]

    return {
        "embedding": p["embedding"],
        "w_in_f": pad_ih(p["w_ih_f"]).astype(jnp.bfloat16),
        "w_in_b": pad_ih(p["w_ih_b"]).astype(jnp.bfloat16),
        "b_in_f": pad_b(p["b_ih_f"] + p["b_hh_f"]).astype(jnp.float32),
        "b_in_b": pad_b(p["b_ih_b"] + p["b_hh_b"]).astype(jnp.float32),
        "whh_f": pad_hh(p["w_hh_f"]).astype(jnp.bfloat16),
        "whh_b": pad_hh(p["w_hh_b"]).astype(jnp.bfloat16),
        "wfc_f": wfc_f.astype(jnp.bfloat16),
        "wfc_b": wfc_b.astype(jnp.bfloat16),
        "bfc": bfc.astype(jnp.float32),
        "H": H, "O": O, "Hp": Hp, "Op": Op, "pad_idx": pad_idx,
    }


if __name__ == "__main__":
    VOCAB, E, H, O, PAD = 50, 16, 32, 5, 0
    B, T = 2, 8

    key = jax.random.PRNGKey(0)
    pkey, xkey = jax.random.split(key)
    raw = init_params(pkey, VOCAB, E, H, O, PAD)
    kp = prepare_kernel_params(raw, embedding_dim=E, hidden_dim=H,
                               output_dim=O, pad_idx=PAD)

    lengths = jnp.array([T, 5], dtype=jnp.int32)          # max(lengths) == T
    ids = jax.random.randint(xkey, (B, T), 1, VOCAB, dtype=jnp.int32)
    valid = (jnp.arange(T, dtype=jnp.int32)[None, :] < lengths[:, None])
    x_ids = jnp.where(valid, ids, PAD)                    # pad with pad_idx

    emissions = lstm_crf_forward(kp, x_ids, lengths)
    emissions = jax.block_until_ready(emissions)
    assert emissions.shape == (B, T, O)
    print("KERNEL_OK")
</pallas_src>

<mosaic_0001>
module attributes {stable_mosaic.version = 11 : i64} {
  func.func @_bilstm_fc_kernel(%arg0: i32, %arg1: memref<1x8x8x16xbf16, #tpu.memory_space<vmem>>, %arg2: memref<1x8x8x1xf32, #tpu.memory_space<vmem>>, %arg3: memref<16x512xbf16, #tpu.memory_space<vmem>>, %arg4: memref<16x512xbf16, #tpu.memory_space<vmem>>, %arg5: memref<1x512xf32, #tpu.memory_space<vmem>>, %arg6: memref<1x512xf32, #tpu.memory_space<vmem>>, %arg7: memref<128x512xbf16, #tpu.memory_space<vmem>>, %arg8: memref<128x512xbf16, #tpu.memory_space<vmem>>, %arg9: memref<128x128xbf16, #tpu.memory_space<vmem>>, %arg10: memref<128x128xbf16, #tpu.memory_space<vmem>>, %arg11: memref<1x128xf32, #tpu.memory_space<vmem>>, %arg12: memref<1x8x8x128xbf16, #tpu.memory_space<vmem>>, %arg13: memref<8x8x512xbf16, #tpu.memory_space<vmem>>, %arg14: memref<8x8x512xbf16, #tpu.memory_space<vmem>>, %arg15: memref<8x8x128xbf16, #tpu.memory_space<vmem>>, %arg16: memref<8x8x128xbf16, #tpu.memory_space<vmem>>) attributes {dimension_semantics = [#tpu.dimension_semantics<parallel>], iteration_bounds = array<i64: 1>, scalar_prefetch = 0 : i64, scratch_operands = 4 : i64, tpu.core_type = #tpu.core_type<tc>, window_params = [{transform_indices = @transform_0, window_bounds = array<i64: 1, 8, 8, 16>}, {transform_indices = @transform_1, window_bounds = array<i64: 1, 8, 8, 1>}, {pipeline_mode = #tpu.pipeline_mode<synchronous>, transform_indices = @transform_2, window_bounds = array<i64: 16, 512>}, {pipeline_mode = #tpu.pipeline_mode<synchronous>, transform_indices = @transform_3, window_bounds = array<i64: 16, 512>}, {pipeline_mode = #tpu.pipeline_mode<synchronous>, transform_indices = @transform_4, window_bounds = array<i64: 1, 512>}, {pipeline_mode = #tpu.pipeline_mode<synchronous>, transform_indices = @transform_5, window_bounds = array<i64: 1, 512>}, {pipeline_mode = #tpu.pipeline_mode<synchronous>, transform_indices = @transform_6, window_bounds = array<i64: 128, 512>}, {pipeline_mode = #tpu.pipeline_mode<synchronous>, transform_indices = @transform_7, window_bounds = array<i64: 128, 512>}, {pipeline_mode = #tpu.pipeline_mode<synchronous>, transform_indices = @transform_8, window_bounds = array<i64: 128, 128>}, {pipeline_mode = #tpu.pipeline_mode<synchronous>, transform_indices = @transform_9, window_bounds = array<i64: 128, 128>}, {pipeline_mode = #tpu.pipeline_mode<synchronous>, transform_indices = @transform_10, window_bounds = array<i64: 1, 128>}, {transform_indices = @transform_11, window_bounds = array<i64: 1, 8, 8, 128>}]} {
    %c0 = arith.constant 0 : index
    %c0_0 = arith.constant 0 : index
    %c0_1 = arith.constant 0 : index
    %c0_2 = arith.constant 0 : index
    %0 = vector.load %arg1[%c0, %c0_0, %c0_1, %c0_2] : memref<1x8x8x16xbf16, #tpu.memory_space<vmem>>, vector<1x8x8x16xbf16>
    %1 = vector.shape_cast %0 : vector<1x8x8x16xbf16> to vector<8x8x16xbf16>
    %2 = vector.shape_cast %1 : vector<8x8x16xbf16> to vector<64x16xbf16>
    %c0_3 = arith.constant 0 : index
    %c0_4 = arith.constant 0 : index
    %3 = vector.load %arg3[%c0_3, %c0_4] : memref<16x512xbf16, #tpu.memory_space<vmem>>, vector<16x512xbf16>
    %cst = arith.constant dense<0.000000e+00> : vector<64x512xf32>
    %4 = tpu.matmul %2, %3, %cst {dimension_numbers = #tpu.dot_dimension_numbers<[1], [0], [0], [1], [0, 0, 1, 1], [], []>} : vector<64x16xbf16>, vector<16x512xbf16>, vector<64x512xf32> -> vector<64x512xf32>
    %c0_5 = arith.constant 0 : index
    %c0_6 = arith.constant 0 : index
    %5 = vector.load %arg5[%c0_5, %c0_6] : memref<1x512xf32, #tpu.memory_space<vmem>>, vector<1x512xf32>
    %6 = vector.broadcast %5 : vector<1x512xf32> to vector<64x512xf32>
    %7 = arith.addf %4, %6 : vector<64x512xf32>
    %c0_7 = arith.constant 0 : index
    %c0_8 = arith.constant 0 : index
    %8 = vector.load %arg4[%c0_7, %c0_8] : memref<16x512xbf16, #tpu.memory_space<vmem>>, vector<16x512xbf16>
    %cst_9 = arith.constant dense<0.000000e+00> : vector<64x512xf32>
    %9 = tpu.matmul %2, %8, %cst_9 {dimension_numbers = #tpu.dot_dimension_numbers<[1], [0], [0], [1], [0, 0, 1, 1], [], []>} : vector<64x16xbf16>, vector<16x512xbf16>, vector<64x512xf32> -> vector<64x512xf32>
    %c0_10 = arith.constant 0 : index
    %c0_11 = arith.constant 0 : index
    %10 = vector.load %arg6[%c0_10, %c0_11] : memref<1x512xf32, #tpu.memory_space<vmem>>, vector<1x512xf32>
    %11 = vector.broadcast %10 : vector<1x512xf32> to vector<64x512xf32>
    %12 = arith.addf %9, %11 : vector<64x512xf32>
    %13 = vector.shape_cast %7 : vector<64x512xf32> to vector<8x8x512xf32>
    %14 = arith.truncf %13 : vector<8x8x512xf32> to vector<8x8x512xbf16>
    %c0_12 = arith.constant 0 : index
    %c0_13 = arith.constant 0 : index
    %c0_14 = arith.constant 0 : index
    %15 = vector.load %arg13[%c0_12, %c0_13, %c0_14] : memref<8x8x512xbf16, #tpu.memory_space<vmem>>, vector<8x8x512xbf16>
    tpu.vector_store %arg13[%c0_12, %c0_13, %c0_14], %14 {strides = array<i32>} : memref<8x8x512xbf16, #tpu.memory_space<vmem>>, vector<8x8x512xbf16>,
    %16 = vector.shape_cast %12 : vector<64x512xf32> to vector<8x8x512xf32>
    %17 = arith.truncf %16 : vector<8x8x512xf32> to vector<8x8x512xbf16>
    %c0_15 = arith.constant 0 : index
    %c0_16 = arith.constant 0 : index
    %c0_17 = arith.constant 0 : index
    %18 = vector.load %arg14[%c0_15, %c0_16, %c0_17] : memref<8x8x512xbf16, #tpu.memory_space<vmem>>, vector<8x8x512xbf16>
    tpu.vector_store %arg14[%c0_15, %c0_16, %c0_17], %17 {strides = array<i32>} : memref<8x8x512xbf16, #tpu.memory_space<vmem>>, vector<8x8x512xbf16>,
    %cst_18 = arith.constant 0.000000e+00 : bf16
    %19 = vector.broadcast %cst_18 : bf16 to vector<8x128xbf16>
    %cst_19 = arith.constant 0.000000e+00 : f32
    %20 = vector.broadcast %cst_19 : f32 to vector<8x128xf32>
    %c0_i32 = arith.constant 0 : i32
    %c7_i32 = arith.constant 7 : i32
    %21 = arith.subi %c7_i32, %c0_i32 : i32
    %22 = arith.index_cast %c0_i32 : i32 to index
    %c0_20 = arith.constant 0 : index
    %c0_21 = arith.constant 0 : index
    %23 = vector.load %arg13[%22, %c0_20, %c0_21] : memref<8x8x512xbf16, #tpu.memory_space<vmem>>, vector<1x8x512xbf16>
    %24 = vector.shape_cast %23 : vector<1x8x512xbf16> to vector<8x512xbf16>
    %c0_22 = arith.constant 0 : index
    %25 = arith.index_cast %c0_i32 : i32 to index
    %c0_23 = arith.constant 0 : index
    %c0_24 = arith.constant 0 : index
    %26 = vector.load %arg2[%c0_22, %25, %c0_23, %c0_24] : memref<1x8x8x1xf32, #tpu.memory_space<vmem>>, vector<1x1x8x1xf32>
    %27 = vector.shape_cast %26 : vector<1x1x8x1xf32> to vector<8x1xf32>
    %28 = arith.extf %24 : vector<8x512xbf16> to vector<8x512xf32>
    %c0_25 = arith.constant 0 : index
    %c0_26 = arith.constant 0 : index
    %29 = vector.load %arg7[%c0_25, %c0_26] : memref<128x512xbf16, #tpu.memory_space<vmem>>, vector<128x512xbf16>
    %cst_27 = arith.constant dense<0.000000e+00> : vector<8x512xf32>
    %30 = tpu.matmul %19, %29, %cst_27 {dimension_numbers = #tpu.dot_dimension_numbers<[1], [0], [0], [1], [0, 0, 1, 1], [], []>} : vector<8x128xbf16>, vector<128x512xbf16>, vector<8x512xf32> -> vector<8x512xf32>
    %31 = arith.addf %28, %30 : vector<8x512xf32>
    %32 = arith.truncf %31 : vector<8x512xf32> to vector<8x512xbf16>
    %33 = vector.extract_strided_slice %32 {offsets = [0, 0], sizes = [8, 128], strides = [1, 1]} : vector<8x512xbf16> to vector<8x128xbf16>
    %34 = arith.negf %33 : vector<8x128xbf16>
    %35 = math.exp %34 : vector<8x128xbf16>
    %cst_28 = arith.constant 1.000000e+00 : bf16
    %36 = vector.broadcast %cst_28 : bf16 to vector<8x128xbf16>
    %37 = arith.addf %36, %35 : vector<8x128xbf16>
    %38 = arith.divf %36, %37 : vector<8x128xbf16>
    %39 = vector.extract_strided_slice %32 {offsets = [0, 128], sizes = [8, 128], strides = [1, 1]} : vector<8x512xbf16> to vector<8x128xbf16>
    %40 = arith.negf %39 : vector<8x128xbf16>
    %41 = math.exp %40 : vector<8x128xbf16>
    %cst_29 = arith.constant 1.000000e+00 : bf16
    %42 = vector.broadcast %cst_29 : bf16 to vector<8x128xbf16>
    %43 = arith.addf %42, %41 : vector<8x128xbf16>
    %44 = arith.divf %42, %43 : vector<8x128xbf16>
    %45 = vector.extract_strided_slice %32 {offsets = [0, 256], sizes = [8, 128], strides = [1, 1]} : vector<8x512xbf16> to vector<8x128xbf16>
    %46 = math.tanh %45 : vector<8x128xbf16>
    %47 = vector.extract_strided_slice %32 {offsets = [0, 384], sizes = [8, 128], strides = [1, 1]} : vector<8x512xbf16> to vector<8x128xbf16>
    %48 = arith.negf %47 : vector<8x128xbf16>
    %49 = math.exp %48 : vector<8x128xbf16>
    %cst_30 = arith.constant 1.000000e+00 : bf16
    %50 = vector.broadcast %cst_30 : bf16 to vector<8x128xbf16>
    %51 = arith.addf %50, %49 : vector<8x128xbf16>
    %52 = arith.divf %50, %51 : vector<8x128xbf16>
    %53 = arith.extf %44 : vector<8x128xbf16> to vector<8x128xf32>
    %54 = arith.mulf %53, %20 : vector<8x128xf32>
    %55 = arith.mulf %38, %46 : vector<8x128xbf16>
    %56 = arith.extf %55 : vector<8x128xbf16> to vector<8x128xf32>
    %57 = arith.addf %54, %56 : vector<8x128xf32>
    %58 = arith.truncf %57 : vector<8x128xf32> to vector<8x128xbf16>
    %59 = math.tanh %58 : vector<8x128xbf16>
    %60 = arith.mulf %52, %59 : vector<8x128xbf16>
    %61 = arith.truncf %27 : vector<8x1xf32> to vector<8x1xbf16>
    %62 = arith.subf %60, %19 : vector<8x128xbf16>
    %63 = vector.broadcast %61 : vector<8x1xbf16> to vector<8x128xbf16>
    %64 = arith.mulf %63, %62 : vector<8x128xbf16>
    %65 = arith.addf %19, %64 : vector<8x128xbf16>
    %66 = arith.subf %57, %20 : vector<8x128xf32>
    %67 = vector.broadcast %27 : vector<8x1xf32> to vector<8x128xf32>
    %68 = arith.mulf %67, %66 : vector<8x128xf32>
    %69 = arith.addf %20, %68 : vector<8x128xf32>
    %70 = vector.broadcast %61 : vector<8x1xbf16> to vector<8x128xbf16>
    %71 = arith.mulf %70, %60 : vector<8x128xbf16>
    %72 = arith.index_cast %c0_i32 : i32 to index
    %c0_31 = arith.constant 0 : index
    %c0_32 = arith.constant 0 : index
    %73 = vector.load %arg15[%72, %c0_31, %c0_32] : memref<8x8x128xbf16, #tpu.memory_space<vmem>>, vector<1x8x128xbf16>
    %74 = vector.shape_cast %73 : vector<1x8x128xbf16> to vector<8x128xbf16>
    %75 = vector.shape_cast %71 : vector<8x128xbf16> to vector<1x8x128xbf16>
    tpu.vector_store %arg15[%72, %c0_31, %c0_32], %75 {strides = array<i32>} : memref<8x8x128xbf16, #tpu.memory_space<vmem>>, vector<1x8x128xbf16>,
    %76 = arith.index_cast %21 : i32 to index
    %c0_33 = arith.constant 0 : index
    %c0_34 = arith.constant 0 : index
    %77 = vector.load %arg14[%76, %c0_33, %c0_34] : memref<8x8x512xbf16, #tpu.memory_space<vmem>>, vector<1x8x512xbf16>
    %78 = vector.shape_cast %77 : vector<1x8x512xbf16> to vector<8x512xbf16>
    %c0_35 = arith.constant 0 : index
    %79 = arith.index_cast %21 : i32 to index
    %c0_36 = arith.constant 0 : index
    %c0_37 = arith.constant 0 : index
    %80 = vector.load %arg2[%c0_35, %79, %c0_36, %c0_37] : memref<1x8x8x1xf32, #tpu.memory_space<vmem>>, vector<1x1x8x1xf32>
    %81 = vector.shape_cast %80 : vector<1x1x8x1xf32> to vector<8x1xf32>
    %82 = arith.extf %78 : vector<8x512xbf16> to vector<8x512xf32>
    %c0_38 = arith.constant 0 : index
    %c0_39 = arith.constant 0 : index
    %83 = vector.load %arg8[%c0_38, %c0_39] : memref<128x512xbf16, #tpu.memory_space<vmem>>, vector<128x512xbf16>
    %cst_40 = arith.constant dense<0.000000e+00> : vector<8x512xf32>
    %84 = tpu.matmul %19, %83, %cst_40 {dimension_numbers = #tpu.dot_dimension_numbers<[1], [0], [0], [1], [0, 0, 1, 1], [], []>} : vector<8x128xbf16>, vector<128x512xbf16>, vector<8x512xf32> -> vector<8x512xf32>
    %85 = arith.addf %82, %84 : vector<8x512xf32>
    %86 = arith.truncf %85 : vector<8x512xf32> to vector<8x512xbf16>
    %87 = vector.extract_strided_slice %86 {offsets = [0, 0], sizes = [8, 128], strides = [1, 1]} : vector<8x512xbf16> to vector<8x128xbf16>
    %88 = arith.negf %87 : vector<8x128xbf16>
    %89 = math.exp %88 : vector<8x128xbf16>
    %cst_41 = arith.constant 1.000000e+00 : bf16
    %90 = vector.broadcast %cst_41 : bf16 to vector<8x128xbf16>
    %91 = arith.addf %90, %89 : vector<8x128xbf16>
    %92 = arith.divf %90, %91 : vector<8x128xbf16>
    %93 = vector.extract_strided_slice %86 {offsets = [0, 128], sizes = [8, 128], strides = [1, 1]} : vector<8x512xbf16> to vector<8x128xbf16>
    %94 = arith.negf %93 : vector<8x128xbf16>
    %95 = math.exp %94 : vector<8x128xbf16>
    %cst_42 = arith.constant 1.000000e+00 : bf16
    %96 = vector.broadcast %cst_42 : bf16 to vector<8x128xbf16>
    %97 = arith.addf %96, %95 : vector<8x128xbf16>
    %98 = arith.divf %96, %97 : vector<8x128xbf16>
    %99 = vector.extract_strided_slice %86 {offsets = [0, 256], sizes = [8, 128], strides = [1, 1]} : vector<8x512xbf16> to vector<8x128xbf16>
    %100 = math.tanh %99 : vector<8x128xbf16>
    %101 = vector.extract_strided_slice %86 {offsets = [0, 384], sizes = [8, 128], strides = [1, 1]} : vector<8x512xbf16> to vector<8x128xbf16>
    %102 = arith.negf %101 : vector<8x128xbf16>
    %103 = math.exp %102 : vector<8x128xbf16>
    %cst_43 = arith.constant 1.000000e+00 : bf16
    %104 = vector.broadcast %cst_43 : bf16 to vector<8x128xbf16>
    %105 = arith.addf %104, %103 : vector<8x128xbf16>
    %106 = arith.divf %104, %105 : vector<8x128xbf16>
    %107 = arith.extf %98 : vector<8x128xbf16> to vector<8x128xf32>
    %108 = arith.mulf %107, %20 : vector<8x128xf32>
    %109 = arith.mulf %92, %100 : vector<8x128xbf16>
    %110 = arith.extf %109 : vector<8x128xbf16> to vector<8x128xf32>
    %111 = arith.addf %108, %110 : vector<8x128xf32>
    %112 = arith.truncf %111 : vector<8x128xf32> to vector<8x128xbf16>
    %113 = math.tanh %112 : vector<8x128xbf16>
    %114 = arith.mulf %106, %113 : vector<8x128xbf16>
    %115 = arith.truncf %81 : vector<8x1xf32> to vector<8x1xbf16>
    %116 = arith.subf %114, %19 : vector<8x128xbf16>
    %117 = vector.broadcast %115 : vector<8x1xbf16> to vector<8x128xbf16>
    %118 = arith.mulf %117, %116 : vector<8x128xbf16>
    %119 = arith.addf %19, %118 : vector<8x128xbf16>
    %120 = arith.subf %111, %20 : vector<8x128xf32>
    %121 = vector.broadcast %81 : vector<8x1xf32> to vector<8x128xf32>
    %122 = arith.mulf %121, %120 : vector<8x128xf32>
    %123 = arith.addf %20, %122 : vector<8x128xf32>
    %124 = vector.broadcast %115 : vector<8x1xbf16> to vector<8x128xbf16>
    %125 = arith.mulf %124, %114 : vector<8x128xbf16>
    %126 = arith.index_cast %21 : i32 to index
    %c0_44 = arith.constant 0 : index
    %c0_45 = arith.constant 0 : index
    %127 = vector.load %arg16[%126, %c0_44, %c0_45] : memref<8x8x128xbf16, #tpu.memory_space<vmem>>, vector<1x8x128xbf16>
    %128 = vector.shape_cast %127 : vector<1x8x128xbf16> to vector<8x128xbf16>
    %129 = vector.shape_cast %125 : vector<8x128xbf16> to vector<1x8x128xbf16>
    tpu.vector_store %arg16[%126, %c0_44, %c0_45], %129 {strides = array<i32>} : memref<8x8x128xbf16, #tpu.memory_space<vmem>>, vector<1x8x128xbf16>,
    %c1_i32 = arith.constant 1 : i32
    %c7_i32_46 = arith.constant 7 : i32
    %130 = arith.subi %c7_i32_46, %c1_i32 : i32
    %131 = arith.index_cast %c1_i32 : i32 to index
    %c0_47 = arith.constant 0 : index
    %c0_48 = arith.constant 0 : index
    %132 = vector.load %arg13[%131, %c0_47, %c0_48] : memref<8x8x512xbf16, #tpu.memory_space<vmem>>, vector<1x8x512xbf16>
    %133 = vector.shape_cast %132 : vector<1x8x512xbf16> to vector<8x512xbf16>
    %c0_49 = arith.constant 0 : index
    %134 = arith.index_cast %c1_i32 : i32 to index
    %c0_50 = arith.constant 0 : index
    %c0_51 = arith.constant 0 : index
    %135 = vector.load %arg2[%c0_49, %134, %c0_50, %c0_51] : memref<1x8x8x1xf32, #tpu.memory_space<vmem>>, vector<1x1x8x1xf32>
    %136 = vector.shape_cast %135 : vector<1x1x8x1xf32> to vector<8x1xf32>
    %137 = arith.extf %133 : vector<8x512xbf16> to vector<8x512xf32>
    %c0_52 = arith.constant 0 : index
    %c0_53 = arith.constant 0 : index
    %138 = vector.load %arg7[%c0_52, %c0_53] : memref<128x512xbf16, #tpu.memory_space<vmem>>, vector<128x512xbf16>
    %cst_54 = arith.constant dense<0.000000e+00> : vector<8x512xf32>
    %139 = tpu.matmul %65, %138, %cst_54 {dimension_numbers = #tpu.dot_dimension_numbers<[1], [0], [0], [1], [0, 0, 1, 1], [], []>} : vector<8x128xbf16>, vector<128x512xbf16>, vector<8x512xf32> -> vector<8x512xf32>
    %140 = arith.addf %137, %139 : vector<8x512xf32>
    %141 = arith.truncf %140 : vector<8x512xf32> to vector<8x512xbf16>
    %142 = vector.extract_strided_slice %141 {offsets = [0, 0], sizes = [8, 128], strides = [1, 1]} : vector<8x512xbf16> to vector<8x128xbf16>
    %143 = arith.negf %142 : vector<8x128xbf16>
    %144 = math.exp %143 : vector<8x128xbf16>
    %cst_55 = arith.constant 1.000000e+00 : bf16
    %145 = vector.broadcast %cst_55 : bf16 to vector<8x128xbf16>
    %146 = arith.addf %145, %144 : vector<8x128xbf16>
    %147 = arith.divf %145, %146 : vector<8x128xbf16>
    %148 = vector.extract_strided_slice %141 {offsets = [0, 128], sizes = [8, 128], strides = [1, 1]} : vector<8x512xbf16> to vector<8x128xbf16>
    %149 = arith.negf %148 : vector<8x128xbf16>
    %150 = math.exp %149 : vector<8x128xbf16>
    %cst_56 = arith.constant 1.000000e+00 : bf16
    %151 = vector.broadcast %cst_56 : bf16 to vector<8x128xbf16>
    %152 = arith.addf %151, %150 : vector<8x128xbf16>
    %153 = arith.divf %151, %152 : vector<8x128xbf16>
    %154 = vector.extract_strided_slice %141 {offsets = [0, 256], sizes = [8, 128], strides = [1, 1]} : vector<8x512xbf16> to vector<8x128xbf16>
    %155 = math.tanh %154 : vector<8x128xbf16>
    %156 = vector.extract_strided_slice %141 {offsets = [0, 384], sizes = [8, 128], strides = [1, 1]} : vector<8x512xbf16> to vector<8x128xbf16>
    %157 = arith.negf %156 : vector<8x128xbf16>
    %158 = math.exp %157 : vector<8x128xbf16>
    %cst_57 = arith.constant 1.000000e+00 : bf16
    %159 = vector.broadcast %cst_57 : bf16 to vector<8x128xbf16>
    %160 = arith.addf %159, %158 : vector<8x128xbf16>
    %161 = arith.divf %159, %160 : vector<8x128xbf16>
    %162 = arith.extf %153 : vector<8x128xbf16> to vector<8x128xf32>
    %163 = arith.mulf %162, %69 : vector<8x128xf32>
    %164 = arith.mulf %147, %155 : vector<8x128xbf16>
    %165 = arith.extf %164 : vector<8x128xbf16> to vector<8x128xf32>
    %166 = arith.addf %163, %165 : vector<8x128xf32>
    %167 = arith.truncf %166 : vector<8x128xf32> to vector<8x128xbf16>
    %168 = math.tanh %167 : vector<8x128xbf16>
    %169 = arith.mulf %161, %168 : vector<8x128xbf16>
    %170 = arith.truncf %136 : vector<8x1xf32> to vector<8x1xbf16>
    %171 = arith.subf %169, %65 : vector<8x128xbf16>
    %172 = vector.broadcast %170 : vector<8x1xbf16> to vector<8x128xbf16>
    %173 = arith.mulf %172, %171 : vector<8x128xbf16>
    %174 = arith.addf %65, %173 : vector<8x128xbf16>
    %175 = arith.subf %166, %69 : vector<8x128xf32>
    %176 = vector.broadcast %136 : vector<8x1xf32> to vector<8x128xf32>
    %177 = arith.mulf %176, %175 : vector<8x128xf32>
    %178 = arith.addf %69, %177 : vector<8x128xf32>
    %179 = vector.broadcast %170 : vector<8x1xbf16> to vector<8x128xbf16>
    %180 = arith.mulf %179, %169 : vector<8x128xbf16>
    %181 = arith.index_cast %c1_i32 : i32 to index
    %c0_58 = arith.constant 0 : index
    %c0_59 = arith.constant 0 : index
    %182 = vector.load %arg15[%181, %c0_58, %c0_59] : memref<8x8x128xbf16, #tpu.memory_space<vmem>>, vector<1x8x128xbf16>
    %183 = vector.shape_cast %182 : vector<1x8x128xbf16> to vector<8x128xbf16>
    %184 = vector.shape_cast %180 : vector<8x128xbf16> to vector<1x8x128xbf16>
    tpu.vector_store %arg15[%181, %c0_58, %c0_59], %184 {strides = array<i32>} : memref<8x8x128xbf16, #tpu.memory_space<vmem>>, vector<1x8x128xbf16>,
    %185 = arith.index_cast %130 : i32 to index
    %c0_60 = arith.constant 0 : index
    %c0_61 = arith.constant 0 : index
    %186 = vector.load %arg14[%185, %c0_60, %c0_61] : memref<8x8x512xbf16, #tpu.memory_space<vmem>>, vector<1x8x512xbf16>
    %187 = vector.shape_cast %186 : vector<1x8x512xbf16> to vector<8x512xbf16>
    %c0_62 = arith.constant 0 : index
    %188 = arith.index_cast %130 : i32 to index
    %c0_63 = arith.constant 0 : index
    %c0_64 = arith.constant 0 : index
    %189 = vector.load %arg2[%c0_62, %188, %c0_63, %c0_64] : memref<1x8x8x1xf32, #tpu.memory_space<vmem>>, vector<1x1x8x1xf32>
    %190 = vector.shape_cast %189 : vector<1x1x8x1xf32> to vector<8x1xf32>
    %191 = arith.extf %187 : vector<8x512xbf16> to vector<8x512xf32>
    %c0_65 = arith.constant 0 : index
    %c0_66 = arith.constant 0 : index
    %192 = vector.load %arg8[%c0_65, %c0_66] : memref<128x512xbf16, #tpu.memory_space<vmem>>, vector<128x512xbf16>
    %cst_67 = arith.constant dense<0.000000e+00> : vector<8x512xf32>
    %193 = tpu.matmul %119, %192, %cst_67 {dimension_numbers = #tpu.dot_dimension_numbers<[1], [0], [0], [1], [0, 0, 1, 1], [], []>} : vector<8x128xbf16>, vector<128x512xbf16>, vector<8x512xf32> -> vector<8x512xf32>
    %194 = arith.addf %191, %193 : vector<8x512xf32>
    %195 = arith.truncf %194 : vector<8x512xf32> to vector<8x512xbf16>
    %196 = vector.extract_strided_slice %195 {offsets = [0, 0], sizes = [8, 128], strides = [1, 1]} : vector<8x512xbf16> to vector<8x128xbf16>
    %197 = arith.negf %196 : vector<8x128xbf16>
    %198 = math.exp %197 : vector<8x128xbf16>
    %cst_68 = arith.constant 1.000000e+00 : bf16
    %199 = vector.broadcast %cst_68 : bf16 to vector<8x128xbf16>
    %200 = arith.addf %199, %198 : vector<8x128xbf16>
    %201 = arith.divf %199, %200 : vector<8x128xbf16>
    %202 = vector.extract_strided_slice %195 {offsets = [0, 128], sizes = [8, 128], strides = [1, 1]} : vector<8x512xbf16> to vector<8x128xbf16>
    %203 = arith.negf %202 : vector<8x128xbf16>
    %204 = math.exp %203 : vector<8x128xbf16>
    %cst_69 = arith.constant 1.000000e+00 : bf16
    %205 = vector.broadcast %cst_69 : bf16 to vector<8x128xbf16>
    %206 = arith.addf %205, %204 : vector<8x128xbf16>
    %207 = arith.divf %205, %206 : vector<8x128xbf16>
    %208 = vector.extract_strided_slice %195 {offsets = [0, 256], sizes = [8, 128], strides = [1, 1]} : vector<8x512xbf16> to vector<8x128xbf16>
    %209 = math.tanh %208 : vector<8x128xbf16>
    %210 = vector.extract_strided_slice %195 {offsets = [0, 384], sizes = [8, 128], strides = [1, 1]} : vector<8x512xbf16> to vector<8x128xbf16>
    %211 = arith.negf %210 : vector<8x128xbf16>
    %212 = math.exp %211 : vector<8x128xbf16>
    %cst_70 = arith.constant 1.000000e+00 : bf16
    %213 = vector.broadcast %cst_70 : bf16 to vector<8x128xbf16>
    %214 = arith.addf %213, %212 : vector<8x128xbf16>
    %215 = arith.divf %213, %214 : vector<8x128xbf16>
    %216 = arith.extf %207 : vector<8x128xbf16> to vector<8x128xf32>
    %217 = arith.mulf %216, %123 : vector<8x128xf32>
    %218 = arith.mulf %201, %209 : vector<8x128xbf16>
    %219 = arith.extf %218 : vector<8x128xbf16> to vector<8x128xf32>
    %220 = arith.addf %217, %219 : vector<8x128xf32>
    %221 = arith.truncf %220 : vector<8x128xf32> to vector<8x128xbf16>
    %222 = math.tanh %221 : vector<8x128xbf16>
    %223 = arith.mulf %215, %222 : vector<8x128xbf16>
    %224 = arith.truncf %190 : vector<8x1xf32> to vector<8x1xbf16>
    %225 = arith.subf %223, %119 : vector<8x128xbf16>
    %226 = vector.broadcast %224 : vector<8x1xbf16> to vector<8x128xbf16>
    %227 = arith.mulf %226, %225 : vector<8x128xbf16>
    %228 = arith.addf %119, %227 : vector<8x128xbf16>
    %229 = arith.subf %220, %123 : vector<8x128xf32>
    %230 = vector.broadcast %190 : vector<8x1xf32> to vector<8x128xf32>
    %231 = arith.mulf %230, %229 : vector<8x128xf32>
    %232 = arith.addf %123, %231 : vector<8x128xf32>
    %233 = vector.broadcast %224 : vector<8x1xbf16> to vector<8x128xbf16>
    %234 = arith.mulf %233, %223 : vector<8x128xbf16>
    %235 = arith.index_cast %130 : i32 to index
    %c0_71 = arith.constant 0 : index
    %c0_72 = arith.constant 0 : index
    %236 = vector.load %arg16[%235, %c0_71, %c0_72] : memref<8x8x128xbf16, #tpu.memory_space<vmem>>, vector<1x8x128xbf16>
    %237 = vector.shape_cast %236 : vector<1x8x128xbf16> to vector<8x128xbf16>
    %238 = vector.shape_cast %234 : vector<8x128xbf16> to vector<1x8x128xbf16>
    tpu.vector_store %arg16[%235, %c0_71, %c0_72], %238 {strides = array<i32>} : memref<8x8x128xbf16, #tpu.memory_space<vmem>>, vector<1x8x128xbf16>,
    %c2_i32 = arith.constant 2 : i32
    %c7_i32_73 = arith.constant 7 : i32
    %239 = arith.subi %c7_i32_73, %c2_i32 : i32
    %240 = arith.index_cast %c2_i32 : i32 to index
    %c0_74 = arith.constant 0 : index
    %c0_75 = arith.constant 0 : index
    %241 = vector.load %arg13[%240, %c0_74, %c0_75] : memref<8x8x512xbf16, #tpu.memory_space<vmem>>, vector<1x8x512xbf16>
    %242 = vector.shape_cast %241 : vector<1x8x512xbf16> to vector<8x512xbf16>
    %c0_76 = arith.constant 0 : index
    %243 = arith.index_cast %c2_i32 : i32 to index
    %c0_77 = arith.constant 0 : index
    %c0_78 = arith.constant 0 : index
    %244 = vector.load %arg2[%c0_76, %243, %c0_77, %c0_78] : memref<1x8x8x1xf32, #tpu.memory_space<vmem>>, vector<1x1x8x1xf32>
    %245 = vector.shape_cast %244 : vector<1x1x8x1xf32> to vector<8x1xf32>
    %246 = arith.extf %242 : vector<8x512xbf16> to vector<8x512xf32>
    %c0_79 = arith.constant 0 : index
    %c0_80 = arith.constant 0 : index
    %247 = vector.load %arg7[%c0_79, %c0_80] : memref<128x512xbf16, #tpu.memory_space<vmem>>, vector<128x512xbf16>
    %cst_81 = arith.constant dense<0.000000e+00> : vector<8x512xf32>
    %248 = tpu.matmul %174, %247, %cst_81 {dimension_numbers = #tpu.dot_dimension_numbers<[1], [0], [0], [1], [0, 0, 1, 1], [], []>} : vector<8x128xbf16>, vector<128x512xbf16>, vector<8x512xf32> -> vector<8x512xf32>
    %249 = arith.addf %246, %248 : vector<8x512xf32>
    %250 = arith.truncf %249 : vector<8x512xf32> to vector<8x512xbf16>
    %251 = vector.extract_strided_slice %250 {offsets = [0, 0], sizes = [8, 128], strides = [1, 1]} : vector<8x512xbf16> to vector<8x128xbf16>
    %252 = arith.negf %251 : vector<8x128xbf16>
    %253 = math.exp %252 : vector<8x128xbf16>
    %cst_82 = arith.constant 1.000000e+00 : bf16
    %254 = vector.broadcast %cst_82 : bf16 to vector<8x128xbf16>
    %255 = arith.addf %254, %253 : vector<8x128xbf16>
    %256 = arith.divf %254, %255 : vector<8x128xbf16>
    %257 = vector.extract_strided_slice %250 {offsets = [0, 128], sizes = [8, 128], strides = [1, 1]} : vector<8x512xbf16> to vector<8x128xbf16>
    %258 = arith.negf %257 : vector<8x128xbf16>
    %259 = math.exp %258 : vector<8x128xbf16>
    %cst_83 = arith.constant 1.000000e+00 : bf16
    %260 = vector.broadcast %cst_83 : bf16 to vector<8x128xbf16>
    %261 = arith.addf %260, %259 : vector<8x128xbf16>
    %262 = arith.divf %260, %261 : vector<8x128xbf16>
    %263 = vector.extract_strided_slice %250 {offsets = [0, 256], sizes = [8, 128], strides = [1, 1]} : vector<8x512xbf16> to vector<8x128xbf16>
    %264 = math.tanh %263 : vector<8x128xbf16>
    %265 = vector.extract_strided_slice %250 {offsets = [0, 384], sizes = [8, 128], strides = [1, 1]} : vector<8x512xbf16> to vector<8x128xbf16>
    %266 = arith.negf %265 : vector<8x128xbf16>
    %267 = math.exp %266 : vector<8x128xbf16>
    %cst_84 = arith.constant 1.000000e+00 : bf16
    %268 = vector.broadcast %cst_84 : bf16 to vector<8x128xbf16>
    %269 = arith.addf %268, %267 : vector<8x128xbf16>
    %270 = arith.divf %268, %269 : vector<8x128xbf16>
    %271 = arith.extf %262 : vector<8x128xbf16> to vector<8x128xf32>
    %272 = arith.mulf %271, %178 : vector<8x128xf32>
    %273 = arith.mulf %256, %264 : vector<8x128xbf16>
    %274 = arith.extf %273 : vector<8x128xbf16> to vector<8x128xf32>
    %275 = arith.addf %272, %274 : vector<8x128xf32>
    %276 = arith.truncf %275 : vector<8x128xf32> to vector<8x128xbf16>
    %277 = math.tanh %276 : vector<8x128xbf16>
    %278 = arith.mulf %270, %277 : vector<8x128xbf16>
    %279 = arith.truncf %245 : vector<8x1xf32> to vector<8x1xbf16>
    %280 = arith.subf %278, %174 : vector<8x128xbf16>
    %281 = vector.broadcast %279 : vector<8x1xbf16> to vector<8x128xbf16>
    %282 = arith.mulf %281, %280 : vector<8x128xbf16>
    %283 = arith.addf %174, %282 : vector<8x128xbf16>
    %284 = arith.subf %275, %178 : vector<8x128xf32>
    %285 = vector.broadcast %245 : vector<8x1xf32> to vector<8x128xf32>
    %286 = arith.mulf %285, %284 : vector<8x128xf32>
    %287 = arith.addf %178, %286 : vector<8x128xf32>
    %288 = vector.broadcast %279 : vector<8x1xbf16> to vector<8x128xbf16>
    %289 = arith.mulf %288, %278 : vector<8x128xbf16>
    %290 = arith.index_cast %c2_i32 : i32 to index
    %c0_85 = arith.constant 0 : index
    %c0_86 = arith.constant 0 : index
    %291 = vector.load %arg15[%290, %c0_85, %c0_86] : memref<8x8x128xbf16, #tpu.memory_space<vmem>>, vector<1x8x128xbf16>
    %292 = vector.shape_cast %291 : vector<1x8x128xbf16> to vector<8x128xbf16>
    %293 = vector.shape_cast %289 : vector<8x128xbf16> to vector<1x8x128xbf16>
    tpu.vector_store %arg15[%290, %c0_85, %c0_86], %293 {strides = array<i32>} : memref<8x8x128xbf16, #tpu.memory_space<vmem>>, vector<1x8x128xbf16>,
    %294 = arith.index_cast %239 : i32 to index
    %c0_87 = arith.constant 0 : index
    %c0_88 = arith.constant 0 : index
    %295 = vector.load %arg14[%294, %c0_87, %c0_88] : memref<8x8x512xbf16, #tpu.memory_space<vmem>>, vector<1x8x512xbf16>
    %296 = vector.shape_cast %295 : vector<1x8x512xbf16> to vector<8x512xbf16>
    %c0_89 = arith.constant 0 : index
    %297 = arith.index_cast %239 : i32 to index
    %c0_90 = arith.constant 0 : index
    %c0_91 = arith.constant 0 : index
    %298 = vector.load %arg2[%c0_89, %297, %c0_90, %c0_91] : memref<1x8x8x1xf32, #tpu.memory_space<vmem>>, vector<1x1x8x1xf32>
    %299 = vector.shape_cast %298 : vector<1x1x8x1xf32> to vector<8x1xf32>
    %300 = arith.extf %296 : vector<8x512xbf16> to vector<8x512xf32>
    %c0_92 = arith.constant 0 : index
    %c0_93 = arith.constant 0 : index
    %301 = vector.load %arg8[%c0_92, %c0_93] : memref<128x512xbf16, #tpu.memory_space<vmem>>, vector<128x512xbf16>
    %cst_94 = arith.constant dense<0.000000e+00> : vector<8x512xf32>
    %302 = tpu.matmul %228, %301, %cst_94 {dimension_numbers = #tpu.dot_dimension_numbers<[1], [0], [0], [1], [0, 0, 1, 1], [], []>} : vector<8x128xbf16>, vector<128x512xbf16>, vector<8x512xf32> -> vector<8x512xf32>
    %303 = arith.addf %300, %302 : vector<8x512xf32>
    %304 = arith.truncf %303 : vector<8x512xf32> to vector<8x512xbf16>
    %305 = vector.extract_strided_slice %304 {offsets = [0, 0], sizes = [8, 128], strides = [1, 1]} : vector<8x512xbf16> to vector<8x128xbf16>
    %306 = arith.negf %305 : vector<8x128xbf16>
    %307 = math.exp %306 : vector<8x128xbf16>
    %cst_95 = arith.constant 1.000000e+00 : bf16
    %308 = vector.broadcast %cst_95 : bf16 to vector<8x128xbf16>
    %309 = arith.addf %308, %307 : vector<8x128xbf16>
    %310 = arith.divf %308, %309 : vector<8x128xbf16>
    %311 = vector.extract_strided_slice %304 {offsets = [0, 128], sizes = [8, 128], strides = [1, 1]} : vector<8x512xbf16> to vector<8x128xbf16>
    %312 = arith.negf %311 : vector<8x128xbf16>
    %313 = math.exp %312 : vector<8x128xbf16>
    %cst_96 = arith.constant 1.000000e+00 : bf16
    %314 = vector.broadcast %cst_96 : bf16 to vector<8x128xbf16>
    %315 = arith.addf %314, %313 : vector<8x128xbf16>
    %316 = arith.divf %314, %315 : vector<8x128xbf16>
    %317 = vector.extract_strided_slice %304 {offsets = [0, 256], sizes = [8, 128], strides = [1, 1]} : vector<8x512xbf16> to vector<8x128xbf16>
    %318 = math.tanh %317 : vector<8x128xbf16>
    %319 = vector.extract_strided_slice %304 {offsets = [0, 384], sizes = [8, 128], strides = [1, 1]} : vector<8x512xbf16> to vector<8x128xbf16>
    %320 = arith.negf %319 : vector<8x128xbf16>
    %321 = math.exp %320 : vector<8x128xbf16>
    %cst_97 = arith.constant 1.000000e+00 : bf16
    %322 = vector.broadcast %cst_97 : bf16 to vector<8x128xbf16>
    %323 = arith.addf %322, %321 : vector<8x128xbf16>
    %324 = arith.divf %322, %323 : vector<8x128xbf16>
    %325 = arith.extf %316 : vector<8x128xbf16> to vector<8x128xf32>
    %326 = arith.mulf %325, %232 : vector<8x128xf32>
    %327 = arith.mulf %310, %318 : vector<8x128xbf16>
    %328 = arith.extf %327 : vector<8x128xbf16> to vector<8x128xf32>
    %329 = arith.addf %326, %328 : vector<8x128xf32>
    %330 = arith.truncf %329 : vector<8x128xf32> to vector<8x128xbf16>
    %331 = math.tanh %330 : vector<8x128xbf16>
    %332 = arith.mulf %324, %331 : vector<8x128xbf16>
    %333 = arith.truncf %299 : vector<8x1xf32> to vector<8x1xbf16>
    %334 = arith.subf %332, %228 : vector<8x128xbf16>
    %335 = vector.broadcast %333 : vector<8x1xbf16> to vector<8x128xbf16>
    %336 = arith.mulf %335, %334 : vector<8x128xbf16>
    %337 = arith.addf %228, %336 : vector<8x128xbf16>
    %338 = arith.subf %329, %232 : vector<8x128xf32>
    %339 = vector.broadcast %299 : vector<8x1xf32> to vector<8x128xf32>
    %340 = arith.mulf %339, %338 : vector<8x128xf32>
    %341 = arith.addf %232, %340 : vector<8x128xf32>
    %342 = vector.broadcast %333 : vector<8x1xbf16> to vector<8x128xbf16>
    %343 = arith.mulf %342, %332 : vector<8x128xbf16>
    %344 = arith.index_cast %239 : i32 to index
    %c0_98 = arith.constant 0 : index
    %c0_99 = arith.constant 0 : index
    %345 = vector.load %arg16[%344, %c0_98, %c0_99] : memref<8x8x128xbf16, #tpu.memory_space<vmem>>, vector<1x8x128xbf16>
    %346 = vector.shape_cast %345 : vector<1x8x128xbf16> to vector<8x128xbf16>
    %347 = vector.shape_cast %343 : vector<8x128xbf16> to vector<1x8x128xbf16>
    tpu.vector_store %arg16[%344, %c0_98, %c0_99], %347 {strides = array<i32>} : memref<8x8x128xbf16, #tpu.memory_space<vmem>>, vector<1x8x128xbf16>,
    %c3_i32 = arith.constant 3 : i32
    %c7_i32_100 = arith.constant 7 : i32
    %348 = arith.subi %c7_i32_100, %c3_i32 : i32
    %349 = arith.index_cast %c3_i32 : i32 to index
    %c0_101 = arith.constant 0 : index
    %c0_102 = arith.constant 0 : index
    %350 = vector.load %arg13[%349, %c0_101, %c0_102] : memref<8x8x512xbf16, #tpu.memory_space<vmem>>, vector<1x8x512xbf16>
    %351 = vector.shape_cast %350 : vector<1x8x512xbf16> to vector<8x512xbf16>
    %c0_103 = arith.constant 0 : index
    %352 = arith.index_cast %c3_i32 : i32 to index
    %c0_104 = arith.constant 0 : index
    %c0_105 = arith.constant 0 : index
    %353 = vector.load %arg2[%c0_103, %352, %c0_104, %c0_105] : memref<1x8x8x1xf32, #tpu.memory_space<vmem>>, vector<1x1x8x1xf32>
    %354 = vector.shape_cast %353 : vector<1x1x8x1xf32> to vector<8x1xf32>
    %355 = arith.extf %351 : vector<8x512xbf16> to vector<8x512xf32>
    %c0_106 = arith.constant 0 : index
    %c0_107 = arith.constant 0 : index
    %356 = vector.load %arg7[%c0_106, %c0_107] : memref<128x512xbf16, #tpu.memory_space<vmem>>, vector<128x512xbf16>
    %cst_108 = arith.constant dense<0.000000e+00> : vector<8x512xf32>
    %357 = tpu.matmul %283, %356, %cst_108 {dimension_numbers = #tpu.dot_dimension_numbers<[1], [0], [0], [1], [0, 0, 1, 1], [], []>} : vector<8x128xbf16>, vector<128x512xbf16>, vector<8x512xf32> -> vector<8x512xf32>
    %358 = arith.addf %355, %357 : vector<8x512xf32>
    %359 = arith.truncf %358 : vector<8x512xf32> to vector<8x512xbf16>
    %360 = vector.extract_strided_slice %359 {offsets = [0, 0], sizes = [8, 128], strides = [1, 1]} : vector<8x512xbf16> to vector<8x128xbf16>
    %361 = arith.negf %360 : vector<8x128xbf16>
    %362 = math.exp %361 : vector<8x128xbf16>
    %cst_109 = arith.constant 1.000000e+00 : bf16
    %363 = vector.broadcast %cst_109 : bf16 to vector<8x128xbf16>
    %364 = arith.addf %363, %362 : vector<8x128xbf16>
    %365 = arith.divf %363, %364 : vector<8x128xbf16>
    %366 = vector.extract_strided_slice %359 {offsets = [0, 128], sizes = [8, 128], strides = [1, 1]} : vector<8x512xbf16> to vector<8x128xbf16>
    %367 = arith.negf %366 : vector<8x128xbf16>
    %368 = math.exp %367 : vector<8x128xbf16>
    %cst_110 = arith.constant 1.000000e+00 : bf16
    %369 = vector.broadcast %cst_110 : bf16 to vector<8x128xbf16>
    %370 = arith.addf %369, %368 : vector<8x128xbf16>
    %371 = arith.divf %369, %370 : vector<8x128xbf16>
    %372 = vector.extract_strided_slice %359 {offsets = [0, 256], sizes = [8, 128], strides = [1, 1]} : vector<8x512xbf16> to vector<8x128xbf16>
    %373 = math.tanh %372 : vector<8x128xbf16>
    %374 = vector.extract_strided_slice %359 {offsets = [0, 384], sizes = [8, 128], strides = [1, 1]} : vector<8x512xbf16> to vector<8x128xbf16>
    %375 = arith.negf %374 : vector<8x128xbf16>
    %376 = math.exp %375 : vector<8x128xbf16>
    %cst_111 = arith.constant 1.000000e+00 : bf16
    %377 = vector.broadcast %cst_111 : bf16 to vector<8x128xbf16>
    %378 = arith.addf %377, %376 : vector<8x128xbf16>
    %379 = arith.divf %377, %378 : vector<8x128xbf16>
    %380 = arith.extf %371 : vector<8x128xbf16> to vector<8x128xf32>
    %381 = arith.mulf %380, %287 : vector<8x128xf32>
    %382 = arith.mulf %365, %373 : vector<8x128xbf16>
    %383 = arith.extf %382 : vector<8x128xbf16> to vector<8x128xf32>
    %384 = arith.addf %381, %383 : vector<8x128xf32>
    %385 = arith.truncf %384 : vector<8x128xf32> to vector<8x128xbf16>
    %386 = math.tanh %385 : vector<8x128xbf16>
    %387 = arith.mulf %379, %386 : vector<8x128xbf16>
    %388 = arith.truncf %354 : vector<8x1xf32> to vector<8x1xbf16>
    %389 = arith.subf %387, %283 : vector<8x128xbf16>
    %390 = vector.broadcast %388 : vector<8x1xbf16> to vector<8x128xbf16>
    %391 = arith.mulf %390, %389 : vector<8x128xbf16>
    %392 = arith.addf %283, %391 : vector<8x128xbf16>
    %393 = arith.subf %384, %287 : vector<8x128xf32>
    %394 = vector.broadcast %354 : vector<8x1xf32> to vector<8x128xf32>
    %395 = arith.mulf %394, %393 : vector<8x128xf32>
    %396 = arith.addf %287, %395 : vector<8x128xf32>
    %397 = vector.broadcast %388 : vector<8x1xbf16> to vector<8x128xbf16>
    %398 = arith.mulf %397, %387 : vector<8x128xbf16>
    %399 = arith.index_cast %c3_i32 : i32 to index
    %c0_112 = arith.constant 0 : index
    %c0_113 = arith.constant 0 : index
    %400 = vector.load %arg15[%399, %c0_112, %c0_113] : memref<8x8x128xbf16, #tpu.memory_space<vmem>>, vector<1x8x128xbf16>
    %401 = vector.shape_cast %400 : vector<1x8x128xbf16> to vector<8x128xbf16>
    %402 = vector.shape_cast %398 : vector<8x128xbf16> to vector<1x8x128xbf16>
    tpu.vector_store %arg15[%399, %c0_112, %c0_113], %402 {strides = array<i32>} : memref<8x8x128xbf16, #tpu.memory_space<vmem>>, vector<1x8x128xbf16>,
    %403 = arith.index_cast %348 : i32 to index
    %c0_114 = arith.constant 0 : index
    %c0_115 = arith.constant 0 : index
    %404 = vector.load %arg14[%403, %c0_114, %c0_115] : memref<8x8x512xbf16, #tpu.memory_space<vmem>>, vector<1x8x512xbf16>
    %405 = vector.shape_cast %404 : vector<1x8x512xbf16> to vector<8x512xbf16>
    %c0_116 = arith.constant 0 : index
    %406 = arith.index_cast %348 : i32 to index
    %c0_117 = arith.constant 0 : index
    %c0_118 = arith.constant 0 : index
    %407 = vector.load %arg2[%c0_116, %406, %c0_117, %c0_118] : memref<1x8x8x1xf32, #tpu.memory_space<vmem>>, vector<1x1x8x1xf32>
    %408 = vector.shape_cast %407 : vector<1x1x8x1xf32> to vector<8x1xf32>
    %409 = arith.extf %405 : vector<8x512xbf16> to vector<8x512xf32>
    %c0_119 = arith.constant 0 : index
    %c0_120 = arith.constant 0 : index
    %410 = vector.load %arg8[%c0_119, %c0_120] : memref<128x512xbf16, #tpu.memory_space<vmem>>, vector<128x512xbf16>
    %cst_121 = arith.constant dense<0.000000e+00> : vector<8x512xf32>
    %411 = tpu.matmul %337, %410, %cst_121 {dimension_numbers = #tpu.dot_dimension_numbers<[1], [0], [0], [1], [0, 0, 1, 1], [], []>} : vector<8x128xbf16>, vector<128x512xbf16>, vector<8x512xf32> -> vector<8x512xf32>
    %412 = arith.addf %409, %411 : vector<8x512xf32>
    %413 = arith.truncf %412 : vector<8x512xf32> to vector<8x512xbf16>
    %414 = vector.extract_strided_slice %413 {offsets = [0, 0], sizes = [8, 128], strides = [1, 1]} : vector<8x512xbf16> to vector<8x128xbf16>
    %415 = arith.negf %414 : vector<8x128xbf16>
    %416 = math.exp %415 : vector<8x128xbf16>
    %cst_122 = arith.constant 1.000000e+00 : bf16
    %417 = vector.broadcast %cst_122 : bf16 to vector<8x128xbf16>
    %418 = arith.addf %417, %416 : vector<8x128xbf16>
    %419 = arith.divf %417, %418 : vector<8x128xbf16>
    %420 = vector.extract_strided_slice %413 {offsets = [0, 128], sizes = [8, 128], strides = [1, 1]} : vector<8x512xbf16> to vector<8x128xbf16>
    %421 = arith.negf %420 : vector<8x128xbf16>
    %422 = math.exp %421 : vector<8x128xbf16>
    %cst_123 = arith.constant 1.000000e+00 : bf16
    %423 = vector.broadcast %cst_123 : bf16 to vector<8x128xbf16>
    %424 = arith.addf %423, %422 : vector<8x128xbf16>
    %425 = arith.divf %423, %424 : vector<8x128xbf16>
    %426 = vector.extract_strided_slice %413 {offsets = [0, 256], sizes = [8, 128], strides = [1, 1]} : vector<8x512xbf16> to vector<8x128xbf16>
    %427 = math.tanh %426 : vector<8x128xbf16>
    %428 = vector.extract_strided_slice %413 {offsets = [0, 384], sizes = [8, 128], strides = [1, 1]} : vector<8x512xbf16> to vector<8x128xbf16>
    %429 = arith.negf %428 : vector<8x128xbf16>
    %430 = math.exp %429 : vector<8x128xbf16>
    %cst_124 = arith.constant 1.000000e+00 : bf16
    %431 = vector.broadcast %cst_124 : bf16 to vector<8x128xbf16>
    %432 = arith.addf %431, %430 : vector<8x128xbf16>
    %433 = arith.divf %431, %432 : vector<8x128xbf16>
    %434 = arith.extf %425 : vector<8x128xbf16> to vector<8x128xf32>
    %435 = arith.mulf %434, %341 : vector<8x128xf32>
    %436 = arith.mulf %419, %427 : vector<8x128xbf16>
    %437 = arith.extf %436 : vector<8x128xbf16> to vector<8x128xf32>
    %438 = arith.addf %435, %437 : vector<8x128xf32>
    %439 = arith.truncf %438 : vector<8x128xf32> to vector<8x128xbf16>
    %440 = math.tanh %439 : vector<8x128xbf16>
    %441 = arith.mulf %433, %440 : vector<8x128xbf16>
    %442 = arith.truncf %408 : vector<8x1xf32> to vector<8x1xbf16>
    %443 = arith.subf %441, %337 : vector<8x128xbf16>
    %444 = vector.broadcast %442 : vector<8x1xbf16> to vector<8x128xbf16>
    %445 = arith.mulf %444, %443 : vector<8x128xbf16>
    %446 = arith.addf %337, %445 : vector<8x128xbf16>
    %447 = arith.subf %438, %341 : vector<8x128xf32>
    %448 = vector.broadcast %408 : vector<8x1xf32> to vector<8x128xf32>
    %449 = arith.mulf %448, %447 : vector<8x128xf32>
    %450 = arith.addf %341, %449 : vector<8x128xf32>
    %451 = vector.broadcast %442 : vector<8x1xbf16> to vector<8x128xbf16>
    %452 = arith.mulf %451, %441 : vector<8x128xbf16>
    %453 = arith.index_cast %348 : i32 to index
    %c0_125 = arith.constant 0 : index
    %c0_126 = arith.constant 0 : index
    %454 = vector.load %arg16[%453, %c0_125, %c0_126] : memref<8x8x128xbf16, #tpu.memory_space<vmem>>, vector<1x8x128xbf16>
    %455 = vector.shape_cast %454 : vector<1x8x128xbf16> to vector<8x128xbf16>
    %456 = vector.shape_cast %452 : vector<8x128xbf16> to vector<1x8x128xbf16>
    tpu.vector_store %arg16[%453, %c0_125, %c0_126], %456 {strides = array<i32>} : memref<8x8x128xbf16, #tpu.memory_space<vmem>>, vector<1x8x128xbf16>,
    %c4_i32 = arith.constant 4 : i32
    %c7_i32_127 = arith.constant 7 : i32
    %457 = arith.subi %c7_i32_127, %c4_i32 : i32
    %458 = arith.index_cast %c4_i32 : i32 to index
    %c0_128 = arith.constant 0 : index
    %c0_129 = arith.constant 0 : index
    %459 = vector.load %arg13[%458, %c0_128, %c0_129] : memref<8x8x512xbf16, #tpu.memory_space<vmem>>, vector<1x8x512xbf16>
    %460 = vector.shape_cast %459 : vector<1x8x512xbf16> to vector<8x512xbf16>
    %c0_130 = arith.constant 0 : index
    %461 = arith.index_cast %c4_i32 : i32 to index
    %c0_131 = arith.constant 0 : index
    %c0_132 = arith.constant 0 : index
    %462 = vector.load %arg2[%c0_130, %461, %c0_131, %c0_132] : memref<1x8x8x1xf32, #tpu.memory_space<vmem>>, vector<1x1x8x1xf32>
    %463 = vector.shape_cast %462 : vector<1x1x8x1xf32> to vector<8x1xf32>
    %464 = arith.extf %460 : vector<8x512xbf16> to vector<8x512xf32>
    %c0_133 = arith.constant 0 : index
    %c0_134 = arith.constant 0 : index
    %465 = vector.load %arg7[%c0_133, %c0_134] : memref<128x512xbf16, #tpu.memory_space<vmem>>, vector<128x512xbf16>
    %cst_135 = arith.constant dense<0.000000e+00> : vector<8x512xf32>
    %466 = tpu.matmul %392, %465, %cst_135 {dimension_numbers = #tpu.dot_dimension_numbers<[1], [0], [0], [1], [0, 0, 1, 1], [], []>} : vector<8x128xbf16>, vector<128x512xbf16>, vector<8x512xf32> -> vector<8x512xf32>
    %467 = arith.addf %464, %466 : vector<8x512xf32>
    %468 = arith.truncf %467 : vector<8x512xf32> to vector<8x512xbf16>
    %469 = vector.extract_strided_slice %468 {offsets = [0, 0], sizes = [8, 128], strides = [1, 1]} : vector<8x512xbf16> to vector<8x128xbf16>
    %470 = arith.negf %469 : vector<8x128xbf16>
    %471 = math.exp %470 : vector<8x128xbf16>
    %cst_136 = arith.constant 1.000000e+00 : bf16
    %472 = vector.broadcast %cst_136 : bf16 to vector<8x128xbf16>
    %473 = arith.addf %472, %471 : vector<8x128xbf16>
    %474 = arith.divf %472, %473 : vector<8x128xbf16>
    %475 = vector.extract_strided_slice %468 {offsets = [0, 128], sizes = [8, 128], strides = [1, 1]} : vector<8x512xbf16> to vector<8x128xbf16>
    %476 = arith.negf %475 : vector<8x128xbf16>
    %477 = math.exp %476 : vector<8x128xbf16>
    %cst_137 = arith.constant 1.000000e+00 : bf16
    %478 = vector.broadcast %cst_137 : bf16 to vector<8x128xbf16>
    %479 = arith.addf %478, %477 : vector<8x128xbf16>
    %480 = arith.divf %478, %479 : vector<8x128xbf16>
    %481 = vector.extract_strided_slice %468 {offsets = [0, 256], sizes = [8, 128], strides = [1, 1]} : vector<8x512xbf16> to vector<8x128xbf16>
    %482 = math.tanh %481 : vector<8x128xbf16>
    %483 = vector.extract_strided_slice %468 {offsets = [0, 384], sizes = [8, 128], strides = [1, 1]} : vector<8x512xbf16> to vector<8x128xbf16>
    %484 = arith.negf %483 : vector<8x128xbf16>
    %485 = math.exp %484 : vector<8x128xbf16>
    %cst_138 = arith.constant 1.000000e+00 : bf16
    %486 = vector.broadcast %cst_138 : bf16 to vector<8x128xbf16>
    %487 = arith.addf %486, %485 : vector<8x128xbf16>
    %488 = arith.divf %486, %487 : vector<8x128xbf16>
    %489 = arith.extf %480 : vector<8x128xbf16> to vector<8x128xf32>
    %490 = arith.mulf %489, %396 : vector<8x128xf32>
    %491 = arith.mulf %474, %482 : vector<8x128xbf16>
    %492 = arith.extf %491 : vector<8x128xbf16> to vector<8x128xf32>
    %493 = arith.addf %490, %492 : vector<8x128xf32>
    %494 = arith.truncf %493 : vector<8x128xf32> to vector<8x128xbf16>
    %495 = math.tanh %494 : vector<8x128xbf16>
    %496 = arith.mulf %488, %495 : vector<8x128xbf16>
    %497 = arith.truncf %463 : vector<8x1xf32> to vector<8x1xbf16>
    %498 = arith.subf %496, %392 : vector<8x128xbf16>
    %499 = vector.broadcast %497 : vector<8x1xbf16> to vector<8x128xbf16>
    %500 = arith.mulf %499, %498 : vector<8x128xbf16>
    %501 = arith.addf %392, %500 : vector<8x128xbf16>
    %502 = arith.subf %493, %396 : vector<8x128xf32>
    %503 = vector.broadcast %463 : vector<8x1xf32> to vector<8x128xf32>
    %504 = arith.mulf %503, %502 : vector<8x128xf32>
    %505 = arith.addf %396, %504 : vector<8x128xf32>
    %506 = vector.broadcast %497 : vector<8x1xbf16> to vector<8x128xbf16>
    %507 = arith.mulf %506, %496 : vector<8x128xbf16>
    %508 = arith.index_cast %c4_i32 : i32 to index
    %c0_139 = arith.constant 0 : index
    %c0_140 = arith.constant 0 : index
    %509 = vector.load %arg15[%508, %c0_139, %c0_140] : memref<8x8x128xbf16, #tpu.memory_space<vmem>>, vector<1x8x128xbf16>
    %510 = vector.shape_cast %509 : vector<1x8x128xbf16> to vector<8x128xbf16>
    %511 = vector.shape_cast %507 : vector<8x128xbf16> to vector<1x8x128xbf16>
    tpu.vector_store %arg15[%508, %c0_139, %c0_140], %511 {strides = array<i32>} : memref<8x8x128xbf16, #tpu.memory_space<vmem>>, vector<1x8x128xbf16>,
    %512 = arith.index_cast %457 : i32 to index
    %c0_141 = arith.constant 0 : index
    %c0_142 = arith.constant 0 : index
    %513 = vector.load %arg14[%512, %c0_141, %c0_142] : memref<8x8x512xbf16, #tpu.memory_space<vmem>>, vector<1x8x512xbf16>
    %514 = vector.shape_cast %513 : vector<1x8x512xbf16> to vector<8x512xbf16>
    %c0_143 = arith.constant 0 : index
    %515 = arith.index_cast %457 : i32 to index
    %c0_144 = arith.constant 0 : index
    %c0_145 = arith.constant 0 : index
    %516 = vector.load %arg2[%c0_143, %515, %c0_144, %c0_145] : memref<1x8x8x1xf32, #tpu.memory_space<vmem>>, vector<1x1x8x1xf32>
    %517 = vector.shape_cast %516 : vector<1x1x8x1xf32> to vector<8x1xf32>
    %518 = arith.extf %514 : vector<8x512xbf16> to vector<8x512xf32>
    %c0_146 = arith.constant 0 : index
    %c0_147 = arith.constant 0 : index
    %519 = vector.load %arg8[%c0_146, %c0_147] : memref<128x512xbf16, #tpu.memory_space<vmem>>, vector<128x512xbf16>
    %cst_148 = arith.constant dense<0.000000e+00> : vector<8x512xf32>
    %520 = tpu.matmul %446, %519, %cst_148 {dimension_numbers = #tpu.dot_dimension_numbers<[1], [0], [0], [1], [0, 0, 1, 1], [], []>} : vector<8x128xbf16>, vector<128x512xbf16>, vector<8x512xf32> -> vector<8x512xf32>
    %521 = arith.addf %518, %520 : vector<8x512xf32>
    %522 = arith.truncf %521 : vector<8x512xf32> to vector<8x512xbf16>
    %523 = vector.extract_strided_slice %522 {offsets = [0, 0], sizes = [8, 128], strides = [1, 1]} : vector<8x512xbf16> to vector<8x128xbf16>
    %524 = arith.negf %523 : vector<8x128xbf16>
    %525 = math.exp %524 : vector<8x128xbf16>
    %cst_149 = arith.constant 1.000000e+00 : bf16
    %526 = vector.broadcast %cst_149 : bf16 to vector<8x128xbf16>
    %527 = arith.addf %526, %525 : vector<8x128xbf16>
    %528 = arith.divf %526, %527 : vector<8x128xbf16>
    %529 = vector.extract_strided_slice %522 {offsets = [0, 128], sizes = [8, 128], strides = [1, 1]} : vector<8x512xbf16> to vector<8x128xbf16>
    %530 = arith.negf %529 : vector<8x128xbf16>
    %531 = math.exp %530 : vector<8x128xbf16>
    %cst_150 = arith.constant 1.000000e+00 : bf16
    %532 = vector.broadcast %cst_150 : bf16 to vector<8x128xbf16>
    %533 = arith.addf %532, %531 : vector<8x128xbf16>
    %534 = arith.divf %532, %533 : vector<8x128xbf16>
    %535 = vector.extract_strided_slice %522 {offsets = [0, 256], sizes = [8, 128], strides = [1, 1]} : vector<8x512xbf16> to vector<8x128xbf16>
    %536 = math.tanh %535 : vector<8x128xbf16>
    %537 = vector.extract_strided_slice %522 {offsets = [0, 384], sizes = [8, 128], strides = [1, 1]} : vector<8x512xbf16> to vector<8x128xbf16>
    %538 = arith.negf %537 : vector<8x128xbf16>
    %539 = math.exp %538 : vector<8x128xbf16>
    %cst_151 = arith.constant 1.000000e+00 : bf16
    %540 = vector.broadcast %cst_151 : bf16 to vector<8x128xbf16>
    %541 = arith.addf %540, %539 : vector<8x128xbf16>
    %542 = arith.divf %540, %541 : vector<8x128xbf16>
    %543 = arith.extf %534 : vector<8x128xbf16> to vector<8x128xf32>
    %544 = arith.mulf %543, %450 : vector<8x128xf32>
    %545 = arith.mulf %528, %536 : vector<8x128xbf16>
    %546 = arith.extf %545 : vector<8x128xbf16> to vector<8x128xf32>
    %547 = arith.addf %544, %546 : vector<8x128xf32>
    %548 = arith.truncf %547 : vector<8x128xf32> to vector<8x128xbf16>
    %549 = math.tanh %548 : vector<8x128xbf16>
    %550 = arith.mulf %542, %549 : vector<8x128xbf16>
    %551 = arith.truncf %517 : vector<8x1xf32> to vector<8x1xbf16>
    %552 = arith.subf %550, %446 : vector<8x128xbf16>
    %553 = vector.broadcast %551 : vector<8x1xbf16> to vector<8x128xbf16>
    %554 = arith.mulf %553, %552 : vector<8x128xbf16>
    %555 = arith.addf %446, %554 : vector<8x128xbf16>
    %556 = arith.subf %547, %450 : vector<8x128xf32>
    %557 = vector.broadcast %517 : vector<8x1xf32> to vector<8x128xf32>
    %558 = arith.mulf %557, %556 : vector<8x128xf32>
    %559 = arith.addf %450, %558 : vector<8x128xf32>
    %560 = vector.broadcast %551 : vector<8x1xbf16> to vector<8x128xbf16>
    %561 = arith.mulf %560, %550 : vector<8x128xbf16>
    %562 = arith.index_cast %457 : i32 to index
    %c0_152 = arith.constant 0 : index
    %c0_153 = arith.constant 0 : index
    %563 = vector.load %arg16[%562, %c0_152, %c0_153] : memref<8x8x128xbf16, #tpu.memory_space<vmem>>, vector<1x8x128xbf16>
    %564 = vector.shape_cast %563 : vector<1x8x128xbf16> to vector<8x128xbf16>
    %565 = vector.shape_cast %561 : vector<8x128xbf16> to vector<1x8x128xbf16>
    tpu.vector_store %arg16[%562, %c0_152, %c0_153], %565 {strides = array<i32>} : memref<8x8x128xbf16, #tpu.memory_space<vmem>>, vector<1x8x128xbf16>,
    %c5_i32 = arith.constant 5 : i32
    %c7_i32_154 = arith.constant 7 : i32
    %566 = arith.subi %c7_i32_154, %c5_i32 : i32
    %567 = arith.index_cast %c5_i32 : i32 to index
    %c0_155 = arith.constant 0 : index
    %c0_156 = arith.constant 0 : index
    %568 = vector.load %arg13[%567, %c0_155, %c0_156] : memref<8x8x512xbf16, #tpu.memory_space<vmem>>, vector<1x8x512xbf16>
    %569 = vector.shape_cast %568 : vector<1x8x512xbf16> to vector<8x512xbf16>
    %c0_157 = arith.constant 0 : index
    %570 = arith.index_cast %c5_i32 : i32 to index
    %c0_158 = arith.constant 0 : index
    %c0_159 = arith.constant 0 : index
    %571 = vector.load %arg2[%c0_157, %570, %c0_158, %c0_159] : memref<1x8x8x1xf32, #tpu.memory_space<vmem>>, vector<1x1x8x1xf32>
    %572 = vector.shape_cast %571 : vector<1x1x8x1xf32> to vector<8x1xf32>
    %573 = arith.extf %569 : vector<8x512xbf16> to vector<8x512xf32>
    %c0_160 = arith.constant 0 : index
    %c0_161 = arith.constant 0 : index
    %574 = vector.load %arg7[%c0_160, %c0_161] : memref<128x512xbf16, #tpu.memory_space<vmem>>, vector<128x512xbf16>
    %cst_162 = arith.constant dense<0.000000e+00> : vector<8x512xf32>
    %575 = tpu.matmul %501, %574, %cst_162 {dimension_numbers = #tpu.dot_dimension_numbers<[1], [0], [0], [1], [0, 0, 1, 1], [], []>} : vector<8x128xbf16>, vector<128x512xbf16>, vector<8x512xf32> -> vector<8x512xf32>
    %576 = arith.addf %573, %575 : vector<8x512xf32>
    %577 = arith.truncf %576 : vector<8x512xf32> to vector<8x512xbf16>
    %578 = vector.extract_strided_slice %577 {offsets = [0, 0], sizes = [8, 128], strides = [1, 1]} : vector<8x512xbf16> to vector<8x128xbf16>
    %579 = arith.negf %578 : vector<8x128xbf16>
    %580 = math.exp %579 : vector<8x128xbf16>
    %cst_163 = arith.constant 1.000000e+00 : bf16
    %581 = vector.broadcast %cst_163 : bf16 to vector<8x128xbf16>
    %582 = arith.addf %581, %580 : vector<8x128xbf16>
    %583 = arith.divf %581, %582 : vector<8x128xbf16>
    %584 = vector.extract_strided_slice %577 {offsets = [0, 128], sizes = [8, 128], strides = [1, 1]} : vector<8x512xbf16> to vector<8x128xbf16>
    %585 = arith.negf %584 : vector<8x128xbf16>
    %586 = math.exp %585 : vector<8x128xbf16>
    %cst_164 = arith.constant 1.000000e+00 : bf16
    %587 = vector.broadcast %cst_164 : bf16 to vector<8x128xbf16>
    %588 = arith.addf %587, %586 : vector<8x128xbf16>
    %589 = arith.divf %587, %588 : vector<8x128xbf16>
    %590 = vector.extract_strided_slice %577 {offsets = [0, 256], sizes = [8, 128], strides = [1, 1]} : vector<8x512xbf16> to vector<8x128xbf16>
    %591 = math.tanh %590 : vector<8x128xbf16>
    %592 = vector.extract_strided_slice %577 {offsets = [0, 384], sizes = [8, 128], strides = [1, 1]} : vector<8x512xbf16> to vector<8x128xbf16>
    %593 = arith.negf %592 : vector<8x128xbf16>
    %594 = math.exp %593 : vector<8x128xbf16>
    %cst_165 = arith.constant 1.000000e+00 : bf16
    %595 = vector.broadcast %cst_165 : bf16 to vector<8x128xbf16>
    %596 = arith.addf %595, %594 : vector<8x128xbf16>
    %597 = arith.divf %595, %596 : vector<8x128xbf16>
    %598 = arith.extf %589 : vector<8x128xbf16> to vector<8x128xf32>
    %599 = arith.mulf %598, %505 : vector<8x128xf32>
    %600 = arith.mulf %583, %591 : vector<8x128xbf16>
    %601 = arith.extf %600 : vector<8x128xbf16> to vector<8x128xf32>
    %602 = arith.addf %599, %601 : vector<8x128xf32>
    %603 = arith.truncf %602 : vector<8x128xf32> to vector<8x128xbf16>
    %604 = math.tanh %603 : vector<8x128xbf16>
    %605 = arith.mulf %597, %604 : vector<8x128xbf16>
    %606 = arith.truncf %572 : vector<8x1xf32> to vector<8x1xbf16>
    %607 = arith.subf %605, %501 : vector<8x128xbf16>
    %608 = vector.broadcast %606 : vector<8x1xbf16> to vector<8x128xbf16>
    %609 = arith.mulf %608, %607 : vector<8x128xbf16>
    %610 = arith.addf %501, %609 : vector<8x128xbf16>
    %611 = arith.subf %602, %505 : vector<8x128xf32>
    %612 = vector.broadcast %572 : vector<8x1xf32> to vector<8x128xf32>
    %613 = arith.mulf %612, %611 : vector<8x128xf32>
    %614 = arith.addf %505, %613 : vector<8x128xf32>
    %615 = vector.broadcast %606 : vector<8x1xbf16> to vector<8x128xbf16>
    %616 = arith.mulf %615, %605 : vector<8x128xbf16>
    %617 = arith.index_cast %c5_i32 : i32 to index
    %c0_166 = arith.constant 0 : index
    %c0_167 = arith.constant 0 : index
    %618 = vector.load %arg15[%617, %c0_166, %c0_167] : memref<8x8x128xbf16, #tpu.memory_space<vmem>>, vector<1x8x128xbf16>
    %619 = vector.shape_cast %618 : vector<1x8x128xbf16> to vector<8x128xbf16>
    %620 = vector.shape_cast %616 : vector<8x128xbf16> to vector<1x8x128xbf16>
    tpu.vector_store %arg15[%617, %c0_166, %c0_167], %620 {strides = array<i32>} : memref<8x8x128xbf16, #tpu.memory_space<vmem>>, vector<1x8x128xbf16>,
    %621 = arith.index_cast %566 : i32 to index
    %c0_168 = arith.constant 0 : index
    %c0_169 = arith.constant 0 : index
    %622 = vector.load %arg14[%621, %c0_168, %c0_169] : memref<8x8x512xbf16, #tpu.memory_space<vmem>>, vector<1x8x512xbf16>
    %623 = vector.shape_cast %622 : vector<1x8x512xbf16> to vector<8x512xbf16>
    %c0_170 = arith.constant 0 : index
    %624 = arith.index_cast %566 : i32 to index
    %c0_171 = arith.constant 0 : index
    %c0_172 = arith.constant 0 : index
    %625 = vector.load %arg2[%c0_170, %624, %c0_171, %c0_172] : memref<1x8x8x1xf32, #tpu.memory_space<vmem>>, vector<1x1x8x1xf32>
    %626 = vector.shape_cast %625 : vector<1x1x8x1xf32> to vector<8x1xf32>
    %627 = arith.extf %623 : vector<8x512xbf16> to vector<8x512xf32>
    %c0_173 = arith.constant 0 : index
    %c0_174 = arith.constant 0 : index
    %628 = vector.load %arg8[%c0_173, %c0_174] : memref<128x512xbf16, #tpu.memory_space<vmem>>, vector<128x512xbf16>
    %cst_175 = arith.constant dense<0.000000e+00> : vector<8x512xf32>
    %629 = tpu.matmul %555, %628, %cst_175 {dimension_numbers = #tpu.dot_dimension_numbers<[1], [0], [0], [1], [0, 0, 1, 1], [], []>} : vector<8x128xbf16>, vector<128x512xbf16>, vector<8x512xf32> -> vector<8x512xf32>
    %630 = arith.addf %627, %629 : vector<8x512xf32>
    %631 = arith.truncf %630 : vector<8x512xf32> to vector<8x512xbf16>
    %632 = vector.extract_strided_slice %631 {offsets = [0, 0], sizes = [8, 128], strides = [1, 1]} : vector<8x512xbf16> to vector<8x128xbf16>
    %633 = arith.negf %632 : vector<8x128xbf16>
    %634 = math.exp %633 : vector<8x128xbf16>
    %cst_176 = arith.constant 1.000000e+00 : bf16
    %635 = vector.broadcast %cst_176 : bf16 to vector<8x128xbf16>
    %636 = arith.addf %635, %634 : vector<8x128xbf16>
    %637 = arith.divf %635, %636 : vector<8x128xbf16>
    %638 = vector.extract_strided_slice %631 {offsets = [0, 128], sizes = [8, 128], strides = [1, 1]} : vector<8x512xbf16> to vector<8x128xbf16>
    %639 = arith.negf %638 : vector<8x128xbf16>
    %640 = math.exp %639 : vector<8x128xbf16>
    %cst_177 = arith.constant 1.000000e+00 : bf16
    %641 = vector.broadcast %cst_177 : bf16 to vector<8x128xbf16>
    %642 = arith.addf %641, %640 : vector<8x128xbf16>
    %643 = arith.divf %641, %642 : vector<8x128xbf16>
    %644 = vector.extract_strided_slice %631 {offsets = [0, 256], sizes = [8, 128], strides = [1, 1]} : vector<8x512xbf16> to vector<8x128xbf16>
    %645 = math.tanh %644 : vector<8x128xbf16>
    %646 = vector.extract_strided_slice %631 {offsets = [0, 384], sizes = [8, 128], strides = [1, 1]} : vector<8x512xbf16> to vector<8x128xbf16>
    %647 = arith.negf %646 : vector<8x128xbf16>
    %648 = math.exp %647 : vector<8x128xbf16>
    %cst_178 = arith.constant 1.000000e+00 : bf16
    %649 = vector.broadcast %cst_178 : bf16 to vector<8x128xbf16>
    %650 = arith.addf %649, %648 : vector<8x128xbf16>
    %651 = arith.divf %649, %650 : vector<8x128xbf16>
    %652 = arith.extf %643 : vector<8x128xbf16> to vector<8x128xf32>
    %653 = arith.mulf %652, %559 : vector<8x128xf32>
    %654 = arith.mulf %637, %645 : vector<8x128xbf16>
    %655 = arith.extf %654 : vector<8x128xbf16> to vector<8x128xf32>
    %656 = arith.addf %653, %655 : vector<8x128xf32>
    %657 = arith.truncf %656 : vector<8x128xf32> to vector<8x128xbf16>
    %658 = math.tanh %657 : vector<8x128xbf16>
    %659 = arith.mulf %651, %658 : vector<8x128xbf16>
    %660 = arith.truncf %626 : vector<8x1xf32> to vector<8x1xbf16>
    %661 = arith.subf %659, %555 : vector<8x128xbf16>
    %662 = vector.broadcast %660 : vector<8x1xbf16> to vector<8x128xbf16>
    %663 = arith.mulf %662, %661 : vector<8x128xbf16>
    %664 = arith.addf %555, %663 : vector<8x128xbf16>
    %665 = arith.subf %656, %559 : vector<8x128xf32>
    %666 = vector.broadcast %626 : vector<8x1xf32> to vector<8x128xf32>
    %667 = arith.mulf %666, %665 : vector<8x128xf32>
    %668 = arith.addf %559, %667 : vector<8x128xf32>
    %669 = vector.broadcast %660 : vector<8x1xbf16> to vector<8x128xbf16>
    %670 = arith.mulf %669, %659 : vector<8x128xbf16>
    %671 = arith.index_cast %566 : i32 to index
    %c0_179 = arith.constant 0 : index
    %c0_180 = arith.constant 0 : index
    %672 = vector.load %arg16[%671, %c0_179, %c0_180] : memref<8x8x128xbf16, #tpu.memory_space<vmem>>, vector<1x8x128xbf16>
    %673 = vector.shape_cast %672 : vector<1x8x128xbf16> to vector<8x128xbf16>
    %674 = vector.shape_cast %670 : vector<8x128xbf16> to vector<1x8x128xbf16>
    tpu.vector_store %arg16[%671, %c0_179, %c0_180], %674 {strides = array<i32>} : memref<8x8x128xbf16, #tpu.memory_space<vmem>>, vector<1x8x128xbf16>,
    %c6_i32 = arith.constant 6 : i32
    %c7_i32_181 = arith.constant 7 : i32
    %675 = arith.subi %c7_i32_181, %c6_i32 : i32
    %676 = arith.index_cast %c6_i32 : i32 to index
    %c0_182 = arith.constant 0 : index
    %c0_183 = arith.constant 0 : index
    %677 = vector.load %arg13[%676, %c0_182, %c0_183] : memref<8x8x512xbf16, #tpu.memory_space<vmem>>, vector<1x8x512xbf16>
    %678 = vector.shape_cast %677 : vector<1x8x512xbf16> to vector<8x512xbf16>
    %c0_184 = arith.constant 0 : index
    %679 = arith.index_cast %c6_i32 : i32 to index
    %c0_185 = arith.constant 0 : index
    %c0_186 = arith.constant 0 : index
    %680 = vector.load %arg2[%c0_184, %679, %c0_185, %c0_186] : memref<1x8x8x1xf32, #tpu.memory_space<vmem>>, vector<1x1x8x1xf32>
    %681 = vector.shape_cast %680 : vector<1x1x8x1xf32> to vector<8x1xf32>
    %682 = arith.extf %678 : vector<8x512xbf16> to vector<8x512xf32>
    %c0_187 = arith.constant 0 : index
    %c0_188 = arith.constant 0 : index
    %683 = vector.load %arg7[%c0_187, %c0_188] : memref<128x512xbf16, #tpu.memory_space<vmem>>, vector<128x512xbf16>
    %cst_189 = arith.constant dense<0.000000e+00> : vector<8x512xf32>
    %684 = tpu.matmul %610, %683, %cst_189 {dimension_numbers = #tpu.dot_dimension_numbers<[1], [0], [0], [1], [0, 0, 1, 1], [], []>} : vector<8x128xbf16>, vector<128x512xbf16>, vector<8x512xf32> -> vector<8x512xf32>
    %685 = arith.addf %682, %684 : vector<8x512xf32>
    %686 = arith.truncf %685 : vector<8x512xf32> to vector<8x512xbf16>
    %687 = vector.extract_strided_slice %686 {offsets = [0, 0], sizes = [8, 128], strides = [1, 1]} : vector<8x512xbf16> to vector<8x128xbf16>
    %688 = arith.negf %687 : vector<8x128xbf16>
    %689 = math.exp %688 : vector<8x128xbf16>
    %cst_190 = arith.constant 1.000000e+00 : bf16
    %690 = vector.broadcast %cst_190 : bf16 to vector<8x128xbf16>
    %691 = arith.addf %690, %689 : vector<8x128xbf16>
    %692 = arith.divf %690, %691 : vector<8x128xbf16>
    %693 = vector.extract_strided_slice %686 {offsets = [0, 128], sizes = [8, 128], strides = [1, 1]} : vector<8x512xbf16> to vector<8x128xbf16>
    %694 = arith.negf %693 : vector<8x128xbf16>
    %695 = math.exp %694 : vector<8x128xbf16>
    %cst_191 = arith.constant 1.000000e+00 : bf16
    %696 = vector.broadcast %cst_191 : bf16 to vector<8x128xbf16>
    %697 = arith.addf %696, %695 : vector<8x128xbf16>
    %698 = arith.divf %696, %697 : vector<8x128xbf16>
    %699 = vector.extract_strided_slice %686 {offsets = [0, 256], sizes = [8, 128], strides = [1, 1]} : vector<8x512xbf16> to vector<8x128xbf16>
    %700 = math.tanh %699 : vector<8x128xbf16>
    %701 = vector.extract_strided_slice %686 {offsets = [0, 384], sizes = [8, 128], strides = [1, 1]} : vector<8x512xbf16> to vector<8x128xbf16>
    %702 = arith.negf %701 : vector<8x128xbf16>
    %703 = math.exp %702 : vector<8x128xbf16>
    %cst_192 = arith.constant 1.000000e+00 : bf16
    %704 = vector.broadcast %cst_192 : bf16 to vector<8x128xbf16>
    %705 = arith.addf %704, %703 : vector<8x128xbf16>
    %706 = arith.divf %704, %705 : vector<8x128xbf16>
    %707 = arith.extf %698 : vector<8x128xbf16> to vector<8x128xf32>
    %708 = arith.mulf %707, %614 : vector<8x128xf32>
    %709 = arith.mulf %692, %700 : vector<8x128xbf16>
    %710 = arith.extf %709 : vector<8x128xbf16> to vector<8x128xf32>
    %711 = arith.addf %708, %710 : vector<8x128xf32>
    %712 = arith.truncf %711 : vector<8x128xf32> to vector<8x128xbf16>
    %713 = math.tanh %712 : vector<8x128xbf16>
    %714 = arith.mulf %706, %713 : vector<8x128xbf16>
    %715 = arith.truncf %681 : vector<8x1xf32> to vector<8x1xbf16>
    %716 = arith.subf %714, %610 : vector<8x128xbf16>
    %717 = vector.broadcast %715 : vector<8x1xbf16> to vector<8x128xbf16>
    %718 = arith.mulf %717, %716 : vector<8x128xbf16>
    %719 = arith.addf %610, %718 : vector<8x128xbf16>
    %720 = arith.subf %711, %614 : vector<8x128xf32>
    %721 = vector.broadcast %681 : vector<8x1xf32> to vector<8x128xf32>
    %722 = arith.mulf %721, %720 : vector<8x128xf32>
    %723 = arith.addf %614, %722 : vector<8x128xf32>
    %724 = vector.broadcast %715 : vector<8x1xbf16> to vector<8x128xbf16>
    %725 = arith.mulf %724, %714 : vector<8x128xbf16>
    %726 = arith.index_cast %c6_i32 : i32 to index
    %c0_193 = arith.constant 0 : index
    %c0_194 = arith.constant 0 : index
    %727 = vector.load %arg15[%726, %c0_193, %c0_194] : memref<8x8x128xbf16, #tpu.memory_space<vmem>>, vector<1x8x128xbf16>
    %728 = vector.shape_cast %727 : vector<1x8x128xbf16> to vector<8x128xbf16>
    %729 = vector.shape_cast %725 : vector<8x128xbf16> to vector<1x8x128xbf16>
    tpu.vector_store %arg15[%726, %c0_193, %c0_194], %729 {strides = array<i32>} : memref<8x8x128xbf16, #tpu.memory_space<vmem>>, vector<1x8x128xbf16>,
    %730 = arith.index_cast %675 : i32 to index
    %c0_195 = arith.constant 0 : index
    %c0_196 = arith.constant 0 : index
    %731 = vector.load %arg14[%730, %c0_195, %c0_196] : memref<8x8x512xbf16, #tpu.memory_space<vmem>>, vector<1x8x512xbf16>
    %732 = vector.shape_cast %731 : vector<1x8x512xbf16> to vector<8x512xbf16>
    %c0_197 = arith.constant 0 : index
    %733 = arith.index_cast %675 : i32 to index
    %c0_198 = arith.constant 0 : index
    %c0_199 = arith.constant 0 : index
    %734 = vector.load %arg2[%c0_197, %733, %c0_198, %c0_199] : memref<1x8x8x1xf32, #tpu.memory_space<vmem>>, vector<1x1x8x1xf32>
    %735 = vector.shape_cast %734 : vector<1x1x8x1xf32> to vector<8x1xf32>
    %736 = arith.extf %732 : vector<8x512xbf16> to vector<8x512xf32>
    %c0_200 = arith.constant 0 : index
    %c0_201 = arith.constant 0 : index
    %737 = vector.load %arg8[%c0_200, %c0_201] : memref<128x512xbf16, #tpu.memory_space<vmem>>, vector<128x512xbf16>
    %cst_202 = arith.constant dense<0.000000e+00> : vector<8x512xf32>
    %738 = tpu.matmul %664, %737, %cst_202 {dimension_numbers = #tpu.dot_dimension_numbers<[1], [0], [0], [1], [0, 0, 1, 1], [], []>} : vector<8x128xbf16>, vector<128x512xbf16>, vector<8x512xf32> -> vector<8x512xf32>
    %739 = arith.addf %736, %738 : vector<8x512xf32>
    %740 = arith.truncf %739 : vector<8x512xf32> to vector<8x512xbf16>
    %741 = vector.extract_strided_slice %740 {offsets = [0, 0], sizes = [8, 128], strides = [1, 1]} : vector<8x512xbf16> to vector<8x128xbf16>
    %742 = arith.negf %741 : vector<8x128xbf16>
    %743 = math.exp %742 : vector<8x128xbf16>
    %cst_203 = arith.constant 1.000000e+00 : bf16
    %744 = vector.broadcast %cst_203 : bf16 to vector<8x128xbf16>
    %745 = arith.addf %744, %743 : vector<8x128xbf16>
    %746 = arith.divf %744, %745 : vector<8x128xbf16>
    %747 = vector.extract_strided_slice %740 {offsets = [0, 128], sizes = [8, 128], strides = [1, 1]} : vector<8x512xbf16> to vector<8x128xbf16>
    %748 = arith.negf %747 : vector<8x128xbf16>
    %749 = math.exp %748 : vector<8x128xbf16>
    %cst_204 = arith.constant 1.000000e+00 : bf16
    %750 = vector.broadcast %cst_204 : bf16 to vector<8x128xbf16>
    %751 = arith.addf %750, %749 : vector<8x128xbf16>
    %752 = arith.divf %750, %751 : vector<8x128xbf16>
    %753 = vector.extract_strided_slice %740 {offsets = [0, 256], sizes = [8, 128], strides = [1, 1]} : vector<8x512xbf16> to vector<8x128xbf16>
    %754 = math.tanh %753 : vector<8x128xbf16>
    %755 = vector.extract_strided_slice %740 {offsets = [0, 384], sizes = [8, 128], strides = [1, 1]} : vector<8x512xbf16> to vector<8x128xbf16>
    %756 = arith.negf %755 : vector<8x128xbf16>
    %757 = math.exp %756 : vector<8x128xbf16>
    %cst_205 = arith.constant 1.000000e+00 : bf16
    %758 = vector.broadcast %cst_205 : bf16 to vector<8x128xbf16>
    %759 = arith.addf %758, %757 : vector<8x128xbf16>
    %760 = arith.divf %758, %759 : vector<8x128xbf16>
    %761 = arith.extf %752 : vector<8x128xbf16> to vector<8x128xf32>
    %762 = arith.mulf %761, %668 : vector<8x128xf32>
    %763 = arith.mulf %746, %754 : vector<8x128xbf16>
    %764 = arith.extf %763 : vector<8x128xbf16> to vector<8x128xf32>
    %765 = arith.addf %762, %764 : vector<8x128xf32>
    %766 = arith.truncf %765 : vector<8x128xf32> to vector<8x128xbf16>
    %767 = math.tanh %766 : vector<8x128xbf16>
    %768 = arith.mulf %760, %767 : vector<8x128xbf16>
    %769 = arith.truncf %735 : vector<8x1xf32> to vector<8x1xbf16>
    %770 = arith.subf %768, %664 : vector<8x128xbf16>
    %771 = vector.broadcast %769 : vector<8x1xbf16> to vector<8x128xbf16>
    %772 = arith.mulf %771, %770 : vector<8x128xbf16>
    %773 = arith.addf %664, %772 : vector<8x128xbf16>
    %774 = arith.subf %765, %668 : vector<8x128xf32>
    %775 = vector.broadcast %735 : vector<8x1xf32> to vector<8x128xf32>
    %776 = arith.mulf %775, %774 : vector<8x128xf32>
    %777 = arith.addf %668, %776 : vector<8x128xf32>
    %778 = vector.broadcast %769 : vector<8x1xbf16> to vector<8x128xbf16>
    %779 = arith.mulf %778, %768 : vector<8x128xbf16>
    %780 = arith.index_cast %675 : i32 to index
    %c0_206 = arith.constant 0 : index
    %c0_207 = arith.constant 0 : index
    %781 = vector.load %arg16[%780, %c0_206, %c0_207] : memref<8x8x128xbf16, #tpu.memory_space<vmem>>, vector<1x8x128xbf16>
    %782 = vector.shape_cast %781 : vector<1x8x128xbf16> to vector<8x128xbf16>
    %783 = vector.shape_cast %779 : vector<8x128xbf16> to vector<1x8x128xbf16>
    tpu.vector_store %arg16[%780, %c0_206, %c0_207], %783 {strides = array<i32>} : memref<8x8x128xbf16, #tpu.memory_space<vmem>>, vector<1x8x128xbf16>,
    %c7_i32_208 = arith.constant 7 : i32
    %c7_i32_209 = arith.constant 7 : i32
    %784 = arith.subi %c7_i32_209, %c7_i32_208 : i32
    %785 = arith.index_cast %c7_i32_208 : i32 to index
    %c0_210 = arith.constant 0 : index
    %c0_211 = arith.constant 0 : index
    %786 = vector.load %arg13[%785, %c0_210, %c0_211] : memref<8x8x512xbf16, #tpu.memory_space<vmem>>, vector<1x8x512xbf16>
    %787 = vector.shape_cast %786 : vector<1x8x512xbf16> to vector<8x512xbf16>
    %c0_212 = arith.constant 0 : index
    %788 = arith.index_cast %c7_i32_208 : i32 to index
    %c0_213 = arith.constant 0 : index
    %c0_214 = arith.constant 0 : index
    %789 = vector.load %arg2[%c0_212, %788, %c0_213, %c0_214] : memref<1x8x8x1xf32, #tpu.memory_space<vmem>>, vector<1x1x8x1xf32>
    %790 = vector.shape_cast %789 : vector<1x1x8x1xf32> to vector<8x1xf32>
    %791 = arith.extf %787 : vector<8x512xbf16> to vector<8x512xf32>
    %c0_215 = arith.constant 0 : index
    %c0_216 = arith.constant 0 : index
    %792 = vector.load %arg7[%c0_215, %c0_216] : memref<128x512xbf16, #tpu.memory_space<vmem>>, vector<128x512xbf16>
    %cst_217 = arith.constant dense<0.000000e+00> : vector<8x512xf32>
    %793 = tpu.matmul %719, %792, %cst_217 {dimension_numbers = #tpu.dot_dimension_numbers<[1], [0], [0], [1], [0, 0, 1, 1], [], []>} : vector<8x128xbf16>, vector<128x512xbf16>, vector<8x512xf32> -> vector<8x512xf32>
    %794 = arith.addf %791, %793 : vector<8x512xf32>
    %795 = arith.truncf %794 : vector<8x512xf32> to vector<8x512xbf16>
    %796 = vector.extract_strided_slice %795 {offsets = [0, 0], sizes = [8, 128], strides = [1, 1]} : vector<8x512xbf16> to vector<8x128xbf16>
    %797 = arith.negf %796 : vector<8x128xbf16>
    %798 = math.exp %797 : vector<8x128xbf16>
    %cst_218 = arith.constant 1.000000e+00 : bf16
    %799 = vector.broadcast %cst_218 : bf16 to vector<8x128xbf16>
    %800 = arith.addf %799, %798 : vector<8x128xbf16>
    %801 = arith.divf %799, %800 : vector<8x128xbf16>
    %802 = vector.extract_strided_slice %795 {offsets = [0, 128], sizes = [8, 128], strides = [1, 1]} : vector<8x512xbf16> to vector<8x128xbf16>
    %803 = arith.negf %802 : vector<8x128xbf16>
    %804 = math.exp %803 : vector<8x128xbf16>
    %cst_219 = arith.constant 1.000000e+00 : bf16
    %805 = vector.broadcast %cst_219 : bf16 to vector<8x128xbf16>
    %806 = arith.addf %805, %804 : vector<8x128xbf16>
    %807 = arith.divf %805, %806 : vector<8x128xbf16>
    %808 = vector.extract_strided_slice %795 {offsets = [0, 256], sizes = [8, 128], strides = [1, 1]} : vector<8x512xbf16> to vector<8x128xbf16>
    %809 = math.tanh %808 : vector<8x128xbf16>
    %810 = vector.extract_strided_slice %795 {offsets = [0, 384], sizes = [8, 128], strides = [1, 1]} : vector<8x512xbf16> to vector<8x128xbf16>
    %811 = arith.negf %810 : vector<8x128xbf16>
    %812 = math.exp %811 : vector<8x128xbf16>
    %cst_220 = arith.constant 1.000000e+00 : bf16
    %813 = vector.broadcast %cst_220 : bf16 to vector<8x128xbf16>
    %814 = arith.addf %813, %812 : vector<8x128xbf16>
    %815 = arith.divf %813, %814 : vector<8x128xbf16>
    %816 = arith.extf %807 : vector<8x128xbf16> to vector<8x128xf32>
    %817 = arith.mulf %816, %723 : vector<8x128xf32>
    %818 = arith.mulf %801, %809 : vector<8x128xbf16>
    %819 = arith.extf %818 : vector<8x128xbf16> to vector<8x128xf32>
    %820 = arith.addf %817, %819 : vector<8x128xf32>
    %821 = arith.truncf %820 : vector<8x128xf32> to vector<8x128xbf16>
    %822 = math.tanh %821 : vector<8x128xbf16>
    %823 = arith.mulf %815, %822 : vector<8x128xbf16>
    %824 = arith.truncf %790 : vector<8x1xf32> to vector<8x1xbf16>
    %825 = arith.subf %823, %719 : vector<8x128xbf16>
    %826 = vector.broadcast %824 : vector<8x1xbf16> to vector<8x128xbf16>
    %827 = arith.mulf %826, %825 : vector<8x128xbf16>
    %828 = arith.addf %719, %827 : vector<8x128xbf16>
    %829 = arith.subf %820, %723 : vector<8x128xf32>
    %830 = vector.broadcast %790 : vector<8x1xf32> to vector<8x128xf32>
    %831 = arith.mulf %830, %829 : vector<8x128xf32>
    %832 = arith.addf %723, %831 : vector<8x128xf32>
    %833 = vector.broadcast %824 : vector<8x1xbf16> to vector<8x128xbf16>
    %834 = arith.mulf %833, %823 : vector<8x128xbf16>
    %835 = arith.index_cast %c7_i32_208 : i32 to index
    %c0_221 = arith.constant 0 : index
    %c0_222 = arith.constant 0 : index
    %836 = vector.load %arg15[%835, %c0_221, %c0_222] : memref<8x8x128xbf16, #tpu.memory_space<vmem>>, vector<1x8x128xbf16>
    %837 = vector.shape_cast %836 : vector<1x8x128xbf16> to vector<8x128xbf16>
    %838 = vector.shape_cast %834 : vector<8x128xbf16> to vector<1x8x128xbf16>
    tpu.vector_store %arg15[%835, %c0_221, %c0_222], %838 {strides = array<i32>} : memref<8x8x128xbf16, #tpu.memory_space<vmem>>, vector<1x8x128xbf16>,
    %839 = arith.index_cast %784 : i32 to index
    %c0_223 = arith.constant 0 : index
    %c0_224 = arith.constant 0 : index
    %840 = vector.load %arg14[%839, %c0_223, %c0_224] : memref<8x8x512xbf16, #tpu.memory_space<vmem>>, vector<1x8x512xbf16>
    %841 = vector.shape_cast %840 : vector<1x8x512xbf16> to vector<8x512xbf16>
    %c0_225 = arith.constant 0 : index
    %842 = arith.index_cast %784 : i32 to index
    %c0_226 = arith.constant 0 : index
    %c0_227 = arith.constant 0 : index
    %843 = vector.load %arg2[%c0_225, %842, %c0_226, %c0_227] : memref<1x8x8x1xf32, #tpu.memory_space<vmem>>, vector<1x1x8x1xf32>
    %844 = vector.shape_cast %843 : vector<1x1x8x1xf32> to vector<8x1xf32>
    %845 = arith.extf %841 : vector<8x512xbf16> to vector<8x512xf32>
    %c0_228 = arith.constant 0 : index
    %c0_229 = arith.constant 0 : index
    %846 = vector.load %arg8[%c0_228, %c0_229] : memref<128x512xbf16, #tpu.memory_space<vmem>>, vector<128x512xbf16>
    %cst_230 = arith.constant dense<0.000000e+00> : vector<8x512xf32>
    %847 = tpu.matmul %773, %846, %cst_230 {dimension_numbers = #tpu.dot_dimension_numbers<[1], [0], [0], [1], [0, 0, 1, 1], [], []>} : vector<8x128xbf16>, vector<128x512xbf16>, vector<8x512xf32> -> vector<8x512xf32>
    %848 = arith.addf %845, %847 : vector<8x512xf32>
    %849 = arith.truncf %848 : vector<8x512xf32> to vector<8x512xbf16>
    %850 = vector.extract_strided_slice %849 {offsets = [0, 0], sizes = [8, 128], strides = [1, 1]} : vector<8x512xbf16> to vector<8x128xbf16>
    %851 = arith.negf %850 : vector<8x128xbf16>
    %852 = math.exp %851 : vector<8x128xbf16>
    %cst_231 = arith.constant 1.000000e+00 : bf16
    %853 = vector.broadcast %cst_231 : bf16 to vector<8x128xbf16>
    %854 = arith.addf %853, %852 : vector<8x128xbf16>
    %855 = arith.divf %853, %854 : vector<8x128xbf16>
    %856 = vector.extract_strided_slice %849 {offsets = [0, 128], sizes = [8, 128], strides = [1, 1]} : vector<8x512xbf16> to vector<8x128xbf16>
    %857 = arith.negf %856 : vector<8x128xbf16>
    %858 = math.exp %857 : vector<8x128xbf16>
    %cst_232 = arith.constant 1.000000e+00 : bf16
    %859 = vector.broadcast %cst_232 : bf16 to vector<8x128xbf16>
    %860 = arith.addf %859, %858 : vector<8x128xbf16>
    %861 = arith.divf %859, %860 : vector<8x128xbf16>
    %862 = vector.extract_strided_slice %849 {offsets = [0, 256], sizes = [8, 128], strides = [1, 1]} : vector<8x512xbf16> to vector<8x128xbf16>
    %863 = math.tanh %862 : vector<8x128xbf16>
    %864 = vector.extract_strided_slice %849 {offsets = [0, 384], sizes = [8, 128], strides = [1, 1]} : vector<8x512xbf16> to vector<8x128xbf16>
    %865 = arith.negf %864 : vector<8x128xbf16>
    %866 = math.exp %865 : vector<8x128xbf16>
    %cst_233 = arith.constant 1.000000e+00 : bf16
    %867 = vector.broadcast %cst_233 : bf16 to vector<8x128xbf16>
    %868 = arith.addf %867, %866 : vector<8x128xbf16>
    %869 = arith.divf %867, %868 : vector<8x128xbf16>
    %870 = arith.extf %861 : vector<8x128xbf16> to vector<8x128xf32>
    %871 = arith.mulf %870, %777 : vector<8x128xf32>
    %872 = arith.mulf %855, %863 : vector<8x128xbf16>
    %873 = arith.extf %872 : vector<8x128xbf16> to vector<8x128xf32>
    %874 = arith.addf %871, %873 : vector<8x128xf32>
    %875 = arith.truncf %874 : vector<8x128xf32> to vector<8x128xbf16>
    %876 = math.tanh %875 : vector<8x128xbf16>
    %877 = arith.mulf %869, %876 : vector<8x128xbf16>
    %878 = arith.truncf %844 : vector<8x1xf32> to vector<8x1xbf16>
    %879 = arith.subf %877, %773 : vector<8x128xbf16>
    %880 = vector.broadcast %878 : vector<8x1xbf16> to vector<8x128xbf16>
    %881 = arith.mulf %880, %879 : vector<8x128xbf16>
    %882 = arith.addf %773, %881 : vector<8x128xbf16>
    %883 = arith.subf %874, %777 : vector<8x128xf32>
    %884 = vector.broadcast %844 : vector<8x1xf32> to vector<8x128xf32>
    %885 = arith.mulf %884, %883 : vector<8x128xf32>
    %886 = arith.addf %777, %885 : vector<8x128xf32>
    %887 = vector.broadcast %878 : vector<8x1xbf16> to vector<8x128xbf16>
    %888 = arith.mulf %887, %877 : vector<8x128xbf16>
    %889 = arith.index_cast %784 : i32 to index
    %c0_234 = arith.constant 0 : index
    %c0_235 = arith.constant 0 : index
    %890 = vector.load %arg16[%889, %c0_234, %c0_235] : memref<8x8x128xbf16, #tpu.memory_space<vmem>>, vector<1x8x128xbf16>
    %891 = vector.shape_cast %890 : vector<1x8x128xbf16> to vector<8x128xbf16>
    %892 = vector.shape_cast %888 : vector<8x128xbf16> to vector<1x8x128xbf16>
    tpu.vector_store %arg16[%889, %c0_234, %c0_235], %892 {strides = array<i32>} : memref<8x8x128xbf16, #tpu.memory_space<vmem>>, vector<1x8x128xbf16>,
    %c8_i32 = arith.constant 8 : i32
    %c0_236 = arith.constant 0 : index
    %c0_237 = arith.constant 0 : index
    %c0_238 = arith.constant 0 : index
    %893 = vector.load %arg15[%c0_236, %c0_237, %c0_238] : memref<8x8x128xbf16, #tpu.memory_space<vmem>>, vector<8x8x128xbf16>
    %894 = vector.shape_cast %893 : vector<8x8x128xbf16> to vector<64x128xbf16>
    %c0_239 = arith.constant 0 : index
    %c0_240 = arith.constant 0 : index
    %c0_241 = arith.constant 0 : index
    %895 = vector.load %arg16[%c0_239, %c0_240, %c0_241] : memref<8x8x128xbf16, #tpu.memory_space<vmem>>, vector<8x8x128xbf16>
    %896 = vector.shape_cast %895 : vector<8x8x128xbf16> to vector<64x128xbf16>
    %c0_242 = arith.constant 0 : index
    %c0_243 = arith.constant 0 : index
    %897 = vector.load %arg9[%c0_242, %c0_243] : memref<128x128xbf16, #tpu.memory_space<vmem>>, vector<128x128xbf16>
    %cst_244 = arith.constant dense<0.000000e+00> : vector<64x128xf32>
    %898 = tpu.matmul %894, %897, %cst_244 {dimension_numbers = #tpu.dot_dimension_numbers<[1], [0], [0], [1], [0, 0, 1, 1], [], []>} : vector<64x128xbf16>, vector<128x128xbf16>, vector<64x128xf32> -> vector<64x128xf32>
    %c0_245 = arith.constant 0 : index
    %c0_246 = arith.constant 0 : index
    %899 = vector.load %arg10[%c0_245, %c0_246] : memref<128x128xbf16, #tpu.memory_space<vmem>>, vector<128x128xbf16>
    %cst_247 = arith.constant dense<0.000000e+00> : vector<64x128xf32>
    %900 = tpu.matmul %896, %899, %cst_247 {dimension_numbers = #tpu.dot_dimension_numbers<[1], [0], [0], [1], [0, 0, 1, 1], [], []>} : vector<64x128xbf16>, vector<128x128xbf16>, vector<64x128xf32> -> vector<64x128xf32>
    %901 = arith.addf %898, %900 : vector<64x128xf32>
    %c0_248 = arith.constant 0 : index
    %c0_249 = arith.constant 0 : index
    %902 = vector.load %arg11[%c0_248, %c0_249] : memref<1x128xf32, #tpu.memory_space<vmem>>, vector<1x128xf32>
    %903 = vector.broadcast %902 : vector<1x128xf32> to vector<64x128xf32>
    %904 = arith.addf %901, %903 : vector<64x128xf32>
    %905 = vector.shape_cast %904 : vector<64x128xf32> to vector<8x8x128xf32>
    %906 = arith.truncf %905 : vector<8x8x128xf32> to vector<8x8x128xbf16>
    %c0_250 = arith.constant 0 : index
    %c0_251 = arith.constant 0 : index
    %c0_252 = arith.constant 0 : index
    %c0_253 = arith.constant 0 : index
    %907 = vector.load %arg12[%c0_250, %c0_251, %c0_252, %c0_253] : memref<1x8x8x128xbf16, #tpu.memory_space<vmem>>, vector<1x8x8x128xbf16>
    %908 = vector.shape_cast %907 : vector<1x8x8x128xbf16> to vector<8x8x128xbf16>
    %909 = vector.shape_cast %906 : vector<8x8x128xbf16> to vector<1x8x8x128xbf16>
    tpu.vector_store %arg12[%c0_250, %c0_251, %c0_252, %c0_253], %909 {strides = array<i32>} : memref<1x8x8x128xbf16, #tpu.memory_space<vmem>>, vector<1x8x8x128xbf16>,
    return
  }
  func.func @transform_0(%arg0: i32) -> (i32, i32, i32, i32) {
    %c0_i32 = arith.constant 0 : i32
    %c0_i32_0 = arith.constant 0 : i32
    %c0_i32_1 = arith.constant 0 : i32
    %c0_i32_2 = arith.constant 0 : i32
    return %arg0, %c0_i32, %c0_i32_0, %c0_i32_1 : i32, i32, i32, i32
  }
  func.func @transform_1(%arg0: i32) -> (i32, i32, i32, i32) {
    %c0_i32 = arith.constant 0 : i32
    %c0_i32_0 = arith.constant 0 : i32
    %c0_i32_1 = arith.constant 0 : i32
    %c0_i32_2 = arith.constant 0 : i32
    return %arg0, %c0_i32, %c0_i32_0, %c0_i32_1 : i32, i32, i32, i32
  }
  func.func @transform_2(%arg0: i32) -> (i32, i32) {
    %c0_i32 = arith.constant 0 : i32
    %c0_i32_0 = arith.constant 0 : i32
    %c0_i32_1 = arith.constant 0 : i32
    return %c0_i32, %c0_i32_0 : i32, i32
  }
  func.func @transform_3(%arg0: i32) -> (i32, i32) {
    %c0_i32 = arith.constant 0 : i32
    %c0_i32_0 = arith.constant 0 : i32
    %c0_i32_1 = arith.constant 0 : i32
    return %c0_i32, %c0_i32_0 : i32, i32
  }
  func.func @transform_4(%arg0: i32) -> (i32, i32) {
    %c0_i32 = arith.constant 0 : i32
    %c0_i32_0 = arith.constant 0 : i32
    %c0_i32_1 = arith.constant 0 : i32
    return %c0_i32, %c0_i32_0 : i32, i32
  }
  func.func @transform_5(%arg0: i32) -> (i32, i32) {
    %c0_i32 = arith.constant 0 : i32
    %c0_i32_0 = arith.constant 0 : i32
    %c0_i32_1 = arith.constant 0 : i32
    return %c0_i32, %c0_i32_0 : i32, i32
  }
  func.func @transform_6(%arg0: i32) -> (i32, i32) {
    %c0_i32 = arith.constant 0 : i32
    %c0_i32_0 = arith.constant 0 : i32
    %c0_i32_1 = arith.constant 0 : i32
    return %c0_i32, %c0_i32_0 : i32, i32
  }
  func.func @transform_7(%arg0: i32) -> (i32, i32) {
    %c0_i32 = arith.constant 0 : i32
    %c0_i32_0 = arith.constant 0 : i32
    %c0_i32_1 = arith.constant 0 : i32
    return %c0_i32, %c0_i32_0 : i32, i32
  }
  func.func @transform_8(%arg0: i32) -> (i32, i32) {
    %c0_i32 = arith.constant 0 : i32
    %c0_i32_0 = arith.constant 0 : i32
    %c0_i32_1 = arith.constant 0 : i32
    return %c0_i32, %c0_i32_0 : i32, i32
  }
  func.func @transform_9(%arg0: i32) -> (i32, i32) {
    %c0_i32 = arith.constant 0 : i32
    %c0_i32_0 = arith.constant 0 : i32
    %c0_i32_1 = arith.constant 0 : i32
    return %c0_i32, %c0_i32_0 : i32, i32
  }
  func.func @transform_10(%arg0: i32) -> (i32, i32) {
    %c0_i32 = arith.constant 0 : i32
    %c0_i32_0 = arith.constant 0 : i32
    %c0_i32_1 = arith.constant 0 : i32
    return %c0_i32, %c0_i32_0 : i32, i32
  }
  func.func @transform_11(%arg0: i32) -> (i32, i32, i32, i32) {
    %c0_i32 = arith.constant 0 : i32
    %c0_i32_0 = arith.constant 0 : i32
    %c0_i32_1 = arith.constant 0 : i32
    %c0_i32_2 = arith.constant 0 : i32
    return %arg0, %c0_i32, %c0_i32_0, %c0_i32_1 : i32, i32, i32, i32
  }
}

</mosaic_0001>

<llo_original>
// kernel: tpu_custom_call.1
$region0: #{tpu_custom_call.1}
  #allocation0 [shape = 'u32[]', space=smem, size = 0x4, offset = 0x4, fixed_abs, tag = 'smem constant byte address 0x4 - core index']
  #allocation1 [shape = 'u32[144,128]{1,0:T(1,128)}', space=vmem, size = 0x12000, scoped, tag = 'internal scratch']
  #allocation2 [shape = 'bf16[8,8,512]{2,1,0:T(8,128)(2,1)}', space=vmem, size = 0x10000, scoped, tag = 'scratch operand']
  #allocation3 [shape = 'bf16[8,8,512]{2,1,0:T(8,128)(2,1)}', space=vmem, size = 0x10000, scoped, tag = 'scratch operand']
  #allocation4 [shape = 'bf16[8,8,128]{2,1,0:T(8,128)(2,1)}', space=vmem, size = 0x4000, scoped, tag = 'scratch operand']
  #allocation5 [shape = 'bf16[8,8,128]{2,1,0:T(8,128)(2,1)}', space=vmem, size = 0x4000, scoped, tag = 'scratch operand']
  %s0 = inlined_call_operand.hbm [shape: bf16[1,8,8,16], index: 0, kind: input, shape index: {}]
  %s1 = inlined_call_operand.vmem [shape: f32[1,8,8,1], index: 1, kind: input, shape index: {}]
  %s2 = inlined_call_operand.hbm [shape: bf16[16,512], index: 2, kind: input, shape index: {}]
  %s3 = inlined_call_operand.hbm [shape: bf16[16,512], index: 3, kind: input, shape index: {}]
  %s4 = inlined_call_operand.vmem [shape: f32[1,512], index: 4, kind: input, shape index: {}]
  %s5 = inlined_call_operand.vmem [shape: f32[1,512], index: 5, kind: input, shape index: {}]
  %s6 = inlined_call_operand.hbm [shape: bf16[128,512], index: 6, kind: input, shape index: {}]
  %s7 = inlined_call_operand.hbm [shape: bf16[128,512], index: 7, kind: input, shape index: {}]
  %s8 = inlined_call_operand.vmem [shape: bf16[128,128], index: 8, kind: input, shape index: {}]
  %s9 = inlined_call_operand.hbm [shape: bf16[128,128], index: 9, kind: input, shape index: {}]
  %s10 = inlined_call_operand.vmem [shape: f32[1,128], index: 10, kind: input, shape index: {}]
  %s11 = inlined_call_operand.hbm [shape: bf16[1,8,8,128], index: 11, kind: output, shape index: {}]
  %s12 = sld [smem:[#allocation0]]
  $region78: #{tpu_custom_call.1} parent=0
    _
  %s14 = ssub.s32 1, %s12
  %s15 = scalar_select 0, %s14, %s12
  $region1: #{tpu_custom_call.1} parent=0
    #allocation6 [shape = 'u8[16384]{0}', space=vmem, size = 0x4000, scoped, tag = 'input window, operand 0, single buffered']
    #allocation7 [shape = 's32[1]{0}', space=sflag, size = 0x4, scoped, tag = 'scoped memory for tpu_custom_call.1']
    #allocation8 [shape = 's32[1]{0}', space=sflag, size = 0x4, scoped, tag = 'scoped memory for tpu_custom_call.1']
    #allocation9 [shape = 'u8[16384]{0}', space=vmem, size = 0x4000, scoped, tag = 'input window, operand 2, single buffered']
    #allocation10 [shape = 's32[1]{0}', space=sflag, size = 0x4, scoped, tag = 'scoped memory for tpu_custom_call.1']
    #allocation11 [shape = 'u8[16384]{0}', space=vmem, size = 0x4000, scoped, tag = 'input window, operand 3, single buffered']
    #allocation12 [shape = 'u8[131072]{0}', space=vmem, size = 0x20000, scoped, tag = 'input window, operand 6, single buffered']
    #allocation13 [shape = 's32[1]{0}', space=sflag, size = 0x4, scoped, tag = 'scoped memory for tpu_custom_call.1']
    #allocation14 [shape = 'u8[131072]{0}', space=vmem, size = 0x20000, scoped, tag = 'input window, operand 7, single buffered']
    #allocation15 [shape = 'u8[32768]{0}', space=vmem, size = 0x8000, scoped, tag = 'input window, operand 9, single buffered']
    #allocation16 [shape = 's32[1]{0}', space=sflag, size = 0x4, scoped, tag = 'scoped memory for tpu_custom_call.1']
    #allocation17 [shape = 'u8[16384]{0}', space=vmem, size = 0x4000, scoped, tag = 'output window, operand 0, single buffered']
    %16 = vsyncpa [#allocation7], 0
    %17 = vsyncpa [#allocation10], 0
    %18 = vsyncpa [#allocation13], 0
    %19 = vsyncpa [#allocation16], 0
    %20 = vsyncpa [#allocation8], 0
    // Predicated region
    $region2: #{tpu_custom_call.1} parent=1 // pred_check
      _
    $region3: #{tpu_custom_call.1} parent=1 // pred_check_branch
      %22 = sbr.rel (0) target = $region5
    $region4: #{tpu_custom_call.1} parent=1 // pred_region
      %s24 = ssub.s32 512, 512
      %25 = vsyncadd [#allocation7], %s24
      %s26 = sshll.u32 [#allocation6], 4
      %s27 = int_to_ptr.vmem [resolvable:$true] %s26
      %32 = dma.hbm_to_vmem [thread:$0]  %s0, 512, %s27, [#allocation7], 64, 64, 4
    $region5: #{tpu_custom_call.1} parent=1 // pred_fallthru
      _
    // Predicated region
    $region6: #{tpu_custom_call.1} parent=1 // pred_check
      _
    $region7: #{tpu_custom_call.1} parent=1 // pred_check_branch
      %34 = sbr.rel (0) target = $region9
    $region8: #{tpu_custom_call.1} parent=1 // pred_region
      _
    $region9: #{tpu_custom_call.1} parent=1 // pred_fallthru
      _
    // Predicated region
    $region10: #{tpu_custom_call.1} parent=1 // pred_check
      _
    $region11: #{tpu_custom_call.1} parent=1 // pred_check_branch
      %36 = sbr.rel (0) target = $region13
    $region12: #{tpu_custom_call.1} parent=1 // pred_region
      %s38 = ssub.s32 512, 512
      %39 = vsyncadd [#allocation10], %s38
      %s40 = sshll.u32 [#allocation9], 4
      %s41 = int_to_ptr.vmem [resolvable:$true] %s40
      %46 = dma.hbm_to_vmem [thread:$0]  %s2, 512, %s41, [#allocation10], 256, 256, 16
    $region13: #{tpu_custom_call.1} parent=1 // pred_fallthru
      _
    // Predicated region
    $region14: #{tpu_custom_call.1} parent=1 // pred_check
      _
    $region15: #{tpu_custom_call.1} parent=1 // pred_check_branch
      %48 = sbr.rel (0) target = $region17
    $region16: #{tpu_custom_call.1} parent=1 // pred_region
      %s50 = ssub.s32 512, 512
      %51 = vsyncadd [#allocation10], %s50
      %s52 = sshll.u32 [#allocation11], 4
      %s53 = int_to_ptr.vmem [resolvable:$true] %s52
      %58 = dma.hbm_to_vmem [thread:$0]  %s3, 512, %s53, [#allocation10], 256, 256, 16
    $region17: #{tpu_custom_call.1} parent=1 // pred_fallthru
      _
    // Predicated region
    $region18: #{tpu_custom_call.1} parent=1 // pred_check
      _
    $region19: #{tpu_custom_call.1} parent=1 // pred_check_branch
      %60 = sbr.rel (0) target = $region21
    $region20: #{tpu_custom_call.1} parent=1 // pred_region
      _
    $region21: #{tpu_custom_call.1} parent=1 // pred_fallthru
      _
    // Predicated region
    $region22: #{tpu_custom_call.1} parent=1 // pred_check
      _
    $region23: #{tpu_custom_call.1} parent=1 // pred_check_branch
      %62 = sbr.rel (0) target = $region25
    $region24: #{tpu_custom_call.1} parent=1 // pred_region
      _
    $region25: #{tpu_custom_call.1} parent=1 // pred_fallthru
      _
    // Predicated region
    $region26: #{tpu_custom_call.1} parent=1 // pred_check
      _
    $region27: #{tpu_custom_call.1} parent=1 // pred_check_branch
      %64 = sbr.rel (0) target = $region29
    $region28: #{tpu_custom_call.1} parent=1 // pred_region
      %s66 = ssub.s32 4096, 4096
      %67 = vsyncadd [#allocation13], %s66
      %s68 = sshll.u32 [#allocation12], 4
      %s69 = int_to_ptr.vmem [resolvable:$true] %s68
      %74 = dma.hbm_to_vmem [thread:$0]  %s6, 4096, %s69, [#allocation13], 256, 256, 16
    $region29: #{tpu_custom_call.1} parent=1 // pred_fallthru
      _
    // Predicated region
    $region30: #{tpu_custom_call.1} parent=1 // pred_check
      _
    $region31: #{tpu_custom_call.1} parent=1 // pred_check_branch
      %76 = sbr.rel (0) target = $region33
    $region32: #{tpu_custom_call.1} parent=1 // pred_region
      %s78 = ssub.s32 4096, 4096
      %79 = vsyncadd [#allocation13], %s78
      %s80 = sshll.u32 [#allocation14], 4
      %s81 = int_to_ptr.vmem [resolvable:$true] %s80
      %86 = dma.hbm_to_vmem [thread:$0]  %s7, 4096, %s81, [#allocation13], 256, 256, 16
    $region33: #{tpu_custom_call.1} parent=1 // pred_fallthru
      _
    // Predicated region
    $region34: #{tpu_custom_call.1} parent=1 // pred_check
      _
    $region35: #{tpu_custom_call.1} parent=1 // pred_check_branch
      %88 = sbr.rel (0) target = $region37
    $region36: #{tpu_custom_call.1} parent=1 // pred_region
      _
    $region37: #{tpu_custom_call.1} parent=1 // pred_fallthru
      _
    // Predicated region
    $region38: #{tpu_custom_call.1} parent=1 // pred_check
      _
    $region39: #{tpu_custom_call.1} parent=1 // pred_check_branch
      %90 = sbr.rel (0) target = $region41
    $region40: #{tpu_custom_call.1} parent=1 // pred_region
      %s92 = ssub.s32 1024, 1024
      %93 = vsyncadd [#allocation16], %s92
      %s94 = sshll.u32 [#allocation15], 4
      %s95 = int_to_ptr.vmem [resolvable:$true] %s94
      %100 = dma.hbm_to_vmem [thread:$0]  %s9, 1024, %s95, [#allocation16], 64, 64, 4
    $region41: #{tpu_custom_call.1} parent=1 // pred_fallthru
      _
    // Predicated region
    $region42: #{tpu_custom_call.1} parent=1 // pred_check
      _
    $region43: #{tpu_custom_call.1} parent=1 // pred_check_branch
      %102 = sbr.rel (0) target = $region45
    $region44: #{tpu_custom_call.1} parent=1 // pred_region
      _
    $region45: #{tpu_custom_call.1} parent=1 // pred_fallthru
      _
    // Predicated region
    $region46: #{tpu_custom_call.1} parent=1 // pred_check
      _
    $region47: #{tpu_custom_call.1} parent=1 // pred_check_branch
      %104 = sbr.rel (0) target = $region49
    $region48: #{tpu_custom_call.1} parent=1 // pred_region
      %105 = dma.done [#allocation7], 512
    $region49: #{tpu_custom_call.1} parent=1 // pred_fallthru
      _
    // Predicated region
    $region50: #{tpu_custom_call.1} parent=1 // pred_check
      _
    $region51: #{tpu_custom_call.1} parent=1 // pred_check_branch
      %107 = sbr.rel (0) target = $region53
    $region52: #{tpu_custom_call.1} parent=1 // pred_region
      %108 = dma.done [#allocation10], 512
    $region53: #{tpu_custom_call.1} parent=1 // pred_fallthru
      _
    // Predicated region
    $region54: #{tpu_custom_call.1} parent=1 // pred_check
      _
    $region55: #{tpu_custom_call.1} parent=1 // pred_check_branch
      %110 = sbr.rel (0) target = $region57
    $region56: #{tpu_custom_call.1} parent=1 // pred_region
      %111 = dma.done [#allocation10], 512
    $region57: #{tpu_custom_call.1} parent=1 // pred_fallthru
      _
    // Predicated region
    $region58: #{tpu_custom_call.1} parent=1 // pred_check
      _
    $region59: #{tpu_custom_call.1} parent=1 // pred_check_branch
      %113 = sbr.rel (0) target = $region61
    $region60: #{tpu_custom_call.1} parent=1 // pred_region
      %114 = dma.done [#allocation13], 4096
    $region61: #{tpu_custom_call.1} parent=1 // pred_fallthru
      _
    // Predicated region
    $region62: #{tpu_custom_call.1} parent=1 // pred_check
      _
    $region63: #{tpu_custom_call.1} parent=1 // pred_check_branch
      %116 = sbr.rel (0) target = $region65
    $region64: #{tpu_custom_call.1} parent=1 // pred_region
      %117 = dma.done [#allocation13], 4096
    $region65: #{tpu_custom_call.1} parent=1 // pred_fallthru
      _
    // Predicated region
    $region66: #{tpu_custom_call.1} parent=1 // pred_check
      _
    $region67: #{tpu_custom_call.1} parent=1 // pred_check_branch
      %119 = sbr.rel (0) target = $region69
    $region68: #{tpu_custom_call.1} parent=1 // pred_region
      %120 = dma.done [#allocation16], 1024
    $region69: #{tpu_custom_call.1} parent=1 // pred_fallthru
      _
    %v123 = vld [vmem:[#allocation6] sm:$0xf]
    %v124 = vld [vmem:[#allocation6 + $0x4] sm:$0xf]
    %v125 = vld [vmem:[#allocation6 + $0x8] sm:$0xf]
    %v126 = vld [vmem:[#allocation6 + $0xc] sm:$0xf]
    %v127 = vld [vmem:[#allocation6 + $0x10] sm:$0xf]
    %v128 = vld [vmem:[#allocation6 + $0x14] sm:$0xf]
    %v129 = vld [vmem:[#allocation6 + $0x18] sm:$0xf]
    %v130 = vld [vmem:[#allocation6 + $0x1c] sm:$0xf]
    %v131 = vld [vmem:[#allocation9] sm:$0xff]
    %v132 = vld [vmem:[#allocation9 + $0x8] sm:$0xff]
    %v133 = vld [vmem:[#allocation9 + $0x10] sm:$0xff]
    %v134 = vld [vmem:[#allocation9 + $0x18] sm:$0xff]
    %v135 = vld [vmem:[%s4] sm:$0xf]
    %v137 = vlaneseq
    %v138 = vshrl.u32 %v137, 7
    %v139 = vsub.s32 0, %v138
    %v140 = vrot.slane %v135, %v139
    %v141 = vlaneseq
    %v142 = vshrl.u32 %v141, 7
    %v143 = vsub.s32 1, %v142
    %v144 = vrot.slane %v135, %v143
    %v145 = vlaneseq
    %v146 = vshrl.u32 %v145, 7
    %v147 = vsub.s32 2, %v146
    %v148 = vrot.slane %v135, %v147
    %v149 = vlaneseq
    %v150 = vshrl.u32 %v149, 7
    %v151 = vsub.s32 3, %v150
    %v152 = vrot.slane %v135, %v151
    %v165 = vunpack.c.l.b16 %v123
    %v166 = vunpack.c.l.b16 %v124
    %v167 = vunpack.c.l.b16 %v125
    %v168 = vunpack.c.l.b16 %v126
    %v169 = vunpack.c.l.b16 %v127
    %v170 = vunpack.c.l.b16 %v128
    %v171 = vunpack.c.l.b16 %v129
    %v172 = vunpack.c.l.b16 %v130
    %v173 = vpack.c.b16 %v166, %v165
    %v174 = vpack.c.b16 %v168, %v167
    %v175 = vpack.c.b16 %v170, %v169
    %v176 = vpack.c.b16 %v172, %v171
    %v181 = vunpack.c.l.b16 %v131
    %v182 = vunpack.c.h.b16 %v131
    %v183 = vunpack.c.l.b16 %v132
    %v184 = vunpack.c.h.b16 %v132
    %v185 = vunpack.c.l.b16 %v133
    %v186 = vunpack.c.h.b16 %v133
    %v187 = vunpack.c.l.b16 %v134
    %v188 = vunpack.c.h.b16 %v134
    %v189 = vpack.c.b16 %v185, %v181
    %v190 = vpack.c.b16 %v186, %v182
    %v191 = vpack.c.b16 %v187, %v183
    %v192 = vpack.c.b16 %v188, %v184
    %vm197 = vcmask 130048
    %v199 = vsel %vm197, %v173, 0
    %v202 = vsel %vm197, %v174, 0
    %v205 = vsel %vm197, %v175, 0
    %v208 = vsel %vm197, %v176, 0
    %210 = vmatprep.subr.bf16.mxu0 0
    %211 = vmatpush1.bf16.msra.mxu0 0
    %212 = vmatprep.subr.bf16.mxu0 0
    %213 = vmatpush1.bf16.msra.mxu0 0
    %214 = vmatprep.subr.bf16.mxu0 0
    %215 = vmatpush1.bf16.msra.mxu0 0
    %216 = vmatprep.subr.bf16.mxu0 0
    %217 = vmatpush1.bf16.msra.mxu0 0
    %218 = vmatprep.subr.bf16.mxu0 0
    %219 = vmatpush1.bf16.msra.mxu0 0
    %220 = vmatprep.subr.bf16.mxu0 0
    %221 = vmatpush1.bf16.msra.mxu0 0
    %222 = vmatprep.subr.bf16.mxu0 0
    %223 = vmatpush1.bf16.msra.mxu0 0
    %224 = vmatprep.subr.bf16.mxu0 %v190
    %225 = vmatpush1.bf16.msra.mxu0 %v189
    %226 = vmatprep.subr.bf16.mxu0 0
    %227 = vmatpush2.bf16.msra.mxu0 0
    %228 = vmatprep.subr.bf16.mxu0 0
    %229 = vmatpush2.bf16.msra.mxu0 0
    %230 = vmatprep.subr.bf16.mxu0 0
    %231 = vmatpush2.bf16.msra.mxu0 0
    %232 = vmatprep.subr.bf16.mxu0 0
    %233 = vmatpush2.bf16.msra.mxu0 0
    %234 = vmatprep.subr.bf16.mxu0 0
    %235 = vmatpush2.bf16.msra.mxu0 0
    %236 = vmatprep.subr.bf16.mxu0 0
    %237 = vmatpush2.bf16.msra.mxu0 0
    %238 = vmatprep.subr.bf16.mxu0 0
    %239 = vmatpush2.bf16.msra.mxu0 0
    %240 = vmatprep.subr.bf16.mxu0 0
    %241 = vmatpush2.bf16.msra.mxu0 0
    %242 = vmatprep.mubr.bf16.mxu0 0
    %243 = vmatmul.mubr.bf16.gmra.mxu0 %v199
    %v244 = vpop.f32.mrf.mxu0
    %v245 = vadd.f32 %v140, %v244
    %v246 = vpop.f32.mrf.mxu0
    %v247 = vadd.f32 %v144, %v246
    %v248 = vpop.f32.mrf.mxu0
    %v249 = vadd.f32 %v140, %v248
    %v250 = vpop.f32.mrf.mxu0
    %v251 = vadd.f32 %v144, %v250
    %252 = vmatprep.mubr.bf16.mxu0 0
    %253 = vmatmul.mubr.bf16.gmra.mxu0 %v202
    %v254 = vpop.f32.mrf.mxu0
    %v255 = vadd.f32 %v140, %v254
    %v256 = vpop.f32.mrf.mxu0
    %v257 = vadd.f32 %v144, %v256
    %v258 = vpop.f32.mrf.mxu0
    %v259 = vadd.f32 %v140, %v258
    %v260 = vpop.f32.mrf.mxu0
    %v261 = vadd.f32 %v144, %v260
    %262 = vmatprep.mubr.bf16.mxu0 0
    %263 = vmatmul.mubr.bf16.gmra.mxu0 %v205
    %v264 = vpop.f32.mrf.mxu0
    %v265 = vadd.f32 %v140, %v264
    %v266 = vpop.f32.mrf.mxu0
    %v267 = vadd.f32 %v144, %v266
    %v268 = vpop.f32.mrf.mxu0
    %v269 = vadd.f32 %v140, %v268
    %v270 = vpop.f32.mrf.mxu0
    %v271 = vadd.f32 %v144, %v270
    %272 = vmatprep.mubr.bf16.mxu0 0
    %273 = vmatmul.mubr.bf16.gmra.mxu0 %v208
    %v274 = vpop.f32.mrf.mxu0
    %v275 = vadd.f32 %v140, %v274
    %v276 = vpop.f32.mrf.mxu0
    %v277 = vadd.f32 %v144, %v276
    %v278 = vpop.f32.mrf.mxu0
    %v279 = vadd.f32 %v140, %v278
    %v280 = vpop.f32.mrf.mxu0
    %v281 = vadd.f32 %v144, %v280
    %282 = vdwg.mxu0
    %283 = vmatprep.subr.bf16.mxu0 0
    %284 = vmatpush1.bf16.msra.mxu0 0
    %285 = vmatprep.subr.bf16.mxu0 0
    %286 = vmatpush1.bf16.msra.mxu0 0
    %287 = vmatprep.subr.bf16.mxu0 0
    %288 = vmatpush1.bf16.msra.mxu0 0
    %289 = vmatprep.subr.bf16.mxu0 0
    %290 = vmatpush1.bf16.msra.mxu0 0
    %291 = vmatprep.subr.bf16.mxu0 0
    %292 = vmatpush1.bf16.msra.mxu0 0
    %293 = vmatprep.subr.bf16.mxu0 0
    %294 = vmatpush1.bf16.msra.mxu0 0
    %295 = vmatprep.subr.bf16.mxu0 0
    %296 = vmatpush1.bf16.msra.mxu0 0
    %297 = vmatprep.subr.bf16.mxu0 %v192
    %298 = vmatpush1.bf16.msra.mxu0 %v191
    %299 = vmatprep.subr.bf16.mxu0 0
    %300 = vmatpush2.bf16.msra.mxu0 0
    %301 = vmatprep.subr.bf16.mxu0 0
    %302 = vmatpush2.bf16.msra.mxu0 0
    %303 = vmatprep.subr.bf16.mxu0 0
    %304 = vmatpush2.bf16.msra.mxu0 0
    %305 = vmatprep.subr.bf16.mxu0 0
    %306 = vmatpush2.bf16.msra.mxu0 0
    %307 = vmatprep.subr.bf16.mxu0 0
    %308 = vmatpush2.bf16.msra.mxu0 0
    %309 = vmatprep.subr.bf16.mxu0 0
    %310 = vmatpush2.bf16.msra.mxu0 0
    %311 = vmatprep.subr.bf16.mxu0 0
    %312 = vmatpush2.bf16.msra.mxu0 0
    %313 = vmatprep.subr.bf16.mxu0 0
    %314 = vmatpush2.bf16.msra.mxu0 0
    %315 = vmatprep.mubr.bf16.mxu0 0
    %316 = vmatmul.mubr.bf16.gmra.mxu0 %v199
    %v317 = vpop.f32.mrf.mxu0
    %v318 = vadd.f32 %v148, %v317
    %v319 = vpop.f32.mrf.mxu0
    %v320 = vadd.f32 %v152, %v319
    %v321 = vpop.f32.mrf.mxu0
    %v322 = vadd.f32 %v148, %v321
    %v323 = vpop.f32.mrf.mxu0
    %v324 = vadd.f32 %v152, %v323
    %325 = vmatprep.mubr.bf16.mxu0 0
    %326 = vmatmul.mubr.bf16.gmra.mxu0 %v202
    %v327 = vpop.f32.mrf.mxu0
    %v328 = vadd.f32 %v148, %v327
    %v329 = vpop.f32.mrf.mxu0
    %v330 = vadd.f32 %v152, %v329
    %v331 = vpop.f32.mrf.mxu0
    %v332 = vadd.f32 %v148, %v331
    %v333 = vpop.f32.mrf.mxu0
    %v334 = vadd.f32 %v152, %v333
    %335 = vmatprep.mubr.bf16.mxu0 0
    %336 = vmatmul.mubr.bf16.gmra.mxu0 %v205
    %v337 = vpop.f32.mrf.mxu0
    %v338 = vadd.f32 %v148, %v337
    %v339 = vpop.f32.mrf.mxu0
    %v340 = vadd.f32 %v152, %v339
    %v341 = vpop.f32.mrf.mxu0
    %v342 = vadd.f32 %v148, %v341
    %v343 = vpop.f32.mrf.mxu0
    %v344 = vadd.f32 %v152, %v343
    %345 = vmatprep.mubr.bf16.mxu0 0
    %346 = vmatmul.mubr.bf16.gmra.mxu0 %v208
    %v347 = vpop.f32.mrf.mxu0
    %v348 = vadd.f32 %v148, %v347
    %v349 = vpop.f32.mrf.mxu0
    %v350 = vadd.f32 %v152, %v349
    %v351 = vpop.f32.mrf.mxu0
    %v352 = vadd.f32 %v148, %v351
    %v353 = vpop.f32.mrf.mxu0
    %v354 = vadd.f32 %v152, %v353
    %355 = vdwg.mxu0
    %v356 = vld [vmem:[#allocation11] sm:$0xff]
    %v357 = vld [vmem:[#allocation11 + $0x8] sm:$0xff]
    %v358 = vld [vmem:[#allocation11 + $0x10] sm:$0xff]
    %v359 = vld [vmem:[#allocation11 + $0x18] sm:$0xff]
    %v360 = vld [vmem:[%s5] sm:$0xf]
    %v362 = vlaneseq
    %v363 = vshrl.u32 %v362, 7
    %v364 = vsub.s32 0, %v363
    %v365 = vrot.slane %v360, %v364
    %v366 = vlaneseq
    %v367 = vshrl.u32 %v366, 7
    %v368 = vsub.s32 1, %v367
    %v369 = vrot.slane %v360, %v368
    %v370 = vlaneseq
    %v371 = vshrl.u32 %v370, 7
    %v372 = vsub.s32 2, %v371
    %v373 = vrot.slane %v360, %v372
    %v374 = vlaneseq
    %v375 = vshrl.u32 %v374, 7
    %v376 = vsub.s32 3, %v375
    %v377 = vrot.slane %v360, %v376
    %v386 = vunpack.c.l.b16 %v356
    %v387 = vunpack.c.h.b16 %v356
    %v388 = vunpack.c.l.b16 %v357
    %v389 = vunpack.c.h.b16 %v357
    %v390 = vunpack.c.l.b16 %v358
    %v391 = vunpack.c.h.b16 %v358
    %v392 = vunpack.c.l.b16 %v359
    %v393 = vunpack.c.h.b16 %v359
    %v394 = vpack.c.b16 %v390, %v386
    %v395 = vpack.c.b16 %v391, %v387
    %v396 = vpack.c.b16 %v392, %v388
    %v397 = vpack.c.b16 %v393, %v389
    %402 = vmatprep.subr.bf16.mxu0 0
    %403 = vmatpush1.bf16.msra.mxu0 0
    %404 = vmatprep.subr.bf16.mxu0 0
    %405 = vmatpush1.bf16.msra.mxu0 0
    %406 = vmatprep.subr.bf16.mxu0 0
    %407 = vmatpush1.bf16.msra.mxu0 0
    %408 = vmatprep.subr.bf16.mxu0 0
    %409 = vmatpush1.bf16.msra.mxu0 0
    %410 = vmatprep.subr.bf16.mxu0 0
    %411 = vmatpush1.bf16.msra.mxu0 0
    %412 = vmatprep.subr.bf16.mxu0 0
    %413 = vmatpush1.bf16.msra.mxu0 0
    %414 = vmatprep.subr.bf16.mxu0 0
    %415 = vmatpush1.bf16.msra.mxu0 0
    %416 = vmatprep.subr.bf16.mxu0 %v395
    %417 = vmatpush1.bf16.msra.mxu0 %v394
    %418 = vmatprep.subr.bf16.mxu0 0
    %419 = vmatpush2.bf16.msra.mxu0 0
    %420 = vmatprep.subr.bf16.mxu0 0
    %421 = vmatpush2.bf16.msra.mxu0 0
    %422 = vmatprep.subr.bf16.mxu0 0
    %423 = vmatpush2.bf16.msra.mxu0 0
    %424 = vmatprep.subr.bf16.mxu0 0
    %425 = vmatpush2.bf16.msra.mxu0 0
    %426 = vmatprep.subr.bf16.mxu0 0
    %427 = vmatpush2.bf16.msra.mxu0 0
    %428 = vmatprep.subr.bf16.mxu0 0
    %429 = vmatpush2.bf16.msra.mxu0 0
    %430 = vmatprep.subr.bf16.mxu0 0
    %431 = vmatpush2.bf16.msra.mxu0 0
    %432 = vmatprep.subr.bf16.mxu0 0
    %433 = vmatpush2.bf16.msra.mxu0 0
    %434 = vmatprep.mubr.bf16.mxu0 0
    %435 = vmatmul.mubr.bf16.gmra.mxu0 %v199
    %v436 = vpop.f32.mrf.mxu0
    %v437 = vadd.f32 %v365, %v436
    %v438 = vpop.f32.mrf.mxu0
    %v439 = vadd.f32 %v369, %v438
    %v440 = vpop.f32.mrf.mxu0
    %v441 = vadd.f32 %v365, %v440
    %v442 = vpop.f32.mrf.mxu0
    %v443 = vadd.f32 %v369, %v442
    %444 = vmatprep.mubr.bf16.mxu0 0
    %445 = vmatmul.mubr.bf16.gmra.mxu0 %v202
    %v446 = vpop.f32.mrf.mxu0
    %v447 = vadd.f32 %v365, %v446
    %v448 = vpop.f32.mrf.mxu0
    %v449 = vadd.f32 %v369, %v448
    %v450 = vpop.f32.mrf.mxu0
    %v451 = vadd.f32 %v365, %v450
    %v452 = vpop.f32.mrf.mxu0
    %v453 = vadd.f32 %v369, %v452
    %454 = vmatprep.mubr.bf16.mxu0 0
    %455 = vmatmul.mubr.bf16.gmra.mxu0 %v205
    %v456 = vpop.f32.mrf.mxu0
    %v457 = vadd.f32 %v365, %v456
    %v458 = vpop.f32.mrf.mxu0
    %v459 = vadd.f32 %v369, %v458
    %v460 = vpop.f32.mrf.mxu0
    %v461 = vadd.f32 %v365, %v460
    %v462 = vpop.f32.mrf.mxu0
    %v463 = vadd.f32 %v369, %v462
    %464 = vmatprep.mubr.bf16.mxu0 0
    %465 = vmatmul.mubr.bf16.gmra.mxu0 %v208
    %v466 = vpop.f32.mrf.mxu0
    %v467 = vadd.f32 %v365, %v466
    %v468 = vpop.f32.mrf.mxu0
    %v469 = vadd.f32 %v369, %v468
    %v470 = vpop.f32.mrf.mxu0
    %v471 = vadd.f32 %v365, %v470
    %v472 = vpop.f32.mrf.mxu0
    %v473 = vadd.f32 %v369, %v472
    %474 = vdwg.mxu0
    %475 = vmatprep.subr.bf16.mxu0 0
    %476 = vmatpush1.bf16.msra.mxu0 0
    %477 = vmatprep.subr.bf16.mxu0 0
    %478 = vmatpush1.bf16.msra.mxu0 0
    %479 = vmatprep.subr.bf16.mxu0 0
    %480 = vmatpush1.bf16.msra.mxu0 0
    %481 = vmatprep.subr.bf16.mxu0 0
    %482 = vmatpush1.bf16.msra.mxu0 0
    %483 = vmatprep.subr.bf16.mxu0 0
    %484 = vmatpush1.bf16.msra.mxu0 0
    %485 = vmatprep.subr.bf16.mxu0 0
    %486 = vmatpush1.bf16.msra.mxu0 0
    %487 = vmatprep.subr.bf16.mxu0 0
    %488 = vmatpush1.bf16.msra.mxu0 0
    %489 = vmatprep.subr.bf16.mxu0 %v397
    %490 = vmatpush1.bf16.msra.mxu0 %v396
    %491 = vmatprep.subr.bf16.mxu0 0
    %492 = vmatpush2.bf16.msra.mxu0 0
    %493 = vmatprep.subr.bf16.mxu0 0
    %494 = vmatpush2.bf16.msra.mxu0 0
    %495 = vmatprep.subr.bf16.mxu0 0
    %496 = vmatpush2.bf16.msra.mxu0 0
    %497 = vmatprep.subr.bf16.mxu0 0
    %498 = vmatpush2.bf16.msra.mxu0 0
    %499 = vmatprep.subr.bf16.mxu0 0
    %500 = vmatpush2.bf16.msra.mxu0 0
    %501 = vmatprep.subr.bf16.mxu0 0
    %502 = vmatpush2.bf16.msra.mxu0 0
    %503 = vmatprep.subr.bf16.mxu0 0
    %504 = vmatpush2.bf16.msra.mxu0 0
    %505 = vmatprep.subr.bf16.mxu0 0
    %506 = vmatpush2.bf16.msra.mxu0 0
    %507 = vmatprep.mubr.bf16.mxu0 0
    %508 = vmatmul.mubr.bf16.gmra.mxu0 %v199
    %v509 = vpop.f32.mrf.mxu0
    %v510 = vadd.f32 %v373, %v509
    %v511 = vpop.f32.mrf.mxu0
    %v512 = vadd.f32 %v377, %v511
    %v513 = vpop.f32.mrf.mxu0
    %v514 = vadd.f32 %v373, %v513
    %v515 = vpop.f32.mrf.mxu0
    %v516 = vadd.f32 %v377, %v515
    %517 = vmatprep.mubr.bf16.mxu0 0
    %518 = vmatmul.mubr.bf16.gmra.mxu0 %v202
    %v519 = vpop.f32.mrf.mxu0
    %v520 = vadd.f32 %v373, %v519
    %v521 = vpop.f32.mrf.mxu0
    %v522 = vadd.f32 %v377, %v521
    %v523 = vpop.f32.mrf.mxu0
    %v524 = vadd.f32 %v373, %v523
    %v525 = vpop.f32.mrf.mxu0
    %v526 = vadd.f32 %v377, %v525
    %527 = vmatprep.mubr.bf16.mxu0 0
    %528 = vmatmul.mubr.bf16.gmra.mxu0 %v205
    %v529 = vpop.f32.mrf.mxu0
    %v530 = vadd.f32 %v373, %v529
    %v531 = vpop.f32.mrf.mxu0
    %v532 = vadd.f32 %v377, %v531
    %v533 = vpop.f32.mrf.mxu0
    %v534 = vadd.f32 %v373, %v533
    %v535 = vpop.f32.mrf.mxu0
    %v536 = vadd.f32 %v377, %v535
    %537 = vmatprep.mubr.bf16.mxu0 0
    %538 = vmatmul.mubr.bf16.gmra.mxu0 %v208
    %v539 = vpop.f32.mrf.mxu0
    %v540 = vadd.f32 %v373, %v539
    %v541 = vpop.f32.mrf.mxu0
    %v542 = vadd.f32 %v377, %v541
    %v543 = vpop.f32.mrf.mxu0
    %v544 = vadd.f32 %v373, %v543
    %v545 = vpop.f32.mrf.mxu0
    %v546 = vadd.f32 %v377, %v545
    %547 = vdwg.mxu0
    %v548 = vpack.c.bf16 %v245, %v245
    %v549 = vpack.c.bf16 %v247, %v247
    %v550 = vpack.c.bf16 %v318, %v318
    %v551 = vpack.c.bf16 %v320, %v320
    %v552 = vpack.c.bf16 %v249, %v249
    %v553 = vpack.c.bf16 %v251, %v251
    %v554 = vpack.c.bf16 %v322, %v322
    %v555 = vpack.c.bf16 %v324, %v324
    %v556 = vpack.c.bf16 %v255, %v255
    %v557 = vpack.c.bf16 %v257, %v257
    %v558 = vpack.c.bf16 %v328, %v328
    %v559 = vpack.c.bf16 %v330, %v330
    %v560 = vpack.c.bf16 %v259, %v259
    %v561 = vpack.c.bf16 %v261, %v261
    %v562 = vpack.c.bf16 %v332, %v332
    %v563 = vpack.c.bf16 %v334, %v334
    %v564 = vpack.c.bf16 %v265, %v265
    %v565 = vpack.c.bf16 %v267, %v267
    %v566 = vpack.c.bf16 %v338, %v338
    %v567 = vpack.c.bf16 %v340, %v340
    %v568 = vpack.c.bf16 %v269, %v269
    %v569 = vpack.c.bf16 %v271, %v271
    %v570 = vpack.c.bf16 %v342, %v342
    %v571 = vpack.c.bf16 %v344, %v344
    %v572 = vpack.c.bf16 %v275, %v275
    %v573 = vpack.c.bf16 %v277, %v277
    %v574 = vpack.c.bf16 %v348, %v348
    %v575 = vpack.c.bf16 %v350, %v350
    %v576 = vpack.c.bf16 %v279, %v279
    %v577 = vpack.c.bf16 %v281, %v281
    %v578 = vpack.c.bf16 %v352, %v352
    %v579 = vpack.c.bf16 %v354, %v354
    %v612 = vunpack.c.l.b16 %v548
    %v613 = vunpack.c.l.b16 %v549
    %v614 = vunpack.c.l.b16 %v550
    %v615 = vunpack.c.l.b16 %v551
    %v616 = vunpack.c.l.b16 %v552
    %v617 = vunpack.c.l.b16 %v553
    %v618 = vunpack.c.l.b16 %v554
    %v619 = vunpack.c.l.b16 %v555
    %v620 = vunpack.c.l.b16 %v556
    %v621 = vunpack.c.l.b16 %v557
    %v622 = vunpack.c.l.b16 %v558
    %v623 = vunpack.c.l.b16 %v559
    %v624 = vunpack.c.l.b16 %v560
    %v625 = vunpack.c.l.b16 %v561
    %v626 = vunpack.c.l.b16 %v562
    %v627 = vunpack.c.l.b16 %v563
    %v628 = vunpack.c.l.b16 %v564
    %v629 = vunpack.c.l.b16 %v565
    %v630 = vunpack.c.l.b16 %v566
    %v631 = vunpack.c.l.b16 %v567
    %v632 = vunpack.c.l.b16 %v568
    %v633 = vunpack.c.l.b16 %v569
    %v634 = vunpack.c.l.b16 %v570
    %v635 = vunpack.c.l.b16 %v571
    %v636 = vunpack.c.l.b16 %v572
    %v637 = vunpack.c.l.b16 %v573
    %v638 = vunpack.c.l.b16 %v574
    %v639 = vunpack.c.l.b16 %v575
    %v640 = vunpack.c.l.b16 %v576
    %v641 = vunpack.c.l.b16 %v577
    %v642 = vunpack.c.l.b16 %v578
    %v643 = vunpack.c.l.b16 %v579
    %v644 = vpack.c.b16 %v613, %v612
    %v645 = vpack.c.b16 %v615, %v614
    %v646 = vpack.c.b16 %v617, %v616
    %v647 = vpack.c.b16 %v619, %v618
    %v648 = vpack.c.b16 %v621, %v620
    %v649 = vpack.c.b16 %v623, %v622
    %v650 = vpack.c.b16 %v625, %v624
    %v651 = vpack.c.b16 %v627, %v626
    %v652 = vpack.c.b16 %v629, %v628
    %v653 = vpack.c.b16 %v631, %v630
    %v654 = vpack.c.b16 %v633, %v632
    %v655 = vpack.c.b16 %v635, %v634
    %v656 = vpack.c.b16 %v637, %v636
    %v657 = vpack.c.b16 %v639, %v638
    %v658 = vpack.c.b16 %v641, %v640
    %v659 = vpack.c.b16 %v643, %v642
    %676 = vst [vmem:[#allocation2] sm:$0xff] %v644
    %677 = vst [vmem:[#allocation2 + $0x8] sm:$0xff] %v645
    %678 = vst [vmem:[#allocation2 + $0x10] sm:$0xff] %v646
    %679 = vst [vmem:[#allocation2 + $0x18] sm:$0xff] %v647
    %680 = vst [vmem:[#allocation2 + $0x20] sm:$0xff] %v648
    %681 = vst [vmem:[#allocation2 + $0x28] sm:$0xff] %v649
    %682 = vst [vmem:[#allocation2 + $0x30] sm:$0xff] %v650
    %683 = vst [vmem:[#allocation2 + $0x38] sm:$0xff] %v651
    %684 = vst [vmem:[#allocation2 + $0x40] sm:$0xff] %v652
    %685 = vst [vmem:[#allocation2 + $0x48] sm:$0xff] %v653
    %686 = vst [vmem:[#allocation2 + $0x50] sm:$0xff] %v654
    %687 = vst [vmem:[#allocation2 + $0x58] sm:$0xff] %v655
    %688 = vst [vmem:[#allocation2 + $0x60] sm:$0xff] %v656
    %689 = vst [vmem:[#allocation2 + $0x68] sm:$0xff] %v657
    %690 = vst [vmem:[#allocation2 + $0x70] sm:$0xff] %v658
    %691 = vst [vmem:[#allocation2 + $0x78] sm:$0xff] %v659
    %v692 = vpack.c.bf16 %v437, %v437
    %v693 = vpack.c.bf16 %v439, %v439
    %v694 = vpack.c.bf16 %v510, %v510
    %v695 = vpack.c.bf16 %v512, %v512
    %v696 = vpack.c.bf16 %v441, %v441
    %v697 = vpack.c.bf16 %v443, %v443
    %v698 = vpack.c.bf16 %v514, %v514
    %v699 = vpack.c.bf16 %v516, %v516
    %v700 = vpack.c.bf16 %v447, %v447
    %v701 = vpack.c.bf16 %v449, %v449
    %v702 = vpack.c.bf16 %v520, %v520
    %v703 = vpack.c.bf16 %v522, %v522
    %v704 = vpack.c.bf16 %v451, %v451
    %v705 = vpack.c.bf16 %v453, %v453
    %v706 = vpack.c.bf16 %v524, %v524
    %v707 = vpack.c.bf16 %v526, %v526
    %v708 = vpack.c.bf16 %v457, %v457
    %v709 = vpack.c.bf16 %v459, %v459
    %v710 = vpack.c.bf16 %v530, %v530
    %v711 = vpack.c.bf16 %v532, %v532
    %v712 = vpack.c.bf16 %v461, %v461
    %v713 = vpack.c.bf16 %v463, %v463
    %v714 = vpack.c.bf16 %v534, %v534
    %v715 = vpack.c.bf16 %v536, %v536
    %v716 = vpack.c.bf16 %v467, %v467
    %v717 = vpack.c.bf16 %v469, %v469
    %v718 = vpack.c.bf16 %v540, %v540
    %v719 = vpack.c.bf16 %v542, %v542
    %v720 = vpack.c.bf16 %v471, %v471
    %v721 = vpack.c.bf16 %v473, %v473
    %v722 = vpack.c.bf16 %v544, %v544
    %v723 = vpack.c.bf16 %v546, %v546
    %v756 = vunpack.c.l.b16 %v692
    %v757 = vunpack.c.l.b16 %v693
    %v758 = vunpack.c.l.b16 %v694
    %v759 = vunpack.c.l.b16 %v695
    %v760 = vunpack.c.l.b16 %v696
    %v761 = vunpack.c.l.b16 %v697
    %v762 = vunpack.c.l.b16 %v698
    %v763 = vunpack.c.l.b16 %v699
    %v764 = vunpack.c.l.b16 %v700
    %v765 = vunpack.c.l.b16 %v701
    %v766 = vunpack.c.l.b16 %v702
    %v767 = vunpack.c.l.b16 %v703
    %v768 = vunpack.c.l.b16 %v704
    %v769 = vunpack.c.l.b16 %v705
    %v770 = vunpack.c.l.b16 %v706
    %v771 = vunpack.c.l.b16 %v707
    %v772 = vunpack.c.l.b16 %v708
    %v773 = vunpack.c.l.b16 %v709
    %v774 = vunpack.c.l.b16 %v710
    %v775 = vunpack.c.l.b16 %v711
    %v776 = vunpack.c.l.b16 %v712
    %v777 = vunpack.c.l.b16 %v713
    %v778 = vunpack.c.l.b16 %v714
    %v779 = vunpack.c.l.b16 %v715
    %v780 = vunpack.c.l.b16 %v716
    %v781 = vunpack.c.l.b16 %v717
    %v782 = vunpack.c.l.b16 %v718
    %v783 = vunpack.c.l.b16 %v719
    %v784 = vunpack.c.l.b16 %v720
    %v785 = vunpack.c.l.b16 %v721
    %v786 = vunpack.c.l.b16 %v722
    %v787 = vunpack.c.l.b16 %v723
    %v788 = vpack.c.b16 %v757, %v756
    %v789 = vpack.c.b16 %v759, %v758
    %v790 = vpack.c.b16 %v761, %v760
    %v791 = vpack.c.b16 %v763, %v762
    %v792 = vpack.c.b16 %v765, %v764
    %v793 = vpack.c.b16 %v767, %v766
    %v794 = vpack.c.b16 %v769, %v768
    %v795 = vpack.c.b16 %v771, %v770
    %v796 = vpack.c.b16 %v773, %v772
    %v797 = vpack.c.b16 %v775, %v774
    %v798 = vpack.c.b16 %v777, %v776
    %v799 = vpack.c.b16 %v779, %v778
    %v800 = vpack.c.b16 %v781, %v780
    %v801 = vpack.c.b16 %v783, %v782
    %v802 = vpack.c.b16 %v785, %v784
    %v803 = vpack.c.b16 %v787, %v786
    %820 = vst [vmem:[#allocation3] sm:$0xff] %v788
    %821 = vst [vmem:[#allocation3 + $0x8] sm:$0xff] %v789
    %822 = vst [vmem:[#allocation3 + $0x10] sm:$0xff] %v790
    %823 = vst [vmem:[#allocation3 + $0x18] sm:$0xff] %v791
    %824 = vst [vmem:[#allocation3 + $0x20] sm:$0xff] %v792
    %825 = vst [vmem:[#allocation3 + $0x28] sm:$0xff] %v793
    %826 = vst [vmem:[#allocation3 + $0x30] sm:$0xff] %v794
    %827 = vst [vmem:[#allocation3 + $0x38] sm:$0xff] %v795
    %828 = vst [vmem:[#allocation3 + $0x40] sm:$0xff] %v796
    %829 = vst [vmem:[#allocation3 + $0x48] sm:$0xff] %v797
    %830 = vst [vmem:[#allocation3 + $0x50] sm:$0xff] %v798
    %831 = vst [vmem:[#allocation3 + $0x58] sm:$0xff] %v799
    %832 = vst [vmem:[#allocation3 + $0x60] sm:$0xff] %v800
    %833 = vst [vmem:[#allocation3 + $0x68] sm:$0xff] %v801
    %834 = vst [vmem:[#allocation3 + $0x70] sm:$0xff] %v802
    %835 = vst [vmem:[#allocation3 + $0x78] sm:$0xff] %v803
    %v836 = vld [vmem:[#allocation2] sm:$0xff]
    %v837 = vld [vmem:[#allocation2 + $0x8] sm:$0xff]
    %v838 = vld [vmem:[%s1] sm:$0xff]
    %v839 = vunpack.c.l.bf16 %v836
    %v840 = vunpack.c.h.bf16 %v836
    %v841 = vunpack.c.l.bf16 %v837
    %v842 = vunpack.c.h.bf16 %v837
    %v843 = vld [vmem:[#allocation12] sm:$0xff]
    %v844 = vld [vmem:[#allocation12 + $0x8] sm:$0xff]
    %v845 = vld [vmem:[#allocation12 + $0x10] sm:$0xff]
    %v846 = vld [vmem:[#allocation12 + $0x18] sm:$0xff]
    %v847 = vld [vmem:[#allocation12 + $0x20] sm:$0xff]
    %v848 = vld [vmem:[#allocation12 + $0x28] sm:$0xff]
    %v849 = vld [vmem:[#allocation12 + $0x30] sm:$0xff]
    %v850 = vld [vmem:[#allocation12 + $0x38] sm:$0xff]
    %v851 = vld [vmem:[#allocation12 + $0x40] sm:$0xff]
    %v852 = vld [vmem:[#allocation12 + $0x48] sm:$0xff]
    %v853 = vld [vmem:[#allocation12 + $0x50] sm:$0xff]
    %v854 = vld [vmem:[#allocation12 + $0x58] sm:$0xff]
    %v855 = vld [vmem:[#allocation12 + $0x60] sm:$0xff]
    %v856 = vld [vmem:[#allocation12 + $0x68] sm:$0xff]
    %v857 = vld [vmem:[#allocation12 + $0x70] sm:$0xff]
    %v858 = vld [vmem:[#allocation12 + $0x78] sm:$0xff]
    %v859 = vld [vmem:[#allocation12 + $0x80] sm:$0xff]
    %v860 = vld [vmem:[#allocation12 + $0x88] sm:$0xff]
    %v861 = vld [vmem:[#allocation12 + $0x90] sm:$0xff]
    %v862 = vld [vmem:[#allocation12 + $0x98] sm:$0xff]
    %v863 = vld [vmem:[#allocation12 + $0xa0] sm:$0xff]
    %v864 = vld [vmem:[#allocation12 + $0xa8] sm:$0xff]
    %v865 = vld [vmem:[#allocation12 + $0xb0] sm:$0xff]
    %v866 = vld [vmem:[#allocation12 + $0xb8] sm:$0xff]
    %v867 = vld [vmem:[#allocation12 + $0xc0] sm:$0xff]
    %v868 = vld [vmem:[#allocation12 + $0xc8] sm:$0xff]
    %v869 = vld [vmem:[#allocation12 + $0xd0] sm:$0xff]
    %v870 = vld [vmem:[#allocation12 + $0xd8] sm:$0xff]
    %v871 = vld [vmem:[#allocation12 + $0xe0] sm:$0xff]
    %v872 = vld [vmem:[#allocation12 + $0xe8] sm:$0xff]
    %v873 = vld [vmem:[#allocation12 + $0xf0] sm:$0xff]
    %v874 = vld [vmem:[#allocation12 + $0xf8] sm:$0xff]
    %v907 = vunpack.c.l.b16 %v843
    %v908 = vunpack.c.h.b16 %v843
    %v909 = vunpack.c.l.b16 %v844
    %v910 = vunpack.c.h.b16 %v844
    %v911 = vunpack.c.l.b16 %v845
    %v912 = vunpack.c.h.b16 %v845
    %v913 = vunpack.c.l.b16 %v846
    %v914 = vunpack.c.h.b16 %v846
    %v915 = vunpack.c.l.b16 %v847
    %v916 = vunpack.c.h.b16 %v847
    %v917 = vunpack.c.l.b16 %v848
    %v918 = vunpack.c.h.b16 %v848
    %v919 = vunpack.c.l.b16 %v849
    %v920 = vunpack.c.h.b16 %v849
    %v921 = vunpack.c.l.b16 %v850
    %v922 = vunpack.c.h.b16 %v850
    %v923 = vunpack.c.l.b16 %v851
    %v924 = vunpack.c.h.b16 %v851
    %v925 = vunpack.c.l.b16 %v852
    %v926 = vunpack.c.h.b16 %v852
    %v927 = vunpack.c.l.b16 %v853
    %v928 = vunpack.c.h.b16 %v853
    %v929 = vunpack.c.l.b16 %v854
    %v930 = vunpack.c.h.b16 %v854
    %v931 = vunpack.c.l.b16 %v855
    %v932 = vunpack.c.h.b16 %v855
    %v933 = vunpack.c.l.b16 %v856
    %v934 = vunpack.c.h.b16 %v856
    %v935 = vunpack.c.l.b16 %v857
    %v936 = vunpack.c.h.b16 %v857
    %v937 = vunpack.c.l.b16 %v858
    %v938 = vunpack.c.h.b16 %v858
    %v939 = vunpack.c.l.b16 %v859
    %v940 = vunpack.c.h.b16 %v859
    %v941 = vunpack.c.l.b16 %v860
    %v942 = vunpack.c.h.b16 %v860
    %v943 = vunpack.c.l.b16 %v861
    %v944 = vunpack.c.h.b16 %v861
    %v945 = vunpack.c.l.b16 %v862
    %v946 = vunpack.c.h.b16 %v862
    %v947 = vunpack.c.l.b16 %v863
    %v948 = vunpack.c.h.b16 %v863
    %v949 = vunpack.c.l.b16 %v864
    %v950 = vunpack.c.h.b16 %v864
    %v951 = vunpack.c.l.b16 %v865
    %v952 = vunpack.c.h.b16 %v865
    %v953 = vunpack.c.l.b16 %v866
    %v954 = vunpack.c.h.b16 %v866
    %v955 = vunpack.c.l.b16 %v867
    %v956 = vunpack.c.h.b16 %v867
    %v957 = vunpack.c.l.b16 %v868
    %v958 = vunpack.c.h.b16 %v868
    %v959 = vunpack.c.l.b16 %v869
    %v960 = vunpack.c.h.b16 %v869
    %v961 = vunpack.c.l.b16 %v870
    %v962 = vunpack.c.h.b16 %v870
    %v963 = vunpack.c.l.b16 %v871
    %v964 = vunpack.c.h.b16 %v871
    %v965 = vunpack.c.l.b16 %v872
    %v966 = vunpack.c.h.b16 %v872
    %v967 = vunpack.c.l.b16 %v873
    %v968 = vunpack.c.h.b16 %v873
    %v969 = vunpack.c.l.b16 %v874
    %v970 = vunpack.c.h.b16 %v874
    %v971 = vpack.c.b16 %v911, %v907
    %v972 = vpack.c.b16 %v912, %v908
    %v973 = vpack.c.b16 %v913, %v909
    %v974 = vpack.c.b16 %v914, %v910
    %v975 = vpack.c.b16 %v919, %v915
    %v976 = vpack.c.b16 %v920, %v916
    %v977 = vpack.c.b16 %v921, %v917
    %v978 = vpack.c.b16 %v922, %v918
    %v979 = vpack.c.b16 %v927, %v923
    %v980 = vpack.c.b16 %v928, %v924
    %v981 = vpack.c.b16 %v929, %v925
    %v982 = vpack.c.b16 %v930, %v926
    %v983 = vpack.c.b16 %v935, %v931
    %v984 = vpack.c.b16 %v936, %v932
    %v985 = vpack.c.b16 %v937, %v933
    %v986 = vpack.c.b16 %v938, %v934
    %v987 = vpack.c.b16 %v943, %v939
    %v988 = vpack.c.b16 %v944, %v940
    %v989 = vpack.c.b16 %v945, %v941
    %v990 = vpack.c.b16 %v946, %v942
    %v991 = vpack.c.b16 %v951, %v947
    %v992 = vpack.c.b16 %v952, %v948
    %v993 = vpack.c.b16 %v953, %v949
    %v994 = vpack.c.b16 %v954, %v950
    %v995 = vpack.c.b16 %v959, %v955
    %v996 = vpack.c.b16 %v960, %v956
    %v997 = vpack.c.b16 %v961, %v957
    %v998 = vpack.c.b16 %v962, %v958
    %v999 = vpack.c.b16 %v967, %v963
    %v1000 = vpack.c.b16 %v968, %v964
    %v1001 = vpack.c.b16 %v969, %v965
    %v1002 = vpack.c.b16 %v970, %v966
    %1035 = vmatprep.subr.bf16.mxu0 %v1000
    %1036 = vmatpush1.bf16.msra.mxu0 %v999
    %1037 = vmatprep.subr.bf16.mxu0 %v996
    %1038 = vmatpush1.bf16.msra.mxu0 %v995
    %1039 = vmatprep.subr.bf16.mxu0 %v992
    %1040 = vmatpush1.bf16.msra.mxu0 %v991
    %1041 = vmatprep.subr.bf16.mxu0 %v988
    %1042 = vmatpush1.bf16.msra.mxu0 %v987
    %1043 = vmatprep.subr.bf16.mxu0 %v984
    %1044 = vmatpush1.bf16.msra.mxu0 %v983
    %1045 = vmatprep.subr.bf16.mxu0 %v980
    %1046 = vmatpush1.bf16.msra.mxu0 %v979
    %1047 = vmatprep.subr.bf16.mxu0 %v976
    %1048 = vmatpush1.bf16.msra.mxu0 %v975
    %1049 = vmatprep.subr.bf16.mxu0 %v972
    %1050 = vmatpush1.bf16.msra.mxu0 %v971
    %1051 = vmatprep.subr.bf16.mxu0 0
    %1052 = vmatpush2.bf16.msra.mxu0 0
    %1053 = vmatprep.subr.bf16.mxu0 0
    %1054 = vmatpush2.bf16.msra.mxu0 0
    %1055 = vmatprep.subr.bf16.mxu0 0
    %1056 = vmatpush2.bf16.msra.mxu0 0
    %1057 = vmatprep.subr.bf16.mxu0 0
    %1058 = vmatpush2.bf16.msra.mxu0 0
    %1059 = vmatprep.subr.bf16.mxu0 0
    %1060 = vmatpush2.bf16.msra.mxu0 0
    %1061 = vmatprep.subr.bf16.mxu0 0
    %1062 = vmatpush2.bf16.msra.mxu0 0
    %1063 = vmatprep.subr.bf16.mxu0 0
    %1064 = vmatpush2.bf16.msra.mxu0 0
    %1065 = vmatprep.subr.bf16.mxu0 0
    %1066 = vmatpush2.bf16.msra.mxu0 0
    %1067 = vmatprep.mubr.bf16.mxu0 0
    %1068 = vmatmul.mubr.bf16.gmra.mxu0 0
    %v1069 = vpop.f32.mrf.mxu0
    %v1070 = vadd.f32 0.0, %v1069
    %v1071 = vpop.f32.mrf.mxu0
    %v1072 = vadd.f32 0.0, %v1071
    %v1073 = vpop.f32.mrf.mxu0
    %v1074 = vpop.f32.mrf.mxu0
    %1075 = vdwg.mxu0
    %1076 = vmatprep.subr.bf16.mxu0 %v1002
    %1077 = vmatpush1.bf16.msra.mxu0 %v1001
    %1078 = vmatprep.subr.bf16.mxu0 %v998
    %1079 = vmatpush1.bf16.msra.mxu0 %v997
    %1080 = vmatprep.subr.bf16.mxu0 %v994
    %1081 = vmatpush1.bf16.msra.mxu0 %v993
    %1082 = vmatprep.subr.bf16.mxu0 %v990
    %1083 = vmatpush1.bf16.msra.mxu0 %v989
    %1084 = vmatprep.subr.bf16.mxu0 %v986
    %1085 = vmatpush1.bf16.msra.mxu0 %v985
    %1086 = vmatprep.subr.bf16.mxu0 %v982
    %1087 = vmatpush1.bf16.msra.mxu0 %v981
    %1088 = vmatprep.subr.bf16.mxu0 %v978
    %1089 = vmatpush1.bf16.msra.mxu0 %v977
    %1090 = vmatprep.subr.bf16.mxu0 %v974
    %1091 = vmatpush1.bf16.msra.mxu0 %v973
    %1092 = vmatprep.subr.bf16.mxu0 0
    %1093 = vmatpush2.bf16.msra.mxu0 0
    %1094 = vmatprep.subr.bf16.mxu0 0
    %1095 = vmatpush2.bf16.msra.mxu0 0
    %1096 = vmatprep.subr.bf16.mxu0 0
    %1097 = vmatpush2.bf16.msra.mxu0 0
    %1098 = vmatprep.subr.bf16.mxu0 0
    %1099 = vmatpush2.bf16.msra.mxu0 0
    %1100 = vmatprep.subr.bf16.mxu0 0
    %1101 = vmatpush2.bf16.msra.mxu0 0
    %1102 = vmatprep.subr.bf16.mxu0 0
    %1103 = vmatpush2.bf16.msra.mxu0 0
    %1104 = vmatprep.subr.bf16.mxu0 0
    %1105 = vmatpush2.bf16.msra.mxu0 0
    %1106 = vmatprep.subr.bf16.mxu0 0
    %1107 = vmatpush2.bf16.msra.mxu0 0
    %1108 = vmatprep.mubr.bf16.mxu0 0
    %1109 = vmatmul.mubr.bf16.gmra.mxu0 0
    %v1110 = vpop.f32.mrf.mxu0
    %v1111 = vadd.f32 0.0, %v1110
    %v1112 = vpop.f32.mrf.mxu0
    %v1113 = vadd.f32 0.0, %v1112
    %v1114 = vpop.f32.mrf.mxu0
    %v1115 = vpop.f32.mrf.mxu0
    %1116 = vdwg.mxu0
    %v1117 = vadd.f32 %v839, %v1070
    %v1118 = vadd.f32 %v840, %v1072
    %v1119 = vadd.f32 %v841, %v1111
    %v1120 = vadd.f32 %v842, %v1113
    %v1121 = vpack.c.bf16 %v1117, %v1117
    %v1122 = vpack.c.bf16 %v1118, %v1118
    %v1123 = vpack.c.bf16 %v1119, %v1119
    %v1124 = vpack.c.bf16 %v1120, %v1120
    %v1125 = vxor.u32 %v1121, 2147516416
    %v1127 = vmul.bf16 %v1125, 1069105081
    %v1128 = vpow.bf16.pop %v1127
    %v1129 = vadd.bf16 %v1128, 1065369472
    %v1130 = vrcp.bf16.pop %v1129
    %v1131 = vmul.bf16 1065369472, %v1130
    %v1132 = vxor.u32 %v1122, 2147516416
    %v1134 = vmul.bf16 %v1132, 1069105081
    %v1135 = vpow.bf16.pop %v1134
    %v1136 = vadd.bf16 %v1135, 1065369472
    %v1137 = vrcp.bf16.pop %v1136
    %v1138 = vmul.bf16 1065369472, %v1137
    %v1139 = vtanh.bf16.pop %v1123
    %v1140 = vxor.u32 %v1124, 2147516416
    %v1142 = vmul.bf16 %v1140, 1069105081
    %v1143 = vpow.bf16.pop %v1142
    %v1144 = vadd.bf16 %v1143, 1065369472
    %v1145 = vrcp.bf16.pop %v1144
    %v1146 = vmul.bf16 1065369472, %v1145
    %v1147 = vunpack.c.l.bf16 %v1138
    %v1148 = vmul.f32 %v1147, 0.0
    %v1149 = vmul.bf16 %v1131, %v1139
    %v1150 = vunpack.c.l.bf16 %v1149
    %v1151 = vadd.f32 %v1148, %v1150
    %v1152 = vpack.c.bf16 %v1151, %v1151
    %v1153 = vtanh.bf16.pop %v1152
    %v1154 = vmul.bf16 %v1146, %v1153
    %v1155 = vpack.c.bf16 %v838, %v838
    %1157 = vset.pattern.permute.xlu0 0
    %1158 = vperm.xlu0 %1157, %v1155
    %v1159 = vpop.permute.xlu0 %1158
    %v1161 = vmul.bf16 %v1159, %v1154
    %v1162 = vadd.bf16 %v1161, 0
    %1164 = vset.pattern.permute.xlu0 0
    %1165 = vperm.xlu0 %1164, %v838
    %v1166 = vpop.permute.xlu0 %1165
    %v1168 = vmul.f32 %v1166, %v1151
    %v1169 = vadd.f32 %v1168, 0.0
    %1170 = vst [vmem:[#allocation4] sm:$0xf] %v1161
    %s1171 = scalar_lea.vmem [#allocation3], 112
    %v1172 = vld [vmem:[%s1171] sm:$0xff]
    %v1173 = vld [vmem:[%s1171 + $0x8] sm:$0xff]
    %s1174 = scalar_lea.vmem %s1, 56
    %v1175 = vld [vmem:[%s1174] sm:$0xff]
    %v1176 = vunpack.c.l.bf16 %v1172
    %v1177 = vunpack.c.h.bf16 %v1172
    %v1178 = vunpack.c.l.bf16 %v1173
    %v1179 = vunpack.c.h.bf16 %v1173
    %v1180 = vld [vmem:[#allocation14] sm:$0xff]
    %v1181 = vld [vmem:[#allocation14 + $0x8] sm:$0xff]
    %v1182 = vld [vmem:[#allocation14 + $0x10] sm:$0xff]
    %v1183 = vld [vmem:[#allocation14 + $0x18] sm:$0xff]
    %v1184 = vld [vmem:[#allocation14 + $0x20] sm:$0xff]
    %v1185 = vld [vmem:[#allocation14 + $0x28] sm:$0xff]
    %v1186 = vld [vmem:[#allocation14 + $0x30] sm:$0xff]
    %v1187 = vld [vmem:[#allocation14 + $0x38] sm:$0xff]
    %v1188 = vld [vmem:[#allocation14 + $0x40] sm:$0xff]
    %v1189 = vld [vmem:[#allocation14 + $0x48] sm:$0xff]
    %v1190 = vld [vmem:[#allocation14 + $0x50] sm:$0xff]
    %v1191 = vld [vmem:[#allocation14 + $0x58] sm:$0xff]
    %v1192 = vld [vmem:[#allocation14 + $0x60] sm:$0xff]
    %v1193 = vld [vmem:[#allocation14 + $0x68] sm:$0xff]
    %v1194 = vld [vmem:[#allocation14 + $0x70] sm:$0xff]
    %v1195 = vld [vmem:[#allocation14 + $0x78] sm:$0xff]
    %v1196 = vld [vmem:[#allocation14 + $0x80] sm:$0xff]
    %v1197 = vld [vmem:[#allocation14 + $0x88] sm:$0xff]
    %v1198 = vld [vmem:[#allocation14 + $0x90] sm:$0xff]
    %v1199 = vld [vmem:[#allocation14 + $0x98] sm:$0xff]
    %v1200 = vld [vmem:[#allocation14 + $0xa0] sm:$0xff]
    %v1201 = vld [vmem:[#allocation14 + $0xa8] sm:$0xff]
    %v1202 = vld [vmem:[#allocation14 + $0xb0] sm:$0xff]
    %v1203 = vld [vmem:[#allocation14 + $0xb8] sm:$0xff]
    %v1204 = vld [vmem:[#allocation14 + $0xc0] sm:$0xff]
    %v1205 = vld [vmem:[#allocation14 + $0xc8] sm:$0xff]
    %v1206 = vld [vmem:[#allocation14 + $0xd0] sm:$0xff]
    %v1207 = vld [vmem:[#allocation14 + $0xd8] sm:$0xff]
    %v1208 = vld [vmem:[#allocation14 + $0xe0] sm:$0xff]
    %v1209 = vld [vmem:[#allocation14 + $0xe8] sm:$0xff]
    %v1210 = vld [vmem:[#allocation14 + $0xf0] sm:$0xff]
    %v1211 = vld [vmem:[#allocation14 + $0xf8] sm:$0xff]
    %v1244 = vunpack.c.l.b16 %v1180
    %v1245 = vunpack.c.h.b16 %v1180
    %v1246 = vunpack.c.l.b16 %v1181
    %v1247 = vunpack.c.h.b16 %v1181
    %v1248 = vunpack.c.l.b16 %v1182
    %v1249 = vunpack.c.h.b16 %v1182
    %v1250 = vunpack.c.l.b16 %v1183
    %v1251 = vunpack.c.h.b16 %v1183
    %v1252 = vunpack.c.l.b16 %v1184
    %v1253 = vunpack.c.h.b16 %v1184
    %v1254 = vunpack.c.l.b16 %v1185
    %v1255 = vunpack.c.h.b16 %v1185
    %v1256 = vunpack.c.l.b16 %v1186
    %v1257 = vunpack.c.h.b16 %v1186
    %v1258 = vunpack.c.l.b16 %v1187
    %v1259 = vunpack.c.h.b16 %v1187
    %v1260 = vunpack.c.l.b16 %v1188
    %v1261 = vunpack.c.h.b16 %v1188
    %v1262 = vunpack.c.l.b16 %v1189
    %v1263 = vunpack.c.h.b16 %v1189
    %v1264 = vunpack.c.l.b16 %v1190
    %v1265 = vunpack.c.h.b16 %v1190
    %v1266 = vunpack.c.l.b16 %v1191
    %v1267 = vunpack.c.h.b16 %v1191
    %v1268 = vunpack.c.l.b16 %v1192
    %v1269 = vunpack.c.h.b16 %v1192
    %v1270 = vunpack.c.l.b16 %v1193
    %v1271 = vunpack.c.h.b16 %v1193
    %v1272 = vunpack.c.l.b16 %v1194
    %v1273 = vunpack.c.h.b16 %v1194
    %v1274 = vunpack.c.l.b16 %v1195
    %v1275 = vunpack.c.h.b16 %v1195
    %v1276 = vunpack.c.l.b16 %v1196
    %v1277 = vunpack.c.h.b16 %v1196
    %v1278 = vunpack.c.l.b16 %v1197
    %v1279 = vunpack.c.h.b16 %v1197
    %v1280 = vunpack.c.l.b16 %v1198
    %v1281 = vunpack.c.h.b16 %v1198
    %v1282 = vunpack.c.l.b16 %v1199
    %v1283 = vunpack.c.h.b16 %v1199
    %v1284 = vunpack.c.l.b16 %v1200
    %v1285 = vunpack.c.h.b16 %v1200
    %v1286 = vunpack.c.l.b16 %v1201
    %v1287 = vunpack.c.h.b16 %v1201
    %v1288 = vunpack.c.l.b16 %v1202
    %v1289 = vunpack.c.h.b16 %v1202
    %v1290 = vunpack.c.l.b16 %v1203
    %v1291 = vunpack.c.h.b16 %v1203
    %v1292 = vunpack.c.l.b16 %v1204
    %v1293 = vunpack.c.h.b16 %v1204
    %v1294 = vunpack.c.l.b16 %v1205
    %v1295 = vunpack.c.h.b16 %v1205
    %v1296 = vunpack.c.l.b16 %v1206
    %v1297 = vunpack.c.h.b16 %v1206
    %v1298 = vunpack.c.l.b16 %v1207
    %v1299 = vunpack.c.h.b16 %v1207
    %v1300 = vunpack.c.l.b16 %v1208
    %v1301 = vunpack.c.h.b16 %v1208
    %v1302 = vunpack.c.l.b16 %v1209
    %v1303 = vunpack.c.h.b16 %v1209
    %v1304 = vunpack.c.l.b16 %v1210
    %v1305 = vunpack.c.h.b16 %v1210
    %v1306 = vunpack.c.l.b16 %v1211
    %v1307 = vunpack.c.h.b16 %v1211
    %v1308 = vpack.c.b16 %v1248, %v1244
    %v1309 = vpack.c.b16 %v1249, %v1245
    %v1310 = vpack.c.b16 %v1250, %v1246
    %v1311 = vpack.c.b16 %v1251, %v1247
    %v1312 = vpack.c.b16 %v1256, %v1252
    %v1313 = vpack.c.b16 %v1257, %v1253
    %v1314 = vpack.c.b16 %v1258, %v1254
    %v1315 = vpack.c.b16 %v1259, %v1255
    %v1316 = vpack.c.b16 %v1264, %v1260
    %v1317 = vpack.c.b16 %v1265, %v1261
    %v1318 = vpack.c.b16 %v1266, %v1262
    %v1319 = vpack.c.b16 %v1267, %v1263
    %v1320 = vpack.c.b16 %v1272, %v1268
    %v1321 = vpack.c.b16 %v1273, %v1269
    %v1322 = vpack.c.b16 %v1274, %v1270
    %v1323 = vpack.c.b16 %v1275, %v1271
    %v1324 = vpack.c.b16 %v1280, %v1276
    %v1325 = vpack.c.b16 %v1281, %v1277
    %v1326 = vpack.c.b16 %v1282, %v1278
    %v1327 = vpack.c.b16 %v1283, %v1279
    %v1328 = vpack.c.b16 %v1288, %v1284
    %v1329 = vpack.c.b16 %v1289, %v1285
    %v1330 = vpack.c.b16 %v1290, %v1286
    %v1331 = vpack.c.b16 %v1291, %v1287
    %v1332 = vpack.c.b16 %v1296, %v1292
    %v1333 = vpack.c.b16 %v1297, %v1293
    %v1334 = vpack.c.b16 %v1298, %v1294
    %v1335 = vpack.c.b16 %v1299, %v1295
    %v1336 = vpack.c.b16 %v1304, %v1300
    %v1337 = vpack.c.b16 %v1305, %v1301
    %v1338 = vpack.c.b16 %v1306, %v1302
    %v1339 = vpack.c.b16 %v1307, %v1303
    %1372 = vmatprep.subr.bf16.mxu0 %v1337
    %1373 = vmatpush1.bf16.msra.mxu0 %v1336
    %1374 = vmatprep.subr.bf16.mxu0 %v1333
    %1375 = vmatpush1.bf16.msra.mxu0 %v1332
    %1376 = vmatprep.subr.bf16.mxu0 %v1329
    %1377 = vmatpush1.bf16.msra.mxu0 %v1328
    %1378 = vmatprep.subr.bf16.mxu0 %v1325
    %1379 = vmatpush1.bf16.msra.mxu0 %v1324
    %1380 = vmatprep.subr.bf16.mxu0 %v1321
    %1381 = vmatpush1.bf16.msra.mxu0 %v1320
    %1382 = vmatprep.subr.bf16.mxu0 %v1317
    %1383 = vmatpush1.bf16.msra.mxu0 %v1316
    %1384 = vmatprep.subr.bf16.mxu0 %v1313
    %1385 = vmatpush1.bf16.msra.mxu0 %v1312
    %1386 = vmatprep.subr.bf16.mxu0 %v1309
    %1387 = vmatpush1.bf16.msra.mxu0 %v1308
    %1388 = vmatprep.subr.bf16.mxu0 0
    %1389 = vmatpush2.bf16.msra.mxu0 0
    %1390 = vmatprep.subr.bf16.mxu0 0
    %1391 = vmatpush2.bf16.msra.mxu0 0
    %1392 = vmatprep.subr.bf16.mxu0 0
    %1393 = vmatpush2.bf16.msra.mxu0 0
    %1394 = vmatprep.subr.bf16.mxu0 0
    %1395 = vmatpush2.bf16.msra.mxu0 0
    %1396 = vmatprep.subr.bf16.mxu0 0
    %1397 = vmatpush2.bf16.msra.mxu0 0
    %1398 = vmatprep.subr.bf16.mxu0 0
    %1399 = vmatpush2.bf16.msra.mxu0 0
    %1400 = vmatprep.subr.bf16.mxu0 0
    %1401 = vmatpush2.bf16.msra.mxu0 0
    %1402 = vmatprep.subr.bf16.mxu0 0
    %1403 = vmatpush2.bf16.msra.mxu0 0
    %1404 = vmatprep.mubr.bf16.mxu0 0
    %1405 = vmatmul.mubr.bf16.gmra.mxu0 0
    %v1406 = vpop.f32.mrf.mxu0
    %v1407 = vadd.f32 0.0, %v1406
    %v1408 = vpop.f32.mrf.mxu0
    %v1409 = vadd.f32 0.0, %v1408
    %v1410 = vpop.f32.mrf.mxu0
    %v1411 = vpop.f32.mrf.mxu0
    %1412 = vdwg.mxu0
    %1413 = vmatprep.subr.bf16.mxu0 %v1339
    %1414 = vmatpush1.bf16.msra.mxu0 %v1338
    %1415 = vmatprep.subr.bf16.mxu0 %v1335
    %1416 = vmatpush1.bf16.msra.mxu0 %v1334
    %1417 = vmatprep.subr.bf16.mxu0 %v1331
    %1418 = vmatpush1.bf16.msra.mxu0 %v1330
    %1419 = vmatprep.subr.bf16.mxu0 %v1327
    %1420 = vmatpush1.bf16.msra.mxu0 %v1326
    %1421 = vmatprep.subr.bf16.mxu0 %v1323
    %1422 = vmatpush1.bf16.msra.mxu0 %v1322
    %1423 = vmatprep.subr.bf16.mxu0 %v1319
    %1424 = vmatpush1.bf16.msra.mxu0 %v1318
    %1425 = vmatprep.subr.bf16.mxu0 %v1315
    %1426 = vmatpush1.bf16.msra.mxu0 %v1314
    %1427 = vmatprep.subr.bf16.mxu0 %v1311
    %1428 = vmatpush1.bf16.msra.mxu0 %v1310
    %1429 = vmatprep.subr.bf16.mxu0 0
    %1430 = vmatpush2.bf16.msra.mxu0 0
    %1431 = vmatprep.subr.bf16.mxu0 0
    %1432 = vmatpush2.bf16.msra.mxu0 0
    %1433 = vmatprep.subr.bf16.mxu0 0
    %1434 = vmatpush2.bf16.msra.mxu0 0
    %1435 = vmatprep.subr.bf16.mxu0 0
    %1436 = vmatpush2.bf16.msra.mxu0 0
    %1437 = vmatprep.subr.bf16.mxu0 0
    %1438 = vmatpush2.bf16.msra.mxu0 0
    %1439 = vmatprep.subr.bf16.mxu0 0
    %1440 = vmatpush2.bf16.msra.mxu0 0
    %1441 = vmatprep.subr.bf16.mxu0 0
    %1442 = vmatpush2.bf16.msra.mxu0 0
    %1443 = vmatprep.subr.bf16.mxu0 0
    %1444 = vmatpush2.bf16.msra.mxu0 0
    %1445 = vmatprep.mubr.bf16.mxu0 0
    %1446 = vmatmul.mubr.bf16.gmra.mxu0 0
    %v1447 = vpop.f32.mrf.mxu0
    %v1448 = vadd.f32 0.0, %v1447
    %v1449 = vpop.f32.mrf.mxu0
    %v1450 = vadd.f32 0.0, %v1449
    %v1451 = vpop.f32.mrf.mxu0
    %v1452 = vpop.f32.mrf.mxu0
    %1453 = vdwg.mxu0
    %v1454 = vadd.f32 %v1176, %v1407
    %v1455 = vadd.f32 %v1177, %v1409
    %v1456 = vadd.f32 %v1178, %v1448
    %v1457 = vadd.f32 %v1179, %v1450
    %v1458 = vpack.c.bf16 %v1454, %v1454
    %v1459 = vpack.c.bf16 %v1455, %v1455
    %v1460 = vpack.c.bf16 %v1456, %v1456
    %v1461 = vpack.c.bf16 %v1457, %v1457
    %v1462 = vxor.u32 %v1458, 2147516416
    %v1464 = vmul.bf16 %v1462, 1069105081
    %v1465 = vpow.bf16.pop %v1464
    %v1466 = vadd.bf16 %v1465, 1065369472
    %v1467 = vrcp.bf16.pop %v1466
    %v1468 = vmul.bf16 1065369472, %v1467
    %v1469 = vxor.u32 %v1459, 2147516416
    %v1471 = vmul.bf16 %v1469, 1069105081
    %v1472 = vpow.bf16.pop %v1471
    %v1473 = vadd.bf16 %v1472, 1065369472
    %v1474 = vrcp.bf16.pop %v1473
    %v1475 = vmul.bf16 1065369472, %v1474
    %v1476 = vtanh.bf16.pop %v1460
    %v1477 = vxor.u32 %v1461, 2147516416
    %v1479 = vmul.bf16 %v1477, 1069105081
    %v1480 = vpow.bf16.pop %v1479
    %v1481 = vadd.bf16 %v1480, 1065369472
    %v1482 = vrcp.bf16.pop %v1481
    %v1483 = vmul.bf16 1065369472, %v1482
    %v1484 = vunpack.c.l.bf16 %v1475
    %v1485 = vmul.f32 %v1484, 0.0
    %v1486 = vmul.bf16 %v1468, %v1476
    %v1487 = vunpack.c.l.bf16 %v1486
    %v1488 = vadd.f32 %v1485, %v1487
    %v1489 = vpack.c.bf16 %v1488, %v1488
    %v1490 = vtanh.bf16.pop %v1489
    %v1491 = vmul.bf16 %v1483, %v1490
    %v1492 = vpack.c.bf16 %v1175, %v1175
    %1494 = vset.pattern.permute.xlu0 0
    %1495 = vperm.xlu0 %1494, %v1492
    %v1496 = vpop.permute.xlu0 %1495
    %v1498 = vmul.bf16 %v1496, %v1491
    %v1499 = vadd.bf16 %v1498, 0
    %1501 = vset.pattern.permute.xlu0 0
    %1502 = vperm.xlu0 %1501, %v1175
    %v1503 = vpop.permute.xlu0 %1502
    %v1505 = vmul.f32 %v1503, %v1488
    %v1506 = vadd.f32 %v1505, 0.0
    %s1507 = scalar_lea.vmem [#allocation5], 28
    %1508 = vst [vmem:[%s1507] sm:$0xf] %v1498
    %s1509 = scalar_lea.vmem [#allocation2], 16
    %v1510 = vld [vmem:[%s1509] sm:$0xff]
    %v1511 = vld [vmem:[%s1509 + $0x8] sm:$0xff]
    %s1512 = scalar_lea.vmem %s1, 8
    %v1513 = vld [vmem:[%s1512] sm:$0xff]
    %v1514 = vunpack.c.l.bf16 %v1510
    %v1515 = vunpack.c.h.bf16 %v1510
    %v1516 = vunpack.c.l.bf16 %v1511
    %v1517 = vunpack.c.h.bf16 %v1511
    %v1518 = vld [vmem:[#allocation12] sm:$0xff]
    %v1519 = vld [vmem:[#allocation12 + $0x8] sm:$0xff]
    %v1520 = vld [vmem:[#allocation12 + $0x10] sm:$0xff]
    %v1521 = vld [vmem:[#allocation12 + $0x18] sm:$0xff]
    %v1522 = vld [vmem:[#allocation12 + $0x20] sm:$0xff]
    %v1523 = vld [vmem:[#allocation12 + $0x28] sm:$0xff]
    %v1524 = vld [vmem:[#allocation12 + $0x30] sm:$0xff]
    %v1525 = vld [vmem:[#allocation12 + $0x38] sm:$0xff]
    %v1526 = vld [vmem:[#allocation12 + $0x40] sm:$0xff]
    %v1527 = vld [vmem:[#allocation12 + $0x48] sm:$0xff]
    %v1528 = vld [vmem:[#allocation12 + $0x50] sm:$0xff]
    %v1529 = vld [vmem:[#allocation12 + $0x58] sm:$0xff]
    %v1530 = vld [vmem:[#allocation12 + $0x60] sm:$0xff]
    %v1531 = vld [vmem:[#allocation12 + $0x68] sm:$0xff]
    %v1532 = vld [vmem:[#allocation12 + $0x70] sm:$0xff]
    %v1533 = vld [vmem:[#allocation12 + $0x78] sm:$0xff]
    %v1534 = vld [vmem:[#allocation12 + $0x80] sm:$0xff]
    %v1535 = vld [vmem:[#allocation12 + $0x88] sm:$0xff]
    %v1536 = vld [vmem:[#allocation12 + $0x90] sm:$0xff]
    %v1537 = vld [vmem:[#allocation12 + $0x98] sm:$0xff]
    %v1538 = vld [vmem:[#allocation12 + $0xa0] sm:$0xff]
    %v1539 = vld [vmem:[#allocation12 + $0xa8] sm:$0xff]
    %v1540 = vld [vmem:[#allocation12 + $0xb0] sm:$0xff]
    %v1541 = vld [vmem:[#allocation12 + $0xb8] sm:$0xff]
    %v1542 = vld [vmem:[#allocation12 + $0xc0] sm:$0xff]
    %v1543 = vld [vmem:[#allocation12 + $0xc8] sm:$0xff]
    %v1544 = vld [vmem:[#allocation12 + $0xd0] sm:$0xff]
    %v1545 = vld [vmem:[#allocation12 + $0xd8] sm:$0xff]
    %v1546 = vld [vmem:[#allocation12 + $0xe0] sm:$0xff]
    %v1547 = vld [vmem:[#allocation12 + $0xe8] sm:$0xff]
    %v1548 = vld [vmem:[#allocation12 + $0xf0] sm:$0xff]
    %v1549 = vld [vmem:[#allocation12 + $0xf8] sm:$0xff]
    %v1582 = vunpack.c.l.b16 %v1518
    %v1583 = vunpack.c.h.b16 %v1518
    %v1584 = vunpack.c.l.b16 %v1519
    %v1585 = vunpack.c.h.b16 %v1519
    %v1586 = vunpack.c.l.b16 %v1520
    %v1587 = vunpack.c.h.b16 %v1520
    %v1588 = vunpack.c.l.b16 %v1521
    %v1589 = vunpack.c.h.b16 %v1521
    %v1590 = vunpack.c.l.b16 %v1522
    %v1591 = vunpack.c.h.b16 %v1522
    %v1592 = vunpack.c.l.b16 %v1523
    %v1593 = vunpack.c.h.b16 %v1523
    %v1594 = vunpack.c.l.b16 %v1524
    %v1595 = vunpack.c.h.b16 %v1524
    %v1596 = vunpack.c.l.b16 %v1525
    %v1597 = vunpack.c.h.b16 %v1525
    %v1598 = vunpack.c.l.b16 %v1526
    %v1599 = vunpack.c.h.b16 %v1526
    %v1600 = vunpack.c.l.b16 %v1527
    %v1601 = vunpack.c.h.b16 %v1527
    %v1602 = vunpack.c.l.b16 %v1528
    %v1603 = vunpack.c.h.b16 %v1528
    %v1604 = vunpack.c.l.b16 %v1529
    %v1605 = vunpack.c.h.b16 %v1529
    %v1606 = vunpack.c.l.b16 %v1530
    %v1607 = vunpack.c.h.b16 %v1530
    %v1608 = vunpack.c.l.b16 %v1531
    %v1609 = vunpack.c.h.b16 %v1531
    %v1610 = vunpack.c.l.b16 %v1532
    %v1611 = vunpack.c.h.b16 %v1532
    %v1612 = vunpack.c.l.b16 %v1533
    %v1613 = vunpack.c.h.b16 %v1533
    %v1614 = vunpack.c.l.b16 %v1534
    %v1615 = vunpack.c.h.b16 %v1534
    %v1616 = vunpack.c.l.b16 %v1535
    %v1617 = vunpack.c.h.b16 %v1535
    %v1618 = vunpack.c.l.b16 %v1536
    %v1619 = vunpack.c.h.b16 %v1536
    %v1620 = vunpack.c.l.b16 %v1537
    %v1621 = vunpack.c.h.b16 %v1537
    %v1622 = vunpack.c.l.b16 %v1538
    %v1623 = vunpack.c.h.b16 %v1538
    %v1624 = vunpack.c.l.b16 %v1539
    %v1625 = vunpack.c.h.b16 %v1539
    %v1626 = vunpack.c.l.b16 %v1540
    %v1627 = vunpack.c.h.b16 %v1540
    %v1628 = vunpack.c.l.b16 %v1541
    %v1629 = vunpack.c.h.b16 %v1541
    %v1630 = vunpack.c.l.b16 %v1542
    %v1631 = vunpack.c.h.b16 %v1542
    %v1632 = vunpack.c.l.b16 %v1543
    %v1633 = vunpack.c.h.b16 %v1543
    %v1634 = vunpack.c.l.b16 %v1544
    %v1635 = vunpack.c.h.b16 %v1544
    %v1636 = vunpack.c.l.b16 %v1545
    %v1637 = vunpack.c.h.b16 %v1545
    %v1638 = vunpack.c.l.b16 %v1546
    %v1639 = vunpack.c.h.b16 %v1546
    %v1640 = vunpack.c.l.b16 %v1547
    %v1641 = vunpack.c.h.b16 %v1547
    %v1642 = vunpack.c.l.b16 %v1548
    %v1643 = vunpack.c.h.b16 %v1548
    %v1644 = vunpack.c.l.b16 %v1549
    %v1645 = vunpack.c.h.b16 %v1549
    %v1646 = vpack.c.b16 %v1586, %v1582
    %v1647 = vpack.c.b16 %v1587, %v1583
    %v1648 = vpack.c.b16 %v1588, %v1584
    %v1649 = vpack.c.b16 %v1589, %v1585
    %v1650 = vpack.c.b16 %v1594, %v1590
    %v1651 = vpack.c.b16 %v1595, %v1591
    %v1652 = vpack.c.b16 %v1596, %v1592
    %v1653 = vpack.c.b16 %v1597, %v1593
    %v1654 = vpack.c.b16 %v1602, %v1598
    %v1655 = vpack.c.b16 %v1603, %v1599
    %v1656 = vpack.c.b16 %v1604, %v1600
    %v1657 = vpack.c.b16 %v1605, %v1601
    %v1658 = vpack.c.b16 %v1610, %v1606
    %v1659 = vpack.c.b16 %v1611, %v1607
    %v1660 = vpack.c.b16 %v1612, %v1608
    %v1661 = vpack.c.b16 %v1613, %v1609
    %v1662 = vpack.c.b16 %v1618, %v1614
    %v1663 = vpack.c.b16 %v1619, %v1615
    %v1664 = vpack.c.b16 %v1620, %v1616
    %v1665 = vpack.c.b16 %v1621, %v1617
    %v1666 = vpack.c.b16 %v1626, %v1622
    %v1667 = vpack.c.b16 %v1627, %v1623
    %v1668 = vpack.c.b16 %v1628, %v1624
    %v1669 = vpack.c.b16 %v1629, %v1625
    %v1670 = vpack.c.b16 %v1634, %v1630
    %v1671 = vpack.c.b16 %v1635, %v1631
    %v1672 = vpack.c.b16 %v1636, %v1632
    %v1673 = vpack.c.b16 %v1637, %v1633
    %v1674 = vpack.c.b16 %v1642, %v1638
    %v1675 = vpack.c.b16 %v1643, %v1639
    %v1676 = vpack.c.b16 %v1644, %v1640
    %v1677 = vpack.c.b16 %v1645, %v1641
    %1710 = vmatprep.subr.bf16.mxu0 %v1675
    %1711 = vmatpush1.bf16.msra.mxu0 %v1674
    %1712 = vmatprep.subr.bf16.mxu0 %v1671
    %1713 = vmatpush1.bf16.msra.mxu0 %v1670
    %1714 = vmatprep.subr.bf16.mxu0 %v1667
    %1715 = vmatpush1.bf16.msra.mxu0 %v1666
    %1716 = vmatprep.subr.bf16.mxu0 %v1663
    %1717 = vmatpush1.bf16.msra.mxu0 %v1662
    %1718 = vmatprep.subr.bf16.mxu0 %v1659
    %1719 = vmatpush1.bf16.msra.mxu0 %v1658
    %1720 = vmatprep.subr.bf16.mxu0 %v1655
    %1721 = vmatpush1.bf16.msra.mxu0 %v1654
    %1722 = vmatprep.subr.bf16.mxu0 %v1651
    %1723 = vmatpush1.bf16.msra.mxu0 %v1650
    %1724 = vmatprep.subr.bf16.mxu0 %v1647
    %1725 = vmatpush1.bf16.msra.mxu0 %v1646
    %1726 = vmatprep.subr.bf16.mxu0 0
    %1727 = vmatpush2.bf16.msra.mxu0 0
    %1728 = vmatprep.subr.bf16.mxu0 0
    %1729 = vmatpush2.bf16.msra.mxu0 0
    %1730 = vmatprep.subr.bf16.mxu0 0
    %1731 = vmatpush2.bf16.msra.mxu0 0
    %1732 = vmatprep.subr.bf16.mxu0 0
    %1733 = vmatpush2.bf16.msra.mxu0 0
    %1734 = vmatprep.subr.bf16.mxu0 0
    %1735 = vmatpush2.bf16.msra.mxu0 0
    %1736 = vmatprep.subr.bf16.mxu0 0
    %1737 = vmatpush2.bf16.msra.mxu0 0
    %1738 = vmatprep.subr.bf16.mxu0 0
    %1739 = vmatpush2.bf16.msra.mxu0 0
    %1740 = vmatprep.subr.bf16.mxu0 0
    %1741 = vmatpush2.bf16.msra.mxu0 0
    %1742 = vmatprep.mubr.bf16.mxu0 0
    %1743 = vmatmul.mubr.bf16.gmra.mxu0 %v1162
    %v1744 = vpop.f32.mrf.mxu0
    %v1745 = vadd.f32 0.0, %v1744
    %v1746 = vpop.f32.mrf.mxu0
    %v1747 = vadd.f32 0.0, %v1746
    %v1748 = vpop.f32.mrf.mxu0
    %v1749 = vpop.f32.mrf.mxu0
    %1750 = vdwg.mxu0
    %1751 = vmatprep.subr.bf16.mxu0 %v1677
    %1752 = vmatpush1.bf16.msra.mxu0 %v1676
    %1753 = vmatprep.subr.bf16.mxu0 %v1673
    %1754 = vmatpush1.bf16.msra.mxu0 %v1672
    %1755 = vmatprep.subr.bf16.mxu0 %v1669
    %1756 = vmatpush1.bf16.msra.mxu0 %v1668
    %1757 = vmatprep.subr.bf16.mxu0 %v1665
    %1758 = vmatpush1.bf16.msra.mxu0 %v1664
    %1759 = vmatprep.subr.bf16.mxu0 %v1661
    %1760 = vmatpush1.bf16.msra.mxu0 %v1660
    %1761 = vmatprep.subr.bf16.mxu0 %v1657
    %1762 = vmatpush1.bf16.msra.mxu0 %v1656
    %1763 = vmatprep.subr.bf16.mxu0 %v1653
    %1764 = vmatpush1.bf16.msra.mxu0 %v1652
    %1765 = vmatprep.subr.bf16.mxu0 %v1649
    %1766 = vmatpush1.bf16.msra.mxu0 %v1648
    %1767 = vmatprep.subr.bf16.mxu0 0
    %1768 = vmatpush2.bf16.msra.mxu0 0
    %1769 = vmatprep.subr.bf16.mxu0 0
    %1770 = vmatpush2.bf16.msra.mxu0 0
    %1771 = vmatprep.subr.bf16.mxu0 0
    %1772 = vmatpush2.bf16.msra.mxu0 0
    %1773 = vmatprep.subr.bf16.mxu0 0
    %1774 = vmatpush2.bf16.msra.mxu0 0
    %1775 = vmatprep.subr.bf16.mxu0 0
    %1776 = vmatpush2.bf16.msra.mxu0 0
    %1777 = vmatprep.subr.bf16.mxu0 0
    %1778 = vmatpush2.bf16.msra.mxu0 0
    %1779 = vmatprep.subr.bf16.mxu0 0
    %1780 = vmatpush2.bf16.msra.mxu0 0
    %1781 = vmatprep.subr.bf16.mxu0 0
    %1782 = vmatpush2.bf16.msra.mxu0 0
    %1783 = vmatprep.mubr.bf16.mxu0 0
    %1784 = vmatmul.mubr.bf16.gmra.mxu0 %v1162
    %v1785 = vpop.f32.mrf.mxu0
    %v1786 = vadd.f32 0.0, %v1785
    %v1787 = vpop.f32.mrf.mxu0
    %v1788 = vadd.f32 0.0, %v1787
    %v1789 = vpop.f32.mrf.mxu0
    %v1790 = vpop.f32.mrf.mxu0
    %1791 = vdwg.mxu0
    %v1792 = vadd.f32 %v1514, %v1745
    %v1793 = vadd.f32 %v1515, %v1747
    %v1794 = vadd.f32 %v1516, %v1786
    %v1795 = vadd.f32 %v1517, %v1788
    %v1796 = vpack.c.bf16 %v1792, %v1792
    %v1797 = vpack.c.bf16 %v1793, %v1793
    %v1798 = vpack.c.bf16 %v1794, %v1794
    %v1799 = vpack.c.bf16 %v1795, %v1795
    %v1800 = vxor.u32 %v1796, 2147516416
    %v1802 = vmul.bf16 %v1800, 1069105081
    %v1803 = vpow.bf16.pop %v1802
    %v1804 = vadd.bf16 %v1803, 1065369472
    %v1805 = vrcp.bf16.pop %v1804
    %v1806 = vmul.bf16 1065369472, %v1805
    %v1807 = vxor.u32 %v1797, 2147516416
    %v1809 = vmul.bf16 %v1807, 1069105081
    %v1810 = vpow.bf16.pop %v1809
    %v1811 = vadd.bf16 %v1810, 1065369472
    %v1812 = vrcp.bf16.pop %v1811
    %v1813 = vmul.bf16 1065369472, %v1812
    %v1814 = vtanh.bf16.pop %v1798
    %v1815 = vxor.u32 %v1799, 2147516416
    %v1817 = vmul.bf16 %v1815, 1069105081
    %v1818 = vpow.bf16.pop %v1817
    %v1819 = vadd.bf16 %v1818, 1065369472
    %v1820 = vrcp.bf16.pop %v1819
    %v1821 = vmul.bf16 1065369472, %v1820
    %v1822 = vunpack.c.l.bf16 %v1813
    %v1823 = vmul.f32 %v1822, %v1169
    %v1824 = vmul.bf16 %v1806, %v1814
    %v1825 = vunpack.c.l.bf16 %v1824
    %v1826 = vadd.f32 %v1823, %v1825
    %v1827 = vpack.c.bf16 %v1826, %v1826
    %v1828 = vtanh.bf16.pop %v1827
    %v1829 = vmul.bf16 %v1821, %v1828
    %v1830 = vpack.c.bf16 %v1513, %v1513
    %v1831 = vsub.bf16 %v1829, %v1162
    %1833 = vset.pattern.permute.xlu0 0
    %1834 = vperm.xlu0 %1833, %v1830
    %v1835 = vpop.permute.xlu0 %1834
    %v1837 = vmul.bf16 %v1835, %v1831
    %v1838 = vadd.bf16 %v1162, %v1837
    %v1839 = vsub.f32 %v1826, %v1169
    %1841 = vset.pattern.permute.xlu0 0
    %1842 = vperm.xlu0 %1841, %v1513
    %v1843 = vpop.permute.xlu0 %1842
    %v1845 = vmul.f32 %v1843, %v1839
    %v1846 = vadd.f32 %v1169, %v1845
    %v1847 = vmul.bf16 %v1835, %v1829
    %s1848 = scalar_lea.vmem [#allocation4], 4
    %1849 = vst [vmem:[%s1848] sm:$0xf] %v1847
    %s1850 = scalar_lea.vmem [#allocation3], 96
    %v1851 = vld [vmem:[%s1850] sm:$0xff]
    %v1852 = vld [vmem:[%s1850 + $0x8] sm:$0xff]
    %s1853 = scalar_lea.vmem %s1, 48
    %v1854 = vld [vmem:[%s1853] sm:$0xff]
    %v1855 = vunpack.c.l.bf16 %v1851
    %v1856 = vunpack.c.h.bf16 %v1851
    %v1857 = vunpack.c.l.bf16 %v1852
    %v1858 = vunpack.c.h.bf16 %v1852
    %v1859 = vld [vmem:[#allocation14] sm:$0xff]
    %v1860 = vld [vmem:[#allocation14 + $0x8] sm:$0xff]
    %v1861 = vld [vmem:[#allocation14 + $0x10] sm:$0xff]
    %v1862 = vld [vmem:[#allocation14 + $0x18] sm:$0xff]
    %v1863 = vld [vmem:[#allocation14 + $0x20] sm:$0xff]
    %v1864 = vld [vmem:[#allocation14 + $0x28] sm:$0xff]
    %v1865 = vld [vmem:[#allocation14 + $0x30] sm:$0xff]
    %v1866 = vld [vmem:[#allocation14 + $0x38] sm:$0xff]
    %v1867 = vld [vmem:[#allocation14 + $0x40] sm:$0xff]
    %v1868 = vld [vmem:[#allocation14 + $0x48] sm:$0xff]
    %v1869 = vld [vmem:[#allocation14 + $0x50] sm:$0xff]
    %v1870 = vld [vmem:[#allocation14 + $0x58] sm:$0xff]
    %v1871 = vld [vmem:[#allocation14 + $0x60] sm:$0xff]
    %v1872 = vld [vmem:[#allocation14 + $0x68] sm:$0xff]
    %v1873 = vld [vmem:[#allocation14 + $0x70] sm:$0xff]
    %v1874 = vld [vmem:[#allocation14 + $0x78] sm:$0xff]
    %v1875 = vld [vmem:[#allocation14 + $0x80] sm:$0xff]
    %v1876 = vld [vmem:[#allocation14 + $0x88] sm:$0xff]
    %v1877 = vld [vmem:[#allocation14 + $0x90] sm:$0xff]
    %v1878 = vld [vmem:[#allocation14 + $0x98] sm:$0xff]
    %v1879 = vld [vmem:[#allocation14 + $0xa0] sm:$0xff]
    %v1880 = vld [vmem:[#allocation14 + $0xa8] sm:$0xff]
    %v1881 = vld [vmem:[#allocation14 + $0xb0] sm:$0xff]
    %v1882 = vld [vmem:[#allocation14 + $0xb8] sm:$0xff]
    %v1883 = vld [vmem:[#allocation14 + $0xc0] sm:$0xff]
    %v1884 = vld [vmem:[#allocation14 + $0xc8] sm:$0xff]
    %v1885 = vld [vmem:[#allocation14 + $0xd0] sm:$0xff]
    %v1886 = vld [vmem:[#allocation14 + $0xd8] sm:$0xff]
    %v1887 = vld [vmem:[#allocation14 + $0xe0] sm:$0xff]
    %v1888 = vld [vmem:[#allocation14 + $0xe8] sm:$0xff]
    %v1889 = vld [vmem:[#allocation14 + $0xf0] sm:$0xff]
    %v1890 = vld [vmem:[#allocation14 + $0xf8] sm:$0xff]
    %v1923 = vunpack.c.l.b16 %v1859
    %v1924 = vunpack.c.h.b16 %v1859
    %v1925 = vunpack.c.l.b16 %v1860
    %v1926 = vunpack.c.h.b16 %v1860
    %v1927 = vunpack.c.l.b16 %v1861
    %v1928 = vunpack.c.h.b16 %v1861
    %v1929 = vunpack.c.l.b16 %v1862
    %v1930 = vunpack.c.h.b16 %v1862
    %v1931 = vunpack.c.l.b16 %v1863
    %v1932 = vunpack.c.h.b16 %v1863
    %v1933 = vunpack.c.l.b16 %v1864
    %v1934 = vunpack.c.h.b16 %v1864
    %v1935 = vunpack.c.l.b16 %v1865
    %v1936 = vunpack.c.h.b16 %v1865
    %v1937 = vunpack.c.l.b16 %v1866
    %v1938 = vunpack.c.h.b16 %v1866
    %v1939 = vunpack.c.l.b16 %v1867
    %v1940 = vunpack.c.h.b16 %v1867
    %v1941 = vunpack.c.l.b16 %v1868
    %v1942 = vunpack.c.h.b16 %v1868
    %v1943 = vunpack.c.l.b16 %v1869
    %v1944 = vunpack.c.h.b16 %v1869
    %v1945 = vunpack.c.l.b16 %v1870
    %v1946 = vunpack.c.h.b16 %v1870
    %v1947 = vunpack.c.l.b16 %v1871
    %v1948 = vunpack.c.h.b16 %v1871
    %v1949 = vunpack.c.l.b16 %v1872
    %v1950 = vunpack.c.h.b16 %v1872
    %v1951 = vunpack.c.l.b16 %v1873
    %v1952 = vunpack.c.h.b16 %v1873
    %v1953 = vunpack.c.l.b16 %v1874
    %v1954 = vunpack.c.h.b16 %v1874
    %v1955 = vunpack.c.l.b16 %v1875
    %v1956 = vunpack.c.h.b16 %v1875
    %v1957 = vunpack.c.l.b16 %v1876
    %v1958 = vunpack.c.h.b16 %v1876
    %v1959 = vunpack.c.l.b16 %v1877
    %v1960 = vunpack.c.h.b16 %v1877
    %v1961 = vunpack.c.l.b16 %v1878
    %v1962 = vunpack.c.h.b16 %v1878
    %v1963 = vunpack.c.l.b16 %v1879
    %v1964 = vunpack.c.h.b16 %v1879
    %v1965 = vunpack.c.l.b16 %v1880
    %v1966 = vunpack.c.h.b16 %v1880
    %v1967 = vunpack.c.l.b16 %v1881
    %v1968 = vunpack.c.h.b16 %v1881
    %v1969 = vunpack.c.l.b16 %v1882
    %v1970 = vunpack.c.h.b16 %v1882
    %v1971 = vunpack.c.l.b16 %v1883
    %v1972 = vunpack.c.h.b16 %v1883
    %v1973 = vunpack.c.l.b16 %v1884
    %v1974 = vunpack.c.h.b16 %v1884
    %v1975 = vunpack.c.l.b16 %v1885
    %v1976 = vunpack.c.h.b16 %v1885
    %v1977 = vunpack.c.l.b16 %v1886
    %v1978 = vunpack.c.h.b16 %v1886
    %v1979 = vunpack.c.l.b16 %v1887
    %v1980 = vunpack.c.h.b16 %v1887
    %v1981 = vunpack.c.l.b16 %v1888
    %v1982 = vunpack.c.h.b16 %v1888
    %v1983 = vunpack.c.l.b16 %v1889
    %v1984 = vunpack.c.h.b16 %v1889
    %v1985 = vunpack.c.l.b16 %v1890
    %v1986 = vunpack.c.h.b16 %v1890
    %v1987 = vpack.c.b16 %v1927, %v1923
    %v1988 = vpack.c.b16 %v1928, %v1924
    %v1989 = vpack.c.b16 %v1929, %v1925
    %v1990 = vpack.c.b16 %v1930, %v1926
    %v1991 = vpack.c.b16 %v1935, %v1931
    %v1992 = vpack.c.b16 %v1936, %v1932
    %v1993 = vpack.c.b16 %v1937, %v1933
    %v1994 = vpack.c.b16 %v1938, %v1934
    %v1995 = vpack.c.b16 %v1943, %v1939
    %v1996 = vpack.c.b16 %v1944, %v1940
    %v1997 = vpack.c.b16 %v1945, %v1941
    %v1998 = vpack.c.b16 %v1946, %v1942
    %v1999 = vpack.c.b16 %v1951, %v1947
    %v2000 = vpack.c.b16 %v1952, %v1948
    %v2001 = vpack.c.b16 %v1953, %v1949
    %v2002 = vpack.c.b16 %v1954, %v1950
    %v2003 = vpack.c.b16 %v1959, %v1955
    %v2004 = vpack.c.b16 %v1960, %v1956
    %v2005 = vpack.c.b16 %v1961, %v1957
    %v2006 = vpack.c.b16 %v1962, %v1958
    %v2007 = vpack.c.b16 %v1967, %v1963
    %v2008 = vpack.c.b16 %v1968, %v1964
    %v2009 = vpack.c.b16 %v1969, %v1965
    %v2010 = vpack.c.b16 %v1970, %v1966
    %v2011 = vpack.c.b16 %v1975, %v1971
    %v2012 = vpack.c.b16 %v1976, %v1972
    %v2013 = vpack.c.b16 %v1977, %v1973
    %v2014 = vpack.c.b16 %v1978, %v1974
    %v2015 = vpack.c.b16 %v1983, %v1979
    %v2016 = vpack.c.b16 %v1984, %v1980
    %v2017 = vpack.c.b16 %v1985, %v1981
    %v2018 = vpack.c.b16 %v1986, %v1982
    %2051 = vmatprep.subr.bf16.mxu0 %v2016
    %2052 = vmatpush1.bf16.msra.mxu0 %v2015
    %2053 = vmatprep.subr.bf16.mxu0 %v2012
    %2054 = vmatpush1.bf16.msra.mxu0 %v2011
    %2055 = vmatprep.subr.bf16.mxu0 %v2008
    %2056 = vmatpush1.bf16.msra.mxu0 %v2007
    %2057 = vmatprep.subr.bf16.mxu0 %v2004
    %2058 = vmatpush1.bf16.msra.mxu0 %v2003
    %2059 = vmatprep.subr.bf16.mxu0 %v2000
    %2060 = vmatpush1.bf16.msra.mxu0 %v1999
    %2061 = vmatprep.subr.bf16.mxu0 %v1996
    %2062 = vmatpush1.bf16.msra.mxu0 %v1995
    %2063 = vmatprep.subr.bf16.mxu0 %v1992
    %2064 = vmatpush1.bf16.msra.mxu0 %v1991
    %2065 = vmatprep.subr.bf16.mxu0 %v1988
    %2066 = vmatpush1.bf16.msra.mxu0 %v1987
    %2067 = vmatprep.subr.bf16.mxu0 0
    %2068 = vmatpush2.bf16.msra.mxu0 0
    %2069 = vmatprep.subr.bf16.mxu0 0
    %2070 = vmatpush2.bf16.msra.mxu0 0
    %2071 = vmatprep.subr.bf16.mxu0 0
    %2072 = vmatpush2.bf16.msra.mxu0 0
    %2073 = vmatprep.subr.bf16.mxu0 0
    %2074 = vmatpush2.bf16.msra.mxu0 0
    %2075 = vmatprep.subr.bf16.mxu0 0
    %2076 = vmatpush2.bf16.msra.mxu0 0
    %2077 = vmatprep.subr.bf16.mxu0 0
    %2078 = vmatpush2.bf16.msra.mxu0 0
    %2079 = vmatprep.subr.bf16.mxu0 0
    %2080 = vmatpush2.bf16.msra.mxu0 0
    %2081 = vmatprep.subr.bf16.mxu0 0
    %2082 = vmatpush2.bf16.msra.mxu0 0
    %2083 = vmatprep.mubr.bf16.mxu0 0
    %2084 = vmatmul.mubr.bf16.gmra.mxu0 %v1499
    %v2085 = vpop.f32.mrf.mxu0
    %v2086 = vadd.f32 0.0, %v2085
    %v2087 = vpop.f32.mrf.mxu0
    %v2088 = vadd.f32 0.0, %v2087
    %v2089 = vpop.f32.mrf.mxu0
    %v2090 = vpop.f32.mrf.mxu0
    %2091 = vdwg.mxu0
    %2092 = vmatprep.subr.bf16.mxu0 %v2018
    %2093 = vmatpush1.bf16.msra.mxu0 %v2017
    %2094 = vmatprep.subr.bf16.mxu0 %v2014
    %2095 = vmatpush1.bf16.msra.mxu0 %v2013
    %2096 = vmatprep.subr.bf16.mxu0 %v2010
    %2097 = vmatpush1.bf16.msra.mxu0 %v2009
    %2098 = vmatprep.subr.bf16.mxu0 %v2006
    %2099 = vmatpush1.bf16.msra.mxu0 %v2005
    %2100 = vmatprep.subr.bf16.mxu0 %v2002
    %2101 = vmatpush1.bf16.msra.mxu0 %v2001
    %2102 = vmatprep.subr.bf16.mxu0 %v1998
    %2103 = vmatpush1.bf16.msra.mxu0 %v1997
    %2104 = vmatprep.subr.bf16.mxu0 %v1994
    %2105 = vmatpush1.bf16.msra.mxu0 %v1993
    %2106 = vmatprep.subr.bf16.mxu0 %v1990
    %2107 = vmatpush1.bf16.msra.mxu0 %v1989
    %2108 = vmatprep.subr.bf16.mxu0 0
    %2109 = vmatpush2.bf16.msra.mxu0 0
    %2110 = vmatprep.subr.bf16.mxu0 0
    %2111 = vmatpush2.bf16.msra.mxu0 0
    %2112 = vmatprep.subr.bf16.mxu0 0
    %2113 = vmatpush2.bf16.msra.mxu0 0
    %2114 = vmatprep.subr.bf16.mxu0 0
    %2115 = vmatpush2.bf16.msra.mxu0 0
    %2116 = vmatprep.subr.bf16.mxu0 0
    %2117 = vmatpush2.bf16.msra.mxu0 0
    %2118 = vmatprep.subr.bf16.mxu0 0
    %2119 = vmatpush2.bf16.msra.mxu0 0
    %2120 = vmatprep.subr.bf16.mxu0 0
    %2121 = vmatpush2.bf16.msra.mxu0 0
    %2122 = vmatprep.subr.bf16.mxu0 0
    %2123 = vmatpush2.bf16.msra.mxu0 0
    %2124 = vmatprep.mubr.bf16.mxu0 0
    %2125 = vmatmul.mubr.bf16.gmra.mxu0 %v1499
    %v2126 = vpop.f32.mrf.mxu0
    %v2127 = vadd.f32 0.0, %v2126
    %v2128 = vpop.f32.mrf.mxu0
    %v2129 = vadd.f32 0.0, %v2128
    %v2130 = vpop.f32.mrf.mxu0
    %v2131 = vpop.f32.mrf.mxu0
    %2132 = vdwg.mxu0
    %v2133 = vadd.f32 %v1855, %v2086
    %v2134 = vadd.f32 %v1856, %v2088
    %v2135 = vadd.f32 %v1857, %v2127
    %v2136 = vadd.f32 %v1858, %v2129
    %v2137 = vpack.c.bf16 %v2133, %v2133
    %v2138 = vpack.c.bf16 %v2134, %v2134
    %v2139 = vpack.c.bf16 %v2135, %v2135
    %v2140 = vpack.c.bf16 %v2136, %v2136
    %v2141 = vxor.u32 %v2137, 2147516416
    %v2143 = vmul.bf16 %v2141, 1069105081
    %v2144 = vpow.bf16.pop %v2143
    %v2145 = vadd.bf16 %v2144, 1065369472
    %v2146 = vrcp.bf16.pop %v2145
    %v2147 = vmul.bf16 1065369472, %v2146
    %v2148 = vxor.u32 %v2138, 2147516416
    %v2150 = vmul.bf16 %v2148, 1069105081
    %v2151 = vpow.bf16.pop %v2150
    %v2152 = vadd.bf16 %v2151, 1065369472
    %v2153 = vrcp.bf16.pop %v2152
    %v2154 = vmul.bf16 1065369472, %v2153
    %v2155 = vtanh.bf16.pop %v2139
    %v2156 = vxor.u32 %v2140, 2147516416
    %v2158 = vmul.bf16 %v2156, 1069105081
    %v2159 = vpow.bf16.pop %v2158
    %v2160 = vadd.bf16 %v2159, 1065369472
    %v2161 = vrcp.bf16.pop %v2160
    %v2162 = vmul.bf16 1065369472, %v2161
    %v2163 = vunpack.c.l.bf16 %v2154
    %v2164 = vmul.f32 %v2163, %v1506
    %v2165 = vmul.bf16 %v2147, %v2155
    %v2166 = vunpack.c.l.bf16 %v2165
    %v2167 = vadd.f32 %v2164, %v2166
    %v2168 = vpack.c.bf16 %v2167, %v2167
    %v2169 = vtanh.bf16.pop %v2168
    %v2170 = vmul.bf16 %v2162, %v2169
    %v2171 = vpack.c.bf16 %v1854, %v1854
    %v2172 = vsub.bf16 %v2170, %v1499
    %2174 = vset.pattern.permute.xlu0 0
    %2175 = vperm.xlu0 %2174, %v2171
    %v2176 = vpop.permute.xlu0 %2175
    %v2178 = vmul.bf16 %v2176, %v2172
    %v2179 = vadd.bf16 %v1499, %v2178
    %v2180 = vsub.f32 %v2167, %v1506
    %2182 = vset.pattern.permute.xlu0 0
    %2183 = vperm.xlu0 %2182, %v1854
    %v2184 = vpop.permute.xlu0 %2183
    %v2186 = vmul.f32 %v2184, %v2180
    %v2187 = vadd.f32 %v1506, %v2186
    %v2188 = vmul.bf16 %v2176, %v2170
    %s2189 = scalar_lea.vmem [#allocation5], 24
    %2190 = vst [vmem:[%s2189] sm:$0xf] %v2188
    %s2191 = scalar_lea.vmem [#allocation2], 32
    %v2192 = vld [vmem:[%s2191] sm:$0xff]
    %v2193 = vld [vmem:[%s2191 + $0x8] sm:$0xff]
    %s2194 = scalar_lea.vmem %s1, 16
    %v2195 = vld [vmem:[%s2194] sm:$0xff]
    %v2196 = vunpack.c.l.bf16 %v2192
    %v2197 = vunpack.c.h.bf16 %v2192
    %v2198 = vunpack.c.l.bf16 %v2193
    %v2199 = vunpack.c.h.bf16 %v2193
    %v2200 = vld [vmem:[#allocation12] sm:$0xff]
    %v2201 = vld [vmem:[#allocation12 + $0x8] sm:$0xff]
    %v2202 = vld [vmem:[#allocation12 + $0x10] sm:$0xff]
    %v2203 = vld [vmem:[#allocation12 + $0x18] sm:$0xff]
    %v2204 = vld [vmem:[#allocation12 + $0x20] sm:$0xff]
    %v2205 = vld [vmem:[#allocation12 + $0x28] sm:$0xff]
    %v2206 = vld [vmem:[#allocation12 + $0x30] sm:$0xff]
    %v2207 = vld [vmem:[#allocation12 + $0x38] sm:$0xff]
    %v2208 = vld [vmem:[#allocation12 + $0x40] sm:$0xff]
    %v2209 = vld [vmem:[#allocation12 + $0x48] sm:$0xff]
    %v2210 = vld [vmem:[#allocation12 + $0x50] sm:$0xff]
    %v2211 = vld [vmem:[#allocation12 + $0x58] sm:$0xff]
    %v2212 = vld [vmem:[#allocation12 + $0x60] sm:$0xff]
    %v2213 = vld [vmem:[#allocation12 + $0x68] sm:$0xff]
    %v2214 = vld [vmem:[#allocation12 + $0x70] sm:$0xff]
    %v2215 = vld [vmem:[#allocation12 + $0x78] sm:$0xff]
    %v2216 = vld [vmem:[#allocation12 + $0x80] sm:$0xff]
    %v2217 = vld [vmem:[#allocation12 + $0x88] sm:$0xff]
    %v2218 = vld [vmem:[#allocation12 + $0x90] sm:$0xff]
    %v2219 = vld [vmem:[#allocation12 + $0x98] sm:$0xff]
    %v2220 = vld [vmem:[#allocation12 + $0xa0] sm:$0xff]
    %v2221 = vld [vmem:[#allocation12 + $0xa8] sm:$0xff]
    %v2222 = vld [vmem:[#allocation12 + $0xb0] sm:$0xff]
    %v2223 = vld [vmem:[#allocation12 + $0xb8] sm:$0xff]
    %v2224 = vld [vmem:[#allocation12 + $0xc0] sm:$0xff]
    %v2225 = vld [vmem:[#allocation12 + $0xc8] sm:$0xff]
    %v2226 = vld [vmem:[#allocation12 + $0xd0] sm:$0xff]
    %v2227 = vld [vmem:[#allocation12 + $0xd8] sm:$0xff]
    %v2228 = vld [vmem:[#allocation12 + $0xe0] sm:$0xff]
    %v2229 = vld [vmem:[#allocation12 + $0xe8] sm:$0xff]
    %v2230 = vld [vmem:[#allocation12 + $0xf0] sm:$0xff]
    %v2231 = vld [vmem:[#allocation12 + $0xf8] sm:$0xff]
    %v2264 = vunpack.c.l.b16 %v2200
    %v2265 = vunpack.c.h.b16 %v2200
    %v2266 = vunpack.c.l.b16 %v2201
    %v2267 = vunpack.c.h.b16 %v2201
    %v2268 = vunpack.c.l.b16 %v2202
    %v2269 = vunpack.c.h.b16 %v2202
    %v2270 = vunpack.c.l.b16 %v2203
    %v2271 = vunpack.c.h.b16 %v2203
    %v2272 = vunpack.c.l.b16 %v2204
    %v2273 = vunpack.c.h.b16 %v2204
    %v2274 = vunpack.c.l.b16 %v2205
    %v2275 = vunpack.c.h.b16 %v2205
    %v2276 = vunpack.c.l.b16 %v2206
    %v2277 = vunpack.c.h.b16 %v2206
    %v2278 = vunpack.c.l.b16 %v2207
    %v2279 = vunpack.c.h.b16 %v2207
    %v2280 = vunpack.c.l.b16 %v2208
    %v2281 = vunpack.c.h.b16 %v2208
    %v2282 = vunpack.c.l.b16 %v2209
    %v2283 = vunpack.c.h.b16 %v2209
    %v2284 = vunpack.c.l.b16 %v2210
    %v2285 = vunpack.c.h.b16 %v2210
    %v2286 = vunpack.c.l.b16 %v2211
    %v2287 = vunpack.c.h.b16 %v2211
    %v2288 = vunpack.c.l.b16 %v2212
    %v2289 = vunpack.c.h.b16 %v2212
    %v2290 = vunpack.c.l.b16 %v2213
    %v2291 = vunpack.c.h.b16 %v2213
    %v2292 = vunpack.c.l.b16 %v2214
    %v2293 = vunpack.c.h.b16 %v2214
    %v2294 = vunpack.c.l.b16 %v2215
    %v2295 = vunpack.c.h.b16 %v2215
    %v2296 = vunpack.c.l.b16 %v2216
    %v2297 = vunpack.c.h.b16 %v2216
    %v2298 = vunpack.c.l.b16 %v2217
    %v2299 = vunpack.c.h.b16 %v2217
    %v2300 = vunpack.c.l.b16 %v2218
    %v2301 = vunpack.c.h.b16 %v2218
    %v2302 = vunpack.c.l.b16 %v2219
    %v2303 = vunpack.c.h.b16 %v2219
    %v2304 = vunpack.c.l.b16 %v2220
    %v2305 = vunpack.c.h.b16 %v2220
    %v2306 = vunpack.c.l.b16 %v2221
    %v2307 = vunpack.c.h.b16 %v2221
    %v2308 = vunpack.c.l.b16 %v2222
    %v2309 = vunpack.c.h.b16 %v2222
    %v2310 = vunpack.c.l.b16 %v2223
    %v2311 = vunpack.c.h.b16 %v2223
    %v2312 = vunpack.c.l.b16 %v2224
    %v2313 = vunpack.c.h.b16 %v2224
    %v2314 = vunpack.c.l.b16 %v2225
    %v2315 = vunpack.c.h.b16 %v2225
    %v2316 = vunpack.c.l.b16 %v2226
    %v2317 = vunpack.c.h.b16 %v2226
    %v2318 = vunpack.c.l.b16 %v2227
    %v2319 = vunpack.c.h.b16 %v2227
    %v2320 = vunpack.c.l.b16 %v2228
    %v2321 = vunpack.c.h.b16 %v2228
    %v2322 = vunpack.c.l.b16 %v2229
    %v2323 = vunpack.c.h.b16 %v2229
    %v2324 = vunpack.c.l.b16 %v2230
    %v2325 = vunpack.c.h.b16 %v2230
    %v2326 = vunpack.c.l.b16 %v2231
    %v2327 = vunpack.c.h.b16 %v2231
    %v2328 = vpack.c.b16 %v2268, %v2264
    %v2329 = vpack.c.b16 %v2269, %v2265
    %v2330 = vpack.c.b16 %v2270, %v2266
    %v2331 = vpack.c.b16 %v2271, %v2267
    %v2332 = vpack.c.b16 %v2276, %v2272
    %v2333 = vpack.c.b16 %v2277, %v2273
    %v2334 = vpack.c.b16 %v2278, %v2274
    %v2335 = vpack.c.b16 %v2279, %v2275
    %v2336 = vpack.c.b16 %v2284, %v2280
    %v2337 = vpack.c.b16 %v2285, %v2281
    %v2338 = vpack.c.b16 %v2286, %v2282
    %v2339 = vpack.c.b16 %v2287, %v2283
    %v2340 = vpack.c.b16 %v2292, %v2288
    %v2341 = vpack.c.b16 %v2293, %v2289
    %v2342 = vpack.c.b16 %v2294, %v2290
    %v2343 = vpack.c.b16 %v2295, %v2291
    %v2344 = vpack.c.b16 %v2300, %v2296
    %v2345 = vpack.c.b16 %v2301, %v2297
    %v2346 = vpack.c.b16 %v2302, %v2298
    %v2347 = vpack.c.b16 %v2303, %v2299
    %v2348 = vpack.c.b16 %v2308, %v2304
    %v2349 = vpack.c.b16 %v2309, %v2305
    %v2350 = vpack.c.b16 %v2310, %v2306
    %v2351 = vpack.c.b16 %v2311, %v2307
    %v2352 = vpack.c.b16 %v2316, %v2312
    %v2353 = vpack.c.b16 %v2317, %v2313
    %v2354 = vpack.c.b16 %v2318, %v2314
    %v2355 = vpack.c.b16 %v2319, %v2315
    %v2356 = vpack.c.b16 %v2324, %v2320
    %v2357 = vpack.c.b16 %v2325, %v2321
    %v2358 = vpack.c.b16 %v2326, %v2322
    %v2359 = vpack.c.b16 %v2327, %v2323
    %2392 = vmatprep.subr.bf16.mxu0 %v2357
    %2393 = vmatpush1.bf16.msra.mxu0 %v2356
    %2394 = vmatprep.subr.bf16.mxu0 %v2353
    %2395 = vmatpush1.bf16.msra.mxu0 %v2352
    %2396 = vmatprep.subr.bf16.mxu0 %v2349
    %2397 = vmatpush1.bf16.msra.mxu0 %v2348
    %2398 = vmatprep.subr.bf16.mxu0 %v2345
    %2399 = vmatpush1.bf16.msra.mxu0 %v2344
    %2400 = vmatprep.subr.bf16.mxu0 %v2341
    %2401 = vmatpush1.bf16.msra.mxu0 %v2340
    %2402 = vmatprep.subr.bf16.mxu0 %v2337
    %2403 = vmatpush1.bf16.msra.mxu0 %v2336
    %2404 = vmatprep.subr.bf16.mxu0 %v2333
    %2405 = vmatpush1.bf16.msra.mxu0 %v2332
    %2406 = vmatprep.subr.bf16.mxu0 %v2329
    %2407 = vmatpush1.bf16.msra.mxu0 %v2328
    %2408 = vmatprep.subr.bf16.mxu0 0
    %2409 = vmatpush2.bf16.msra.mxu0 0
    %2410 = vmatprep.subr.bf16.mxu0 0
    %2411 = vmatpush2.bf16.msra.mxu0 0
    %2412 = vmatprep.subr.bf16.mxu0 0
    %2413 = vmatpush2.bf16.msra.mxu0 0
    %2414 = vmatprep.subr.bf16.mxu0 0
    %2415 = vmatpush2.bf16.msra.mxu0 0
    %2416 = vmatprep.subr.bf16.mxu0 0
    %2417 = vmatpush2.bf16.msra.mxu0 0
    %2418 = vmatprep.subr.bf16.mxu0 0
    %2419 = vmatpush2.bf16.msra.mxu0 0
    %2420 = vmatprep.subr.bf16.mxu0 0
    %2421 = vmatpush2.bf16.msra.mxu0 0
    %2422 = vmatprep.subr.bf16.mxu0 0
    %2423 = vmatpush2.bf16.msra.mxu0 0
    %2424 = vmatprep.mubr.bf16.mxu0 0
    %2425 = vmatmul.mubr.bf16.gmra.mxu0 %v1838
    %v2426 = vpop.f32.mrf.mxu0
    %v2427 = vadd.f32 0.0, %v2426
    %v2428 = vpop.f32.mrf.mxu0
    %v2429 = vadd.f32 0.0, %v2428
    %v2430 = vpop.f32.mrf.mxu0
    %v2431 = vpop.f32.mrf.mxu0
    %2432 = vdwg.mxu0
    %2433 = vmatprep.subr.bf16.mxu0 %v2359
    %2434 = vmatpush1.bf16.msra.mxu0 %v2358
    %2435 = vmatprep.subr.bf16.mxu0 %v2355
    %2436 = vmatpush1.bf16.msra.mxu0 %v2354
    %2437 = vmatprep.subr.bf16.mxu0 %v2351
    %2438 = vmatpush1.bf16.msra.mxu0 %v2350
    %2439 = vmatprep.subr.bf16.mxu0 %v2347
    %2440 = vmatpush1.bf16.msra.mxu0 %v2346
    %2441 = vmatprep.subr.bf16.mxu0 %v2343
    %2442 = vmatpush1.bf16.msra.mxu0 %v2342
    %2443 = vmatprep.subr.bf16.mxu0 %v2339
    %2444 = vmatpush1.bf16.msra.mxu0 %v2338
    %2445 = vmatprep.subr.bf16.mxu0 %v2335
    %2446 = vmatpush1.bf16.msra.mxu0 %v2334
    %2447 = vmatprep.subr.bf16.mxu0 %v2331
    %2448 = vmatpush1.bf16.msra.mxu0 %v2330
    %2449 = vmatprep.subr.bf16.mxu0 0
    %2450 = vmatpush2.bf16.msra.mxu0 0
    %2451 = vmatprep.subr.bf16.mxu0 0
    %2452 = vmatpush2.bf16.msra.mxu0 0
    %2453 = vmatprep.subr.bf16.mxu0 0
    %2454 = vmatpush2.bf16.msra.mxu0 0
    %2455 = vmatprep.subr.bf16.mxu0 0
    %2456 = vmatpush2.bf16.msra.mxu0 0
    %2457 = vmatprep.subr.bf16.mxu0 0
    %2458 = vmatpush2.bf16.msra.mxu0 0
    %2459 = vmatprep.subr.bf16.mxu0 0
    %2460 = vmatpush2.bf16.msra.mxu0 0
    %2461 = vmatprep.subr.bf16.mxu0 0
    %2462 = vmatpush2.bf16.msra.mxu0 0
    %2463 = vmatprep.subr.bf16.mxu0 0
    %2464 = vmatpush2.bf16.msra.mxu0 0
    %2465 = vmatprep.mubr.bf16.mxu0 0
    %2466 = vmatmul.mubr.bf16.gmra.mxu0 %v1838
    %v2467 = vpop.f32.mrf.mxu0
    %v2468 = vadd.f32 0.0, %v2467
    %v2469 = vpop.f32.mrf.mxu0
    %v2470 = vadd.f32 0.0, %v2469
    %v2471 = vpop.f32.mrf.mxu0
    %v2472 = vpop.f32.mrf.mxu0
    %2473 = vdwg.mxu0
    %v2474 = vadd.f32 %v2196, %v2427
    %v2475 = vadd.f32 %v2197, %v2429
    %v2476 = vadd.f32 %v2198, %v2468
    %v2477 = vadd.f32 %v2199, %v2470
    %v2478 = vpack.c.bf16 %v2474, %v2474
    %v2479 = vpack.c.bf16 %v2475, %v2475
    %v2480 = vpack.c.bf16 %v2476, %v2476
    %v2481 = vpack.c.bf16 %v2477, %v2477
    %v2482 = vxor.u32 %v2478, 2147516416
    %v2484 = vmul.bf16 %v2482, 1069105081
    %v2485 = vpow.bf16.pop %v2484
    %v2486 = vadd.bf16 %v2485, 1065369472
    %v2487 = vrcp.bf16.pop %v2486
    %v2488 = vmul.bf16 1065369472, %v2487
    %v2489 = vxor.u32 %v2479, 2147516416
    %v2491 = vmul.bf16 %v2489, 1069105081
    %v2492 = vpow.bf16.pop %v2491
    %v2493 = vadd.bf16 %v2492, 1065369472
    %v2494 = vrcp.bf16.pop %v2493
    %v2495 = vmul.bf16 1065369472, %v2494
    %v2496 = vtanh.bf16.pop %v2480
    %v2497 = vxor.u32 %v2481, 2147516416
    %v2499 = vmul.bf16 %v2497, 1069105081
    %v2500 = vpow.bf16.pop %v2499
    %v2501 = vadd.bf16 %v2500, 1065369472
    %v2502 = vrcp.bf16.pop %v2501
    %v2503 = vmul.bf16 1065369472, %v2502
    %v2504 = vunpack.c.l.bf16 %v2495
    %v2505 = vmul.f32 %v2504, %v1846
    %v2506 = vmul.bf16 %v2488, %v2496
    %v2507 = vunpack.c.l.bf16 %v2506
    %v2508 = vadd.f32 %v2505, %v2507
    %v2509 = vpack.c.bf16 %v2508, %v2508
    %v2510 = vtanh.bf16.pop %v2509
    %v2511 = vmul.bf16 %v2503, %v2510
    %v2512 = vpack.c.bf16 %v2195, %v2195
    %v2513 = vsub.bf16 %v2511, %v1838
    %2515 = vset.pattern.permute.xlu0 0
    %2516 = vperm.xlu0 %2515, %v2512
    %v2517 = vpop.permute.xlu0 %2516
    %v2519 = vmul.bf16 %v2517, %v2513
    %v2520 = vadd.bf16 %v1838, %v2519
    %v2521 = vsub.f32 %v2508, %v1846
    %2523 = vset.pattern.permute.xlu0 0
    %2524 = vperm.xlu0 %2523, %v2195
    %v2525 = vpop.permute.xlu0 %2524
    %v2527 = vmul.f32 %v2525, %v2521
    %v2528 = vadd.f32 %v1846, %v2527
    %v2529 = vmul.bf16 %v2517, %v2511
    %s2530 = scalar_lea.vmem [#allocation4], 8
    %2531 = vst [vmem:[%s2530] sm:$0xf] %v2529
    %s2532 = scalar_lea.vmem [#allocation3], 80
    %v2533 = vld [vmem:[%s2532] sm:$0xff]
    %v2534 = vld [vmem:[%s2532 + $0x8] sm:$0xff]
    %s2535 = scalar_lea.vmem %s1, 40
    %v2536 = vld [vmem:[%s2535] sm:$0xff]
    %v2537 = vunpack.c.l.bf16 %v2533
    %v2538 = vunpack.c.h.bf16 %v2533
    %v2539 = vunpack.c.l.bf16 %v2534
    %v2540 = vunpack.c.h.bf16 %v2534
    %v2541 = vld [vmem:[#allocation14] sm:$0xff]
    %v2542 = vld [vmem:[#allocation14 + $0x8] sm:$0xff]
    %v2543 = vld [vmem:[#allocation14 + $0x10] sm:$0xff]
    %v2544 = vld [vmem:[#allocation14 + $0x18] sm:$0xff]
    %v2545 = vld [vmem:[#allocation14 + $0x20] sm:$0xff]
    %v2546 = vld [vmem:[#allocation14 + $0x28] sm:$0xff]
    %v2547 = vld [vmem:[#allocation14 + $0x30] sm:$0xff]
    %v2548 = vld [vmem:[#allocation14 + $0x38] sm:$0xff]
    %v2549 = vld [vmem:[#allocation14 + $0x40] sm:$0xff]
    %v2550 = vld [vmem:[#allocation14 + $0x48] sm:$0xff]
    %v2551 = vld [vmem:[#allocation14 + $0x50] sm:$0xff]
    %v2552 = vld [vmem:[#allocation14 + $0x58] sm:$0xff]
    %v2553 = vld [vmem:[#allocation14 + $0x60] sm:$0xff]
    %v2554 = vld [vmem:[#allocation14 + $0x68] sm:$0xff]
    %v2555 = vld [vmem:[#allocation14 + $0x70] sm:$0xff]
    %v2556 = vld [vmem:[#allocation14 + $0x78] sm:$0xff]
    %v2557 = vld [vmem:[#allocation14 + $0x80] sm:$0xff]
    %v2558 = vld [vmem:[#allocation14 + $0x88] sm:$0xff]
    %v2559 = vld [vmem:[#allocation14 + $0x90] sm:$0xff]
    %v2560 = vld [vmem:[#allocation14 + $0x98] sm:$0xff]
    %v2561 = vld [vmem:[#allocation14 + $0xa0] sm:$0xff]
    %v2562 = vld [vmem:[#allocation14 + $0xa8] sm:$0xff]
    %v2563 = vld [vmem:[#allocation14 + $0xb0] sm:$0xff]
    %v2564 = vld [vmem:[#allocation14 + $0xb8] sm:$0xff]
    %v2565 = vld [vmem:[#allocation14 + $0xc0] sm:$0xff]
    %v2566 = vld [vmem:[#allocation14 + $0xc8] sm:$0xff]
    %v2567 = vld [vmem:[#allocation14 + $0xd0] sm:$0xff]
    %v2568 = vld [vmem:[#allocation14 + $0xd8] sm:$0xff]
    %v2569 = vld [vmem:[#allocation14 + $0xe0] sm:$0xff]
    %v2570 = vld [vmem:[#allocation14 + $0xe8] sm:$0xff]
    %v2571 = vld [vmem:[#allocation14 + $0xf0] sm:$0xff]
    %v2572 = vld [vmem:[#allocation14 + $0xf8] sm:$0xff]
    %v2605 = vunpack.c.l.b16 %v2541
    %v2606 = vunpack.c.h.b16 %v2541
    %v2607 = vunpack.c.l.b16 %v2542
    %v2608 = vunpack.c.h.b16 %v2542
    %v2609 = vunpack.c.l.b16 %v2543
    %v2610 = vunpack.c.h.b16 %v2543
    %v2611 = vunpack.c.l.b16 %v2544
    %v2612 = vunpack.c.h.b16 %v2544
    %v2613 = vunpack.c.l.b16 %v2545
    %v2614 = vunpack.c.h.b16 %v2545
    %v2615 = vunpack.c.l.b16 %v2546
    %v2616 = vunpack.c.h.b16 %v2546
    %v2617 = vunpack.c.l.b16 %v2547
    %v2618 = vunpack.c.h.b16 %v2547
    %v2619 = vunpack.c.l.b16 %v2548
    %v2620 = vunpack.c.h.b16 %v2548
    %v2621 = vunpack.c.l.b16 %v2549
    %v2622 = vunpack.c.h.b16 %v2549
    %v2623 = vunpack.c.l.b16 %v2550
    %v2624 = vunpack.c.h.b16 %v2550
    %v2625 = vunpack.c.l.b16 %v2551
    %v2626 = vunpack.c.h.b16 %v2551
    %v2627 = vunpack.c.l.b16 %v2552
    %v2628 = vunpack.c.h.b16 %v2552
    %v2629 = vunpack.c.l.b16 %v2553
    %v2630 = vunpack.c.h.b16 %v2553
    %v2631 = vunpack.c.l.b16 %v2554
    %v2632 = vunpack.c.h.b16 %v2554
    %v2633 = vunpack.c.l.b16 %v2555
    %v2634 = vunpack.c.h.b16 %v2555
    %v2635 = vunpack.c.l.b16 %v2556
    %v2636 = vunpack.c.h.b16 %v2556
    %v2637 = vunpack.c.l.b16 %v2557
    %v2638 = vunpack.c.h.b16 %v2557
    %v2639 = vunpack.c.l.b16 %v2558
    %v2640 = vunpack.c.h.b16 %v2558
    %v2641 = vunpack.c.l.b16 %v2559
    %v2642 = vunpack.c.h.b16 %v2559
    %v2643 = vunpack.c.l.b16 %v2560
    %v2644 = vunpack.c.h.b16 %v2560
    %v2645 = vunpack.c.l.b16 %v2561
    %v2646 = vunpack.c.h.b16 %v2561
    %v2647 = vunpack.c.l.b16 %v2562
    %v2648 = vunpack.c.h.b16 %v2562
    %v2649 = vunpack.c.l.b16 %v2563
    %v2650 = vunpack.c.h.b16 %v2563
    %v2651 = vunpack.c.l.b16 %v2564
    %v2652 = vunpack.c.h.b16 %v2564
    %v2653 = vunpack.c.l.b16 %v2565
    %v2654 = vunpack.c.h.b16 %v2565
    %v2655 = vunpack.c.l.b16 %v2566
    %v2656 = vunpack.c.h.b16 %v2566
    %v2657 = vunpack.c.l.b16 %v2567
    %v2658 = vunpack.c.h.b16 %v2567
    %v2659 = vunpack.c.l.b16 %v2568
    %v2660 = vunpack.c.h.b16 %v2568
    %v2661 = vunpack.c.l.b16 %v2569
    %v2662 = vunpack.c.h.b16 %v2569
    %v2663 = vunpack.c.l.b16 %v2570
    %v2664 = vunpack.c.h.b16 %v2570
    %v2665 = vunpack.c.l.b16 %v2571
    %v2666 = vunpack.c.h.b16 %v2571
    %v2667 = vunpack.c.l.b16 %v2572
    %v2668 = vunpack.c.h.b16 %v2572
    %v2669 = vpack.c.b16 %v2609, %v2605
    %v2670 = vpack.c.b16 %v2610, %v2606
    %v2671 = vpack.c.b16 %v2611, %v2607
    %v2672 = vpack.c.b16 %v2612, %v2608
    %v2673 = vpack.c.b16 %v2617, %v2613
    %v2674 = vpack.c.b16 %v2618, %v2614
    %v2675 = vpack.c.b16 %v2619, %v2615
    %v2676 = vpack.c.b16 %v2620, %v2616
    %v2677 = vpack.c.b16 %v2625, %v2621
    %v2678 = vpack.c.b16 %v2626, %v2622
    %v2679 = vpack.c.b16 %v2627, %v2623
    %v2680 = vpack.c.b16 %v2628, %v2624
    %v2681 = vpack.c.b16 %v2633, %v2629
    %v2682 = vpack.c.b16 %v2634, %v2630
    %v2683 = vpack.c.b16 %v2635, %v2631
    %v2684 = vpack.c.b16 %v2636, %v2632
    %v2685 = vpack.c.b16 %v2641, %v2637
    %v2686 = vpack.c.b16 %v2642, %v2638
    %v2687 = vpack.c.b16 %v2643, %v2639
    %v2688 = vpack.c.b16 %v2644, %v2640
    %v2689 = vpack.c.b16 %v2649, %v2645
    %v2690 = vpack.c.b16 %v2650, %v2646
    %v2691 = vpack.c.b16 %v2651, %v2647
    %v2692 = vpack.c.b16 %v2652, %v2648
    %v2693 = vpack.c.b16 %v2657, %v2653
    %v2694 = vpack.c.b16 %v2658, %v2654
    %v2695 = vpack.c.b16 %v2659, %v2655
    %v2696 = vpack.c.b16 %v2660, %v2656
    %v2697 = vpack.c.b16 %v2665, %v2661
    %v2698 = vpack.c.b16 %v2666, %v2662
    %v2699 = vpack.c.b16 %v2667, %v2663
    %v2700 = vpack.c.b16 %v2668, %v2664
    %2733 = vmatprep.subr.bf16.mxu0 %v2698
    %2734 = vmatpush1.bf16.msra.mxu0 %v2697
    %2735 = vmatprep.subr.bf16.mxu0 %v2694
    %2736 = vmatpush1.bf16.msra.mxu0 %v2693
    %2737 = vmatprep.subr.bf16.mxu0 %v2690
    %2738 = vmatpush1.bf16.msra.mxu0 %v2689
    %2739 = vmatprep.subr.bf16.mxu0 %v2686
    %2740 = vmatpush1.bf16.msra.mxu0 %v2685
    %2741 = vmatprep.subr.bf16.mxu0 %v2682
    %2742 = vmatpush1.bf16.msra.mxu0 %v2681
    %2743 = vmatprep.subr.bf16.mxu0 %v2678
    %2744 = vmatpush1.bf16.msra.mxu0 %v2677
    %2745 = vmatprep.subr.bf16.mxu0 %v2674
    %2746 = vmatpush1.bf16.msra.mxu0 %v2673
    %2747 = vmatprep.subr.bf16.mxu0 %v2670
    %2748 = vmatpush1.bf16.msra.mxu0 %v2669
    %2749 = vmatprep.subr.bf16.mxu0 0
    %2750 = vmatpush2.bf16.msra.mxu0 0
    %2751 = vmatprep.subr.bf16.mxu0 0
    %2752 = vmatpush2.bf16.msra.mxu0 0
    %2753 = vmatprep.subr.bf16.mxu0 0
    %2754 = vmatpush2.bf16.msra.mxu0 0
    %2755 = vmatprep.subr.bf16.mxu0 0
    %2756 = vmatpush2.bf16.msra.mxu0 0
    %2757 = vmatprep.subr.bf16.mxu0 0
    %2758 = vmatpush2.bf16.msra.mxu0 0
    %2759 = vmatprep.subr.bf16.mxu0 0
    %2760 = vmatpush2.bf16.msra.mxu0 0
    %2761 = vmatprep.subr.bf16.mxu0 0
    %2762 = vmatpush2.bf16.msra.mxu0 0
    %2763 = vmatprep.subr.bf16.mxu0 0
    %2764 = vmatpush2.bf16.msra.mxu0 0
    %2765 = vmatprep.mubr.bf16.mxu0 0
    %2766 = vmatmul.mubr.bf16.gmra.mxu0 %v2179
    %v2767 = vpop.f32.mrf.mxu0
    %v2768 = vadd.f32 0.0, %v2767
    %v2769 = vpop.f32.mrf.mxu0
    %v2770 = vadd.f32 0.0, %v2769
    %v2771 = vpop.f32.mrf.mxu0
    %v2772 = vpop.f32.mrf.mxu0
    %2773 = vdwg.mxu0
    %2774 = vmatprep.subr.bf16.mxu0 %v2700
    %2775 = vmatpush1.bf16.msra.mxu0 %v2699
    %2776 = vmatprep.subr.bf16.mxu0 %v2696
    %2777 = vmatpush1.bf16.msra.mxu0 %v2695
    %2778 = vmatprep.subr.bf16.mxu0 %v2692
    %2779 = vmatpush1.bf16.msra.mxu0 %v2691
    %2780 = vmatprep.subr.bf16.mxu0 %v2688
    %2781 = vmatpush1.bf16.msra.mxu0 %v2687
    %2782 = vmatprep.subr.bf16.mxu0 %v2684
    %2783 = vmatpush1.bf16.msra.mxu0 %v2683
    %2784 = vmatprep.subr.bf16.mxu0 %v2680
    %2785 = vmatpush1.bf16.msra.mxu0 %v2679
    %2786 = vmatprep.subr.bf16.mxu0 %v2676
    %2787 = vmatpush1.bf16.msra.mxu0 %v2675
    %2788 = vmatprep.subr.bf16.mxu0 %v2672
    %2789 = vmatpush1.bf16.msra.mxu0 %v2671
    %2790 = vmatprep.subr.bf16.mxu0 0
    %2791 = vmatpush2.bf16.msra.mxu0 0
    %2792 = vmatprep.subr.bf16.mxu0 0
    %2793 = vmatpush2.bf16.msra.mxu0 0
    %2794 = vmatprep.subr.bf16.mxu0 0
    %2795 = vmatpush2.bf16.msra.mxu0 0
    %2796 = vmatprep.subr.bf16.mxu0 0
    %2797 = vmatpush2.bf16.msra.mxu0 0
    %2798 = vmatprep.subr.bf16.mxu0 0
    %2799 = vmatpush2.bf16.msra.mxu0 0
    %2800 = vmatprep.subr.bf16.mxu0 0
    %2801 = vmatpush2.bf16.msra.mxu0 0
    %2802 = vmatprep.subr.bf16.mxu0 0
    %2803 = vmatpush2.bf16.msra.mxu0 0
    %2804 = vmatprep.subr.bf16.mxu0 0
    %2805 = vmatpush2.bf16.msra.mxu0 0
    %2806 = vmatprep.mubr.bf16.mxu0 0
    %2807 = vmatmul.mubr.bf16.gmra.mxu0 %v2179
    %v2808 = vpop.f32.mrf.mxu0
    %v2809 = vadd.f32 0.0, %v2808
    %v2810 = vpop.f32.mrf.mxu0
    %v2811 = vadd.f32 0.0, %v2810
    %v2812 = vpop.f32.mrf.mxu0
    %v2813 = vpop.f32.mrf.mxu0
    %2814 = vdwg.mxu0
    %v2815 = vadd.f32 %v2537, %v2768
    %v2816 = vadd.f32 %v2538, %v2770
    %v2817 = vadd.f32 %v2539, %v2809
    %v2818 = vadd.f32 %v2540, %v2811
    %v2819 = vpack.c.bf16 %v2815, %v2815
    %v2820 = vpack.c.bf16 %v2816, %v2816
    %v2821 = vpack.c.bf16 %v2817, %v2817
    %v2822 = vpack.c.bf16 %v2818, %v2818
    %v2823 = vxor.u32 %v2819, 2147516416
    %v2825 = vmul.bf16 %v2823, 1069105081
    %v2826 = vpow.bf16.pop %v2825
    %v2827 = vadd.bf16 %v2826, 1065369472
    %v2828 = vrcp.bf16.pop %v2827
    %v2829 = vmul.bf16 1065369472, %v2828
    %v2830 = vxor.u32 %v2820, 2147516416
    %v2832 = vmul.bf16 %v2830, 1069105081
    %v2833 = vpow.bf16.pop %v2832
    %v2834 = vadd.bf16 %v2833, 1065369472
    %v2835 = vrcp.bf16.pop %v2834
    %v2836 = vmul.bf16 1065369472, %v2835
    %v2837 = vtanh.bf16.pop %v2821
    %v2838 = vxor.u32 %v2822, 2147516416
    %v2840 = vmul.bf16 %v2838, 1069105081
    %v2841 = vpow.bf16.pop %v2840
    %v2842 = vadd.bf16 %v2841, 1065369472
    %v2843 = vrcp.bf16.pop %v2842
    %v2844 = vmul.bf16 1065369472, %v2843
    %v2845 = vunpack.c.l.bf16 %v2836
    %v2846 = vmul.f32 %v2845, %v2187
    %v2847 = vmul.bf16 %v2829, %v2837
    %v2848 = vunpack.c.l.bf16 %v2847
    %v2849 = vadd.f32 %v2846, %v2848
    %v2850 = vpack.c.bf16 %v2849, %v2849
    %v2851 = vtanh.bf16.pop %v2850
    %v2852 = vmul.bf16 %v2844, %v2851
    %v2853 = vpack.c.bf16 %v2536, %v2536
    %v2854 = vsub.bf16 %v2852, %v2179
    %2856 = vset.pattern.permute.xlu0 0
    %2857 = vperm.xlu0 %2856, %v2853
    %v2858 = vpop.permute.xlu0 %2857
    %v2860 = vmul.bf16 %v2858, %v2854
    %v2861 = vadd.bf16 %v2179, %v2860
    %v2862 = vsub.f32 %v2849, %v2187
    %2864 = vset.pattern.permute.xlu0 0
    %2865 = vperm.xlu0 %2864, %v2536
    %v2866 = vpop.permute.xlu0 %2865
    %v2868 = vmul.f32 %v2866, %v2862
    %v2869 = vadd.f32 %v2187, %v2868
    %v2870 = vmul.bf16 %v2858, %v2852
    %s2871 = scalar_lea.vmem [#allocation5], 20
    %2872 = vst [vmem:[%s2871] sm:$0xf] %v2870
    %s2873 = scalar_lea.vmem [#allocation2], 48
    %v2874 = vld [vmem:[%s2873] sm:$0xff]
    %v2875 = vld [vmem:[%s2873 + $0x8] sm:$0xff]
    %s2876 = scalar_lea.vmem %s1, 24
    %v2877 = vld [vmem:[%s2876] sm:$0xff]
    %v2878 = vunpack.c.l.bf16 %v2874
    %v2879 = vunpack.c.h.bf16 %v2874
    %v2880 = vunpack.c.l.bf16 %v2875
    %v2881 = vunpack.c.h.bf16 %v2875
    %v2882 = vld [vmem:[#allocation12] sm:$0xff]
    %v2883 = vld [vmem:[#allocation12 + $0x8] sm:$0xff]
    %v2884 = vld [vmem:[#allocation12 + $0x10] sm:$0xff]
    %v2885 = vld [vmem:[#allocation12 + $0x18] sm:$0xff]
    %v2886 = vld [vmem:[#allocation12 + $0x20] sm:$0xff]
    %v2887 = vld [vmem:[#allocation12 + $0x28] sm:$0xff]
    %v2888 = vld [vmem:[#allocation12 + $0x30] sm:$0xff]
    %v2889 = vld [vmem:[#allocation12 + $0x38] sm:$0xff]
    %v2890 = vld [vmem:[#allocation12 + $0x40] sm:$0xff]
    %v2891 = vld [vmem:[#allocation12 + $0x48] sm:$0xff]
    %v2892 = vld [vmem:[#allocation12 + $0x50] sm:$0xff]
    %v2893 = vld [vmem:[#allocation12 + $0x58] sm:$0xff]
    %v2894 = vld [vmem:[#allocation12 + $0x60] sm:$0xff]
    %v2895 = vld [vmem:[#allocation12 + $0x68] sm:$0xff]
    %v2896 = vld [vmem:[#allocation12 + $0x70] sm:$0xff]
    %v2897 = vld [vmem:[#allocation12 + $0x78] sm:$0xff]
    %v2898 = vld [vmem:[#allocation12 + $0x80] sm:$0xff]
    %v2899 = vld [vmem:[#allocation12 + $0x88] sm:$0xff]
    %v2900 = vld [vmem:[#allocation12 + $0x90] sm:$0xff]
    %v2901 = vld [vmem:[#allocation12 + $0x98] sm:$0xff]
    %v2902 = vld [vmem:[#allocation12 + $0xa0] sm:$0xff]
    %v2903 = vld [vmem:[#allocation12 + $0xa8] sm:$0xff]
    %v2904 = vld [vmem:[#allocation12 + $0xb0] sm:$0xff]
    %v2905 = vld [vmem:[#allocation12 + $0xb8] sm:$0xff]
    %v2906 = vld [vmem:[#allocation12 + $0xc0] sm:$0xff]
    %v2907 = vld [vmem:[#allocation12 + $0xc8] sm:$0xff]
    %v2908 = vld [vmem:[#allocation12 + $0xd0] sm:$0xff]
    %v2909 = vld [vmem:[#allocation12 + $0xd8] sm:$0xff]
    %v2910 = vld [vmem:[#allocation12 + $0xe0] sm:$0xff]
    %v2911 = vld [vmem:[#allocation12 + $0xe8] sm:$0xff]
    %v2912 = vld [vmem:[#allocation12 + $0xf0] sm:$0xff]
    %v2913 = vld [vmem:[#allocation12 + $0xf8] sm:$0xff]
    %v2946 = vunpack.c.l.b16 %v2882
    %v2947 = vunpack.c.h.b16 %v2882
    %v2948 = vunpack.c.l.b16 %v2883
    %v2949 = vunpack.c.h.b16 %v2883
    %v2950 = vunpack.c.l.b16 %v2884
    %v2951 = vunpack.c.h.b16 %v2884
    %v2952 = vunpack.c.l.b16 %v2885
    %v2953 = vunpack.c.h.b16 %v2885
    %v2954 = vunpack.c.l.b16 %v2886
    %v2955 = vunpack.c.h.b16 %v2886
    %v2956 = vunpack.c.l.b16 %v2887
    %v2957 = vunpack.c.h.b16 %v2887
    %v2958 = vunpack.c.l.b16 %v2888
    %v2959 = vunpack.c.h.b16 %v2888
    %v2960 = vunpack.c.l.b16 %v2889
    %v2961 = vunpack.c.h.b16 %v2889
    %v2962 = vunpack.c.l.b16 %v2890
    %v2963 = vunpack.c.h.b16 %v2890
    %v2964 = vunpack.c.l.b16 %v2891
    %v2965 = vunpack.c.h.b16 %v2891
    %v2966 = vunpack.c.l.b16 %v2892
    %v2967 = vunpack.c.h.b16 %v2892
    %v2968 = vunpack.c.l.b16 %v2893
    %v2969 = vunpack.c.h.b16 %v2893
    %v2970 = vunpack.c.l.b16 %v2894
    %v2971 = vunpack.c.h.b16 %v2894
    %v2972 = vunpack.c.l.b16 %v2895
    %v2973 = vunpack.c.h.b16 %v2895
    %v2974 = vunpack.c.l.b16 %v2896
    %v2975 = vunpack.c.h.b16 %v2896
    %v2976 = vunpack.c.l.b16 %v2897
    %v2977 = vunpack.c.h.b16 %v2897
    %v2978 = vunpack.c.l.b16 %v2898
    %v2979 = vunpack.c.h.b16 %v2898
    %v2980 = vunpack.c.l.b16 %v2899
    %v2981 = vunpack.c.h.b16 %v2899
    %v2982 = vunpack.c.l.b16 %v2900
    %v2983 = vunpack.c.h.b16 %v2900
    %v2984 = vunpack.c.l.b16 %v2901
    %v2985 = vunpack.c.h.b16 %v2901
    %v2986 = vunpack.c.l.b16 %v2902
    %v2987 = vunpack.c.h.b16 %v2902
    %v2988 = vunpack.c.l.b16 %v2903
    %v2989 = vunpack.c.h.b16 %v2903
    %v2990 = vunpack.c.l.b16 %v2904
    %v2991 = vunpack.c.h.b16 %v2904
    %v2992 = vunpack.c.l.b16 %v2905
    %v2993 = vunpack.c.h.b16 %v2905
    %v2994 = vunpack.c.l.b16 %v2906
    %v2995 = vunpack.c.h.b16 %v2906
    %v2996 = vunpack.c.l.b16 %v2907
    %v2997 = vunpack.c.h.b16 %v2907
    %v2998 = vunpack.c.l.b16 %v2908
    %v2999 = vunpack.c.h.b16 %v2908
    %v3000 = vunpack.c.l.b16 %v2909
    %v3001 = vunpack.c.h.b16 %v2909
    %v3002 = vunpack.c.l.b16 %v2910
    %v3003 = vunpack.c.h.b16 %v2910
    %v3004 = vunpack.c.l.b16 %v2911
    %v3005 = vunpack.c.h.b16 %v2911
    %v3006 = vunpack.c.l.b16 %v2912
    %v3007 = vunpack.c.h.b16 %v2912
    %v3008 = vunpack.c.l.b16 %v2913
    %v3009 = vunpack.c.h.b16 %v2913
    %v3010 = vpack.c.b16 %v2950, %v2946
    %v3011 = vpack.c.b16 %v2951, %v2947
    %v3012 = vpack.c.b16 %v2952, %v2948
    %v3013 = vpack.c.b16 %v2953, %v2949
    %v3014 = vpack.c.b16 %v2958, %v2954
    %v3015 = vpack.c.b16 %v2959, %v2955
    %v3016 = vpack.c.b16 %v2960, %v2956
    %v3017 = vpack.c.b16 %v2961, %v2957
    %v3018 = vpack.c.b16 %v2966, %v2962
    %v3019 = vpack.c.b16 %v2967, %v2963
    %v3020 = vpack.c.b16 %v2968, %v2964
    %v3021 = vpack.c.b16 %v2969, %v2965
    %v3022 = vpack.c.b16 %v2974, %v2970
    %v3023 = vpack.c.b16 %v2975, %v2971
    %v3024 = vpack.c.b16 %v2976, %v2972
    %v3025 = vpack.c.b16 %v2977, %v2973
    %v3026 = vpack.c.b16 %v2982, %v2978
    %v3027 = vpack.c.b16 %v2983, %v2979
    %v3028 = vpack.c.b16 %v2984, %v2980
    %v3029 = vpack.c.b16 %v2985, %v2981
    %v3030 = vpack.c.b16 %v2990, %v2986
    %v3031 = vpack.c.b16 %v2991, %v2987
    %v3032 = vpack.c.b16 %v2992, %v2988
    %v3033 = vpack.c.b16 %v2993, %v2989
    %v3034 = vpack.c.b16 %v2998, %v2994
    %v3035 = vpack.c.b16 %v2999, %v2995
    %v3036 = vpack.c.b16 %v3000, %v2996
    %v3037 = vpack.c.b16 %v3001, %v2997
    %v3038 = vpack.c.b16 %v3006, %v3002
    %v3039 = vpack.c.b16 %v3007, %v3003
    %v3040 = vpack.c.b16 %v3008, %v3004
    %v3041 = vpack.c.b16 %v3009, %v3005
    %3074 = vmatprep.subr.bf16.mxu0 %v3039
    %3075 = vmatpush1.bf16.msra.mxu0 %v3038
    %3076 = vmatprep.subr.bf16.mxu0 %v3035
    %3077 = vmatpush1.bf16.msra.mxu0 %v3034
    %3078 = vmatprep.subr.bf16.mxu0 %v3031
    %3079 = vmatpush1.bf16.msra.mxu0 %v3030
    %3080 = vmatprep.subr.bf16.mxu0 %v3027
    %3081 = vmatpush1.bf16.msra.mxu0 %v3026
    %3082 = vmatprep.subr.bf16.mxu0 %v3023
    %3083 = vmatpush1.bf16.msra.mxu0 %v3022
    %3084 = vmatprep.subr.bf16.mxu0 %v3019
    %3085 = vmatpush1.bf16.msra.mxu0 %v3018
    %3086 = vmatprep.subr.bf16.mxu0 %v3015
    %3087 = vmatpush1.bf16.msra.mxu0 %v3014
    %3088 = vmatprep.subr.bf16.mxu0 %v3011
    %3089 = vmatpush1.bf16.msra.mxu0 %v3010
    %3090 = vmatprep.subr.bf16.mxu0 0
    %3091 = vmatpush2.bf16.msra.mxu0 0
    %3092 = vmatprep.subr.bf16.mxu0 0
    %3093 = vmatpush2.bf16.msra.mxu0 0
    %3094 = vmatprep.subr.bf16.mxu0 0
    %3095 = vmatpush2.bf16.msra.mxu0 0
    %3096 = vmatprep.subr.bf16.mxu0 0
    %3097 = vmatpush2.bf16.msra.mxu0 0
    %3098 = vmatprep.subr.bf16.mxu0 0
    %3099 = vmatpush2.bf16.msra.mxu0 0
    %3100 = vmatprep.subr.bf16.mxu0 0
    %3101 = vmatpush2.bf16.msra.mxu0 0
    %3102 = vmatprep.subr.bf16.mxu0 0
    %3103 = vmatpush2.bf16.msra.mxu0 0
    %3104 = vmatprep.subr.bf16.mxu0 0
    %3105 = vmatpush2.bf16.msra.mxu0 0
    %3106 = vmatprep.mubr.bf16.mxu0 0
    %3107 = vmatmul.mubr.bf16.gmra.mxu0 %v2520
    %v3108 = vpop.f32.mrf.mxu0
    %v3109 = vadd.f32 0.0, %v3108
    %v3110 = vpop.f32.mrf.mxu0
    %v3111 = vadd.f32 0.0, %v3110
    %v3112 = vpop.f32.mrf.mxu0
    %v3113 = vpop.f32.mrf.mxu0
    %3114 = vdwg.mxu0
    %3115 = vmatprep.subr.bf16.mxu0 %v3041
    %3116 = vmatpush1.bf16.msra.mxu0 %v3040
    %3117 = vmatprep.subr.bf16.mxu0 %v3037
    %3118 = vmatpush1.bf16.msra.mxu0 %v3036
    %3119 = vmatprep.subr.bf16.mxu0 %v3033
    %3120 = vmatpush1.bf16.msra.mxu0 %v3032
    %3121 = vmatprep.subr.bf16.mxu0 %v3029
    %3122 = vmatpush1.bf16.msra.mxu0 %v3028
    %3123 = vmatprep.subr.bf16.mxu0 %v3025
    %3124 = vmatpush1.bf16.msra.mxu0 %v3024
    %3125 = vmatprep.subr.bf16.mxu0 %v3021
    %3126 = vmatpush1.bf16.msra.mxu0 %v3020
    %3127 = vmatprep.subr.bf16.mxu0 %v3017
    %3128 = vmatpush1.bf16.msra.mxu0 %v3016
    %3129 = vmatprep.subr.bf16.mxu0 %v3013
    %3130 = vmatpush1.bf16.msra.mxu0 %v3012
    %3131 = vmatprep.subr.bf16.mxu0 0
    %3132 = vmatpush2.bf16.msra.mxu0 0
    %3133 = vmatprep.subr.bf16.mxu0 0
    %3134 = vmatpush2.bf16.msra.mxu0 0
    %3135 = vmatprep.subr.bf16.mxu0 0
    %3136 = vmatpush2.bf16.msra.mxu0 0
    %3137 = vmatprep.subr.bf16.mxu0 0
    %3138 = vmatpush2.bf16.msra.mxu0 0
    %3139 = vmatprep.subr.bf16.mxu0 0
    %3140 = vmatpush2.bf16.msra.mxu0 0
    %3141 = vmatprep.subr.bf16.mxu0 0
    %3142 = vmatpush2.bf16.msra.mxu0 0
    %3143 = vmatprep.subr.bf16.mxu0 0
    %3144 = vmatpush2.bf16.msra.mxu0 0
    %3145 = vmatprep.subr.bf16.mxu0 0
    %3146 = vmatpush2.bf16.msra.mxu0 0
    %3147 = vmatprep.mubr.bf16.mxu0 0
    %3148 = vmatmul.mubr.bf16.gmra.mxu0 %v2520
    %v3149 = vpop.f32.mrf.mxu0
    %v3150 = vadd.f32 0.0, %v3149
    %v3151 = vpop.f32.mrf.mxu0
    %v3152 = vadd.f32 0.0, %v3151
    %v3153 = vpop.f32.mrf.mxu0
    %v3154 = vpop.f32.mrf.mxu0
    %3155 = vdwg.mxu0
    %v3156 = vadd.f32 %v2878, %v3109
    %v3157 = vadd.f32 %v2879, %v3111
    %v3158 = vadd.f32 %v2880, %v3150
    %v3159 = vadd.f32 %v2881, %v3152
    %v3160 = vpack.c.bf16 %v3156, %v3156
    %v3161 = vpack.c.bf16 %v3157, %v3157
    %v3162 = vpack.c.bf16 %v3158, %v3158
    %v3163 = vpack.c.bf16 %v3159, %v3159
    %v3164 = vxor.u32 %v3160, 2147516416
    %v3166 = vmul.bf16 %v3164, 1069105081
    %v3167 = vpow.bf16.pop %v3166
    %v3168 = vadd.bf16 %v3167, 1065369472
    %v3169 = vrcp.bf16.pop %v3168
    %v3170 = vmul.bf16 1065369472, %v3169
    %v3171 = vxor.u32 %v3161, 2147516416
    %v3173 = vmul.bf16 %v3171, 1069105081
    %v3174 = vpow.bf16.pop %v3173
    %v3175 = vadd.bf16 %v3174, 1065369472
    %v3176 = vrcp.bf16.pop %v3175
    %v3177 = vmul.bf16 1065369472, %v3176
    %v3178 = vtanh.bf16.pop %v3162
    %v3179 = vxor.u32 %v3163, 2147516416
    %v3181 = vmul.bf16 %v3179, 1069105081
    %v3182 = vpow.bf16.pop %v3181
    %v3183 = vadd.bf16 %v3182, 1065369472
    %v3184 = vrcp.bf16.pop %v3183
    %v3185 = vmul.bf16 1065369472, %v3184
    %v3186 = vunpack.c.l.bf16 %v3177
    %v3187 = vmul.f32 %v3186, %v2528
    %v3188 = vmul.bf16 %v3170, %v3178
    %v3189 = vunpack.c.l.bf16 %v3188
    %v3190 = vadd.f32 %v3187, %v3189
    %v3191 = vpack.c.bf16 %v3190, %v3190
    %v3192 = vtanh.bf16.pop %v3191
    %v3193 = vmul.bf16 %v3185, %v3192
    %v3194 = vpack.c.bf16 %v2877, %v2877
    %v3195 = vsub.bf16 %v3193, %v2520
    %3197 = vset.pattern.permute.xlu0 0
    %3198 = vperm.xlu0 %3197, %v3194
    %v3199 = vpop.permute.xlu0 %3198
    %v3201 = vmul.bf16 %v3199, %v3195
    %v3202 = vadd.bf16 %v2520, %v3201
    %v3203 = vsub.f32 %v3190, %v2528
    %3205 = vset.pattern.permute.xlu0 0
    %3206 = vperm.xlu0 %3205, %v2877
    %v3207 = vpop.permute.xlu0 %3206
    %v3209 = vmul.f32 %v3207, %v3203
    %v3210 = vadd.f32 %v2528, %v3209
    %v3211 = vmul.bf16 %v3199, %v3193
    %s3212 = scalar_lea.vmem [#allocation4], 12
    %3213 = vst [vmem:[%s3212] sm:$0xf] %v3211
    %s3214 = scalar_lea.vmem [#allocation3], 64
    %v3215 = vld [vmem:[%s3214] sm:$0xff]
    %v3216 = vld [vmem:[%s3214 + $0x8] sm:$0xff]
    %s3217 = scalar_lea.vmem %s1, 32
    %v3218 = vld [vmem:[%s3217] sm:$0xff]
    %v3219 = vunpack.c.l.bf16 %v3215
    %v3220 = vunpack.c.h.bf16 %v3215
    %v3221 = vunpack.c.l.bf16 %v3216
    %v3222 = vunpack.c.h.bf16 %v3216
    %v3223 = vld [vmem:[#allocation14] sm:$0xff]
    %v3224 = vld [vmem:[#allocation14 + $0x8] sm:$0xff]
    %v3225 = vld [vmem:[#allocation14 + $0x10] sm:$0xff]
    %v3226 = vld [vmem:[#allocation14 + $0x18] sm:$0xff]
    %v3227 = vld [vmem:[#allocation14 + $0x20] sm:$0xff]
    %v3228 = vld [vmem:[#allocation14 + $0x28] sm:$0xff]
    %v3229 = vld [vmem:[#allocation14 + $0x30] sm:$0xff]
    %v3230 = vld [vmem:[#allocation14 + $0x38] sm:$0xff]
    %v3231 = vld [vmem:[#allocation14 + $0x40] sm:$0xff]
    %v3232 = vld [vmem:[#allocation14 + $0x48] sm:$0xff]
    %v3233 = vld [vmem:[#allocation14 + $0x50] sm:$0xff]
    %v3234 = vld [vmem:[#allocation14 + $0x58] sm:$0xff]
    %v3235 = vld [vmem:[#allocation14 + $0x60] sm:$0xff]
    %v3236 = vld [vmem:[#allocation14 + $0x68] sm:$0xff]
    %v3237 = vld [vmem:[#allocation14 + $0x70] sm:$0xff]
    %v3238 = vld [vmem:[#allocation14 + $0x78] sm:$0xff]
    %v3239 = vld [vmem:[#allocation14 + $0x80] sm:$0xff]
    %v3240 = vld [vmem:[#allocation14 + $0x88] sm:$0xff]
    %v3241 = vld [vmem:[#allocation14 + $0x90] sm:$0xff]
    %v3242 = vld [vmem:[#allocation14 + $0x98] sm:$0xff]
    %v3243 = vld [vmem:[#allocation14 + $0xa0] sm:$0xff]
    %v3244 = vld [vmem:[#allocation14 + $0xa8] sm:$0xff]
    %v3245 = vld [vmem:[#allocation14 + $0xb0] sm:$0xff]
    %v3246 = vld [vmem:[#allocation14 + $0xb8] sm:$0xff]
    %v3247 = vld [vmem:[#allocation14 + $0xc0] sm:$0xff]
    %v3248 = vld [vmem:[#allocation14 + $0xc8] sm:$0xff]
    %v3249 = vld [vmem:[#allocation14 + $0xd0] sm:$0xff]
    %v3250 = vld [vmem:[#allocation14 + $0xd8] sm:$0xff]
    %v3251 = vld [vmem:[#allocation14 + $0xe0] sm:$0xff]
    %v3252 = vld [vmem:[#allocation14 + $0xe8] sm:$0xff]
    %v3253 = vld [vmem:[#allocation14 + $0xf0] sm:$0xff]
    %v3254 = vld [vmem:[#allocation14 + $0xf8] sm:$0xff]
    %v3287 = vunpack.c.l.b16 %v3223
    %v3288 = vunpack.c.h.b16 %v3223
    %v3289 = vunpack.c.l.b16 %v3224
    %v3290 = vunpack.c.h.b16 %v3224
    %v3291 = vunpack.c.l.b16 %v3225
    %v3292 = vunpack.c.h.b16 %v3225
    %v3293 = vunpack.c.l.b16 %v3226
    %v3294 = vunpack.c.h.b16 %v3226
    %v3295 = vunpack.c.l.b16 %v3227
    %v3296 = vunpack.c.h.b16 %v3227
    %v3297 = vunpack.c.l.b16 %v3228
    %v3298 = vunpack.c.h.b16 %v3228
    %v3299 = vunpack.c.l.b16 %v3229
    %v3300 = vunpack.c.h.b16 %v3229
    %v3301 = vunpack.c.l.b16 %v3230
    %v3302 = vunpack.c.h.b16 %v3230
    %v3303 = vunpack.c.l.b16 %v3231
    %v3304 = vunpack.c.h.b16 %v3231
    %v3305 = vunpack.c.l.b16 %v3232
    %v3306 = vunpack.c.h.b16 %v3232
    %v3307 = vunpack.c.l.b16 %v3233
    %v3308 = vunpack.c.h.b16 %v3233
    %v3309 = vunpack.c.l.b16 %v3234
    %v3310 = vunpack.c.h.b16 %v3234
    %v3311 = vunpack.c.l.b16 %v3235
    %v3312 = vunpack.c.h.b16 %v3235
    %v3313 = vunpack.c.l.b16 %v3236
    %v3314 = vunpack.c.h.b16 %v3236
    %v3315 = vunpack.c.l.b16 %v3237
    %v3316 = vunpack.c.h.b16 %v3237
    %v3317 = vunpack.c.l.b16 %v3238
    %v3318 = vunpack.c.h.b16 %v3238
    %v3319 = vunpack.c.l.b16 %v3239
    %v3320 = vunpack.c.h.b16 %v3239
    %v3321 = vunpack.c.l.b16 %v3240
    %v3322 = vunpack.c.h.b16 %v3240
    %v3323 = vunpack.c.l.b16 %v3241
    %v3324 = vunpack.c.h.b16 %v3241
    %v3325 = vunpack.c.l.b16 %v3242
    %v3326 = vunpack.c.h.b16 %v3242
    %v3327 = vunpack.c.l.b16 %v3243
    %v3328 = vunpack.c.h.b16 %v3243
    %v3329 = vunpack.c.l.b16 %v3244
    %v3330 = vunpack.c.h.b16 %v3244
    %v3331 = vunpack.c.l.b16 %v3245
    %v3332 = vunpack.c.h.b16 %v3245
    %v3333 = vunpack.c.l.b16 %v3246
    %v3334 = vunpack.c.h.b16 %v3246
    %v3335 = vunpack.c.l.b16 %v3247
    %v3336 = vunpack.c.h.b16 %v3247
    %v3337 = vunpack.c.l.b16 %v3248
    %v3338 = vunpack.c.h.b16 %v3248
    %v3339 = vunpack.c.l.b16 %v3249
    %v3340 = vunpack.c.h.b16 %v3249
    %v3341 = vunpack.c.l.b16 %v3250
    %v3342 = vunpack.c.h.b16 %v3250
    %v3343 = vunpack.c.l.b16 %v3251
    %v3344 = vunpack.c.h.b16 %v3251
    %v3345 = vunpack.c.l.b16 %v3252
    %v3346 = vunpack.c.h.b16 %v3252
    %v3347 = vunpack.c.l.b16 %v3253
    %v3348 = vunpack.c.h.b16 %v3253
    %v3349 = vunpack.c.l.b16 %v3254
    %v3350 = vunpack.c.h.b16 %v3254
    %v3351 = vpack.c.b16 %v3291, %v3287
    %v3352 = vpack.c.b16 %v3292, %v3288
    %v3353 = vpack.c.b16 %v3293, %v3289
    %v3354 = vpack.c.b16 %v3294, %v3290
    %v3355 = vpack.c.b16 %v3299, %v3295
    %v3356 = vpack.c.b16 %v3300, %v3296
    %v3357 = vpack.c.b16 %v3301, %v3297
    %v3358 = vpack.c.b16 %v3302, %v3298
    %v3359 = vpack.c.b16 %v3307, %v3303
    %v3360 = vpack.c.b16 %v3308, %v3304
    %v3361 = vpack.c.b16 %v3309, %v3305
    %v3362 = vpack.c.b16 %v3310, %v3306
    %v3363 = vpack.c.b16 %v3315, %v3311
    %v3364 = vpack.c.b16 %v3316, %v3312
    %v3365 = vpack.c.b16 %v3317, %v3313
    %v3366 = vpack.c.b16 %v3318, %v3314
    %v3367 = vpack.c.b16 %v3323, %v3319
    %v3368 = vpack.c.b16 %v3324, %v3320
    %v3369 = vpack.c.b16 %v3325, %v3321
    %v3370 = vpack.c.b16 %v3326, %v3322
    %v3371 = vpack.c.b16 %v3331, %v3327
    %v3372 = vpack.c.b16 %v3332, %v3328
    %v3373 = vpack.c.b16 %v3333, %v3329
    %v3374 = vpack.c.b16 %v3334, %v3330
    %v3375 = vpack.c.b16 %v3339, %v3335
    %v3376 = vpack.c.b16 %v3340, %v3336
    %v3377 = vpack.c.b16 %v3341, %v3337
    %v3378 = vpack.c.b16 %v3342, %v3338
    %v3379 = vpack.c.b16 %v3347, %v3343
    %v3380 = vpack.c.b16 %v3348, %v3344
    %v3381 = vpack.c.b16 %v3349, %v3345
    %v3382 = vpack.c.b16 %v3350, %v3346
    %3415 = vmatprep.subr.bf16.mxu0 %v3380
    %3416 = vmatpush1.bf16.msra.mxu0 %v3379
    %3417 = vmatprep.subr.bf16.mxu0 %v3376
    %3418 = vmatpush1.bf16.msra.mxu0 %v3375
    %3419 = vmatprep.subr.bf16.mxu0 %v3372
    %3420 = vmatpush1.bf16.msra.mxu0 %v3371
    %3421 = vmatprep.subr.bf16.mxu0 %v3368
    %3422 = vmatpush1.bf16.msra.mxu0 %v3367
    %3423 = vmatprep.subr.bf16.mxu0 %v3364
    %3424 = vmatpush1.bf16.msra.mxu0 %v3363
    %3425 = vmatprep.subr.bf16.mxu0 %v3360
    %3426 = vmatpush1.bf16.msra.mxu0 %v3359
    %3427 = vmatprep.subr.bf16.mxu0 %v3356
    %3428 = vmatpush1.bf16.msra.mxu0 %v3355
    %3429 = vmatprep.subr.bf16.mxu0 %v3352
    %3430 = vmatpush1.bf16.msra.mxu0 %v3351
    %3431 = vmatprep.subr.bf16.mxu0 0
    %3432 = vmatpush2.bf16.msra.mxu0 0
    %3433 = vmatprep.subr.bf16.mxu0 0
    %3434 = vmatpush2.bf16.msra.mxu0 0
    %3435 = vmatprep.subr.bf16.mxu0 0
    %3436 = vmatpush2.bf16.msra.mxu0 0
    %3437 = vmatprep.subr.bf16.mxu0 0
    %3438 = vmatpush2.bf16.msra.mxu0 0
    %3439 = vmatprep.subr.bf16.mxu0 0
    %3440 = vmatpush2.bf16.msra.mxu0 0
    %3441 = vmatprep.subr.bf16.mxu0 0
    %3442 = vmatpush2.bf16.msra.mxu0 0
    %3443 = vmatprep.subr.bf16.mxu0 0
    %3444 = vmatpush2.bf16.msra.mxu0 0
    %3445 = vmatprep.subr.bf16.mxu0 0
    %3446 = vmatpush2.bf16.msra.mxu0 0
    %3447 = vmatprep.mubr.bf16.mxu0 0
    %3448 = vmatmul.mubr.bf16.gmra.mxu0 %v2861
    %v3449 = vpop.f32.mrf.mxu0
    %v3450 = vadd.f32 0.0, %v3449
    %v3451 = vpop.f32.mrf.mxu0
    %v3452 = vadd.f32 0.0, %v3451
    %v3453 = vpop.f32.mrf.mxu0
    %v3454 = vpop.f32.mrf.mxu0
    %3455 = vdwg.mxu0
    %3456 = vmatprep.subr.bf16.mxu0 %v3382
    %3457 = vmatpush1.bf16.msra.mxu0 %v3381
    %3458 = vmatprep.subr.bf16.mxu0 %v3378
    %3459 = vmatpush1.bf16.msra.mxu0 %v3377
    %3460 = vmatprep.subr.bf16.mxu0 %v3374
    %3461 = vmatpush1.bf16.msra.mxu0 %v3373
    %3462 = vmatprep.subr.bf16.mxu0 %v3370
    %3463 = vmatpush1.bf16.msra.mxu0 %v3369
    %3464 = vmatprep.subr.bf16.mxu0 %v3366
    %3465 = vmatpush1.bf16.msra.mxu0 %v3365
    %3466 = vmatprep.subr.bf16.mxu0 %v3362
    %3467 = vmatpush1.bf16.msra.mxu0 %v3361
    %3468 = vmatprep.subr.bf16.mxu0 %v3358
    %3469 = vmatpush1.bf16.msra.mxu0 %v3357
    %3470 = vmatprep.subr.bf16.mxu0 %v3354
    %3471 = vmatpush1.bf16.msra.mxu0 %v3353
    %3472 = vmatprep.subr.bf16.mxu0 0
    %3473 = vmatpush2.bf16.msra.mxu0 0
    %3474 = vmatprep.subr.bf16.mxu0 0
    %3475 = vmatpush2.bf16.msra.mxu0 0
    %3476 = vmatprep.subr.bf16.mxu0 0
    %3477 = vmatpush2.bf16.msra.mxu0 0
    %3478 = vmatprep.subr.bf16.mxu0 0
    %3479 = vmatpush2.bf16.msra.mxu0 0
    %3480 = vmatprep.subr.bf16.mxu0 0
    %3481 = vmatpush2.bf16.msra.mxu0 0
    %3482 = vmatprep.subr.bf16.mxu0 0
    %3483 = vmatpush2.bf16.msra.mxu0 0
    %3484 = vmatprep.subr.bf16.mxu0 0
    %3485 = vmatpush2.bf16.msra.mxu0 0
    %3486 = vmatprep.subr.bf16.mxu0 0
    %3487 = vmatpush2.bf16.msra.mxu0 0
    %3488 = vmatprep.mubr.bf16.mxu0 0
    %3489 = vmatmul.mubr.bf16.gmra.mxu0 %v2861
    %v3490 = vpop.f32.mrf.mxu0
    %v3491 = vadd.f32 0.0, %v3490
    %v3492 = vpop.f32.mrf.mxu0
    %v3493 = vadd.f32 0.0, %v3492
    %v3494 = vpop.f32.mrf.mxu0
    %v3495 = vpop.f32.mrf.mxu0
    %3496 = vdwg.mxu0
    %v3497 = vadd.f32 %v3219, %v3450
    %v3498 = vadd.f32 %v3220, %v3452
    %v3499 = vadd.f32 %v3221, %v3491
    %v3500 = vadd.f32 %v3222, %v3493
    %v3501 = vpack.c.bf16 %v3497, %v3497
    %v3502 = vpack.c.bf16 %v3498, %v3498
    %v3503 = vpack.c.bf16 %v3499, %v3499
    %v3504 = vpack.c.bf16 %v3500, %v3500
    %v3505 = vxor.u32 %v3501, 2147516416
    %v3507 = vmul.bf16 %v3505, 1069105081
    %v3508 = vpow.bf16.pop %v3507
    %v3509 = vadd.bf16 %v3508, 1065369472
    %v3510 = vrcp.bf16.pop %v3509
    %v3511 = vmul.bf16 1065369472, %v3510
    %v3512 = vxor.u32 %v3502, 2147516416
    %v3514 = vmul.bf16 %v3512, 1069105081
    %v3515 = vpow.bf16.pop %v3514
    %v3516 = vadd.bf16 %v3515, 1065369472
    %v3517 = vrcp.bf16.pop %v3516
    %v3518 = vmul.bf16 1065369472, %v3517
    %v3519 = vtanh.bf16.pop %v3503
    %v3520 = vxor.u32 %v3504, 2147516416
    %v3522 = vmul.bf16 %v3520, 1069105081
    %v3523 = vpow.bf16.pop %v3522
    %v3524 = vadd.bf16 %v3523, 1065369472
    %v3525 = vrcp.bf16.pop %v3524
    %v3526 = vmul.bf16 1065369472, %v3525
    %v3527 = vunpack.c.l.bf16 %v3518
    %v3528 = vmul.f32 %v3527, %v2869
    %v3529 = vmul.bf16 %v3511, %v3519
    %v3530 = vunpack.c.l.bf16 %v3529
    %v3531 = vadd.f32 %v3528, %v3530
    %v3532 = vpack.c.bf16 %v3531, %v3531
    %v3533 = vtanh.bf16.pop %v3532
    %v3534 = vmul.bf16 %v3526, %v3533
    %v3535 = vpack.c.bf16 %v3218, %v3218
    %v3536 = vsub.bf16 %v3534, %v2861
    %3538 = vset.pattern.permute.xlu0 0
    %3539 = vperm.xlu0 %3538, %v3535
    %v3540 = vpop.permute.xlu0 %3539
    %v3542 = vmul.bf16 %v3540, %v3536
    %v3543 = vadd.bf16 %v2861, %v3542
    %v3544 = vsub.f32 %v3531, %v2869
    %3546 = vset.pattern.permute.xlu0 0
    %3547 = vperm.xlu0 %3546, %v3218
    %v3548 = vpop.permute.xlu0 %3547
    %v3550 = vmul.f32 %v3548, %v3544
    %v3551 = vadd.f32 %v2869, %v3550
    %v3552 = vmul.bf16 %v3540, %v3534
    %s3553 = scalar_lea.vmem [#allocation5], 16
    %3554 = vst [vmem:[%s3553] sm:$0xf] %v3552
    %s3555 = scalar_lea.vmem [#allocation2], 64
    %v3556 = vld [vmem:[%s3555] sm:$0xff]
    %v3557 = vld [vmem:[%s3555 + $0x8] sm:$0xff]
    %v3558 = vld [vmem:[%s3217] sm:$0xff]
    %v3559 = vunpack.c.l.bf16 %v3556
    %v3560 = vunpack.c.h.bf16 %v3556
    %v3561 = vunpack.c.l.bf16 %v3557
    %v3562 = vunpack.c.h.bf16 %v3557
    %v3563 = vld [vmem:[#allocation12] sm:$0xff]
    %v3564 = vld [vmem:[#allocation12 + $0x8] sm:$0xff]
    %v3565 = vld [vmem:[#allocation12 + $0x10] sm:$0xff]
    %v3566 = vld [vmem:[#allocation12 + $0x18] sm:$0xff]
    %v3567 = vld [vmem:[#allocation12 + $0x20] sm:$0xff]
    %v3568 = vld [vmem:[#allocation12 + $0x28] sm:$0xff]
    %v3569 = vld [vmem:[#allocation12 + $0x30] sm:$0xff]
    %v3570 = vld [vmem:[#allocation12 + $0x38] sm:$0xff]
    %v3571 = vld [vmem:[#allocation12 + $0x40] sm:$0xff]
    %v3572 = vld [vmem:[#allocation12 + $0x48] sm:$0xff]
    %v3573 = vld [vmem:[#allocation12 + $0x50] sm:$0xff]
    %v3574 = vld [vmem:[#allocation12 + $0x58] sm:$0xff]
    %v3575 = vld [vmem:[#allocation12 + $0x60] sm:$0xff]
    %v3576 = vld [vmem:[#allocation12 + $0x68] sm:$0xff]
    %v3577 = vld [vmem:[#allocation12 + $0x70] sm:$0xff]
    %v3578 = vld [vmem:[#allocation12 + $0x78] sm:$0xff]
    %v3579 = vld [vmem:[#allocation12 + $0x80] sm:$0xff]
    %v3580 = vld [vmem:[#allocation12 + $0x88] sm:$0xff]
    %v3581 = vld [vmem:[#allocation12 + $0x90] sm:$0xff]
    %v3582 = vld [vmem:[#allocation12 + $0x98] sm:$0xff]
    %v3583 = vld [vmem:[#allocation12 + $0xa0] sm:$0xff]
    %v3584 = vld [vmem:[#allocation12 + $0xa8] sm:$0xff]
    %v3585 = vld [vmem:[#allocation12 + $0xb0] sm:$0xff]
    %v3586 = vld [vmem:[#allocation12 + $0xb8] sm:$0xff]
    %v3587 = vld [vmem:[#allocation12 + $0xc0] sm:$0xff]
    %v3588 = vld [vmem:[#allocation12 + $0xc8] sm:$0xff]
    %v3589 = vld [vmem:[#allocation12 + $0xd0] sm:$0xff]
    %v3590 = vld [vmem:[#allocation12 + $0xd8] sm:$0xff]
    %v3591 = vld [vmem:[#allocation12 + $0xe0] sm:$0xff]
    %v3592 = vld [vmem:[#allocation12 + $0xe8] sm:$0xff]
    %v3593 = vld [vmem:[#allocation12 + $0xf0] sm:$0xff]
    %v3594 = vld [vmem:[#allocation12 + $0xf8] sm:$0xff]
    %v3627 = vunpack.c.l.b16 %v3563
    %v3628 = vunpack.c.h.b16 %v3563
    %v3629 = vunpack.c.l.b16 %v3564
    %v3630 = vunpack.c.h.b16 %v3564
    %v3631 = vunpack.c.l.b16 %v3565
    %v3632 = vunpack.c.h.b16 %v3565
    %v3633 = vunpack.c.l.b16 %v3566
    %v3634 = vunpack.c.h.b16 %v3566
    %v3635 = vunpack.c.l.b16 %v3567
    %v3636 = vunpack.c.h.b16 %v3567
    %v3637 = vunpack.c.l.b16 %v3568
    %v3638 = vunpack.c.h.b16 %v3568
    %v3639 = vunpack.c.l.b16 %v3569
    %v3640 = vunpack.c.h.b16 %v3569
    %v3641 = vunpack.c.l.b16 %v3570
    %v3642 = vunpack.c.h.b16 %v3570
    %v3643 = vunpack.c.l.b16 %v3571
    %v3644 = vunpack.c.h.b16 %v3571
    %v3645 = vunpack.c.l.b16 %v3572
    %v3646 = vunpack.c.h.b16 %v3572
    %v3647 = vunpack.c.l.b16 %v3573
    %v3648 = vunpack.c.h.b16 %v3573
    %v3649 = vunpack.c.l.b16 %v3574
    %v3650 = vunpack.c.h.b16 %v3574
    %v3651 = vunpack.c.l.b16 %v3575
    %v3652 = vunpack.c.h.b16 %v3575
    %v3653 = vunpack.c.l.b16 %v3576
    %v3654 = vunpack.c.h.b16 %v3576
    %v3655 = vunpack.c.l.b16 %v3577
    %v3656 = vunpack.c.h.b16 %v3577
    %v3657 = vunpack.c.l.b16 %v3578
    %v3658 = vunpack.c.h.b16 %v3578
    %v3659 = vunpack.c.l.b16 %v3579
    %v3660 = vunpack.c.h.b16 %v3579
    %v3661 = vunpack.c.l.b16 %v3580
    %v3662 = vunpack.c.h.b16 %v3580
    %v3663 = vunpack.c.l.b16 %v3581
    %v3664 = vunpack.c.h.b16 %v3581
    %v3665 = vunpack.c.l.b16 %v3582
    %v3666 = vunpack.c.h.b16 %v3582
    %v3667 = vunpack.c.l.b16 %v3583
    %v3668 = vunpack.c.h.b16 %v3583
    %v3669 = vunpack.c.l.b16 %v3584
    %v3670 = vunpack.c.h.b16 %v3584
    %v3671 = vunpack.c.l.b16 %v3585
    %v3672 = vunpack.c.h.b16 %v3585
    %v3673 = vunpack.c.l.b16 %v3586
    %v3674 = vunpack.c.h.b16 %v3586
    %v3675 = vunpack.c.l.b16 %v3587
    %v3676 = vunpack.c.h.b16 %v3587
    %v3677 = vunpack.c.l.b16 %v3588
    %v3678 = vunpack.c.h.b16 %v3588
    %v3679 = vunpack.c.l.b16 %v3589
    %v3680 = vunpack.c.h.b16 %v3589
    %v3681 = vunpack.c.l.b16 %v3590
    %v3682 = vunpack.c.h.b16 %v3590
    %v3683 = vunpack.c.l.b16 %v3591
    %v3684 = vunpack.c.h.b16 %v3591
    %v3685 = vunpack.c.l.b16 %v3592
    %v3686 = vunpack.c.h.b16 %v3592
    %v3687 = vunpack.c.l.b16 %v3593
    %v3688 = vunpack.c.h.b16 %v3593
    %v3689 = vunpack.c.l.b16 %v3594
    %v3690 = vunpack.c.h.b16 %v3594
    %v3691 = vpack.c.b16 %v3631, %v3627
    %v3692 = vpack.c.b16 %v3632, %v3628
    %v3693 = vpack.c.b16 %v3633, %v3629
    %v3694 = vpack.c.b16 %v3634, %v3630
    %v3695 = vpack.c.b16 %v3639, %v3635
    %v3696 = vpack.c.b16 %v3640, %v3636
    %v3697 = vpack.c.b16 %v3641, %v3637
    %v3698 = vpack.c.b16 %v3642, %v3638
    %v3699 = vpack.c.b16 %v3647, %v3643
    %v3700 = vpack.c.b16 %v3648, %v3644
    %v3701 = vpack.c.b16 %v3649, %v3645
    %v3702 = vpack.c.b16 %v3650, %v3646
    %v3703 = vpack.c.b16 %v3655, %v3651
    %v3704 = vpack.c.b16 %v3656, %v3652
    %v3705 = vpack.c.b16 %v3657, %v3653
    %v3706 = vpack.c.b16 %v3658, %v3654
    %v3707 = vpack.c.b16 %v3663, %v3659
    %v3708 = vpack.c.b16 %v3664, %v3660
    %v3709 = vpack.c.b16 %v3665, %v3661
    %v3710 = vpack.c.b16 %v3666, %v3662
    %v3711 = vpack.c.b16 %v3671, %v3667
    %v3712 = vpack.c.b16 %v3672, %v3668
    %v3713 = vpack.c.b16 %v3673, %v3669
    %v3714 = vpack.c.b16 %v3674, %v3670
    %v3715 = vpack.c.b16 %v3679, %v3675
    %v3716 = vpack.c.b16 %v3680, %v3676
    %v3717 = vpack.c.b16 %v3681, %v3677
    %v3718 = vpack.c.b16 %v3682, %v3678
    %v3719 = vpack.c.b16 %v3687, %v3683
    %v3720 = vpack.c.b16 %v3688, %v3684
    %v3721 = vpack.c.b16 %v3689, %v3685
    %v3722 = vpack.c.b16 %v3690, %v3686
    %3755 = vmatprep.subr.bf16.mxu0 %v3720
    %3756 = vmatpush1.bf16.msra.mxu0 %v3719
    %3757 = vmatprep.subr.bf16.mxu0 %v3716
    %3758 = vmatpush1.bf16.msra.mxu0 %v3715
    %3759 = vmatprep.subr.bf16.mxu0 %v3712
    %3760 = vmatpush1.bf16.msra.mxu0 %v3711
    %3761 = vmatprep.subr.bf16.mxu0 %v3708
    %3762 = vmatpush1.bf16.msra.mxu0 %v3707
    %3763 = vmatprep.subr.bf16.mxu0 %v3704
    %3764 = vmatpush1.bf16.msra.mxu0 %v3703
    %3765 = vmatprep.subr.bf16.mxu0 %v3700
    %3766 = vmatpush1.bf16.msra.mxu0 %v3699
    %3767 = vmatprep.subr.bf16.mxu0 %v3696
    %3768 = vmatpush1.bf16.msra.mxu0 %v3695
    %3769 = vmatprep.subr.bf16.mxu0 %v3692
    %3770 = vmatpush1.bf16.msra.mxu0 %v3691
    %3771 = vmatprep.subr.bf16.mxu0 0
    %3772 = vmatpush2.bf16.msra.mxu0 0
    %3773 = vmatprep.subr.bf16.mxu0 0
    %3774 = vmatpush2.bf16.msra.mxu0 0
    %3775 = vmatprep.subr.bf16.mxu0 0
    %3776 = vmatpush2.bf16.msra.mxu0 0
    %3777 = vmatprep.subr.bf16.mxu0 0
    %3778 = vmatpush2.bf16.msra.mxu0 0
    %3779 = vmatprep.subr.bf16.mxu0 0
    %3780 = vmatpush2.bf16.msra.mxu0 0
    %3781 = vmatprep.subr.bf16.mxu0 0
    %3782 = vmatpush2.bf16.msra.mxu0 0
    %3783 = vmatprep.subr.bf16.mxu0 0
    %3784 = vmatpush2.bf16.msra.mxu0 0
    %3785 = vmatprep.subr.bf16.mxu0 0
    %3786 = vmatpush2.bf16.msra.mxu0 0
    %3787 = vmatprep.mubr.bf16.mxu0 0
    %3788 = vmatmul.mubr.bf16.gmra.mxu0 %v3202
    %v3789 = vpop.f32.mrf.mxu0
    %v3790 = vadd.f32 0.0, %v3789
    %v3791 = vpop.f32.mrf.mxu0
    %v3792 = vadd.f32 0.0, %v3791
    %v3793 = vpop.f32.mrf.mxu0
    %v3794 = vpop.f32.mrf.mxu0
    %3795 = vdwg.mxu0
    %3796 = vmatprep.subr.bf16.mxu0 %v3722
    %3797 = vmatpush1.bf16.msra.mxu0 %v3721
    %3798 = vmatprep.subr.bf16.mxu0 %v3718
    %3799 = vmatpush1.bf16.msra.mxu0 %v3717
    %3800 = vmatprep.subr.bf16.mxu0 %v3714
    %3801 = vmatpush1.bf16.msra.mxu0 %v3713
    %3802 = vmatprep.subr.bf16.mxu0 %v3710
    %3803 = vmatpush1.bf16.msra.mxu0 %v3709
    %3804 = vmatprep.subr.bf16.mxu0 %v3706
    %3805 = vmatpush1.bf16.msra.mxu0 %v3705
    %3806 = vmatprep.subr.bf16.mxu0 %v3702
    %3807 = vmatpush1.bf16.msra.mxu0 %v3701
    %3808 = vmatprep.subr.bf16.mxu0 %v3698
    %3809 = vmatpush1.bf16.msra.mxu0 %v3697
    %3810 = vmatprep.subr.bf16.mxu0 %v3694
    %3811 = vmatpush1.bf16.msra.mxu0 %v3693
    %3812 = vmatprep.subr.bf16.mxu0 0
    %3813 = vmatpush2.bf16.msra.mxu0 0
    %3814 = vmatprep.subr.bf16.mxu0 0
    %3815 = vmatpush2.bf16.msra.mxu0 0
    %3816 = vmatprep.subr.bf16.mxu0 0
    %3817 = vmatpush2.bf16.msra.mxu0 0
    %3818 = vmatprep.subr.bf16.mxu0 0
    %3819 = vmatpush2.bf16.msra.mxu0 0
    %3820 = vmatprep.subr.bf16.mxu0 0
    %3821 = vmatpush2.bf16.msra.mxu0 0
    %3822 = vmatprep.subr.bf16.mxu0 0
    %3823 = vmatpush2.bf16.msra.mxu0 0
    %3824 = vmatprep.subr.bf16.mxu0 0
    %3825 = vmatpush2.bf16.msra.mxu0 0
    %3826 = vmatprep.subr.bf16.mxu0 0
    %3827 = vmatpush2.bf16.msra.mxu0 0
    %3828 = vmatprep.mubr.bf16.mxu0 0
    %3829 = vmatmul.mubr.bf16.gmra.mxu0 %v3202
    %v3830 = vpop.f32.mrf.mxu0
    %v3831 = vadd.f32 0.0, %v3830
    %v3832 = vpop.f32.mrf.mxu0
    %v3833 = vadd.f32 0.0, %v3832
    %v3834 = vpop.f32.mrf.mxu0
    %v3835 = vpop.f32.mrf.mxu0
    %3836 = vdwg.mxu0
    %v3837 = vadd.f32 %v3559, %v3790
    %v3838 = vadd.f32 %v3560, %v3792
    %v3839 = vadd.f32 %v3561, %v3831
    %v3840 = vadd.f32 %v3562, %v3833
    %v3841 = vpack.c.bf16 %v3837, %v3837
    %v3842 = vpack.c.bf16 %v3838, %v3838
    %v3843 = vpack.c.bf16 %v3839, %v3839
    %v3844 = vpack.c.bf16 %v3840, %v3840
    %v3845 = vxor.u32 %v3841, 2147516416
    %v3847 = vmul.bf16 %v3845, 1069105081
    %v3848 = vpow.bf16.pop %v3847
    %v3849 = vadd.bf16 %v3848, 1065369472
    %v3850 = vrcp.bf16.pop %v3849
    %v3851 = vmul.bf16 1065369472, %v3850
    %v3852 = vxor.u32 %v3842, 2147516416
    %v3854 = vmul.bf16 %v3852, 1069105081
    %v3855 = vpow.bf16.pop %v3854
    %v3856 = vadd.bf16 %v3855, 1065369472
    %v3857 = vrcp.bf16.pop %v3856
    %v3858 = vmul.bf16 1065369472, %v3857
    %v3859 = vtanh.bf16.pop %v3843
    %v3860 = vxor.u32 %v3844, 2147516416
    %v3862 = vmul.bf16 %v3860, 1069105081
    %v3863 = vpow.bf16.pop %v3862
    %v3864 = vadd.bf16 %v3863, 1065369472
    %v3865 = vrcp.bf16.pop %v3864
    %v3866 = vmul.bf16 1065369472, %v3865
    %v3867 = vunpack.c.l.bf16 %v3858
    %v3868 = vmul.f32 %v3867, %v3210
    %v3869 = vmul.bf16 %v3851, %v3859
    %v3870 = vunpack.c.l.bf16 %v3869
    %v3871 = vadd.f32 %v3868, %v3870
    %v3872 = vpack.c.bf16 %v3871, %v3871
    %v3873 = vtanh.bf16.pop %v3872
    %v3874 = vmul.bf16 %v3866, %v3873
    %v3875 = vpack.c.bf16 %v3558, %v3558
    %v3876 = vsub.bf16 %v3874, %v3202
    %3878 = vset.pattern.permute.xlu0 0
    %3879 = vperm.xlu0 %3878, %v3875
    %v3880 = vpop.permute.xlu0 %3879
    %v3882 = vmul.bf16 %v3880, %v3876
    %v3883 = vadd.bf16 %v3202, %v3882
    %v3884 = vsub.f32 %v3871, %v3210
    %3886 = vset.pattern.permute.xlu0 0
    %3887 = vperm.xlu0 %3886, %v3558
    %v3888 = vpop.permute.xlu0 %3887
    %v3890 = vmul.f32 %v3888, %v3884
    %v3891 = vadd.f32 %v3210, %v3890
    %v3892 = vmul.bf16 %v3880, %v3874
    %s3893 = scalar_lea.vmem [#allocation4], 16
    %3894 = vst [vmem:[%s3893] sm:$0xf] %v3892
    %s3895 = scalar_lea.vmem [#allocation3], 48
    %v3896 = vld [vmem:[%s3895] sm:$0xff]
    %v3897 = vld [vmem:[%s3895 + $0x8] sm:$0xff]
    %v3898 = vld [vmem:[%s2876] sm:$0xff]
    %v3899 = vunpack.c.l.bf16 %v3896
    %v3900 = vunpack.c.h.bf16 %v3896
    %v3901 = vunpack.c.l.bf16 %v3897
    %v3902 = vunpack.c.h.bf16 %v3897
    %v3903 = vld [vmem:[#allocation14] sm:$0xff]
    %v3904 = vld [vmem:[#allocation14 + $0x8] sm:$0xff]
    %v3905 = vld [vmem:[#allocation14 + $0x10] sm:$0xff]
    %v3906 = vld [vmem:[#allocation14 + $0x18] sm:$0xff]
    %v3907 = vld [vmem:[#allocation14 + $0x20] sm:$0xff]
    %v3908 = vld [vmem:[#allocation14 + $0x28] sm:$0xff]
    %v3909 = vld [vmem:[#allocation14 + $0x30] sm:$0xff]
    %v3910 = vld [vmem:[#allocation14 + $0x38] sm:$0xff]
    %v3911 = vld [vmem:[#allocation14 + $0x40] sm:$0xff]
    %v3912 = vld [vmem:[#allocation14 + $0x48] sm:$0xff]
    %v3913 = vld [vmem:[#allocation14 + $0x50] sm:$0xff]
    %v3914 = vld [vmem:[#allocation14 + $0x58] sm:$0xff]
    %v3915 = vld [vmem:[#allocation14 + $0x60] sm:$0xff]
    %v3916 = vld [vmem:[#allocation14 + $0x68] sm:$0xff]
    %v3917 = vld [vmem:[#allocation14 + $0x70] sm:$0xff]
    %v3918 = vld [vmem:[#allocation14 + $0x78] sm:$0xff]
    %v3919 = vld [vmem:[#allocation14 + $0x80] sm:$0xff]
    %v3920 = vld [vmem:[#allocation14 + $0x88] sm:$0xff]
    %v3921 = vld [vmem:[#allocation14 + $0x90] sm:$0xff]
    %v3922 = vld [vmem:[#allocation14 + $0x98] sm:$0xff]
    %v3923 = vld [vmem:[#allocation14 + $0xa0] sm:$0xff]
    %v3924 = vld [vmem:[#allocation14 + $0xa8] sm:$0xff]
    %v3925 = vld [vmem:[#allocation14 + $0xb0] sm:$0xff]
    %v3926 = vld [vmem:[#allocation14 + $0xb8] sm:$0xff]
    %v3927 = vld [vmem:[#allocation14 + $0xc0] sm:$0xff]
    %v3928 = vld [vmem:[#allocation14 + $0xc8] sm:$0xff]
    %v3929 = vld [vmem:[#allocation14 + $0xd0] sm:$0xff]
    %v3930 = vld [vmem:[#allocation14 + $0xd8] sm:$0xff]
    %v3931 = vld [vmem:[#allocation14 + $0xe0] sm:$0xff]
    %v3932 = vld [vmem:[#allocation14 + $0xe8] sm:$0xff]
    %v3933 = vld [vmem:[#allocation14 + $0xf0] sm:$0xff]
    %v3934 = vld [vmem:[#allocation14 + $0xf8] sm:$0xff]
    %v3967 = vunpack.c.l.b16 %v3903
    %v3968 = vunpack.c.h.b16 %v3903
    %v3969 = vunpack.c.l.b16 %v3904
    %v3970 = vunpack.c.h.b16 %v3904
    %v3971 = vunpack.c.l.b16 %v3905
    %v3972 = vunpack.c.h.b16 %v3905
    %v3973 = vunpack.c.l.b16 %v3906
    %v3974 = vunpack.c.h.b16 %v3906
    %v3975 = vunpack.c.l.b16 %v3907
    %v3976 = vunpack.c.h.b16 %v3907
    %v3977 = vunpack.c.l.b16 %v3908
    %v3978 = vunpack.c.h.b16 %v3908
    %v3979 = vunpack.c.l.b16 %v3909
    %v3980 = vunpack.c.h.b16 %v3909
    %v3981 = vunpack.c.l.b16 %v3910
    %v3982 = vunpack.c.h.b16 %v3910
    %v3983 = vunpack.c.l.b16 %v3911
    %v3984 = vunpack.c.h.b16 %v3911
    %v3985 = vunpack.c.l.b16 %v3912
    %v3986 = vunpack.c.h.b16 %v3912
    %v3987 = vunpack.c.l.b16 %v3913
    %v3988 = vunpack.c.h.b16 %v3913
    %v3989 = vunpack.c.l.b16 %v3914
    %v3990 = vunpack.c.h.b16 %v3914
    %v3991 = vunpack.c.l.b16 %v3915
    %v3992 = vunpack.c.h.b16 %v3915
    %v3993 = vunpack.c.l.b16 %v3916
    %v3994 = vunpack.c.h.b16 %v3916
    %v3995 = vunpack.c.l.b16 %v3917
    %v3996 = vunpack.c.h.b16 %v3917
    %v3997 = vunpack.c.l.b16 %v3918
    %v3998 = vunpack.c.h.b16 %v3918
    %v3999 = vunpack.c.l.b16 %v3919
    %v4000 = vunpack.c.h.b16 %v3919
    %v4001 = vunpack.c.l.b16 %v3920
    %v4002 = vunpack.c.h.b16 %v3920
    %v4003 = vunpack.c.l.b16 %v3921
    %v4004 = vunpack.c.h.b16 %v3921
    %v4005 = vunpack.c.l.b16 %v3922
    %v4006 = vunpack.c.h.b16 %v3922
    %v4007 = vunpack.c.l.b16 %v3923
    %v4008 = vunpack.c.h.b16 %v3923
    %v4009 = vunpack.c.l.b16 %v3924
    %v4010 = vunpack.c.h.b16 %v3924
    %v4011 = vunpack.c.l.b16 %v3925
    %v4012 = vunpack.c.h.b16 %v3925
    %v4013 = vunpack.c.l.b16 %v3926
    %v4014 = vunpack.c.h.b16 %v3926
    %v4015 = vunpack.c.l.b16 %v3927
    %v4016 = vunpack.c.h.b16 %v3927
    %v4017 = vunpack.c.l.b16 %v3928
    %v4018 = vunpack.c.h.b16 %v3928
    %v4019 = vunpack.c.l.b16 %v3929
    %v4020 = vunpack.c.h.b16 %v3929
    %v4021 = vunpack.c.l.b16 %v3930
    %v4022 = vunpack.c.h.b16 %v3930
    %v4023 = vunpack.c.l.b16 %v3931
    %v4024 = vunpack.c.h.b16 %v3931
    %v4025 = vunpack.c.l.b16 %v3932
    %v4026 = vunpack.c.h.b16 %v3932
    %v4027 = vunpack.c.l.b16 %v3933
    %v4028 = vunpack.c.h.b16 %v3933
    %v4029 = vunpack.c.l.b16 %v3934
    %v4030 = vunpack.c.h.b16 %v3934
    %v4031 = vpack.c.b16 %v3971, %v3967
    %v4032 = vpack.c.b16 %v3972, %v3968
    %v4033 = vpack.c.b16 %v3973, %v3969
    %v4034 = vpack.c.b16 %v3974, %v3970
    %v4035 = vpack.c.b16 %v3979, %v3975
    %v4036 = vpack.c.b16 %v3980, %v3976
    %v4037 = vpack.c.b16 %v3981, %v3977
    %v4038 = vpack.c.b16 %v3982, %v3978
    %v4039 = vpack.c.b16 %v3987, %v3983
    %v4040 = vpack.c.b16 %v3988, %v3984
    %v4041 = vpack.c.b16 %v3989, %v3985
    %v4042 = vpack.c.b16 %v3990, %v3986
    %v4043 = vpack.c.b16 %v3995, %v3991
    %v4044 = vpack.c.b16 %v3996, %v3992
    %v4045 = vpack.c.b16 %v3997, %v3993
    %v4046 = vpack.c.b16 %v3998, %v3994
    %v4047 = vpack.c.b16 %v4003, %v3999
    %v4048 = vpack.c.b16 %v4004, %v4000
    %v4049 = vpack.c.b16 %v4005, %v4001
    %v4050 = vpack.c.b16 %v4006, %v4002
    %v4051 = vpack.c.b16 %v4011, %v4007
    %v4052 = vpack.c.b16 %v4012, %v4008
    %v4053 = vpack.c.b16 %v4013, %v4009
    %v4054 = vpack.c.b16 %v4014, %v4010
    %v4055 = vpack.c.b16 %v4019, %v4015
    %v4056 = vpack.c.b16 %v4020, %v4016
    %v4057 = vpack.c.b16 %v4021, %v4017
    %v4058 = vpack.c.b16 %v4022, %v4018
    %v4059 = vpack.c.b16 %v4027, %v4023
    %v4060 = vpack.c.b16 %v4028, %v4024
    %v4061 = vpack.c.b16 %v4029, %v4025
    %v4062 = vpack.c.b16 %v4030, %v4026
    %4095 = vmatprep.subr.bf16.mxu0 %v4060
    %4096 = vmatpush1.bf16.msra.mxu0 %v4059
    %4097 = vmatprep.subr.bf16.mxu0 %v4056
    %4098 = vmatpush1.bf16.msra.mxu0 %v4055
    %4099 = vmatprep.subr.bf16.mxu0 %v4052
    %4100 = vmatpush1.bf16.msra.mxu0 %v4051
    %4101 = vmatprep.subr.bf16.mxu0 %v4048
    %4102 = vmatpush1.bf16.msra.mxu0 %v4047
    %4103 = vmatprep.subr.bf16.mxu0 %v4044
    %4104 = vmatpush1.bf16.msra.mxu0 %v4043
    %4105 = vmatprep.subr.bf16.mxu0 %v4040
    %4106 = vmatpush1.bf16.msra.mxu0 %v4039
    %4107 = vmatprep.subr.bf16.mxu0 %v4036
    %4108 = vmatpush1.bf16.msra.mxu0 %v4035
    %4109 = vmatprep.subr.bf16.mxu0 %v4032
    %4110 = vmatpush1.bf16.msra.mxu0 %v4031
    %4111 = vmatprep.subr.bf16.mxu0 0
    %4112 = vmatpush2.bf16.msra.mxu0 0
    %4113 = vmatprep.subr.bf16.mxu0 0
    %4114 = vmatpush2.bf16.msra.mxu0 0
    %4115 = vmatprep.subr.bf16.mxu0 0
    %4116 = vmatpush2.bf16.msra.mxu0 0
    %4117 = vmatprep.subr.bf16.mxu0 0
    %4118 = vmatpush2.bf16.msra.mxu0 0
    %4119 = vmatprep.subr.bf16.mxu0 0
    %4120 = vmatpush2.bf16.msra.mxu0 0
    %4121 = vmatprep.subr.bf16.mxu0 0
    %4122 = vmatpush2.bf16.msra.mxu0 0
    %4123 = vmatprep.subr.bf16.mxu0 0
    %4124 = vmatpush2.bf16.msra.mxu0 0
    %4125 = vmatprep.subr.bf16.mxu0 0
    %4126 = vmatpush2.bf16.msra.mxu0 0
    %4127 = vmatprep.mubr.bf16.mxu0 0
    %4128 = vmatmul.mubr.bf16.gmra.mxu0 %v3543
    %v4129 = vpop.f32.mrf.mxu0
    %v4130 = vadd.f32 0.0, %v4129
    %v4131 = vpop.f32.mrf.mxu0
    %v4132 = vadd.f32 0.0, %v4131
    %v4133 = vpop.f32.mrf.mxu0
    %v4134 = vpop.f32.mrf.mxu0
    %4135 = vdwg.mxu0
    %4136 = vmatprep.subr.bf16.mxu0 %v4062
    %4137 = vmatpush1.bf16.msra.mxu0 %v4061
    %4138 = vmatprep.subr.bf16.mxu0 %v4058
    %4139 = vmatpush1.bf16.msra.mxu0 %v4057
    %4140 = vmatprep.subr.bf16.mxu0 %v4054
    %4141 = vmatpush1.bf16.msra.mxu0 %v4053
    %4142 = vmatprep.subr.bf16.mxu0 %v4050
    %4143 = vmatpush1.bf16.msra.mxu0 %v4049
    %4144 = vmatprep.subr.bf16.mxu0 %v4046
    %4145 = vmatpush1.bf16.msra.mxu0 %v4045
    %4146 = vmatprep.subr.bf16.mxu0 %v4042
    %4147 = vmatpush1.bf16.msra.mxu0 %v4041
    %4148 = vmatprep.subr.bf16.mxu0 %v4038
    %4149 = vmatpush1.bf16.msra.mxu0 %v4037
    %4150 = vmatprep.subr.bf16.mxu0 %v4034
    %4151 = vmatpush1.bf16.msra.mxu0 %v4033
    %4152 = vmatprep.subr.bf16.mxu0 0
    %4153 = vmatpush2.bf16.msra.mxu0 0
    %4154 = vmatprep.subr.bf16.mxu0 0
    %4155 = vmatpush2.bf16.msra.mxu0 0
    %4156 = vmatprep.subr.bf16.mxu0 0
    %4157 = vmatpush2.bf16.msra.mxu0 0
    %4158 = vmatprep.subr.bf16.mxu0 0
    %4159 = vmatpush2.bf16.msra.mxu0 0
    %4160 = vmatprep.subr.bf16.mxu0 0
    %4161 = vmatpush2.bf16.msra.mxu0 0
    %4162 = vmatprep.subr.bf16.mxu0 0
    %4163 = vmatpush2.bf16.msra.mxu0 0
    %4164 = vmatprep.subr.bf16.mxu0 0
    %4165 = vmatpush2.bf16.msra.mxu0 0
    %4166 = vmatprep.subr.bf16.mxu0 0
    %4167 = vmatpush2.bf16.msra.mxu0 0
    %4168 = vmatprep.mubr.bf16.mxu0 0
    %4169 = vmatmul.mubr.bf16.gmra.mxu0 %v3543
    %v4170 = vpop.f32.mrf.mxu0
    %v4171 = vadd.f32 0.0, %v4170
    %v4172 = vpop.f32.mrf.mxu0
    %v4173 = vadd.f32 0.0, %v4172
    %v4174 = vpop.f32.mrf.mxu0
    %v4175 = vpop.f32.mrf.mxu0
    %4176 = vdwg.mxu0
    %v4177 = vadd.f32 %v3899, %v4130
    %v4178 = vadd.f32 %v3900, %v4132
    %v4179 = vadd.f32 %v3901, %v4171
    %v4180 = vadd.f32 %v3902, %v4173
    %v4181 = vpack.c.bf16 %v4177, %v4177
    %v4182 = vpack.c.bf16 %v4178, %v4178
    %v4183 = vpack.c.bf16 %v4179, %v4179
    %v4184 = vpack.c.bf16 %v4180, %v4180
    %v4185 = vxor.u32 %v4181, 2147516416
    %v4187 = vmul.bf16 %v4185, 1069105081
    %v4188 = vpow.bf16.pop %v4187
    %v4189 = vadd.bf16 %v4188, 1065369472
    %v4190 = vrcp.bf16.pop %v4189
    %v4191 = vmul.bf16 1065369472, %v4190
    %v4192 = vxor.u32 %v4182, 2147516416
    %v4194 = vmul.bf16 %v4192, 1069105081
    %v4195 = vpow.bf16.pop %v4194
    %v4196 = vadd.bf16 %v4195, 1065369472
    %v4197 = vrcp.bf16.pop %v4196
    %v4198 = vmul.bf16 1065369472, %v4197
    %v4199 = vtanh.bf16.pop %v4183
    %v4200 = vxor.u32 %v4184, 2147516416
    %v4202 = vmul.bf16 %v4200, 1069105081
    %v4203 = vpow.bf16.pop %v4202
    %v4204 = vadd.bf16 %v4203, 1065369472
    %v4205 = vrcp.bf16.pop %v4204
    %v4206 = vmul.bf16 1065369472, %v4205
    %v4207 = vunpack.c.l.bf16 %v4198
    %v4208 = vmul.f32 %v4207, %v3551
    %v4209 = vmul.bf16 %v4191, %v4199
    %v4210 = vunpack.c.l.bf16 %v4209
    %v4211 = vadd.f32 %v4208, %v4210
    %v4212 = vpack.c.bf16 %v4211, %v4211
    %v4213 = vtanh.bf16.pop %v4212
    %v4214 = vmul.bf16 %v4206, %v4213
    %v4215 = vpack.c.bf16 %v3898, %v3898
    %v4216 = vsub.bf16 %v4214, %v3543
    %4218 = vset.pattern.permute.xlu0 0
    %4219 = vperm.xlu0 %4218, %v4215
    %v4220 = vpop.permute.xlu0 %4219
    %v4222 = vmul.bf16 %v4220, %v4216
    %v4223 = vadd.bf16 %v3543, %v4222
    %v4224 = vsub.f32 %v4211, %v3551
    %4226 = vset.pattern.permute.xlu0 0
    %4227 = vperm.xlu0 %4226, %v3898
    %v4228 = vpop.permute.xlu0 %4227
    %v4230 = vmul.f32 %v4228, %v4224
    %v4231 = vadd.f32 %v3551, %v4230
    %v4232 = vmul.bf16 %v4220, %v4214
    %s4233 = scalar_lea.vmem [#allocation5], 12
    %4234 = vst [vmem:[%s4233] sm:$0xf] %v4232
    %s4235 = scalar_lea.vmem [#allocation2], 80
    %v4236 = vld [vmem:[%s4235] sm:$0xff]
    %v4237 = vld [vmem:[%s4235 + $0x8] sm:$0xff]
    %v4238 = vld [vmem:[%s2535] sm:$0xff]
    %v4239 = vunpack.c.l.bf16 %v4236
    %v4240 = vunpack.c.h.bf16 %v4236
    %v4241 = vunpack.c.l.bf16 %v4237
    %v4242 = vunpack.c.h.bf16 %v4237
    %v4243 = vld [vmem:[#allocation12] sm:$0xff]
    %v4244 = vld [vmem:[#allocation12 + $0x8] sm:$0xff]
    %v4245 = vld [vmem:[#allocation12 + $0x10] sm:$0xff]
    %v4246 = vld [vmem:[#allocation12 + $0x18] sm:$0xff]
    %v4247 = vld [vmem:[#allocation12 + $0x20] sm:$0xff]
    %v4248 = vld [vmem:[#allocation12 + $0x28] sm:$0xff]
    %v4249 = vld [vmem:[#allocation12 + $0x30] sm:$0xff]
    %v4250 = vld [vmem:[#allocation12 + $0x38] sm:$0xff]
    %v4251 = vld [vmem:[#allocation12 + $0x40] sm:$0xff]
    %v4252 = vld [vmem:[#allocation12 + $0x48] sm:$0xff]
    %v4253 = vld [vmem:[#allocation12 + $0x50] sm:$0xff]
    %v4254 = vld [vmem:[#allocation12 + $0x58] sm:$0xff]
    %v4255 = vld [vmem:[#allocation12 + $0x60] sm:$0xff]
    %v4256 = vld [vmem:[#allocation12 + $0x68] sm:$0xff]
    %v4257 = vld [vmem:[#allocation12 + $0x70] sm:$0xff]
    %v4258 = vld [vmem:[#allocation12 + $0x78] sm:$0xff]
    %v4259 = vld [vmem:[#allocation12 + $0x80] sm:$0xff]
    %v4260 = vld [vmem:[#allocation12 + $0x88] sm:$0xff]
    %v4261 = vld [vmem:[#allocation12 + $0x90] sm:$0xff]
    %v4262 = vld [vmem:[#allocation12 + $0x98] sm:$0xff]
    %v4263 = vld [vmem:[#allocation12 + $0xa0] sm:$0xff]
    %v4264 = vld [vmem:[#allocation12 + $0xa8] sm:$0xff]
    %v4265 = vld [vmem:[#allocation12 + $0xb0] sm:$0xff]
    %v4266 = vld [vmem:[#allocation12 + $0xb8] sm:$0xff]
    %v4267 = vld [vmem:[#allocation12 + $0xc0] sm:$0xff]
    %v4268 = vld [vmem:[#allocation12 + $0xc8] sm:$0xff]
    %v4269 = vld [vmem:[#allocation12 + $0xd0] sm:$0xff]
    %v4270 = vld [vmem:[#allocation12 + $0xd8] sm:$0xff]
    %v4271 = vld [vmem:[#allocation12 + $0xe0] sm:$0xff]
    %v4272 = vld [vmem:[#allocation12 + $0xe8] sm:$0xff]
    %v4273 = vld [vmem:[#allocation12 + $0xf0] sm:$0xff]
    %v4274 = vld [vmem:[#allocation12 + $0xf8] sm:$0xff]
    %v4307 = vunpack.c.l.b16 %v4243
    %v4308 = vunpack.c.h.b16 %v4243
    %v4309 = vunpack.c.l.b16 %v4244
    %v4310 = vunpack.c.h.b16 %v4244
    %v4311 = vunpack.c.l.b16 %v4245
    %v4312 = vunpack.c.h.b16 %v4245
    %v4313 = vunpack.c.l.b16 %v4246
    %v4314 = vunpack.c.h.b16 %v4246
    %v4315 = vunpack.c.l.b16 %v4247
    %v4316 = vunpack.c.h.b16 %v4247
    %v4317 = vunpack.c.l.b16 %v4248
    %v4318 = vunpack.c.h.b16 %v4248
    %v4319 = vunpack.c.l.b16 %v4249
    %v4320 = vunpack.c.h.b16 %v4249
    %v4321 = vunpack.c.l.b16 %v4250
    %v4322 = vunpack.c.h.b16 %v4250
    %v4323 = vunpack.c.l.b16 %v4251
    %v4324 = vunpack.c.h.b16 %v4251
    %v4325 = vunpack.c.l.b16 %v4252
    %v4326 = vunpack.c.h.b16 %v4252
    %v4327 = vunpack.c.l.b16 %v4253
    %v4328 = vunpack.c.h.b16 %v4253
    %v4329 = vunpack.c.l.b16 %v4254
    %v4330 = vunpack.c.h.b16 %v4254
    %v4331 = vunpack.c.l.b16 %v4255
    %v4332 = vunpack.c.h.b16 %v4255
    %v4333 = vunpack.c.l.b16 %v4256
    %v4334 = vunpack.c.h.b16 %v4256
    %v4335 = vunpack.c.l.b16 %v4257
    %v4336 = vunpack.c.h.b16 %v4257
    %v4337 = vunpack.c.l.b16 %v4258
    %v4338 = vunpack.c.h.b16 %v4258
    %v4339 = vunpack.c.l.b16 %v4259
    %v4340 = vunpack.c.h.b16 %v4259
    %v4341 = vunpack.c.l.b16 %v4260
    %v4342 = vunpack.c.h.b16 %v4260
    %v4343 = vunpack.c.l.b16 %v4261
    %v4344 = vunpack.c.h.b16 %v4261
    %v4345 = vunpack.c.l.b16 %v4262
    %v4346 = vunpack.c.h.b16 %v4262
    %v4347 = vunpack.c.l.b16 %v4263
    %v4348 = vunpack.c.h.b16 %v4263
    %v4349 = vunpack.c.l.b16 %v4264
    %v4350 = vunpack.c.h.b16 %v4264
    %v4351 = vunpack.c.l.b16 %v4265
    %v4352 = vunpack.c.h.b16 %v4265
    %v4353 = vunpack.c.l.b16 %v4266
    %v4354 = vunpack.c.h.b16 %v4266
    %v4355 = vunpack.c.l.b16 %v4267
    %v4356 = vunpack.c.h.b16 %v4267
    %v4357 = vunpack.c.l.b16 %v4268
    %v4358 = vunpack.c.h.b16 %v4268
    %v4359 = vunpack.c.l.b16 %v4269
    %v4360 = vunpack.c.h.b16 %v4269
    %v4361 = vunpack.c.l.b16 %v4270
    %v4362 = vunpack.c.h.b16 %v4270
    %v4363 = vunpack.c.l.b16 %v4271
    %v4364 = vunpack.c.h.b16 %v4271
    %v4365 = vunpack.c.l.b16 %v4272
    %v4366 = vunpack.c.h.b16 %v4272
    %v4367 = vunpack.c.l.b16 %v4273
    %v4368 = vunpack.c.h.b16 %v4273
    %v4369 = vunpack.c.l.b16 %v4274
    %v4370 = vunpack.c.h.b16 %v4274
    %v4371 = vpack.c.b16 %v4311, %v4307
    %v4372 = vpack.c.b16 %v4312, %v4308
    %v4373 = vpack.c.b16 %v4313, %v4309
    %v4374 = vpack.c.b16 %v4314, %v4310
    %v4375 = vpack.c.b16 %v4319, %v4315
    %v4376 = vpack.c.b16 %v4320, %v4316
    %v4377 = vpack.c.b16 %v4321, %v4317
    %v4378 = vpack.c.b16 %v4322, %v4318
    %v4379 = vpack.c.b16 %v4327, %v4323
    %v4380 = vpack.c.b16 %v4328, %v4324
    %v4381 = vpack.c.b16 %v4329, %v4325
    %v4382 = vpack.c.b16 %v4330, %v4326
    %v4383 = vpack.c.b16 %v4335, %v4331
    %v4384 = vpack.c.b16 %v4336, %v4332
    %v4385 = vpack.c.b16 %v4337, %v4333
    %v4386 = vpack.c.b16 %v4338, %v4334
    %v4387 = vpack.c.b16 %v4343, %v4339
    %v4388 = vpack.c.b16 %v4344, %v4340
    %v4389 = vpack.c.b16 %v4345, %v4341
    %v4390 = vpack.c.b16 %v4346, %v4342
    %v4391 = vpack.c.b16 %v4351, %v4347
    %v4392 = vpack.c.b16 %v4352, %v4348
    %v4393 = vpack.c.b16 %v4353, %v4349
    %v4394 = vpack.c.b16 %v4354, %v4350
    %v4395 = vpack.c.b16 %v4359, %v4355
    %v4396 = vpack.c.b16 %v4360, %v4356
    %v4397 = vpack.c.b16 %v4361, %v4357
    %v4398 = vpack.c.b16 %v4362, %v4358
    %v4399 = vpack.c.b16 %v4367, %v4363
    %v4400 = vpack.c.b16 %v4368, %v4364
    %v4401 = vpack.c.b16 %v4369, %v4365
    %v4402 = vpack.c.b16 %v4370, %v4366
    %4435 = vmatprep.subr.bf16.mxu0 %v4400
    %4436 = vmatpush1.bf16.msra.mxu0 %v4399
    %4437 = vmatprep.subr.bf16.mxu0 %v4396
    %4438 = vmatpush1.bf16.msra.mxu0 %v4395
    %4439 = vmatprep.subr.bf16.mxu0 %v4392
    %4440 = vmatpush1.bf16.msra.mxu0 %v4391
    %4441 = vmatprep.subr.bf16.mxu0 %v4388
    %4442 = vmatpush1.bf16.msra.mxu0 %v4387
    %4443 = vmatprep.subr.bf16.mxu0 %v4384
    %4444 = vmatpush1.bf16.msra.mxu0 %v4383
    %4445 = vmatprep.subr.bf16.mxu0 %v4380
    %4446 = vmatpush1.bf16.msra.mxu0 %v4379
    %4447 = vmatprep.subr.bf16.mxu0 %v4376
    %4448 = vmatpush1.bf16.msra.mxu0 %v4375
    %4449 = vmatprep.subr.bf16.mxu0 %v4372
    %4450 = vmatpush1.bf16.msra.mxu0 %v4371
    %4451 = vmatprep.subr.bf16.mxu0 0
    %4452 = vmatpush2.bf16.msra.mxu0 0
    %4453 = vmatprep.subr.bf16.mxu0 0
    %4454 = vmatpush2.bf16.msra.mxu0 0
    %4455 = vmatprep.subr.bf16.mxu0 0
    %4456 = vmatpush2.bf16.msra.mxu0 0
    %4457 = vmatprep.subr.bf16.mxu0 0
    %4458 = vmatpush2.bf16.msra.mxu0 0
    %4459 = vmatprep.subr.bf16.mxu0 0
    %4460 = vmatpush2.bf16.msra.mxu0 0
    %4461 = vmatprep.subr.bf16.mxu0 0
    %4462 = vmatpush2.bf16.msra.mxu0 0
    %4463 = vmatprep.subr.bf16.mxu0 0
    %4464 = vmatpush2.bf16.msra.mxu0 0
    %4465 = vmatprep.subr.bf16.mxu0 0
    %4466 = vmatpush2.bf16.msra.mxu0 0
    %4467 = vmatprep.mubr.bf16.mxu0 0
    %4468 = vmatmul.mubr.bf16.gmra.mxu0 %v3883
    %v4469 = vpop.f32.mrf.mxu0
    %v4470 = vadd.f32 0.0, %v4469
    %v4471 = vpop.f32.mrf.mxu0
    %v4472 = vadd.f32 0.0, %v4471
    %v4473 = vpop.f32.mrf.mxu0
    %v4474 = vpop.f32.mrf.mxu0
    %4475 = vdwg.mxu0
    %4476 = vmatprep.subr.bf16.mxu0 %v4402
    %4477 = vmatpush1.bf16.msra.mxu0 %v4401
    %4478 = vmatprep.subr.bf16.mxu0 %v4398
    %4479 = vmatpush1.bf16.msra.mxu0 %v4397
    %4480 = vmatprep.subr.bf16.mxu0 %v4394
    %4481 = vmatpush1.bf16.msra.mxu0 %v4393
    %4482 = vmatprep.subr.bf16.mxu0 %v4390
    %4483 = vmatpush1.bf16.msra.mxu0 %v4389
    %4484 = vmatprep.subr.bf16.mxu0 %v4386
    %4485 = vmatpush1.bf16.msra.mxu0 %v4385
    %4486 = vmatprep.subr.bf16.mxu0 %v4382
    %4487 = vmatpush1.bf16.msra.mxu0 %v4381
    %4488 = vmatprep.subr.bf16.mxu0 %v4378
    %4489 = vmatpush1.bf16.msra.mxu0 %v4377
    %4490 = vmatprep.subr.bf16.mxu0 %v4374
    %4491 = vmatpush1.bf16.msra.mxu0 %v4373
    %4492 = vmatprep.subr.bf16.mxu0 0
    %4493 = vmatpush2.bf16.msra.mxu0 0
    %4494 = vmatprep.subr.bf16.mxu0 0
    %4495 = vmatpush2.bf16.msra.mxu0 0
    %4496 = vmatprep.subr.bf16.mxu0 0
    %4497 = vmatpush2.bf16.msra.mxu0 0
    %4498 = vmatprep.subr.bf16.mxu0 0
    %4499 = vmatpush2.bf16.msra.mxu0 0
    %4500 = vmatprep.subr.bf16.mxu0 0
    %4501 = vmatpush2.bf16.msra.mxu0 0
    %4502 = vmatprep.subr.bf16.mxu0 0
    %4503 = vmatpush2.bf16.msra.mxu0 0
    %4504 = vmatprep.subr.bf16.mxu0 0
    %4505 = vmatpush2.bf16.msra.mxu0 0
    %4506 = vmatprep.subr.bf16.mxu0 0
    %4507 = vmatpush2.bf16.msra.mxu0 0
    %4508 = vmatprep.mubr.bf16.mxu0 0
    %4509 = vmatmul.mubr.bf16.gmra.mxu0 %v3883
    %v4510 = vpop.f32.mrf.mxu0
    %v4511 = vadd.f32 0.0, %v4510
    %v4512 = vpop.f32.mrf.mxu0
    %v4513 = vadd.f32 0.0, %v4512
    %v4514 = vpop.f32.mrf.mxu0
    %v4515 = vpop.f32.mrf.mxu0
    %4516 = vdwg.mxu0
    %v4517 = vadd.f32 %v4239, %v4470
    %v4518 = vadd.f32 %v4240, %v4472
    %v4519 = vadd.f32 %v4241, %v4511
    %v4520 = vadd.f32 %v4242, %v4513
    %v4521 = vpack.c.bf16 %v4517, %v4517
    %v4522 = vpack.c.bf16 %v4518, %v4518
    %v4523 = vpack.c.bf16 %v4519, %v4519
    %v4524 = vpack.c.bf16 %v4520, %v4520
    %v4525 = vxor.u32 %v4521, 2147516416
    %v4527 = vmul.bf16 %v4525, 1069105081
    %v4528 = vpow.bf16.pop %v4527
    %v4529 = vadd.bf16 %v4528, 1065369472
    %v4530 = vrcp.bf16.pop %v4529
    %v4531 = vmul.bf16 1065369472, %v4530
    %v4532 = vxor.u32 %v4522, 2147516416
    %v4534 = vmul.bf16 %v4532, 1069105081
    %v4535 = vpow.bf16.pop %v4534
    %v4536 = vadd.bf16 %v4535, 1065369472
    %v4537 = vrcp.bf16.pop %v4536
    %v4538 = vmul.bf16 1065369472, %v4537
    %v4539 = vtanh.bf16.pop %v4523
    %v4540 = vxor.u32 %v4524, 2147516416
    %v4542 = vmul.bf16 %v4540, 1069105081
    %v4543 = vpow.bf16.pop %v4542
    %v4544 = vadd.bf16 %v4543, 1065369472
    %v4545 = vrcp.bf16.pop %v4544
    %v4546 = vmul.bf16 1065369472, %v4545
    %v4547 = vunpack.c.l.bf16 %v4538
    %v4548 = vmul.f32 %v4547, %v3891
    %v4549 = vmul.bf16 %v4531, %v4539
    %v4550 = vunpack.c.l.bf16 %v4549
    %v4551 = vadd.f32 %v4548, %v4550
    %v4552 = vpack.c.bf16 %v4551, %v4551
    %v4553 = vtanh.bf16.pop %v4552
    %v4554 = vmul.bf16 %v4546, %v4553
    %v4555 = vpack.c.bf16 %v4238, %v4238
    %v4556 = vsub.bf16 %v4554, %v3883
    %4558 = vset.pattern.permute.xlu0 0
    %4559 = vperm.xlu0 %4558, %v4555
    %v4560 = vpop.permute.xlu0 %4559
    %v4562 = vmul.bf16 %v4560, %v4556
    %v4563 = vadd.bf16 %v3883, %v4562
    %v4564 = vsub.f32 %v4551, %v3891
    %4566 = vset.pattern.permute.xlu0 0
    %4567 = vperm.xlu0 %4566, %v4238
    %v4568 = vpop.permute.xlu0 %4567
    %v4570 = vmul.f32 %v4568, %v4564
    %v4571 = vadd.f32 %v3891, %v4570
    %v4572 = vmul.bf16 %v4560, %v4554
    %s4573 = scalar_lea.vmem [#allocation4], 20
    %4574 = vst [vmem:[%s4573] sm:$0xf] %v4572
    %s4575 = scalar_lea.vmem [#allocation3], 32
    %v4576 = vld [vmem:[%s4575] sm:$0xff]
    %v4577 = vld [vmem:[%s4575 + $0x8] sm:$0xff]
    %v4578 = vld [vmem:[%s2194] sm:$0xff]
    %v4579 = vunpack.c.l.bf16 %v4576
    %v4580 = vunpack.c.h.bf16 %v4576
    %v4581 = vunpack.c.l.bf16 %v4577
    %v4582 = vunpack.c.h.bf16 %v4577
    %v4583 = vld [vmem:[#allocation14] sm:$0xff]
    %v4584 = vld [vmem:[#allocation14 + $0x8] sm:$0xff]
    %v4585 = vld [vmem:[#allocation14 + $0x10] sm:$0xff]
    %v4586 = vld [vmem:[#allocation14 + $0x18] sm:$0xff]
    %v4587 = vld [vmem:[#allocation14 + $0x20] sm:$0xff]
    %v4588 = vld [vmem:[#allocation14 + $0x28] sm:$0xff]
    %v4589 = vld [vmem:[#allocation14 + $0x30] sm:$0xff]
    %v4590 = vld [vmem:[#allocation14 + $0x38] sm:$0xff]
    %v4591 = vld [vmem:[#allocation14 + $0x40] sm:$0xff]
    %v4592 = vld [vmem:[#allocation14 + $0x48] sm:$0xff]
    %v4593 = vld [vmem:[#allocation14 + $0x50] sm:$0xff]
    %v4594 = vld [vmem:[#allocation14 + $0x58] sm:$0xff]
    %v4595 = vld [vmem:[#allocation14 + $0x60] sm:$0xff]
    %v4596 = vld [vmem:[#allocation14 + $0x68] sm:$0xff]
    %v4597 = vld [vmem:[#allocation14 + $0x70] sm:$0xff]
    %v4598 = vld [vmem:[#allocation14 + $0x78] sm:$0xff]
    %v4599 = vld [vmem:[#allocation14 + $0x80] sm:$0xff]
    %v4600 = vld [vmem:[#allocation14 + $0x88] sm:$0xff]
    %v4601 = vld [vmem:[#allocation14 + $0x90] sm:$0xff]
    %v4602 = vld [vmem:[#allocation14 + $0x98] sm:$0xff]
    %v4603 = vld [vmem:[#allocation14 + $0xa0] sm:$0xff]
    %v4604 = vld [vmem:[#allocation14 + $0xa8] sm:$0xff]
    %v4605 = vld [vmem:[#allocation14 + $0xb0] sm:$0xff]
    %v4606 = vld [vmem:[#allocation14 + $0xb8] sm:$0xff]
    %v4607 = vld [vmem:[#allocation14 + $0xc0] sm:$0xff]
    %v4608 = vld [vmem:[#allocation14 + $0xc8] sm:$0xff]
    %v4609 = vld [vmem:[#allocation14 + $0xd0] sm:$0xff]
    %v4610 = vld [vmem:[#allocation14 + $0xd8] sm:$0xff]
    %v4611 = vld [vmem:[#allocation14 + $0xe0] sm:$0xff]
    %v4612 = vld [vmem:[#allocation14 + $0xe8] sm:$0xff]
    %v4613 = vld [vmem:[#allocation14 + $0xf0] sm:$0xff]
    %v4614 = vld [vmem:[#allocation14 + $0xf8] sm:$0xff]
    %v4647 = vunpack.c.l.b16 %v4583
    %v4648 = vunpack.c.h.b16 %v4583
    %v4649 = vunpack.c.l.b16 %v4584
    %v4650 = vunpack.c.h.b16 %v4584
    %v4651 = vunpack.c.l.b16 %v4585
    %v4652 = vunpack.c.h.b16 %v4585
    %v4653 = vunpack.c.l.b16 %v4586
    %v4654 = vunpack.c.h.b16 %v4586
    %v4655 = vunpack.c.l.b16 %v4587
    %v4656 = vunpack.c.h.b16 %v4587
    %v4657 = vunpack.c.l.b16 %v4588
    %v4658 = vunpack.c.h.b16 %v4588
    %v4659 = vunpack.c.l.b16 %v4589
    %v4660 = vunpack.c.h.b16 %v4589
    %v4661 = vunpack.c.l.b16 %v4590
    %v4662 = vunpack.c.h.b16 %v4590
    %v4663 = vunpack.c.l.b16 %v4591
    %v4664 = vunpack.c.h.b16 %v4591
    %v4665 = vunpack.c.l.b16 %v4592
    %v4666 = vunpack.c.h.b16 %v4592
    %v4667 = vunpack.c.l.b16 %v4593
    %v4668 = vunpack.c.h.b16 %v4593
    %v4669 = vunpack.c.l.b16 %v4594
    %v4670 = vunpack.c.h.b16 %v4594
    %v4671 = vunpack.c.l.b16 %v4595
    %v4672 = vunpack.c.h.b16 %v4595
    %v4673 = vunpack.c.l.b16 %v4596
    %v4674 = vunpack.c.h.b16 %v4596
    %v4675 = vunpack.c.l.b16 %v4597
    %v4676 = vunpack.c.h.b16 %v4597
    %v4677 = vunpack.c.l.b16 %v4598
    %v4678 = vunpack.c.h.b16 %v4598
    %v4679 = vunpack.c.l.b16 %v4599
    %v4680 = vunpack.c.h.b16 %v4599
    %v4681 = vunpack.c.l.b16 %v4600
    %v4682 = vunpack.c.h.b16 %v4600
    %v4683 = vunpack.c.l.b16 %v4601
    %v4684 = vunpack.c.h.b16 %v4601
    %v4685 = vunpack.c.l.b16 %v4602
    %v4686 = vunpack.c.h.b16 %v4602
    %v4687 = vunpack.c.l.b16 %v4603
    %v4688 = vunpack.c.h.b16 %v4603
    %v4689 = vunpack.c.l.b16 %v4604
    %v4690 = vunpack.c.h.b16 %v4604
    %v4691 = vunpack.c.l.b16 %v4605
    %v4692 = vunpack.c.h.b16 %v4605
    %v4693 = vunpack.c.l.b16 %v4606
    %v4694 = vunpack.c.h.b16 %v4606
    %v4695 = vunpack.c.l.b16 %v4607
    %v4696 = vunpack.c.h.b16 %v4607
    %v4697 = vunpack.c.l.b16 %v4608
    %v4698 = vunpack.c.h.b16 %v4608
    %v4699 = vunpack.c.l.b16 %v4609
    %v4700 = vunpack.c.h.b16 %v4609
    %v4701 = vunpack.c.l.b16 %v4610
    %v4702 = vunpack.c.h.b16 %v4610
    %v4703 = vunpack.c.l.b16 %v4611
    %v4704 = vunpack.c.h.b16 %v4611
    %v4705 = vunpack.c.l.b16 %v4612
    %v4706 = vunpack.c.h.b16 %v4612
    %v4707 = vunpack.c.l.b16 %v4613
    %v4708 = vunpack.c.h.b16 %v4613
    %v4709 = vunpack.c.l.b16 %v4614
    %v4710 = vunpack.c.h.b16 %v4614
    %v4711 = vpack.c.b16 %v4651, %v4647
    %v4712 = vpack.c.b16 %v4652, %v4648
    %v4713 = vpack.c.b16 %v4653, %v4649
    %v4714 = vpack.c.b16 %v4654, %v4650
    %v4715 = vpack.c.b16 %v4659, %v4655
    %v4716 = vpack.c.b16 %v4660, %v4656
    %v4717 = vpack.c.b16 %v4661, %v4657
    %v4718 = vpack.c.b16 %v4662, %v4658
    %v4719 = vpack.c.b16 %v4667, %v4663
    %v4720 = vpack.c.b16 %v4668, %v4664
    %v4721 = vpack.c.b16 %v4669, %v4665
    %v4722 = vpack.c.b16 %v4670, %v4666
    %v4723 = vpack.c.b16 %v4675, %v4671
    %v4724 = vpack.c.b16 %v4676, %v4672
    %v4725 = vpack.c.b16 %v4677, %v4673
    %v4726 = vpack.c.b16 %v4678, %v4674
    %v4727 = vpack.c.b16 %v4683, %v4679
    %v4728 = vpack.c.b16 %v4684, %v4680
    %v4729 = vpack.c.b16 %v4685, %v4681
    %v4730 = vpack.c.b16 %v4686, %v4682
    %v4731 = vpack.c.b16 %v4691, %v4687
    %v4732 = vpack.c.b16 %v4692, %v4688
    %v4733 = vpack.c.b16 %v4693, %v4689
    %v4734 = vpack.c.b16 %v4694, %v4690
    %v4735 = vpack.c.b16 %v4699, %v4695
    %v4736 = vpack.c.b16 %v4700, %v4696
    %v4737 = vpack.c.b16 %v4701, %v4697
    %v4738 = vpack.c.b16 %v4702, %v4698
    %v4739 = vpack.c.b16 %v4707, %v4703
    %v4740 = vpack.c.b16 %v4708, %v4704
    %v4741 = vpack.c.b16 %v4709, %v4705
    %v4742 = vpack.c.b16 %v4710, %v4706
    %4775 = vmatprep.subr.bf16.mxu0 %v4740
    %4776 = vmatpush1.bf16.msra.mxu0 %v4739
    %4777 = vmatprep.subr.bf16.mxu0 %v4736
    %4778 = vmatpush1.bf16.msra.mxu0 %v4735
    %4779 = vmatprep.subr.bf16.mxu0 %v4732
    %4780 = vmatpush1.bf16.msra.mxu0 %v4731
    %4781 = vmatprep.subr.bf16.mxu0 %v4728
    %4782 = vmatpush1.bf16.msra.mxu0 %v4727
    %4783 = vmatprep.subr.bf16.mxu0 %v4724
    %4784 = vmatpush1.bf16.msra.mxu0 %v4723
    %4785 = vmatprep.subr.bf16.mxu0 %v4720
    %4786 = vmatpush1.bf16.msra.mxu0 %v4719
    %4787 = vmatprep.subr.bf16.mxu0 %v4716
    %4788 = vmatpush1.bf16.msra.mxu0 %v4715
    %4789 = vmatprep.subr.bf16.mxu0 %v4712
    %4790 = vmatpush1.bf16.msra.mxu0 %v4711
    %4791 = vmatprep.subr.bf16.mxu0 0
    %4792 = vmatpush2.bf16.msra.mxu0 0
    %4793 = vmatprep.subr.bf16.mxu0 0
    %4794 = vmatpush2.bf16.msra.mxu0 0
    %4795 = vmatprep.subr.bf16.mxu0 0
    %4796 = vmatpush2.bf16.msra.mxu0 0
    %4797 = vmatprep.subr.bf16.mxu0 0
    %4798 = vmatpush2.bf16.msra.mxu0 0
    %4799 = vmatprep.subr.bf16.mxu0 0
    %4800 = vmatpush2.bf16.msra.mxu0 0
    %4801 = vmatprep.subr.bf16.mxu0 0
    %4802 = vmatpush2.bf16.msra.mxu0 0
    %4803 = vmatprep.subr.bf16.mxu0 0
    %4804 = vmatpush2.bf16.msra.mxu0 0
    %4805 = vmatprep.subr.bf16.mxu0 0
    %4806 = vmatpush2.bf16.msra.mxu0 0
    %4807 = vmatprep.mubr.bf16.mxu0 0
    %4808 = vmatmul.mubr.bf16.gmra.mxu0 %v4223
    %v4809 = vpop.f32.mrf.mxu0
    %v4810 = vadd.f32 0.0, %v4809
    %v4811 = vpop.f32.mrf.mxu0
    %v4812 = vadd.f32 0.0, %v4811
    %v4813 = vpop.f32.mrf.mxu0
    %v4814 = vpop.f32.mrf.mxu0
    %4815 = vdwg.mxu0
    %4816 = vmatprep.subr.bf16.mxu0 %v4742
    %4817 = vmatpush1.bf16.msra.mxu0 %v4741
    %4818 = vmatprep.subr.bf16.mxu0 %v4738
    %4819 = vmatpush1.bf16.msra.mxu0 %v4737
    %4820 = vmatprep.subr.bf16.mxu0 %v4734
    %4821 = vmatpush1.bf16.msra.mxu0 %v4733
    %4822 = vmatprep.subr.bf16.mxu0 %v4730
    %4823 = vmatpush1.bf16.msra.mxu0 %v4729
    %4824 = vmatprep.subr.bf16.mxu0 %v4726
    %4825 = vmatpush1.bf16.msra.mxu0 %v4725
    %4826 = vmatprep.subr.bf16.mxu0 %v4722
    %4827 = vmatpush1.bf16.msra.mxu0 %v4721
    %4828 = vmatprep.subr.bf16.mxu0 %v4718
    %4829 = vmatpush1.bf16.msra.mxu0 %v4717
    %4830 = vmatprep.subr.bf16.mxu0 %v4714
    %4831 = vmatpush1.bf16.msra.mxu0 %v4713
    %4832 = vmatprep.subr.bf16.mxu0 0
    %4833 = vmatpush2.bf16.msra.mxu0 0
    %4834 = vmatprep.subr.bf16.mxu0 0
    %4835 = vmatpush2.bf16.msra.mxu0 0
    %4836 = vmatprep.subr.bf16.mxu0 0
    %4837 = vmatpush2.bf16.msra.mxu0 0
    %4838 = vmatprep.subr.bf16.mxu0 0
    %4839 = vmatpush2.bf16.msra.mxu0 0
    %4840 = vmatprep.subr.bf16.mxu0 0
    %4841 = vmatpush2.bf16.msra.mxu0 0
    %4842 = vmatprep.subr.bf16.mxu0 0
    %4843 = vmatpush2.bf16.msra.mxu0 0
    %4844 = vmatprep.subr.bf16.mxu0 0
    %4845 = vmatpush2.bf16.msra.mxu0 0
    %4846 = vmatprep.subr.bf16.mxu0 0
    %4847 = vmatpush2.bf16.msra.mxu0 0
    %4848 = vmatprep.mubr.bf16.mxu0 0
    %4849 = vmatmul.mubr.bf16.gmra.mxu0 %v4223
    %v4850 = vpop.f32.mrf.mxu0
    %v4851 = vadd.f32 0.0, %v4850
    %v4852 = vpop.f32.mrf.mxu0
    %v4853 = vadd.f32 0.0, %v4852
    %v4854 = vpop.f32.mrf.mxu0
    %v4855 = vpop.f32.mrf.mxu0
    %4856 = vdwg.mxu0
    %v4857 = vadd.f32 %v4579, %v4810
    %v4858 = vadd.f32 %v4580, %v4812
    %v4859 = vadd.f32 %v4581, %v4851
    %v4860 = vadd.f32 %v4582, %v4853
    %v4861 = vpack.c.bf16 %v4857, %v4857
    %v4862 = vpack.c.bf16 %v4858, %v4858
    %v4863 = vpack.c.bf16 %v4859, %v4859
    %v4864 = vpack.c.bf16 %v4860, %v4860
    %v4865 = vxor.u32 %v4861, 2147516416
    %v4867 = vmul.bf16 %v4865, 1069105081
    %v4868 = vpow.bf16.pop %v4867
    %v4869 = vadd.bf16 %v4868, 1065369472
    %v4870 = vrcp.bf16.pop %v4869
    %v4871 = vmul.bf16 1065369472, %v4870
    %v4872 = vxor.u32 %v4862, 2147516416
    %v4874 = vmul.bf16 %v4872, 1069105081
    %v4875 = vpow.bf16.pop %v4874
    %v4876 = vadd.bf16 %v4875, 1065369472
    %v4877 = vrcp.bf16.pop %v4876
    %v4878 = vmul.bf16 1065369472, %v4877
    %v4879 = vtanh.bf16.pop %v4863
    %v4880 = vxor.u32 %v4864, 2147516416
    %v4882 = vmul.bf16 %v4880, 1069105081
    %v4883 = vpow.bf16.pop %v4882
    %v4884 = vadd.bf16 %v4883, 1065369472
    %v4885 = vrcp.bf16.pop %v4884
    %v4886 = vmul.bf16 1065369472, %v4885
    %v4887 = vunpack.c.l.bf16 %v4878
    %v4888 = vmul.f32 %v4887, %v4231
    %v4889 = vmul.bf16 %v4871, %v4879
    %v4890 = vunpack.c.l.bf16 %v4889
    %v4891 = vadd.f32 %v4888, %v4890
    %v4892 = vpack.c.bf16 %v4891, %v4891
    %v4893 = vtanh.bf16.pop %v4892
    %v4894 = vmul.bf16 %v4886, %v4893
    %v4895 = vpack.c.bf16 %v4578, %v4578
    %v4896 = vsub.bf16 %v4894, %v4223
    %4898 = vset.pattern.permute.xlu0 0
    %4899 = vperm.xlu0 %4898, %v4895
    %v4900 = vpop.permute.xlu0 %4899
    %v4902 = vmul.bf16 %v4900, %v4896
    %v4903 = vadd.bf16 %v4223, %v4902
    %v4904 = vsub.f32 %v4891, %v4231
    %4906 = vset.pattern.permute.xlu0 0
    %4907 = vperm.xlu0 %4906, %v4578
    %v4908 = vpop.permute.xlu0 %4907
    %v4910 = vmul.f32 %v4908, %v4904
    %v4911 = vadd.f32 %v4231, %v4910
    %v4912 = vmul.bf16 %v4900, %v4894
    %s4913 = scalar_lea.vmem [#allocation5], 8
    %4914 = vst [vmem:[%s4913] sm:$0xf] %v4912
    %s4915 = scalar_lea.vmem [#allocation2], 96
    %v4916 = vld [vmem:[%s4915] sm:$0xff]
    %v4917 = vld [vmem:[%s4915 + $0x8] sm:$0xff]
    %v4918 = vld [vmem:[%s1853] sm:$0xff]
    %v4919 = vunpack.c.l.bf16 %v4916
    %v4920 = vunpack.c.h.bf16 %v4916
    %v4921 = vunpack.c.l.bf16 %v4917
    %v4922 = vunpack.c.h.bf16 %v4917
    %v4923 = vld [vmem:[#allocation12] sm:$0xff]
    %v4924 = vld [vmem:[#allocation12 + $0x8] sm:$0xff]
    %v4925 = vld [vmem:[#allocation12 + $0x10] sm:$0xff]
    %v4926 = vld [vmem:[#allocation12 + $0x18] sm:$0xff]
    %v4927 = vld [vmem:[#allocation12 + $0x20] sm:$0xff]
    %v4928 = vld [vmem:[#allocation12 + $0x28] sm:$0xff]
    %v4929 = vld [vmem:[#allocation12 + $0x30] sm:$0xff]
    %v4930 = vld [vmem:[#allocation12 + $0x38] sm:$0xff]
    %v4931 = vld [vmem:[#allocation12 + $0x40] sm:$0xff]
    %v4932 = vld [vmem:[#allocation12 + $0x48] sm:$0xff]
    %v4933 = vld [vmem:[#allocation12 + $0x50] sm:$0xff]
    %v4934 = vld [vmem:[#allocation12 + $0x58] sm:$0xff]
    %v4935 = vld [vmem:[#allocation12 + $0x60] sm:$0xff]
    %v4936 = vld [vmem:[#allocation12 + $0x68] sm:$0xff]
    %v4937 = vld [vmem:[#allocation12 + $0x70] sm:$0xff]
    %v4938 = vld [vmem:[#allocation12 + $0x78] sm:$0xff]
    %v4939 = vld [vmem:[#allocation12 + $0x80] sm:$0xff]
    %v4940 = vld [vmem:[#allocation12 + $0x88] sm:$0xff]
    %v4941 = vld [vmem:[#allocation12 + $0x90] sm:$0xff]
    %v4942 = vld [vmem:[#allocation12 + $0x98] sm:$0xff]
    %v4943 = vld [vmem:[#allocation12 + $0xa0] sm:$0xff]
    %v4944 = vld [vmem:[#allocation12 + $0xa8] sm:$0xff]
    %v4945 = vld [vmem:[#allocation12 + $0xb0] sm:$0xff]
    %v4946 = vld [vmem:[#allocation12 + $0xb8] sm:$0xff]
    %v4947 = vld [vmem:[#allocation12 + $0xc0] sm:$0xff]
    %v4948 = vld [vmem:[#allocation12 + $0xc8] sm:$0xff]
    %v4949 = vld [vmem:[#allocation12 + $0xd0] sm:$0xff]
    %v4950 = vld [vmem:[#allocation12 + $0xd8] sm:$0xff]
    %v4951 = vld [vmem:[#allocation12 + $0xe0] sm:$0xff]
    %v4952 = vld [vmem:[#allocation12 + $0xe8] sm:$0xff]
    %v4953 = vld [vmem:[#allocation12 + $0xf0] sm:$0xff]
    %v4954 = vld [vmem:[#allocation12 + $0xf8] sm:$0xff]
    %v4987 = vunpack.c.l.b16 %v4923
    %v4988 = vunpack.c.h.b16 %v4923
    %v4989 = vunpack.c.l.b16 %v4924
    %v4990 = vunpack.c.h.b16 %v4924
    %v4991 = vunpack.c.l.b16 %v4925
    %v4992 = vunpack.c.h.b16 %v4925
    %v4993 = vunpack.c.l.b16 %v4926
    %v4994 = vunpack.c.h.b16 %v4926
    %v4995 = vunpack.c.l.b16 %v4927
    %v4996 = vunpack.c.h.b16 %v4927
    %v4997 = vunpack.c.l.b16 %v4928
    %v4998 = vunpack.c.h.b16 %v4928
    %v4999 = vunpack.c.l.b16 %v4929
    %v5000 = vunpack.c.h.b16 %v4929
    %v5001 = vunpack.c.l.b16 %v4930
    %v5002 = vunpack.c.h.b16 %v4930
    %v5003 = vunpack.c.l.b16 %v4931
    %v5004 = vunpack.c.h.b16 %v4931
    %v5005 = vunpack.c.l.b16 %v4932
    %v5006 = vunpack.c.h.b16 %v4932
    %v5007 = vunpack.c.l.b16 %v4933
    %v5008 = vunpack.c.h.b16 %v4933
    %v5009 = vunpack.c.l.b16 %v4934
    %v5010 = vunpack.c.h.b16 %v4934
    %v5011 = vunpack.c.l.b16 %v4935
    %v5012 = vunpack.c.h.b16 %v4935
    %v5013 = vunpack.c.l.b16 %v4936
    %v5014 = vunpack.c.h.b16 %v4936
    %v5015 = vunpack.c.l.b16 %v4937
    %v5016 = vunpack.c.h.b16 %v4937
    %v5017 = vunpack.c.l.b16 %v4938
    %v5018 = vunpack.c.h.b16 %v4938
    %v5019 = vunpack.c.l.b16 %v4939
    %v5020 = vunpack.c.h.b16 %v4939
    %v5021 = vunpack.c.l.b16 %v4940
    %v5022 = vunpack.c.h.b16 %v4940
    %v5023 = vunpack.c.l.b16 %v4941
    %v5024 = vunpack.c.h.b16 %v4941
    %v5025 = vunpack.c.l.b16 %v4942
    %v5026 = vunpack.c.h.b16 %v4942
    %v5027 = vunpack.c.l.b16 %v4943
    %v5028 = vunpack.c.h.b16 %v4943
    %v5029 = vunpack.c.l.b16 %v4944
    %v5030 = vunpack.c.h.b16 %v4944
    %v5031 = vunpack.c.l.b16 %v4945
    %v5032 = vunpack.c.h.b16 %v4945
    %v5033 = vunpack.c.l.b16 %v4946
    %v5034 = vunpack.c.h.b16 %v4946
    %v5035 = vunpack.c.l.b16 %v4947
    %v5036 = vunpack.c.h.b16 %v4947
    %v5037 = vunpack.c.l.b16 %v4948
    %v5038 = vunpack.c.h.b16 %v4948
    %v5039 = vunpack.c.l.b16 %v4949
    %v5040 = vunpack.c.h.b16 %v4949
    %v5041 = vunpack.c.l.b16 %v4950
    %v5042 = vunpack.c.h.b16 %v4950
    %v5043 = vunpack.c.l.b16 %v4951
    %v5044 = vunpack.c.h.b16 %v4951
    %v5045 = vunpack.c.l.b16 %v4952
    %v5046 = vunpack.c.h.b16 %v4952
    %v5047 = vunpack.c.l.b16 %v4953
    %v5048 = vunpack.c.h.b16 %v4953
    %v5049 = vunpack.c.l.b16 %v4954
    %v5050 = vunpack.c.h.b16 %v4954
    %v5051 = vpack.c.b16 %v4991, %v4987
    %v5052 = vpack.c.b16 %v4992, %v4988
    %v5053 = vpack.c.b16 %v4993, %v4989
    %v5054 = vpack.c.b16 %v4994, %v4990
    %v5055 = vpack.c.b16 %v4999, %v4995
    %v5056 = vpack.c.b16 %v5000, %v4996
    %v5057 = vpack.c.b16 %v5001, %v4997
    %v5058 = vpack.c.b16 %v5002, %v4998
    %v5059 = vpack.c.b16 %v5007, %v5003
    %v5060 = vpack.c.b16 %v5008, %v5004
    %v5061 = vpack.c.b16 %v5009, %v5005
    %v5062 = vpack.c.b16 %v5010, %v5006
    %v5063 = vpack.c.b16 %v5015, %v5011
    %v5064 = vpack.c.b16 %v5016, %v5012
    %v5065 = vpack.c.b16 %v5017, %v5013
    %v5066 = vpack.c.b16 %v5018, %v5014
    %v5067 = vpack.c.b16 %v5023, %v5019
    %v5068 = vpack.c.b16 %v5024, %v5020
    %v5069 = vpack.c.b16 %v5025, %v5021
    %v5070 = vpack.c.b16 %v5026, %v5022
    %v5071 = vpack.c.b16 %v5031, %v5027
    %v5072 = vpack.c.b16 %v5032, %v5028
    %v5073 = vpack.c.b16 %v5033, %v5029
    %v5074 = vpack.c.b16 %v5034, %v5030
    %v5075 = vpack.c.b16 %v5039, %v5035
    %v5076 = vpack.c.b16 %v5040, %v5036
    %v5077 = vpack.c.b16 %v5041, %v5037
    %v5078 = vpack.c.b16 %v5042, %v5038
    %v5079 = vpack.c.b16 %v5047, %v5043
    %v5080 = vpack.c.b16 %v5048, %v5044
    %v5081 = vpack.c.b16 %v5049, %v5045
    %v5082 = vpack.c.b16 %v5050, %v5046
    %5115 = vmatprep.subr.bf16.mxu0 %v5080
    %5116 = vmatpush1.bf16.msra.mxu0 %v5079
    %5117 = vmatprep.subr.bf16.mxu0 %v5076
    %5118 = vmatpush1.bf16.msra.mxu0 %v5075
    %5119 = vmatprep.subr.bf16.mxu0 %v5072
    %5120 = vmatpush1.bf16.msra.mxu0 %v5071
    %5121 = vmatprep.subr.bf16.mxu0 %v5068
    %5122 = vmatpush1.bf16.msra.mxu0 %v5067
    %5123 = vmatprep.subr.bf16.mxu0 %v5064
    %5124 = vmatpush1.bf16.msra.mxu0 %v5063
    %5125 = vmatprep.subr.bf16.mxu0 %v5060
    %5126 = vmatpush1.bf16.msra.mxu0 %v5059
    %5127 = vmatprep.subr.bf16.mxu0 %v5056
    %5128 = vmatpush1.bf16.msra.mxu0 %v5055
    %5129 = vmatprep.subr.bf16.mxu0 %v5052
    %5130 = vmatpush1.bf16.msra.mxu0 %v5051
    %5131 = vmatprep.subr.bf16.mxu0 0
    %5132 = vmatpush2.bf16.msra.mxu0 0
    %5133 = vmatprep.subr.bf16.mxu0 0
    %5134 = vmatpush2.bf16.msra.mxu0 0
    %5135 = vmatprep.subr.bf16.mxu0 0
    %5136 = vmatpush2.bf16.msra.mxu0 0
    %5137 = vmatprep.subr.bf16.mxu0 0
    %5138 = vmatpush2.bf16.msra.mxu0 0
    %5139 = vmatprep.subr.bf16.mxu0 0
    %5140 = vmatpush2.bf16.msra.mxu0 0
    %5141 = vmatprep.subr.bf16.mxu0 0
    %5142 = vmatpush2.bf16.msra.mxu0 0
    %5143 = vmatprep.subr.bf16.mxu0 0
    %5144 = vmatpush2.bf16.msra.mxu0 0
    %5145 = vmatprep.subr.bf16.mxu0 0
    %5146 = vmatpush2.bf16.msra.mxu0 0
    %5147 = vmatprep.mubr.bf16.mxu0 0
    %5148 = vmatmul.mubr.bf16.gmra.mxu0 %v4563
    %v5149 = vpop.f32.mrf.mxu0
    %v5150 = vadd.f32 0.0, %v5149
    %v5151 = vpop.f32.mrf.mxu0
    %v5152 = vadd.f32 0.0, %v5151
    %v5153 = vpop.f32.mrf.mxu0
    %v5154 = vpop.f32.mrf.mxu0
    %5155 = vdwg.mxu0
    %5156 = vmatprep.subr.bf16.mxu0 %v5082
    %5157 = vmatpush1.bf16.msra.mxu0 %v5081
    %5158 = vmatprep.subr.bf16.mxu0 %v5078
    %5159 = vmatpush1.bf16.msra.mxu0 %v5077
    %5160 = vmatprep.subr.bf16.mxu0 %v5074
    %5161 = vmatpush1.bf16.msra.mxu0 %v5073
    %5162 = vmatprep.subr.bf16.mxu0 %v5070
    %5163 = vmatpush1.bf16.msra.mxu0 %v5069
    %5164 = vmatprep.subr.bf16.mxu0 %v5066
    %5165 = vmatpush1.bf16.msra.mxu0 %v5065
    %5166 = vmatprep.subr.bf16.mxu0 %v5062
    %5167 = vmatpush1.bf16.msra.mxu0 %v5061
    %5168 = vmatprep.subr.bf16.mxu0 %v5058
    %5169 = vmatpush1.bf16.msra.mxu0 %v5057
    %5170 = vmatprep.subr.bf16.mxu0 %v5054
    %5171 = vmatpush1.bf16.msra.mxu0 %v5053
    %5172 = vmatprep.subr.bf16.mxu0 0
    %5173 = vmatpush2.bf16.msra.mxu0 0
    %5174 = vmatprep.subr.bf16.mxu0 0
    %5175 = vmatpush2.bf16.msra.mxu0 0
    %5176 = vmatprep.subr.bf16.mxu0 0
    %5177 = vmatpush2.bf16.msra.mxu0 0
    %5178 = vmatprep.subr.bf16.mxu0 0
    %5179 = vmatpush2.bf16.msra.mxu0 0
    %5180 = vmatprep.subr.bf16.mxu0 0
    %5181 = vmatpush2.bf16.msra.mxu0 0
    %5182 = vmatprep.subr.bf16.mxu0 0
    %5183 = vmatpush2.bf16.msra.mxu0 0
    %5184 = vmatprep.subr.bf16.mxu0 0
    %5185 = vmatpush2.bf16.msra.mxu0 0
    %5186 = vmatprep.subr.bf16.mxu0 0
    %5187 = vmatpush2.bf16.msra.mxu0 0
    %5188 = vmatprep.mubr.bf16.mxu0 0
    %5189 = vmatmul.mubr.bf16.gmra.mxu0 %v4563
    %v5190 = vpop.f32.mrf.mxu0
    %v5191 = vadd.f32 0.0, %v5190
    %v5192 = vpop.f32.mrf.mxu0
    %v5193 = vadd.f32 0.0, %v5192
    %v5194 = vpop.f32.mrf.mxu0
    %v5195 = vpop.f32.mrf.mxu0
    %5196 = vdwg.mxu0
    %v5197 = vadd.f32 %v4919, %v5150
    %v5198 = vadd.f32 %v4920, %v5152
    %v5199 = vadd.f32 %v4921, %v5191
    %v5200 = vadd.f32 %v4922, %v5193
    %v5201 = vpack.c.bf16 %v5197, %v5197
    %v5202 = vpack.c.bf16 %v5198, %v5198
    %v5203 = vpack.c.bf16 %v5199, %v5199
    %v5204 = vpack.c.bf16 %v5200, %v5200
    %v5205 = vxor.u32 %v5201, 2147516416
    %v5207 = vmul.bf16 %v5205, 1069105081
    %v5208 = vpow.bf16.pop %v5207
    %v5209 = vadd.bf16 %v5208, 1065369472
    %v5210 = vrcp.bf16.pop %v5209
    %v5211 = vmul.bf16 1065369472, %v5210
    %v5212 = vxor.u32 %v5202, 2147516416
    %v5214 = vmul.bf16 %v5212, 1069105081
    %v5215 = vpow.bf16.pop %v5214
    %v5216 = vadd.bf16 %v5215, 1065369472
    %v5217 = vrcp.bf16.pop %v5216
    %v5218 = vmul.bf16 1065369472, %v5217
    %v5219 = vtanh.bf16.pop %v5203
    %v5220 = vxor.u32 %v5204, 2147516416
    %v5222 = vmul.bf16 %v5220, 1069105081
    %v5223 = vpow.bf16.pop %v5222
    %v5224 = vadd.bf16 %v5223, 1065369472
    %v5225 = vrcp.bf16.pop %v5224
    %v5226 = vmul.bf16 1065369472, %v5225
    %v5227 = vunpack.c.l.bf16 %v5218
    %v5228 = vmul.f32 %v5227, %v4571
    %v5229 = vmul.bf16 %v5211, %v5219
    %v5230 = vunpack.c.l.bf16 %v5229
    %v5231 = vadd.f32 %v5228, %v5230
    %v5232 = vpack.c.bf16 %v5231, %v5231
    %v5233 = vtanh.bf16.pop %v5232
    %v5234 = vmul.bf16 %v5226, %v5233
    %v5235 = vpack.c.bf16 %v4918, %v4918
    %v5236 = vsub.bf16 %v5234, %v4563
    %5238 = vset.pattern.permute.xlu0 0
    %5239 = vperm.xlu0 %5238, %v5235
    %v5240 = vpop.permute.xlu0 %5239
    %v5242 = vmul.bf16 %v5240, %v5236
    %v5243 = vadd.bf16 %v4563, %v5242
    %v5244 = vsub.f32 %v5231, %v4571
    %5246 = vset.pattern.permute.xlu0 0
    %5247 = vperm.xlu0 %5246, %v4918
    %v5248 = vpop.permute.xlu0 %5247
    %v5250 = vmul.f32 %v5248, %v5244
    %v5251 = vadd.f32 %v4571, %v5250
    %v5252 = vmul.bf16 %v5240, %v5234
    %s5253 = scalar_lea.vmem [#allocation4], 24
    %5254 = vst [vmem:[%s5253] sm:$0xf] %v5252
    %s5255 = scalar_lea.vmem [#allocation3], 16
    %v5256 = vld [vmem:[%s5255] sm:$0xff]
    %v5257 = vld [vmem:[%s5255 + $0x8] sm:$0xff]
    %v5258 = vld [vmem:[%s1512] sm:$0xff]
    %v5259 = vunpack.c.l.bf16 %v5256
    %v5260 = vunpack.c.h.bf16 %v5256
    %v5261 = vunpack.c.l.bf16 %v5257
    %v5262 = vunpack.c.h.bf16 %v5257
    %v5263 = vld [vmem:[#allocation14] sm:$0xff]
    %v5264 = vld [vmem:[#allocation14 + $0x8] sm:$0xff]
    %v5265 = vld [vmem:[#allocation14 + $0x10] sm:$0xff]
    %v5266 = vld [vmem:[#allocation14 + $0x18] sm:$0xff]
    %v5267 = vld [vmem:[#allocation14 + $0x20] sm:$0xff]
    %v5268 = vld [vmem:[#allocation14 + $0x28] sm:$0xff]
    %v5269 = vld [vmem:[#allocation14 + $0x30] sm:$0xff]
    %v5270 = vld [vmem:[#allocation14 + $0x38] sm:$0xff]
    %v5271 = vld [vmem:[#allocation14 + $0x40] sm:$0xff]
    %v5272 = vld [vmem:[#allocation14 + $0x48] sm:$0xff]
    %v5273 = vld [vmem:[#allocation14 + $0x50] sm:$0xff]
    %v5274 = vld [vmem:[#allocation14 + $0x58] sm:$0xff]
    %v5275 = vld [vmem:[#allocation14 + $0x60] sm:$0xff]
    %v5276 = vld [vmem:[#allocation14 + $0x68] sm:$0xff]
    %v5277 = vld [vmem:[#allocation14 + $0x70] sm:$0xff]
    %v5278 = vld [vmem:[#allocation14 + $0x78] sm:$0xff]
    %v5279 = vld [vmem:[#allocation14 + $0x80] sm:$0xff]
    %v5280 = vld [vmem:[#allocation14 + $0x88] sm:$0xff]
    %v5281 = vld [vmem:[#allocation14 + $0x90] sm:$0xff]
    %v5282 = vld [vmem:[#allocation14 + $0x98] sm:$0xff]
    %v5283 = vld [vmem:[#allocation14 + $0xa0] sm:$0xff]
    %v5284 = vld [vmem:[#allocation14 + $0xa8] sm:$0xff]
    %v5285 = vld [vmem:[#allocation14 + $0xb0] sm:$0xff]
    %v5286 = vld [vmem:[#allocation14 + $0xb8] sm:$0xff]
    %v5287 = vld [vmem:[#allocation14 + $0xc0] sm:$0xff]
    %v5288 = vld [vmem:[#allocation14 + $0xc8] sm:$0xff]
    %v5289 = vld [vmem:[#allocation14 + $0xd0] sm:$0xff]
    %v5290 = vld [vmem:[#allocation14 + $0xd8] sm:$0xff]
    %v5291 = vld [vmem:[#allocation14 + $0xe0] sm:$0xff]
    %v5292 = vld [vmem:[#allocation14 + $0xe8] sm:$0xff]
    %v5293 = vld [vmem:[#allocation14 + $0xf0] sm:$0xff]
    %v5294 = vld [vmem:[#allocation14 + $0xf8] sm:$0xff]
    %v5327 = vunpack.c.l.b16 %v5263
    %v5328 = vunpack.c.h.b16 %v5263
    %v5329 = vunpack.c.l.b16 %v5264
    %v5330 = vunpack.c.h.b16 %v5264
    %v5331 = vunpack.c.l.b16 %v5265
    %v5332 = vunpack.c.h.b16 %v5265
    %v5333 = vunpack.c.l.b16 %v5266
    %v5334 = vunpack.c.h.b16 %v5266
    %v5335 = vunpack.c.l.b16 %v5267
    %v5336 = vunpack.c.h.b16 %v5267
    %v5337 = vunpack.c.l.b16 %v5268
    %v5338 = vunpack.c.h.b16 %v5268
    %v5339 = vunpack.c.l.b16 %v5269
    %v5340 = vunpack.c.h.b16 %v5269
    %v5341 = vunpack.c.l.b16 %v5270
    %v5342 = vunpack.c.h.b16 %v5270
    %v5343 = vunpack.c.l.b16 %v5271
    %v5344 = vunpack.c.h.b16 %v5271
    %v5345 = vunpack.c.l.b16 %v5272
    %v5346 = vunpack.c.h.b16 %v5272
    %v5347 = vunpack.c.l.b16 %v5273
    %v5348 = vunpack.c.h.b16 %v5273
    %v5349 = vunpack.c.l.b16 %v5274
    %v5350 = vunpack.c.h.b16 %v5274
    %v5351 = vunpack.c.l.b16 %v5275
    %v5352 = vunpack.c.h.b16 %v5275
    %v5353 = vunpack.c.l.b16 %v5276
    %v5354 = vunpack.c.h.b16 %v5276
    %v5355 = vunpack.c.l.b16 %v5277
    %v5356 = vunpack.c.h.b16 %v5277
    %v5357 = vunpack.c.l.b16 %v5278
    %v5358 = vunpack.c.h.b16 %v5278
    %v5359 = vunpack.c.l.b16 %v5279
    %v5360 = vunpack.c.h.b16 %v5279
    %v5361 = vunpack.c.l.b16 %v5280
    %v5362 = vunpack.c.h.b16 %v5280
    %v5363 = vunpack.c.l.b16 %v5281
    %v5364 = vunpack.c.h.b16 %v5281
    %v5365 = vunpack.c.l.b16 %v5282
    %v5366 = vunpack.c.h.b16 %v5282
    %v5367 = vunpack.c.l.b16 %v5283
    %v5368 = vunpack.c.h.b16 %v5283
    %v5369 = vunpack.c.l.b16 %v5284
    %v5370 = vunpack.c.h.b16 %v5284
    %v5371 = vunpack.c.l.b16 %v5285
    %v5372 = vunpack.c.h.b16 %v5285
    %v5373 = vunpack.c.l.b16 %v5286
    %v5374 = vunpack.c.h.b16 %v5286
    %v5375 = vunpack.c.l.b16 %v5287
    %v5376 = vunpack.c.h.b16 %v5287
    %v5377 = vunpack.c.l.b16 %v5288
    %v5378 = vunpack.c.h.b16 %v5288
    %v5379 = vunpack.c.l.b16 %v5289
    %v5380 = vunpack.c.h.b16 %v5289
    %v5381 = vunpack.c.l.b16 %v5290
    %v5382 = vunpack.c.h.b16 %v5290
    %v5383 = vunpack.c.l.b16 %v5291
    %v5384 = vunpack.c.h.b16 %v5291
    %v5385 = vunpack.c.l.b16 %v5292
    %v5386 = vunpack.c.h.b16 %v5292
    %v5387 = vunpack.c.l.b16 %v5293
    %v5388 = vunpack.c.h.b16 %v5293
    %v5389 = vunpack.c.l.b16 %v5294
    %v5390 = vunpack.c.h.b16 %v5294
    %v5391 = vpack.c.b16 %v5331, %v5327
    %v5392 = vpack.c.b16 %v5332, %v5328
    %v5393 = vpack.c.b16 %v5333, %v5329
    %v5394 = vpack.c.b16 %v5334, %v5330
    %v5395 = vpack.c.b16 %v5339, %v5335
    %v5396 = vpack.c.b16 %v5340, %v5336
    %v5397 = vpack.c.b16 %v5341, %v5337
    %v5398 = vpack.c.b16 %v5342, %v5338
    %v5399 = vpack.c.b16 %v5347, %v5343
    %v5400 = vpack.c.b16 %v5348, %v5344
    %v5401 = vpack.c.b16 %v5349, %v5345
    %v5402 = vpack.c.b16 %v5350, %v5346
    %v5403 = vpack.c.b16 %v5355, %v5351
    %v5404 = vpack.c.b16 %v5356, %v5352
    %v5405 = vpack.c.b16 %v5357, %v5353
    %v5406 = vpack.c.b16 %v5358, %v5354
    %v5407 = vpack.c.b16 %v5363, %v5359
    %v5408 = vpack.c.b16 %v5364, %v5360
    %v5409 = vpack.c.b16 %v5365, %v5361
    %v5410 = vpack.c.b16 %v5366, %v5362
    %v5411 = vpack.c.b16 %v5371, %v5367
    %v5412 = vpack.c.b16 %v5372, %v5368
    %v5413 = vpack.c.b16 %v5373, %v5369
    %v5414 = vpack.c.b16 %v5374, %v5370
    %v5415 = vpack.c.b16 %v5379, %v5375
    %v5416 = vpack.c.b16 %v5380, %v5376
    %v5417 = vpack.c.b16 %v5381, %v5377
    %v5418 = vpack.c.b16 %v5382, %v5378
    %v5419 = vpack.c.b16 %v5387, %v5383
    %v5420 = vpack.c.b16 %v5388, %v5384
    %v5421 = vpack.c.b16 %v5389, %v5385
    %v5422 = vpack.c.b16 %v5390, %v5386
    %5455 = vmatprep.subr.bf16.mxu0 %v5420
    %5456 = vmatpush1.bf16.msra.mxu0 %v5419
    %5457 = vmatprep.subr.bf16.mxu0 %v5416
    %5458 = vmatpush1.bf16.msra.mxu0 %v5415
    %5459 = vmatprep.subr.bf16.mxu0 %v5412
    %5460 = vmatpush1.bf16.msra.mxu0 %v5411
    %5461 = vmatprep.subr.bf16.mxu0 %v5408
    %5462 = vmatpush1.bf16.msra.mxu0 %v5407
    %5463 = vmatprep.subr.bf16.mxu0 %v5404
    %5464 = vmatpush1.bf16.msra.mxu0 %v5403
    %5465 = vmatprep.subr.bf16.mxu0 %v5400
    %5466 = vmatpush1.bf16.msra.mxu0 %v5399
    %5467 = vmatprep.subr.bf16.mxu0 %v5396
    %5468 = vmatpush1.bf16.msra.mxu0 %v5395
    %5469 = vmatprep.subr.bf16.mxu0 %v5392
    %5470 = vmatpush1.bf16.msra.mxu0 %v5391
    %5471 = vmatprep.subr.bf16.mxu0 0
    %5472 = vmatpush2.bf16.msra.mxu0 0
    %5473 = vmatprep.subr.bf16.mxu0 0
    %5474 = vmatpush2.bf16.msra.mxu0 0
    %5475 = vmatprep.subr.bf16.mxu0 0
    %5476 = vmatpush2.bf16.msra.mxu0 0
    %5477 = vmatprep.subr.bf16.mxu0 0
    %5478 = vmatpush2.bf16.msra.mxu0 0
    %5479 = vmatprep.subr.bf16.mxu0 0
    %5480 = vmatpush2.bf16.msra.mxu0 0
    %5481 = vmatprep.subr.bf16.mxu0 0
    %5482 = vmatpush2.bf16.msra.mxu0 0
    %5483 = vmatprep.subr.bf16.mxu0 0
    %5484 = vmatpush2.bf16.msra.mxu0 0
    %5485 = vmatprep.subr.bf16.mxu0 0
    %5486 = vmatpush2.bf16.msra.mxu0 0
    %5487 = vmatprep.mubr.bf16.mxu0 0
    %5488 = vmatmul.mubr.bf16.gmra.mxu0 %v4903
    %v5489 = vpop.f32.mrf.mxu0
    %v5490 = vadd.f32 0.0, %v5489
    %v5491 = vpop.f32.mrf.mxu0
    %v5492 = vadd.f32 0.0, %v5491
    %v5493 = vpop.f32.mrf.mxu0
    %v5494 = vpop.f32.mrf.mxu0
    %5495 = vdwg.mxu0
    %5496 = vmatprep.subr.bf16.mxu0 %v5422
    %5497 = vmatpush1.bf16.msra.mxu0 %v5421
    %5498 = vmatprep.subr.bf16.mxu0 %v5418
    %5499 = vmatpush1.bf16.msra.mxu0 %v5417
    %5500 = vmatprep.subr.bf16.mxu0 %v5414
    %5501 = vmatpush1.bf16.msra.mxu0 %v5413
    %5502 = vmatprep.subr.bf16.mxu0 %v5410
    %5503 = vmatpush1.bf16.msra.mxu0 %v5409
    %5504 = vmatprep.subr.bf16.mxu0 %v5406
    %5505 = vmatpush1.bf16.msra.mxu0 %v5405
    %5506 = vmatprep.subr.bf16.mxu0 %v5402
    %5507 = vmatpush1.bf16.msra.mxu0 %v5401
    %5508 = vmatprep.subr.bf16.mxu0 %v5398
    %5509 = vmatpush1.bf16.msra.mxu0 %v5397
    %5510 = vmatprep.subr.bf16.mxu0 %v5394
    %5511 = vmatpush1.bf16.msra.mxu0 %v5393
    %5512 = vmatprep.subr.bf16.mxu0 0
    %5513 = vmatpush2.bf16.msra.mxu0 0
    %5514 = vmatprep.subr.bf16.mxu0 0
    %5515 = vmatpush2.bf16.msra.mxu0 0
    %5516 = vmatprep.subr.bf16.mxu0 0
    %5517 = vmatpush2.bf16.msra.mxu0 0
    %5518 = vmatprep.subr.bf16.mxu0 0
    %5519 = vmatpush2.bf16.msra.mxu0 0
    %5520 = vmatprep.subr.bf16.mxu0 0
    %5521 = vmatpush2.bf16.msra.mxu0 0
    %5522 = vmatprep.subr.bf16.mxu0 0
    %5523 = vmatpush2.bf16.msra.mxu0 0
    %5524 = vmatprep.subr.bf16.mxu0 0
    %5525 = vmatpush2.bf16.msra.mxu0 0
    %5526 = vmatprep.subr.bf16.mxu0 0
    %5527 = vmatpush2.bf16.msra.mxu0 0
    %5528 = vmatprep.mubr.bf16.mxu0 0
    %5529 = vmatmul.mubr.bf16.gmra.mxu0 %v4903
    %v5530 = vpop.f32.mrf.mxu0
    %v5531 = vadd.f32 0.0, %v5530
    %v5532 = vpop.f32.mrf.mxu0
    %v5533 = vadd.f32 0.0, %v5532
    %v5534 = vpop.f32.mrf.mxu0
    %v5535 = vpop.f32.mrf.mxu0
    %5536 = vdwg.mxu0
    %v5537 = vadd.f32 %v5259, %v5490
    %v5538 = vadd.f32 %v5260, %v5492
    %v5539 = vadd.f32 %v5261, %v5531
    %v5540 = vadd.f32 %v5262, %v5533
    %v5541 = vpack.c.bf16 %v5537, %v5537
    %v5542 = vpack.c.bf16 %v5538, %v5538
    %v5543 = vpack.c.bf16 %v5539, %v5539
    %v5544 = vpack.c.bf16 %v5540, %v5540
    %v5545 = vxor.u32 %v5541, 2147516416
    %v5547 = vmul.bf16 %v5545, 1069105081
    %v5548 = vpow.bf16.pop %v5547
    %v5549 = vadd.bf16 %v5548, 1065369472
    %v5550 = vrcp.bf16.pop %v5549
    %v5551 = vmul.bf16 1065369472, %v5550
    %v5552 = vxor.u32 %v5542, 2147516416
    %v5554 = vmul.bf16 %v5552, 1069105081
    %v5555 = vpow.bf16.pop %v5554
    %v5556 = vadd.bf16 %v5555, 1065369472
    %v5557 = vrcp.bf16.pop %v5556
    %v5558 = vmul.bf16 1065369472, %v5557
    %v5559 = vtanh.bf16.pop %v5543
    %v5560 = vxor.u32 %v5544, 2147516416
    %v5562 = vmul.bf16 %v5560, 1069105081
    %v5563 = vpow.bf16.pop %v5562
    %v5564 = vadd.bf16 %v5563, 1065369472
    %v5565 = vrcp.bf16.pop %v5564
    %v5566 = vmul.bf16 1065369472, %v5565
    %v5567 = vunpack.c.l.bf16 %v5558
    %v5568 = vmul.f32 %v5567, %v4911
    %v5569 = vmul.bf16 %v5551, %v5559
    %v5570 = vunpack.c.l.bf16 %v5569
    %v5571 = vadd.f32 %v5568, %v5570
    %v5572 = vpack.c.bf16 %v5571, %v5571
    %v5573 = vtanh.bf16.pop %v5572
    %v5574 = vmul.bf16 %v5566, %v5573
    %v5575 = vpack.c.bf16 %v5258, %v5258
    %v5576 = vsub.bf16 %v5574, %v4903
    %5578 = vset.pattern.permute.xlu0 0
    %5579 = vperm.xlu0 %5578, %v5575
    %v5580 = vpop.permute.xlu0 %5579
    %v5582 = vmul.bf16 %v5580, %v5576
    %v5583 = vadd.bf16 %v4903, %v5582
    %v5584 = vsub.f32 %v5571, %v4911
    %5586 = vset.pattern.permute.xlu0 0
    %5587 = vperm.xlu0 %5586, %v5258
    %v5588 = vpop.permute.xlu0 %5587
    %v5590 = vmul.f32 %v5588, %v5584
    %v5591 = vadd.f32 %v4911, %v5590
    %v5592 = vmul.bf16 %v5580, %v5574
    %s5593 = scalar_lea.vmem [#allocation5], 4
    %5594 = vst [vmem:[%s5593] sm:$0xf] %v5592
    %s5595 = scalar_lea.vmem [#allocation2], 112
    %v5596 = vld [vmem:[%s5595] sm:$0xff]
    %v5597 = vld [vmem:[%s5595 + $0x8] sm:$0xff]
    %v5598 = vld [vmem:[%s1174] sm:$0xff]
    %v5599 = vunpack.c.l.bf16 %v5596
    %v5600 = vunpack.c.h.bf16 %v5596
    %v5601 = vunpack.c.l.bf16 %v5597
    %v5602 = vunpack.c.h.bf16 %v5597
    %v5603 = vld [vmem:[#allocation12] sm:$0xff]
    %v5604 = vld [vmem:[#allocation12 + $0x8] sm:$0xff]
    %v5605 = vld [vmem:[#allocation12 + $0x10] sm:$0xff]
    %v5606 = vld [vmem:[#allocation12 + $0x18] sm:$0xff]
    %v5607 = vld [vmem:[#allocation12 + $0x20] sm:$0xff]
    %v5608 = vld [vmem:[#allocation12 + $0x28] sm:$0xff]
    %v5609 = vld [vmem:[#allocation12 + $0x30] sm:$0xff]
    %v5610 = vld [vmem:[#allocation12 + $0x38] sm:$0xff]
    %v5611 = vld [vmem:[#allocation12 + $0x40] sm:$0xff]
    %v5612 = vld [vmem:[#allocation12 + $0x48] sm:$0xff]
    %v5613 = vld [vmem:[#allocation12 + $0x50] sm:$0xff]
    %v5614 = vld [vmem:[#allocation12 + $0x58] sm:$0xff]
    %v5615 = vld [vmem:[#allocation12 + $0x60] sm:$0xff]
    %v5616 = vld [vmem:[#allocation12 + $0x68] sm:$0xff]
    %v5617 = vld [vmem:[#allocation12 + $0x70] sm:$0xff]
    %v5618 = vld [vmem:[#allocation12 + $0x78] sm:$0xff]
    %v5619 = vld [vmem:[#allocation12 + $0x80] sm:$0xff]
    %v5620 = vld [vmem:[#allocation12 + $0x88] sm:$0xff]
    %v5621 = vld [vmem:[#allocation12 + $0x90] sm:$0xff]
    %v5622 = vld [vmem:[#allocation12 + $0x98] sm:$0xff]
    %v5623 = vld [vmem:[#allocation12 + $0xa0] sm:$0xff]
    %v5624 = vld [vmem:[#allocation12 + $0xa8] sm:$0xff]
    %v5625 = vld [vmem:[#allocation12 + $0xb0] sm:$0xff]
    %v5626 = vld [vmem:[#allocation12 + $0xb8] sm:$0xff]
    %v5627 = vld [vmem:[#allocation12 + $0xc0] sm:$0xff]
    %v5628 = vld [vmem:[#allocation12 + $0xc8] sm:$0xff]
    %v5629 = vld [vmem:[#allocation12 + $0xd0] sm:$0xff]
    %v5630 = vld [vmem:[#allocation12 + $0xd8] sm:$0xff]
    %v5631 = vld [vmem:[#allocation12 + $0xe0] sm:$0xff]
    %v5632 = vld [vmem:[#allocation12 + $0xe8] sm:$0xff]
    %v5633 = vld [vmem:[#allocation12 + $0xf0] sm:$0xff]
    %v5634 = vld [vmem:[#allocation12 + $0xf8] sm:$0xff]
    %v5667 = vunpack.c.l.b16 %v5603
    %v5668 = vunpack.c.h.b16 %v5603
    %v5669 = vunpack.c.l.b16 %v5604
    %v5670 = vunpack.c.h.b16 %v5604
    %v5671 = vunpack.c.l.b16 %v5605
    %v5672 = vunpack.c.h.b16 %v5605
    %v5673 = vunpack.c.l.b16 %v5606
    %v5674 = vunpack.c.h.b16 %v5606
    %v5675 = vunpack.c.l.b16 %v5607
    %v5676 = vunpack.c.h.b16 %v5607
    %v5677 = vunpack.c.l.b16 %v5608
    %v5678 = vunpack.c.h.b16 %v5608
    %v5679 = vunpack.c.l.b16 %v5609
    %v5680 = vunpack.c.h.b16 %v5609
    %v5681 = vunpack.c.l.b16 %v5610
    %v5682 = vunpack.c.h.b16 %v5610
    %v5683 = vunpack.c.l.b16 %v5611
    %v5684 = vunpack.c.h.b16 %v5611
    %v5685 = vunpack.c.l.b16 %v5612
    %v5686 = vunpack.c.h.b16 %v5612
    %v5687 = vunpack.c.l.b16 %v5613
    %v5688 = vunpack.c.h.b16 %v5613
    %v5689 = vunpack.c.l.b16 %v5614
    %v5690 = vunpack.c.h.b16 %v5614
    %v5691 = vunpack.c.l.b16 %v5615
    %v5692 = vunpack.c.h.b16 %v5615
    %v5693 = vunpack.c.l.b16 %v5616
    %v5694 = vunpack.c.h.b16 %v5616
    %v5695 = vunpack.c.l.b16 %v5617
    %v5696 = vunpack.c.h.b16 %v5617
    %v5697 = vunpack.c.l.b16 %v5618
    %v5698 = vunpack.c.h.b16 %v5618
    %v5699 = vunpack.c.l.b16 %v5619
    %v5700 = vunpack.c.h.b16 %v5619
    %v5701 = vunpack.c.l.b16 %v5620
    %v5702 = vunpack.c.h.b16 %v5620
    %v5703 = vunpack.c.l.b16 %v5621
    %v5704 = vunpack.c.h.b16 %v5621
    %v5705 = vunpack.c.l.b16 %v5622
    %v5706 = vunpack.c.h.b16 %v5622
    %v5707 = vunpack.c.l.b16 %v5623
    %v5708 = vunpack.c.h.b16 %v5623
    %v5709 = vunpack.c.l.b16 %v5624
    %v5710 = vunpack.c.h.b16 %v5624
    %v5711 = vunpack.c.l.b16 %v5625
    %v5712 = vunpack.c.h.b16 %v5625
    %v5713 = vunpack.c.l.b16 %v5626
    %v5714 = vunpack.c.h.b16 %v5626
    %v5715 = vunpack.c.l.b16 %v5627
    %v5716 = vunpack.c.h.b16 %v5627
    %v5717 = vunpack.c.l.b16 %v5628
    %v5718 = vunpack.c.h.b16 %v5628
    %v5719 = vunpack.c.l.b16 %v5629
    %v5720 = vunpack.c.h.b16 %v5629
    %v5721 = vunpack.c.l.b16 %v5630
    %v5722 = vunpack.c.h.b16 %v5630
    %v5723 = vunpack.c.l.b16 %v5631
    %v5724 = vunpack.c.h.b16 %v5631
    %v5725 = vunpack.c.l.b16 %v5632
    %v5726 = vunpack.c.h.b16 %v5632
    %v5727 = vunpack.c.l.b16 %v5633
    %v5728 = vunpack.c.h.b16 %v5633
    %v5729 = vunpack.c.l.b16 %v5634
    %v5730 = vunpack.c.h.b16 %v5634
    %v5731 = vpack.c.b16 %v5671, %v5667
    %v5732 = vpack.c.b16 %v5672, %v5668
    %v5733 = vpack.c.b16 %v5673, %v5669
    %v5734 = vpack.c.b16 %v5674, %v5670
    %v5735 = vpack.c.b16 %v5679, %v5675
    %v5736 = vpack.c.b16 %v5680, %v5676
    %v5737 = vpack.c.b16 %v5681, %v5677
    %v5738 = vpack.c.b16 %v5682, %v5678
    %v5739 = vpack.c.b16 %v5687, %v5683
    %v5740 = vpack.c.b16 %v5688, %v5684
    %v5741 = vpack.c.b16 %v5689, %v5685
    %v5742 = vpack.c.b16 %v5690, %v5686
    %v5743 = vpack.c.b16 %v5695, %v5691
    %v5744 = vpack.c.b16 %v5696, %v5692
    %v5745 = vpack.c.b16 %v5697, %v5693
    %v5746 = vpack.c.b16 %v5698, %v5694
    %v5747 = vpack.c.b16 %v5703, %v5699
    %v5748 = vpack.c.b16 %v5704, %v5700
    %v5749 = vpack.c.b16 %v5705, %v5701
    %v5750 = vpack.c.b16 %v5706, %v5702
    %v5751 = vpack.c.b16 %v5711, %v5707
    %v5752 = vpack.c.b16 %v5712, %v5708
    %v5753 = vpack.c.b16 %v5713, %v5709
    %v5754 = vpack.c.b16 %v5714, %v5710
    %v5755 = vpack.c.b16 %v5719, %v5715
    %v5756 = vpack.c.b16 %v5720, %v5716
    %v5757 = vpack.c.b16 %v5721, %v5717
    %v5758 = vpack.c.b16 %v5722, %v5718
    %v5759 = vpack.c.b16 %v5727, %v5723
    %v5760 = vpack.c.b16 %v5728, %v5724
    %v5761 = vpack.c.b16 %v5729, %v5725
    %v5762 = vpack.c.b16 %v5730, %v5726
    %5795 = vmatprep.subr.bf16.mxu0 %v5760
    %5796 = vmatpush1.bf16.msra.mxu0 %v5759
    %5797 = vmatprep.subr.bf16.mxu0 %v5756
    %5798 = vmatpush1.bf16.msra.mxu0 %v5755
    %5799 = vmatprep.subr.bf16.mxu0 %v5752
    %5800 = vmatpush1.bf16.msra.mxu0 %v5751
    %5801 = vmatprep.subr.bf16.mxu0 %v5748
    %5802 = vmatpush1.bf16.msra.mxu0 %v5747
    %5803 = vmatprep.subr.bf16.mxu0 %v5744
    %5804 = vmatpush1.bf16.msra.mxu0 %v5743
    %5805 = vmatprep.subr.bf16.mxu0 %v5740
    %5806 = vmatpush1.bf16.msra.mxu0 %v5739
    %5807 = vmatprep.subr.bf16.mxu0 %v5736
    %5808 = vmatpush1.bf16.msra.mxu0 %v5735
    %5809 = vmatprep.subr.bf16.mxu0 %v5732
    %5810 = vmatpush1.bf16.msra.mxu0 %v5731
    %5811 = vmatprep.subr.bf16.mxu0 0
    %5812 = vmatpush2.bf16.msra.mxu0 0
    %5813 = vmatprep.subr.bf16.mxu0 0
    %5814 = vmatpush2.bf16.msra.mxu0 0
    %5815 = vmatprep.subr.bf16.mxu0 0
    %5816 = vmatpush2.bf16.msra.mxu0 0
    %5817 = vmatprep.subr.bf16.mxu0 0
    %5818 = vmatpush2.bf16.msra.mxu0 0
    %5819 = vmatprep.subr.bf16.mxu0 0
    %5820 = vmatpush2.bf16.msra.mxu0 0
    %5821 = vmatprep.subr.bf16.mxu0 0
    %5822 = vmatpush2.bf16.msra.mxu0 0
    %5823 = vmatprep.subr.bf16.mxu0 0
    %5824 = vmatpush2.bf16.msra.mxu0 0
    %5825 = vmatprep.subr.bf16.mxu0 0
    %5826 = vmatpush2.bf16.msra.mxu0 0
    %5827 = vmatprep.mubr.bf16.mxu0 0
    %5828 = vmatmul.mubr.bf16.gmra.mxu0 %v5243
    %v5829 = vpop.f32.mrf.mxu0
    %v5830 = vadd.f32 0.0, %v5829
    %v5831 = vpop.f32.mrf.mxu0
    %v5832 = vadd.f32 0.0, %v5831
    %v5833 = vpop.f32.mrf.mxu0
    %v5834 = vpop.f32.mrf.mxu0
    %5835 = vdwg.mxu0
    %5836 = vmatprep.subr.bf16.mxu0 %v5762
    %5837 = vmatpush1.bf16.msra.mxu0 %v5761
    %5838 = vmatprep.subr.bf16.mxu0 %v5758
    %5839 = vmatpush1.bf16.msra.mxu0 %v5757
    %5840 = vmatprep.subr.bf16.mxu0 %v5754
    %5841 = vmatpush1.bf16.msra.mxu0 %v5753
    %5842 = vmatprep.subr.bf16.mxu0 %v5750
    %5843 = vmatpush1.bf16.msra.mxu0 %v5749
    %5844 = vmatprep.subr.bf16.mxu0 %v5746
    %5845 = vmatpush1.bf16.msra.mxu0 %v5745
    %5846 = vmatprep.subr.bf16.mxu0 %v5742
    %5847 = vmatpush1.bf16.msra.mxu0 %v5741
    %5848 = vmatprep.subr.bf16.mxu0 %v5738
    %5849 = vmatpush1.bf16.msra.mxu0 %v5737
    %5850 = vmatprep.subr.bf16.mxu0 %v5734
    %5851 = vmatpush1.bf16.msra.mxu0 %v5733
    %5852 = vmatprep.subr.bf16.mxu0 0
    %5853 = vmatpush2.bf16.msra.mxu0 0
    %5854 = vmatprep.subr.bf16.mxu0 0
    %5855 = vmatpush2.bf16.msra.mxu0 0
    %5856 = vmatprep.subr.bf16.mxu0 0
    %5857 = vmatpush2.bf16.msra.mxu0 0
    %5858 = vmatprep.subr.bf16.mxu0 0
    %5859 = vmatpush2.bf16.msra.mxu0 0
    %5860 = vmatprep.subr.bf16.mxu0 0
    %5861 = vmatpush2.bf16.msra.mxu0 0
    %5862 = vmatprep.subr.bf16.mxu0 0
    %5863 = vmatpush2.bf16.msra.mxu0 0
    %5864 = vmatprep.subr.bf16.mxu0 0
    %5865 = vmatpush2.bf16.msra.mxu0 0
    %5866 = vmatprep.subr.bf16.mxu0 0
    %5867 = vmatpush2.bf16.msra.mxu0 0
    %5868 = vmatprep.mubr.bf16.mxu0 0
    %5869 = vmatmul.mubr.bf16.gmra.mxu0 %v5243
    %v5870 = vpop.f32.mrf.mxu0
    %v5871 = vadd.f32 0.0, %v5870
    %v5872 = vpop.f32.mrf.mxu0
    %v5873 = vadd.f32 0.0, %v5872
    %v5874 = vpop.f32.mrf.mxu0
    %v5875 = vpop.f32.mrf.mxu0
    %5876 = vdwg.mxu0
    %v5877 = vadd.f32 %v5599, %v5830
    %v5878 = vadd.f32 %v5600, %v5832
    %v5879 = vadd.f32 %v5601, %v5871
    %v5880 = vadd.f32 %v5602, %v5873
    %v5881 = vpack.c.bf16 %v5877, %v5877
    %v5882 = vpack.c.bf16 %v5878, %v5878
    %v5883 = vpack.c.bf16 %v5879, %v5879
    %v5884 = vpack.c.bf16 %v5880, %v5880
    %v5885 = vxor.u32 %v5881, 2147516416
    %v5887 = vmul.bf16 %v5885, 1069105081
    %v5888 = vpow.bf16.pop %v5887
    %v5889 = vadd.bf16 %v5888, 1065369472
    %v5890 = vrcp.bf16.pop %v5889
    %v5891 = vmul.bf16 1065369472, %v5890
    %v5892 = vxor.u32 %v5882, 2147516416
    %v5894 = vmul.bf16 %v5892, 1069105081
    %v5895 = vpow.bf16.pop %v5894
    %v5896 = vadd.bf16 %v5895, 1065369472
    %v5897 = vrcp.bf16.pop %v5896
    %v5898 = vmul.bf16 1065369472, %v5897
    %v5899 = vtanh.bf16.pop %v5883
    %v5900 = vxor.u32 %v5884, 2147516416
    %v5902 = vmul.bf16 %v5900, 1069105081
    %v5903 = vpow.bf16.pop %v5902
    %v5904 = vadd.bf16 %v5903, 1065369472
    %v5905 = vrcp.bf16.pop %v5904
    %v5906 = vmul.bf16 1065369472, %v5905
    %v5907 = vunpack.c.l.bf16 %v5898
    %v5908 = vmul.f32 %v5907, %v5251
    %v5909 = vmul.bf16 %v5891, %v5899
    %v5910 = vunpack.c.l.bf16 %v5909
    %v5911 = vadd.f32 %v5908, %v5910
    %v5912 = vpack.c.bf16 %v5911, %v5911
    %v5913 = vtanh.bf16.pop %v5912
    %v5914 = vmul.bf16 %v5906, %v5913
    %v5915 = vpack.c.bf16 %v5598, %v5598
    %5917 = vset.pattern.permute.xlu0 0
    %5918 = vperm.xlu0 %5917, %v5915
    %v5919 = vpop.permute.xlu0 %5918
    %v5921 = vmul.bf16 %v5919, %v5914
    %s5922 = scalar_lea.vmem [#allocation4], 28
    %5923 = vst [vmem:[%s5922] sm:$0xf] %v5921
    %v5924 = vld [vmem:[#allocation3] sm:$0xff]
    %v5925 = vld [vmem:[#allocation3 + $0x8] sm:$0xff]
    %v5926 = vld [vmem:[%s1] sm:$0xff]
    %v5927 = vunpack.c.l.bf16 %v5924
    %v5928 = vunpack.c.h.bf16 %v5924
    %v5929 = vunpack.c.l.bf16 %v5925
    %v5930 = vunpack.c.h.bf16 %v5925
    %v5931 = vld [vmem:[#allocation14] sm:$0xff]
    %v5932 = vld [vmem:[#allocation14 + $0x8] sm:$0xff]
    %v5933 = vld [vmem:[#allocation14 + $0x10] sm:$0xff]
    %v5934 = vld [vmem:[#allocation14 + $0x18] sm:$0xff]
    %v5935 = vld [vmem:[#allocation14 + $0x20] sm:$0xff]
    %v5936 = vld [vmem:[#allocation14 + $0x28] sm:$0xff]
    %v5937 = vld [vmem:[#allocation14 + $0x30] sm:$0xff]
    %v5938 = vld [vmem:[#allocation14 + $0x38] sm:$0xff]
    %v5939 = vld [vmem:[#allocation14 + $0x40] sm:$0xff]
    %v5940 = vld [vmem:[#allocation14 + $0x48] sm:$0xff]
    %v5941 = vld [vmem:[#allocation14 + $0x50] sm:$0xff]
    %v5942 = vld [vmem:[#allocation14 + $0x58] sm:$0xff]
    %v5943 = vld [vmem:[#allocation14 + $0x60] sm:$0xff]
    %v5944 = vld [vmem:[#allocation14 + $0x68] sm:$0xff]
    %v5945 = vld [vmem:[#allocation14 + $0x70] sm:$0xff]
    %v5946 = vld [vmem:[#allocation14 + $0x78] sm:$0xff]
    %v5947 = vld [vmem:[#allocation14 + $0x80] sm:$0xff]
    %v5948 = vld [vmem:[#allocation14 + $0x88] sm:$0xff]
    %v5949 = vld [vmem:[#allocation14 + $0x90] sm:$0xff]
    %v5950 = vld [vmem:[#allocation14 + $0x98] sm:$0xff]
    %v5951 = vld [vmem:[#allocation14 + $0xa0] sm:$0xff]
    %v5952 = vld [vmem:[#allocation14 + $0xa8] sm:$0xff]
    %v5953 = vld [vmem:[#allocation14 + $0xb0] sm:$0xff]
    %v5954 = vld [vmem:[#allocation14 + $0xb8] sm:$0xff]
    %v5955 = vld [vmem:[#allocation14 + $0xc0] sm:$0xff]
    %v5956 = vld [vmem:[#allocation14 + $0xc8] sm:$0xff]
    %v5957 = vld [vmem:[#allocation14 + $0xd0] sm:$0xff]
    %v5958 = vld [vmem:[#allocation14 + $0xd8] sm:$0xff]
    %v5959 = vld [vmem:[#allocation14 + $0xe0] sm:$0xff]
    %v5960 = vld [vmem:[#allocation14 + $0xe8] sm:$0xff]
    %v5961 = vld [vmem:[#allocation14 + $0xf0] sm:$0xff]
    %v5962 = vld [vmem:[#allocation14 + $0xf8] sm:$0xff]
    %v5995 = vunpack.c.l.b16 %v5931
    %v5996 = vunpack.c.h.b16 %v5931
    %v5997 = vunpack.c.l.b16 %v5932
    %v5998 = vunpack.c.h.b16 %v5932
    %v5999 = vunpack.c.l.b16 %v5933
    %v6000 = vunpack.c.h.b16 %v5933
    %v6001 = vunpack.c.l.b16 %v5934
    %v6002 = vunpack.c.h.b16 %v5934
    %v6003 = vunpack.c.l.b16 %v5935
    %v6004 = vunpack.c.h.b16 %v5935
    %v6005 = vunpack.c.l.b16 %v5936
    %v6006 = vunpack.c.h.b16 %v5936
    %v6007 = vunpack.c.l.b16 %v5937
    %v6008 = vunpack.c.h.b16 %v5937
    %v6009 = vunpack.c.l.b16 %v5938
    %v6010 = vunpack.c.h.b16 %v5938
    %v6011 = vunpack.c.l.b16 %v5939
    %v6012 = vunpack.c.h.b16 %v5939
    %v6013 = vunpack.c.l.b16 %v5940
    %v6014 = vunpack.c.h.b16 %v5940
    %v6015 = vunpack.c.l.b16 %v5941
    %v6016 = vunpack.c.h.b16 %v5941
    %v6017 = vunpack.c.l.b16 %v5942
    %v6018 = vunpack.c.h.b16 %v5942
    %v6019 = vunpack.c.l.b16 %v5943
    %v6020 = vunpack.c.h.b16 %v5943
    %v6021 = vunpack.c.l.b16 %v5944
    %v6022 = vunpack.c.h.b16 %v5944
    %v6023 = vunpack.c.l.b16 %v5945
    %v6024 = vunpack.c.h.b16 %v5945
    %v6025 = vunpack.c.l.b16 %v5946
    %v6026 = vunpack.c.h.b16 %v5946
    %v6027 = vunpack.c.l.b16 %v5947
    %v6028 = vunpack.c.h.b16 %v5947
    %v6029 = vunpack.c.l.b16 %v5948
    %v6030 = vunpack.c.h.b16 %v5948
    %v6031 = vunpack.c.l.b16 %v5949
    %v6032 = vunpack.c.h.b16 %v5949
    %v6033 = vunpack.c.l.b16 %v5950
    %v6034 = vunpack.c.h.b16 %v5950
    %v6035 = vunpack.c.l.b16 %v5951
    %v6036 = vunpack.c.h.b16 %v5951
    %v6037 = vunpack.c.l.b16 %v5952
    %v6038 = vunpack.c.h.b16 %v5952
    %v6039 = vunpack.c.l.b16 %v5953
    %v6040 = vunpack.c.h.b16 %v5953
    %v6041 = vunpack.c.l.b16 %v5954
    %v6042 = vunpack.c.h.b16 %v5954
    %v6043 = vunpack.c.l.b16 %v5955
    %v6044 = vunpack.c.h.b16 %v5955
    %v6045 = vunpack.c.l.b16 %v5956
    %v6046 = vunpack.c.h.b16 %v5956
    %v6047 = vunpack.c.l.b16 %v5957
    %v6048 = vunpack.c.h.b16 %v5957
    %v6049 = vunpack.c.l.b16 %v5958
    %v6050 = vunpack.c.h.b16 %v5958
    %v6051 = vunpack.c.l.b16 %v5959
    %v6052 = vunpack.c.h.b16 %v5959
    %v6053 = vunpack.c.l.b16 %v5960
    %v6054 = vunpack.c.h.b16 %v5960
    %v6055 = vunpack.c.l.b16 %v5961
    %v6056 = vunpack.c.h.b16 %v5961
    %v6057 = vunpack.c.l.b16 %v5962
    %v6058 = vunpack.c.h.b16 %v5962
    %v6059 = vpack.c.b16 %v5999, %v5995
    %v6060 = vpack.c.b16 %v6000, %v5996
    %v6061 = vpack.c.b16 %v6001, %v5997
    %v6062 = vpack.c.b16 %v6002, %v5998
    %v6063 = vpack.c.b16 %v6007, %v6003
    %v6064 = vpack.c.b16 %v6008, %v6004
    %v6065 = vpack.c.b16 %v6009, %v6005
    %v6066 = vpack.c.b16 %v6010, %v6006
    %v6067 = vpack.c.b16 %v6015, %v6011
    %v6068 = vpack.c.b16 %v6016, %v6012
    %v6069 = vpack.c.b16 %v6017, %v6013
    %v6070 = vpack.c.b16 %v6018, %v6014
    %v6071 = vpack.c.b16 %v6023, %v6019
    %v6072 = vpack.c.b16 %v6024, %v6020
    %v6073 = vpack.c.b16 %v6025, %v6021
    %v6074 = vpack.c.b16 %v6026, %v6022
    %v6075 = vpack.c.b16 %v6031, %v6027
    %v6076 = vpack.c.b16 %v6032, %v6028
    %v6077 = vpack.c.b16 %v6033, %v6029
    %v6078 = vpack.c.b16 %v6034, %v6030
    %v6079 = vpack.c.b16 %v6039, %v6035
    %v6080 = vpack.c.b16 %v6040, %v6036
    %v6081 = vpack.c.b16 %v6041, %v6037
    %v6082 = vpack.c.b16 %v6042, %v6038
    %v6083 = vpack.c.b16 %v6047, %v6043
    %v6084 = vpack.c.b16 %v6048, %v6044
    %v6085 = vpack.c.b16 %v6049, %v6045
    %v6086 = vpack.c.b16 %v6050, %v6046
    %v6087 = vpack.c.b16 %v6055, %v6051
    %v6088 = vpack.c.b16 %v6056, %v6052
    %v6089 = vpack.c.b16 %v6057, %v6053
    %v6090 = vpack.c.b16 %v6058, %v6054
    %6123 = vmatprep.subr.bf16.mxu0 %v6088
    %6124 = vmatpush1.bf16.msra.mxu0 %v6087
    %6125 = vmatprep.subr.bf16.mxu0 %v6084
    %6126 = vmatpush1.bf16.msra.mxu0 %v6083
    %6127 = vmatprep.subr.bf16.mxu0 %v6080
    %6128 = vmatpush1.bf16.msra.mxu0 %v6079
    %6129 = vmatprep.subr.bf16.mxu0 %v6076
    %6130 = vmatpush1.bf16.msra.mxu0 %v6075
    %6131 = vmatprep.subr.bf16.mxu0 %v6072
    %6132 = vmatpush1.bf16.msra.mxu0 %v6071
    %6133 = vmatprep.subr.bf16.mxu0 %v6068
    %6134 = vmatpush1.bf16.msra.mxu0 %v6067
    %6135 = vmatprep.subr.bf16.mxu0 %v6064
    %6136 = vmatpush1.bf16.msra.mxu0 %v6063
    %6137 = vmatprep.subr.bf16.mxu0 %v6060
    %6138 = vmatpush1.bf16.msra.mxu0 %v6059
    %6139 = vmatprep.subr.bf16.mxu0 0
    %6140 = vmatpush2.bf16.msra.mxu0 0
    %6141 = vmatprep.subr.bf16.mxu0 0
    %6142 = vmatpush2.bf16.msra.mxu0 0
    %6143 = vmatprep.subr.bf16.mxu0 0
    %6144 = vmatpush2.bf16.msra.mxu0 0
    %6145 = vmatprep.subr.bf16.mxu0 0
    %6146 = vmatpush2.bf16.msra.mxu0 0
    %6147 = vmatprep.subr.bf16.mxu0 0
    %6148 = vmatpush2.bf16.msra.mxu0 0
    %6149 = vmatprep.subr.bf16.mxu0 0
    %6150 = vmatpush2.bf16.msra.mxu0 0
    %6151 = vmatprep.subr.bf16.mxu0 0
    %6152 = vmatpush2.bf16.msra.mxu0 0
    %6153 = vmatprep.subr.bf16.mxu0 0
    %6154 = vmatpush2.bf16.msra.mxu0 0
    %6155 = vmatprep.mubr.bf16.mxu0 0
    %6156 = vmatmul.mubr.bf16.gmra.mxu0 %v5583
    %v6157 = vpop.f32.mrf.mxu0
    %v6158 = vadd.f32 0.0, %v6157
    %v6159 = vpop.f32.mrf.mxu0
    %v6160 = vadd.f32 0.0, %v6159
    %v6161 = vpop.f32.mrf.mxu0
    %v6162 = vpop.f32.mrf.mxu0
    %6163 = vdwg.mxu0
    %6164 = vmatprep.subr.bf16.mxu0 %v6090
    %6165 = vmatpush1.bf16.msra.mxu0 %v6089
    %6166 = vmatprep.subr.bf16.mxu0 %v6086
    %6167 = vmatpush1.bf16.msra.mxu0 %v6085
    %6168 = vmatprep.subr.bf16.mxu0 %v6082
    %6169 = vmatpush1.bf16.msra.mxu0 %v6081
    %6170 = vmatprep.subr.bf16.mxu0 %v6078
    %6171 = vmatpush1.bf16.msra.mxu0 %v6077
    %6172 = vmatprep.subr.bf16.mxu0 %v6074
    %6173 = vmatpush1.bf16.msra.mxu0 %v6073
    %6174 = vmatprep.subr.bf16.mxu0 %v6070
    %6175 = vmatpush1.bf16.msra.mxu0 %v6069
    %6176 = vmatprep.subr.bf16.mxu0 %v6066
    %6177 = vmatpush1.bf16.msra.mxu0 %v6065
    %6178 = vmatprep.subr.bf16.mxu0 %v6062
    %6179 = vmatpush1.bf16.msra.mxu0 %v6061
    %6180 = vmatprep.subr.bf16.mxu0 0
    %6181 = vmatpush2.bf16.msra.mxu0 0
    %6182 = vmatprep.subr.bf16.mxu0 0
    %6183 = vmatpush2.bf16.msra.mxu0 0
    %6184 = vmatprep.subr.bf16.mxu0 0
    %6185 = vmatpush2.bf16.msra.mxu0 0
    %6186 = vmatprep.subr.bf16.mxu0 0
    %6187 = vmatpush2.bf16.msra.mxu0 0
    %6188 = vmatprep.subr.bf16.mxu0 0
    %6189 = vmatpush2.bf16.msra.mxu0 0
    %6190 = vmatprep.subr.bf16.mxu0 0
    %6191 = vmatpush2.bf16.msra.mxu0 0
    %6192 = vmatprep.subr.bf16.mxu0 0
    %6193 = vmatpush2.bf16.msra.mxu0 0
    %6194 = vmatprep.subr.bf16.mxu0 0
    %6195 = vmatpush2.bf16.msra.mxu0 0
    %6196 = vmatprep.mubr.bf16.mxu0 0
    %6197 = vmatmul.mubr.bf16.gmra.mxu0 %v5583
    %v6198 = vpop.f32.mrf.mxu0
    %v6199 = vadd.f32 0.0, %v6198
    %v6200 = vpop.f32.mrf.mxu0
    %v6201 = vadd.f32 0.0, %v6200
    %v6202 = vpop.f32.mrf.mxu0
    %v6203 = vpop.f32.mrf.mxu0
    %6204 = vdwg.mxu0
    %v6205 = vadd.f32 %v5927, %v6158
    %v6206 = vadd.f32 %v5928, %v6160
    %v6207 = vadd.f32 %v5929, %v6199
    %v6208 = vadd.f32 %v5930, %v6201
    %v6209 = vpack.c.bf16 %v6205, %v6205
    %v6210 = vpack.c.bf16 %v6206, %v6206
    %v6211 = vpack.c.bf16 %v6207, %v6207
    %v6212 = vpack.c.bf16 %v6208, %v6208
    %v6213 = vxor.u32 %v6209, 2147516416
    %v6215 = vmul.bf16 %v6213, 1069105081
    %v6216 = vpow.bf16.pop %v6215
    %v6217 = vadd.bf16 %v6216, 1065369472
    %v6218 = vrcp.bf16.pop %v6217
    %v6219 = vmul.bf16 1065369472, %v6218
    %v6220 = vxor.u32 %v6210, 2147516416
    %v6222 = vmul.bf16 %v6220, 1069105081
    %v6223 = vpow.bf16.pop %v6222
    %v6224 = vadd.bf16 %v6223, 1065369472
    %v6225 = vrcp.bf16.pop %v6224
    %v6226 = vmul.bf16 1065369472, %v6225
    %v6227 = vtanh.bf16.pop %v6211
    %v6228 = vxor.u32 %v6212, 2147516416
    %v6230 = vmul.bf16 %v6228, 1069105081
    %v6231 = vpow.bf16.pop %v6230
    %v6232 = vadd.bf16 %v6231, 1065369472
    %v6233 = vrcp.bf16.pop %v6232
    %v6234 = vmul.bf16 1065369472, %v6233
    %v6235 = vunpack.c.l.bf16 %v6226
    %v6236 = vmul.f32 %v6235, %v5591
    %v6237 = vmul.bf16 %v6219, %v6227
    %v6238 = vunpack.c.l.bf16 %v6237
    %v6239 = vadd.f32 %v6236, %v6238
    %v6240 = vpack.c.bf16 %v6239, %v6239
    %v6241 = vtanh.bf16.pop %v6240
    %v6242 = vmul.bf16 %v6234, %v6241
    %v6243 = vpack.c.bf16 %v5926, %v5926
    %6245 = vset.pattern.permute.xlu0 0
    %6246 = vperm.xlu0 %6245, %v6243
    %v6247 = vpop.permute.xlu0 %6246
    %v6249 = vmul.bf16 %v6247, %v6242
    %6250 = vst [vmem:[#allocation5] sm:$0xf] %v6249
    %v6251 = vld [vmem:[#allocation4] sm:$0xf]
    %v6252 = vld [vmem:[#allocation4 + $0x4] sm:$0xf]
    %v6253 = vld [vmem:[#allocation4 + $0x8] sm:$0xf]
    %v6254 = vld [vmem:[#allocation4 + $0xc] sm:$0xf]
    %v6255 = vld [vmem:[#allocation4 + $0x10] sm:$0xf]
    %v6256 = vld [vmem:[#allocation4 + $0x14] sm:$0xf]
    %v6257 = vld [vmem:[#allocation4 + $0x18] sm:$0xf]
    %v6258 = vld [vmem:[#allocation4 + $0x1c] sm:$0xf]
    %v6259 = vld [vmem:[#allocation5] sm:$0xf]
    %v6260 = vld [vmem:[#allocation5 + $0x4] sm:$0xf]
    %v6261 = vld [vmem:[#allocation5 + $0x8] sm:$0xf]
    %v6262 = vld [vmem:[#allocation5 + $0xc] sm:$0xf]
    %v6263 = vld [vmem:[#allocation5 + $0x10] sm:$0xf]
    %v6264 = vld [vmem:[#allocation5 + $0x14] sm:$0xf]
    %v6265 = vld [vmem:[#allocation5 + $0x18] sm:$0xf]
    %v6266 = vld [vmem:[#allocation5 + $0x1c] sm:$0xf]
    %v6267 = vld [vmem:[%s8] sm:$0xf]
    %v6268 = vld [vmem:[%s8 + $0x4] sm:$0xf]
    %v6269 = vld [vmem:[%s8 + $0x8] sm:$0xf]
    %v6270 = vld [vmem:[%s8 + $0xc] sm:$0xf]
    %v6271 = vld [vmem:[%s8 + $0x10] sm:$0xf]
    %v6272 = vld [vmem:[%s8 + $0x14] sm:$0xf]
    %v6273 = vld [vmem:[%s8 + $0x18] sm:$0xf]
    %v6274 = vld [vmem:[%s8 + $0x1c] sm:$0xf]
    %v6275 = vld [vmem:[%s8 + $0x20] sm:$0xf]
    %v6276 = vld [vmem:[%s8 + $0x24] sm:$0xf]
    %v6277 = vld [vmem:[%s8 + $0x28] sm:$0xf]
    %v6278 = vld [vmem:[%s8 + $0x2c] sm:$0xf]
    %v6279 = vld [vmem:[%s8 + $0x30] sm:$0xf]
    %v6280 = vld [vmem:[%s8 + $0x34] sm:$0xf]
    %v6281 = vld [vmem:[%s8 + $0x38] sm:$0xf]
    %v6282 = vld [vmem:[%s8 + $0x3c] sm:$0xf]
    %v6283 = vld [vmem:[#allocation15] sm:$0xf]
    %v6284 = vld [vmem:[#allocation15 + $0x4] sm:$0xf]
    %v6285 = vld [vmem:[#allocation15 + $0x8] sm:$0xf]
    %v6286 = vld [vmem:[#allocation15 + $0xc] sm:$0xf]
    %v6287 = vld [vmem:[#allocation15 + $0x10] sm:$0xf]
    %v6288 = vld [vmem:[#allocation15 + $0x14] sm:$0xf]
    %v6289 = vld [vmem:[#allocation15 + $0x18] sm:$0xf]
    %v6290 = vld [vmem:[#allocation15 + $0x1c] sm:$0xf]
    %v6291 = vld [vmem:[#allocation15 + $0x20] sm:$0xf]
    %v6292 = vld [vmem:[#allocation15 + $0x24] sm:$0xf]
    %v6293 = vld [vmem:[#allocation15 + $0x28] sm:$0xf]
    %v6294 = vld [vmem:[#allocation15 + $0x2c] sm:$0xf]
    %v6295 = vld [vmem:[#allocation15 + $0x30] sm:$0xf]
    %v6296 = vld [vmem:[#allocation15 + $0x34] sm:$0xf]
    %v6297 = vld [vmem:[#allocation15 + $0x38] sm:$0xf]
    %v6298 = vld [vmem:[#allocation15 + $0x3c] sm:$0xf]
    %v6307 = vunpack.c.l.b16 %v6259
    %v6308 = vunpack.c.l.b16 %v6260
    %v6309 = vunpack.c.l.b16 %v6261
    %v6310 = vunpack.c.l.b16 %v6262
    %v6311 = vunpack.c.l.b16 %v6263
    %v6312 = vunpack.c.l.b16 %v6264
    %v6313 = vunpack.c.l.b16 %v6265
    %v6314 = vunpack.c.l.b16 %v6266
    %v6315 = vpack.c.b16 %v6308, %v6307
    %v6316 = vpack.c.b16 %v6310, %v6309
    %v6317 = vpack.c.b16 %v6312, %v6311
    %v6318 = vpack.c.b16 %v6314, %v6313
    %v6339 = vunpack.c.l.b16 %v6283
    %v6340 = vunpack.c.l.b16 %v6284
    %v6341 = vunpack.c.l.b16 %v6285
    %v6342 = vunpack.c.l.b16 %v6286
    %v6343 = vunpack.c.l.b16 %v6287
    %v6344 = vunpack.c.l.b16 %v6288
    %v6345 = vunpack.c.l.b16 %v6289
    %v6346 = vunpack.c.l.b16 %v6290
    %v6347 = vunpack.c.l.b16 %v6291
    %v6348 = vunpack.c.l.b16 %v6292
    %v6349 = vunpack.c.l.b16 %v6293
    %v6350 = vunpack.c.l.b16 %v6294
    %v6351 = vunpack.c.l.b16 %v6295
    %v6352 = vunpack.c.l.b16 %v6296
    %v6353 = vunpack.c.l.b16 %v6297
    %v6354 = vunpack.c.l.b16 %v6298
    %v6355 = vpack.c.b16 %v6340, %v6339
    %v6356 = vpack.c.b16 %v6342, %v6341
    %v6357 = vpack.c.b16 %v6344, %v6343
    %v6358 = vpack.c.b16 %v6346, %v6345
    %v6359 = vpack.c.b16 %v6348, %v6347
    %v6360 = vpack.c.b16 %v6350, %v6349
    %v6361 = vpack.c.b16 %v6352, %v6351
    %v6362 = vpack.c.b16 %v6354, %v6353
    %6371 = vmatprep.subr.bf16.mxu0 0
    %6372 = vmatpush1.bf16.msra.mxu0 %v6362
    %6373 = vmatprep.subr.bf16.mxu0 0
    %6374 = vmatpush1.bf16.msra.mxu0 %v6361
    %6375 = vmatprep.subr.bf16.mxu0 0
    %6376 = vmatpush1.bf16.msra.mxu0 %v6360
    %6377 = vmatprep.subr.bf16.mxu0 0
    %6378 = vmatpush1.bf16.msra.mxu0 %v6359
    %6379 = vmatprep.subr.bf16.mxu0 0
    %6380 = vmatpush1.bf16.msra.mxu0 %v6358
    %6381 = vmatprep.subr.bf16.mxu0 0
    %6382 = vmatpush1.bf16.msra.mxu0 %v6357
    %6383 = vmatprep.subr.bf16.mxu0 0
    %6384 = vmatpush1.bf16.msra.mxu0 %v6356
    %6385 = vmatprep.subr.bf16.mxu0 0
    %6386 = vmatpush1.bf16.msra.mxu0 %v6355
    %6387 = vmatprep.subr.bf16.mxu0 0
    %6388 = vmatpush2.bf16.msra.mxu0 0
    %6389 = vmatprep.subr.bf16.mxu0 0
    %6390 = vmatpush2.bf16.msra.mxu0 0
    %6391 = vmatprep.subr.bf16.mxu0 0
    %6392 = vmatpush2.bf16.msra.mxu0 0
    %6393 = vmatprep.subr.bf16.mxu0 0
    %6394 = vmatpush2.bf16.msra.mxu0 0
    %6395 = vmatprep.subr.bf16.mxu0 0
    %6396 = vmatpush2.bf16.msra.mxu0 0
    %6397 = vmatprep.subr.bf16.mxu0 0
    %6398 = vmatpush2.bf16.msra.mxu0 0
    %6399 = vmatprep.subr.bf16.mxu0 0
    %6400 = vmatpush2.bf16.msra.mxu0 0
    %6401 = vmatprep.subr.bf16.mxu0 0
    %6402 = vmatpush2.bf16.msra.mxu0 0
    %6403 = vmatprep.mubr.bf16.mxu0 0
    %6404 = vmatmul.mubr.bf16.gmra.mxu0 %v6315
    %v6405 = vpop.f32.mrf.mxu0
    %v6406 = vadd.f32 0.0, %v6405
    %v6407 = vpop.f32.mrf.mxu0
    %v6408 = vpop.f32.mrf.mxu0
    %v6409 = vadd.f32 0.0, %v6408
    %v6410 = vpop.f32.mrf.mxu0
    %6411 = vmatprep.mubr.bf16.mxu0 0
    %6412 = vmatmul.mubr.bf16.gmra.mxu0 %v6316
    %v6413 = vpop.f32.mrf.mxu0
    %v6414 = vadd.f32 0.0, %v6413
    %v6415 = vpop.f32.mrf.mxu0
    %v6416 = vpop.f32.mrf.mxu0
    %v6417 = vadd.f32 0.0, %v6416
    %v6418 = vpop.f32.mrf.mxu0
    %6419 = vmatprep.mubr.bf16.mxu0 0
    %6420 = vmatmul.mubr.bf16.gmra.mxu0 %v6317
    %v6421 = vpop.f32.mrf.mxu0
    %v6422 = vadd.f32 0.0, %v6421
    %v6423 = vpop.f32.mrf.mxu0
    %v6424 = vpop.f32.mrf.mxu0
    %v6425 = vadd.f32 0.0, %v6424
    %v6426 = vpop.f32.mrf.mxu0
    %6427 = vmatprep.mubr.bf16.mxu0 0
    %6428 = vmatmul.mubr.bf16.gmra.mxu0 %v6318
    %v6429 = vpop.f32.mrf.mxu0
    %v6430 = vadd.f32 0.0, %v6429
    %v6431 = vpop.f32.mrf.mxu0
    %v6432 = vpop.f32.mrf.mxu0
    %v6433 = vadd.f32 0.0, %v6432
    %v6434 = vpop.f32.mrf.mxu0
    %6435 = vdwg.mxu0
    %v6444 = vunpack.c.l.b16 %v6251
    %v6445 = vunpack.c.l.b16 %v6252
    %v6446 = vunpack.c.l.b16 %v6253
    %v6447 = vunpack.c.l.b16 %v6254
    %v6448 = vunpack.c.l.b16 %v6255
    %v6449 = vunpack.c.l.b16 %v6256
    %v6450 = vunpack.c.l.b16 %v6257
    %v6451 = vunpack.c.l.b16 %v6258
    %v6452 = vpack.c.b16 %v6445, %v6444
    %v6453 = vpack.c.b16 %v6447, %v6446
    %v6454 = vpack.c.b16 %v6449, %v6448
    %v6455 = vpack.c.b16 %v6451, %v6450
    %v6476 = vunpack.c.l.b16 %v6267
    %v6477 = vunpack.c.l.b16 %v6268
    %v6478 = vunpack.c.l.b16 %v6269
    %v6479 = vunpack.c.l.b16 %v6270
    %v6480 = vunpack.c.l.b16 %v6271
    %v6481 = vunpack.c.l.b16 %v6272
    %v6482 = vunpack.c.l.b16 %v6273
    %v6483 = vunpack.c.l.b16 %v6274
    %v6484 = vunpack.c.l.b16 %v6275
    %v6485 = vunpack.c.l.b16 %v6276
    %v6486 = vunpack.c.l.b16 %v6277
    %v6487 = vunpack.c.l.b16 %v6278
    %v6488 = vunpack.c.l.b16 %v6279
    %v6489 = vunpack.c.l.b16 %v6280
    %v6490 = vunpack.c.l.b16 %v6281
    %v6491 = vunpack.c.l.b16 %v6282
    %v6492 = vpack.c.b16 %v6477, %v6476
    %v6493 = vpack.c.b16 %v6479, %v6478
    %v6494 = vpack.c.b16 %v6481, %v6480
    %v6495 = vpack.c.b16 %v6483, %v6482
    %v6496 = vpack.c.b16 %v6485, %v6484
    %v6497 = vpack.c.b16 %v6487, %v6486
    %v6498 = vpack.c.b16 %v6489, %v6488
    %v6499 = vpack.c.b16 %v6491, %v6490
    %6508 = vmatprep.subr.bf16.mxu0 0
    %6509 = vmatpush1.bf16.msra.mxu0 %v6499
    %6510 = vmatprep.subr.bf16.mxu0 0
    %6511 = vmatpush1.bf16.msra.mxu0 %v6498
    %6512 = vmatprep.subr.bf16.mxu0 0
    %6513 = vmatpush1.bf16.msra.mxu0 %v6497
    %6514 = vmatprep.subr.bf16.mxu0 0
    %6515 = vmatpush1.bf16.msra.mxu0 %v6496
    %6516 = vmatprep.subr.bf16.mxu0 0
    %6517 = vmatpush1.bf16.msra.mxu0 %v6495
    %6518 = vmatprep.subr.bf16.mxu0 0
    %6519 = vmatpush1.bf16.msra.mxu0 %v6494
    %6520 = vmatprep.subr.bf16.mxu0 0
    %6521 = vmatpush1.bf16.msra.mxu0 %v6493
    %6522 = vmatprep.subr.bf16.mxu0 0
    %6523 = vmatpush1.bf16.msra.mxu0 %v6492
    %6524 = vmatprep.subr.bf16.mxu0 0
    %6525 = vmatpush2.bf16.msra.mxu0 0
    %6526 = vmatprep.subr.bf16.mxu0 0
    %6527 = vmatpush2.bf16.msra.mxu0 0
    %6528 = vmatprep.subr.bf16.mxu0 0
    %6529 = vmatpush2.bf16.msra.mxu0 0
    %6530 = vmatprep.subr.bf16.mxu0 0
    %6531 = vmatpush2.bf16.msra.mxu0 0
    %6532 = vmatprep.subr.bf16.mxu0 0
    %6533 = vmatpush2.bf16.msra.mxu0 0
    %6534 = vmatprep.subr.bf16.mxu0 0
    %6535 = vmatpush2.bf16.msra.mxu0 0
    %6536 = vmatprep.subr.bf16.mxu0 0
    %6537 = vmatpush2.bf16.msra.mxu0 0
    %6538 = vmatprep.subr.bf16.mxu0 0
    %6539 = vmatpush2.bf16.msra.mxu0 0
    %6540 = vmatprep.mubr.bf16.mxu0 0
    %6541 = vmatmul.mubr.bf16.gmra.mxu0 %v6452
    %v6542 = vpop.f32.mrf.mxu0
    %v6543 = vadd.f32 %v6406, %v6542
    %v6544 = vpop.f32.mrf.mxu0
    %v6545 = vpop.f32.mrf.mxu0
    %v6546 = vadd.f32 %v6409, %v6545
    %v6547 = vpop.f32.mrf.mxu0
    %6548 = vmatprep.mubr.bf16.mxu0 0
    %6549 = vmatmul.mubr.bf16.gmra.mxu0 %v6453
    %v6550 = vpop.f32.mrf.mxu0
    %v6551 = vadd.f32 %v6414, %v6550
    %v6552 = vpop.f32.mrf.mxu0
    %v6553 = vpop.f32.mrf.mxu0
    %v6554 = vadd.f32 %v6417, %v6553
    %v6555 = vpop.f32.mrf.mxu0
    %6556 = vmatprep.mubr.bf16.mxu0 0
    %6557 = vmatmul.mubr.bf16.gmra.mxu0 %v6454
    %v6558 = vpop.f32.mrf.mxu0
    %v6559 = vadd.f32 %v6422, %v6558
    %v6560 = vpop.f32.mrf.mxu0
    %v6561 = vpop.f32.mrf.mxu0
    %v6562 = vadd.f32 %v6425, %v6561
    %v6563 = vpop.f32.mrf.mxu0
    %6564 = vmatprep.mubr.bf16.mxu0 0
    %6565 = vmatmul.mubr.bf16.gmra.mxu0 %v6455
    %v6566 = vpop.f32.mrf.mxu0
    %v6567 = vadd.f32 %v6430, %v6566
    %v6568 = vpop.f32.mrf.mxu0
    %v6569 = vpop.f32.mrf.mxu0
    %v6570 = vadd.f32 %v6433, %v6569
    %v6571 = vpop.f32.mrf.mxu0
    %6572 = vdwg.mxu0
    %v6573 = vld [vmem:[%s10] sm:$0x1]
    %v6575 = vlaneseq
    %v6576 = vshrl.u32 %v6575, 7
    %v6577 = vsub.s32 0, %v6576
    %v6578 = vrot.slane %v6573, %v6577
    %v6580 = vadd.f32 %v6543, %v6578
    %v6581 = vadd.f32 %v6546, %v6578
    %v6582 = vadd.f32 %v6551, %v6578
    %v6583 = vadd.f32 %v6554, %v6578
    %v6584 = vadd.f32 %v6559, %v6578
    %v6585 = vadd.f32 %v6562, %v6578
    %v6586 = vadd.f32 %v6567, %v6578
    %v6587 = vadd.f32 %v6570, %v6578
    %v6588 = vpack.c.bf16 %v6580, %v6580
    %v6589 = vpack.c.bf16 %v6581, %v6581
    %v6590 = vpack.c.bf16 %v6582, %v6582
    %v6591 = vpack.c.bf16 %v6583, %v6583
    %v6592 = vpack.c.bf16 %v6584, %v6584
    %v6593 = vpack.c.bf16 %v6585, %v6585
    %v6594 = vpack.c.bf16 %v6586, %v6586
    %v6595 = vpack.c.bf16 %v6587, %v6587
    %6596 = vst [vmem:[#allocation17] sm:$0xf] %v6588
    %6597 = vst [vmem:[#allocation17 + $0x4] sm:$0xf] %v6589
    %6598 = vst [vmem:[#allocation17 + $0x8] sm:$0xf] %v6590
    %6599 = vst [vmem:[#allocation17 + $0xc] sm:$0xf] %v6591
    %6600 = vst [vmem:[#allocation17 + $0x10] sm:$0xf] %v6592
    %6601 = vst [vmem:[#allocation17 + $0x14] sm:$0xf] %v6593
    %6602 = vst [vmem:[#allocation17 + $0x18] sm:$0xf] %v6594
    %6603 = vst [vmem:[#allocation17 + $0x1c] sm:$0xf] %v6595
    // Predicated region
    $region70: #{tpu_custom_call.1} parent=1 // pred_check
      _
    $region71: #{tpu_custom_call.1} parent=1 // pred_check_branch
      %6605 = sbr.rel (0) target = $region73
    $region72: #{tpu_custom_call.1} parent=1 // pred_region
      %s6607 = ssub.s32 512, 512
      %6608 = vsyncadd [#allocation8], %s6607
      %s6609 = sshll.u32 [#allocation17], 4
      %s6610 = int_to_ptr.vmem [resolvable:$true] %s6609
      %6615 = dma.vmem_to_hbm [thread:$0]  %s6610, 512, %s11, [#allocation8], 64, 64, 4
    $region73: #{tpu_custom_call.1} parent=1 // pred_fallthru
      _
    // Predicated region
    $region74: #{tpu_custom_call.1} parent=1 // pred_check
      _
    $region75: #{tpu_custom_call.1} parent=1 // pred_check_branch
      %6617 = sbr.rel (0) target = $region77
    $region76: #{tpu_custom_call.1} parent=1 // pred_region
      %6618 = dma.done [#allocation8], 512
    $region77: #{tpu_custom_call.1} parent=1 // pred_fallthru
      _
    %6619 = vsyncpa [#allocation7], 1
    %6620 = vsyncpa [#allocation10], 1
    %6621 = vsyncpa [#allocation13], 1
    %6622 = vsyncpa [#allocation16], 1
    %6623 = vsyncpa [#allocation8], 1

</llo_original>
